<compile_context>
chip_gen: v5e
topology: v5e:2x2
jax: 0.10.0
libtpu: 0.0.40
codegen_flags: <defaults>
</compile_context>

<pallas_src>
import functools

import numpy as np

import jax
import jax.numpy as jnp
from jax import lax
from jax.experimental import pallas as pl
from jax.experimental.pallas import tpu as pltpu

C_MID = 32      # channel width used by every layer of the model
CIN_PAD = 8     # conv1 input channels zero-padded 3 -> 8 so K = W*8 = 128 lanes


# ----------------------------------------------------------------------------
# Fused forward kernel: one batch tile (B images) per grid step, all in VMEM.
# ----------------------------------------------------------------------------
def _basic_cnn1_kernel(x_ref, band1_ref, bandf_ref, band2_ref, fc1p_ref,
                       fc2_ref, b2_ref, o_ref,
                       pad1, padf, pad2, acc1, acc2,
                       *, B, H, W, n_blocks):
    f32 = jnp.float32
    dt = band1_ref.dtype                      # matmul operand dtype (f32 / bf16)
    C = C_MID
    H2, W2 = H // 2, W // 2
    HB, H2B = H * B, H2 * B
    WC, W2C = W * C, W2 * C

    # ---- zero only the halo ROWS; interiors are fully overwritten below -----
    pad1[0:2 * B, :] = jnp.zeros((2 * B, W * CIN_PAD), dt)
    pad1[(2 + H) * B:(4 + H) * B, :] = jnp.zeros((2 * B, W * CIN_PAD), dt)
    if n_blocks > 0:
        padf[0:B, :] = jnp.zeros((B, W2C), dt)
        padf[(1 + H2) * B:(2 + H2) * B, :] = jnp.zeros((B, W2C), dt)
    pad2[0:2 * B, :] = jnp.zeros((2 * B, W2C), dt)
    pad2[(2 + H2) * B:(4 + H2) * B, :] = jnp.zeros((2 * B, W2C), dt)

    # ---- conv1 (5x5, pad 2, BN folded): 5 matmuls on contiguous row slabs ---
    pad1[2 * B:(2 + H) * B, :] = x_ref[...]
    acc1[...] = jnp.dot(pad1[0:HB, :], band1_ref[0], preferred_element_type=f32)
    for kh in range(1, 5):
        acc1[...] += jnp.dot(pad1[kh * B:kh * B + HB, :], band1_ref[kh],
                             preferred_element_type=f32)

    # ---- ReLU + Dropout(id) + MaxPool2d(2,2)  (ReLU commutes with max) ------
    # band1 orders conv1's output lanes as (parity, w2, c), so the width pool
    # is a single max of two contiguous 128-lane halves.
    a1 = acc1[...]
    yw = jnp.maximum(a1[:, 0:W2C], a1[:, W2C:WC])                   # (HB, W2C)
    nxt, off = (padf, B) if n_blocks > 0 else (pad2, 2 * B)
    for h2 in range(H2):                                            # height pool
        m = jnp.maximum(yw[2 * h2 * B:(2 * h2 + 1) * B, :],
                        yw[(2 * h2 + 1) * B:(2 * h2 + 2) * B, :])
        nxt[off + h2 * B:off + (h2 + 1) * B, :] = (
            jnp.maximum(m, 0.0).astype(dt))

    # ---- feature blocks: 3x3 conv (pad 1, BN folded) + ReLU -----------------
    for blk in range(n_blocks):
        acc2[...] = jnp.dot(padf[0:H2B, :], bandf_ref[blk, 0],
                            preferred_element_type=f32)
        for kh in range(1, 3):
            acc2[...] += jnp.dot(padf[kh * B:kh * B + H2B, :],
                                 bandf_ref[blk, kh],
                                 preferred_element_type=f32)
        nxt, off = (padf, B) if blk + 1 < n_blocks else (pad2, 2 * B)
        nxt[off:off + H2B, :] = jnp.maximum(acc2[...], 0.0).astype(dt)

    # ---- conv2 (5x5, pad 2, BN folded) + ReLU -------------------------------
    acc2[...] = jnp.dot(pad2[0:H2B, :], band2_ref[0], preferred_element_type=f32)
    for kh in range(1, 5):
        acc2[...] += jnp.dot(pad2[kh * B:kh * B + H2B, :], band2_ref[kh],
                             preferred_element_type=f32)
    y = jnp.maximum(acc2[...], 0.0)                                 # (H2B, W2C)

    # ---- AdaptiveAvgPool2d((1,1)) folded into fc1 (fc1p = tile(fc1)/(H2*W2)) -
    t = jnp.dot(y.astype(dt), fc1p_ref[...], preferred_element_type=f32)
    s = t[0:B, :]
    for h2 in range(1, H2):
        s = s + t[h2 * B:(h2 + 1) * B, :]
    hcls = jnp.maximum(s, 0.0)                                      # (B, 32)

    # ---- Linear(32, n_classes) + bias, lane-padded to 128 outputs -----------
    o_ref[...] = (jnp.dot(hcls.astype(dt), fc2_ref[...],
                          preferred_element_type=f32)
                  + b2_ref[...]).astype(o_ref.dtype)


# ----------------------------------------------------------------------------
# Wrapper: one pallas_call for the whole network, grid over batch tiles.
# ----------------------------------------------------------------------------
@functools.partial(jax.jit, static_argnums=(2, 3, 4))
def basic_cnn1_forward(x_nchw, packed, n_blocks, n_classes, b_tile):
    N, cin, H, W = x_nchw.shape
    assert H % 2 == 0 and W % 2 == 0, "MaxPool2d(2,2) path assumes even H, W"
    assert cin <= CIN_PAD
    C = C_MID
    H2, W2 = H // 2, W // 2
    dt = packed["band1"].dtype
    npad = packed["fc2"].shape[1]            # n_classes padded up to 128 lanes

    T = -(-N // b_tile)                      # number of batch tiles (grid len)
    Npad = T * b_tile

    # NCHW -> lane-dense slab: rows = (tile, h, image-in-tile), lanes = (w, ci),
    # with the 3 input channels zero-padded to 8 so conv1's K is exactly 128.
    x = jnp.transpose(x_nchw, (0, 2, 3, 1)).astype(dt)              # (N,H,W,cin)
    x = jnp.pad(x, ((0, Npad - N), (0, 0), (0, 0), (0, CIN_PAD - cin)))
    x = x.reshape(T, b_tile, H, W * CIN_PAD)
    x = jnp.transpose(x, (0, 2, 1, 3)).reshape(T * H * b_tile, W * CIN_PAD)

    kernel = functools.partial(_basic_cnn1_kernel, B=b_tile, H=H, W=W,
                               n_blocks=n_blocks)

    grid_spec = pltpu.PrefetchScalarGridSpec(
        num_scalar_prefetch=0,
        grid=(T,),
        in_specs=[
            pl.BlockSpec((H * b_tile, W * CIN_PAD), lambda t: (t, 0)),
            # weights: constant index maps -> fetched once, resident across steps
            pl.BlockSpec(packed["band1"].shape, lambda t: (0, 0, 0)),
            pl.BlockSpec(packed["bandf"].shape, lambda t: (0, 0, 0, 0)),
            pl.BlockSpec(packed["band2"].shape, lambda t: (0, 0, 0)),
            pl.BlockSpec(packed["fc1p"].shape, lambda t: (0, 0)),
            pl.BlockSpec(packed["fc2"].shape, lambda t: (0, 0)),
            pl.BlockSpec(packed["b2"].shape, lambda t: (0, 0)),
        ],
        out_specs=pl.BlockSpec((b_tile, npad), lambda t: (t, 0)),
        scratch_shapes=[
            pltpu.VMEM(((H + 4) * b_tile, W * CIN_PAD), dt),   # conv1 padded in
            pltpu.VMEM(((H2 + 2) * b_tile, W2 * C), dt),       # feature padded in
            pltpu.VMEM(((H2 + 4) * b_tile, W2 * C), dt),       # conv2 padded in
            pltpu.VMEM((H * b_tile, W * C), jnp.float32),      # conv1 f32 acc
            pltpu.VMEM((H2 * b_tile, W2 * C), jnp.float32),    # feat/conv2 f32 acc
        ],
    )

    out = pl.pallas_call(
        kernel,
        grid_spec=grid_spec,
        out_shape=jax.ShapeDtypeStruct((Npad, npad), jnp.float32),
        compiler_params=pltpu.CompilerParams(
            dimension_semantics=("parallel",)),   # batch tiles across v7x's 2 TCs
    )(x, packed["band1"], packed["bandf"], packed["band2"],
      packed["fc1p"], packed["fc2"], packed["b2"])
    return out[:N, :n_classes]


# ----------------------------------------------------------------------------
# Parameters: raw (PyTorch-equivalent) weights + prep-time packing into the
# width-banded / BN-folded / pool-folded forms used by the kernel.
# ----------------------------------------------------------------------------
def init_raw_params(key, n_classes, n_blocks):
    ks = jax.random.split(key, n_blocks + 4)

    def kaiming(k, shape, fan_in):
        return jax.random.normal(k, shape, jnp.float32) * np.sqrt(2.0 / fan_in)

    raw = {}
    raw["w1"] = kaiming(ks[0], (5, 5, 3, C_MID), 5 * 5 * 3)          # HWIO
    raw["wf"] = [kaiming(ks[1 + i], (3, 3, C_MID, C_MID), 3 * 3 * C_MID)
                 for i in range(n_blocks)]
    raw["w2"] = kaiming(ks[1 + n_blocks], (5, 5, C_MID, C_MID), 5 * 5 * C_MID)
    raw["fc1"] = kaiming(ks[2 + n_blocks], (C_MID, C_MID), C_MID)    # (in, out)
    raw["fc2"] = kaiming(ks[3 + n_blocks], (C_MID, n_classes), C_MID)
    raw["fc2_b"] = jnp.zeros((n_classes,), jnp.float32)
    return raw


def pack_params(raw, H, W, param_dtype=jnp.float32, eps=1e-5):
    """Fold BN, build width-banded conv weights, fold avg-pool into fc1."""
    C = C_MID
    H2, W2 = H // 2, W // 2
    n_blocks = len(raw["wf"])
    # BatchNorm2d eval with fresh-init stats (mean=0, var=1, gamma=1, beta=0).
    # TODO(synk): trained BN needs per-channel gamma/sqrt(var+eps) scale and an
    # additive shift (e.g. via an extra constant-one input channel).
    bn = 1.0 / np.sqrt(1.0 + eps)

    def band(w_hwio, Wd, pad, out_perm=None):
        # banded weight: [kh, w_in*Cin + ci, w_out*Cout + co] = w[kh, kw, ci, co]
        # for w_in = w_out + kw - pad (zero elsewhere == "same" width padding).
        Kh, Kw, Cin, Cout = w_hwio.shape
        bm = np.zeros((Kh, Wd * Cin, Wd * Cout), np.float32)
        for kh in range(Kh):
            for wo in range(Wd):
                oc = out_perm[wo] if out_perm is not None else wo
                for kw in range(Kw):
                    wi = wo + kw - pad
                    if 0 <= wi < Wd:
                        bm[kh, wi * Cin:(wi + 1) * Cin,
                           oc * Cout:(oc + 1) * Cout] = w_hwio[kh, kw]
        return bm

    # conv1: channels padded 3->8 (K = 128) and output lanes permuted to
    # (parity, w2, c) so the max-pool width step is a single contiguous max.
    w1 = np.zeros((5, 5, CIN_PAD, C), np.float32)
    w1[:, :, :3, :] = np.asarray(raw["w1"], np.float32) * bn
    perm1 = [(wo % 2) * W2 + wo // 2 for wo in range(W)]
    band1 = band(w1, W, 2, perm1)

    if n_blocks > 0:
        bandf = np.stack([band(np.asarray(w, np.float32) * bn, W2, 1)
                          for w in raw["wf"]])
    else:
        bandf = np.zeros((1, 3, W2 * C, W2 * C), np.float32)        # unused dummy
    band2 = band(np.asarray(raw["w2"], np.float32) * bn, W2, 2)

    # AdaptiveAvgPool2d((1,1)) folded into fc1 (both linear, ReLU comes after).
    fc1p = np.tile(np.asarray(raw["fc1"], np.float32), (W2, 1)) / float(H2 * W2)

    n_classes = raw["fc2"].shape[1]
    npad = ((n_classes + 127) // 128) * 128                         # lane-dense out
    fc2 = np.zeros((C, npad), np.float32)
    fc2[:, :n_classes] = np.asarray(raw["fc2"], np.float32)
    b2 = np.zeros((1, npad), np.float32)
    b2[0, :n_classes] = np.asarray(raw["fc2_b"], np.float32)

    dt = param_dtype
    return {
        "band1": jnp.asarray(band1, dt), "bandf": jnp.asarray(bandf, dt),
        "band2": jnp.asarray(band2, dt), "fc1p": jnp.asarray(fc1p, dt),
        "fc2": jnp.asarray(fc2, dt), "b2": jnp.asarray(b2, jnp.float32),
    }


# ----------------------------------------------------------------------------
# Pure-JAX reference (mirrors the PyTorch module in eval mode).
# ----------------------------------------------------------------------------
def reference_forward(x_nchw, raw, n_blocks, eps=1e-5):
    dn = ("NCHW", "HWIO", "NCHW")
    bn = 1.0 / np.sqrt(1.0 + eps)

    def conv_bn_relu(y, w):
        y = lax.conv_general_dilated(y, w * bn, window_strides=(1, 1),
                                     padding="SAME", dimension_numbers=dn)
        return jnp.maximum(y, 0.0)

    y = conv_bn_relu(x_nchw, raw["w1"])
    y = lax.reduce_window(y, -jnp.inf, lax.max, (1, 1, 2, 2), (1, 1, 2, 2),
                          "VALID")
    for i in range(n_blocks):
        y = conv_bn_relu(y, raw["wf"][i])
    y = conv_bn_relu(y, raw["w2"])
    y = jnp.mean(y, axis=(2, 3))                                    # (N, 32)
    h = jnp.maximum(y @ raw["fc1"], 0.0)
    return h @ raw["fc2"] + raw["fc2_b"][None, :]


if __name__ == "__main__":
    n_classes, n_blocks = 10, 2           # dropout is the identity in eval mode
    N, Cin, H, W = 2, 3, 16, 16
    B_TILE = 8                            # batch tile (N is zero-padded up to it)

    key = jax.random.PRNGKey(0)
    k_x, k_p = jax.random.split(key)
    x = jax.random.normal(k_x, (N, Cin, H, W), jnp.float32)          # NCHW input
    raw = init_raw_params(k_p, n_classes, n_blocks)

    # f32 path (matches the pure-JAX / PyTorch eval reference numerically).
    packed = pack_params(raw, H, W, param_dtype=jnp.float32)
    out = basic_cnn1_forward(x, packed, n_blocks, n_classes, B_TILE)
    jax.block_until_ready(out)
    assert out.shape == (N, n_classes) and out.dtype == jnp.float32
    ref = reference_forward(x, raw, n_blocks)
    err = float(jnp.max(jnp.abs(out - ref)))
    assert err < 1e-2, f"kernel does not match reference, max abs err = {err}"

    # bf16 weights/activations (v6e/v7x MXU fast path), f32 accumulation.
    packed_bf16 = pack_params(raw, H, W, param_dtype=jnp.bfloat16)
    out_bf16 = basic_cnn1_forward(x, packed_bf16, n_blocks, n_classes, B_TILE)
    jax.block_until_ready(out_bf16)
    assert out_bf16.shape == (N, n_classes)
    assert bool(jnp.all(jnp.isfinite(out_bf16)))

    print("KERNEL_OK")
</pallas_src>

<mosaic_0001>
module attributes {stable_mosaic.version = 11 : i64} {
  func.func @_basic_cnn1_kernel(%arg0: i32, %arg1: memref<128x128xf32, #tpu.memory_space<vmem>>, %arg2: memref<5x128x512xf32, #tpu.memory_space<vmem>>, %arg3: memref<2x3x256x256xf32, #tpu.memory_space<vmem>>, %arg4: memref<5x256x256xf32, #tpu.memory_space<vmem>>, %arg5: memref<256x32xf32, #tpu.memory_space<vmem>>, %arg6: memref<32x128xf32, #tpu.memory_space<vmem>>, %arg7: memref<1x128xf32, #tpu.memory_space<vmem>>, %arg8: memref<8x128xf32, #tpu.memory_space<vmem>>, %arg9: memref<160x128xf32, #tpu.memory_space<vmem>>, %arg10: memref<80x256xf32, #tpu.memory_space<vmem>>, %arg11: memref<96x256xf32, #tpu.memory_space<vmem>>, %arg12: memref<128x512xf32, #tpu.memory_space<vmem>>, %arg13: memref<64x256xf32, #tpu.memory_space<vmem>>) attributes {dimension_semantics = [#tpu.dimension_semantics<parallel>], iteration_bounds = array<i64: 1>, scalar_prefetch = 0 : i64, scratch_operands = 5 : i64, tpu.core_type = #tpu.core_type<tc>, window_params = [{transform_indices = @transform_0, window_bounds = array<i64: 128, 128>}, {pipeline_mode = #tpu.pipeline_mode<synchronous>, transform_indices = @transform_1, window_bounds = array<i64: 5, 128, 512>}, {pipeline_mode = #tpu.pipeline_mode<synchronous>, transform_indices = @transform_2, window_bounds = array<i64: 2, 3, 256, 256>}, {pipeline_mode = #tpu.pipeline_mode<synchronous>, transform_indices = @transform_3, window_bounds = array<i64: 5, 256, 256>}, {pipeline_mode = #tpu.pipeline_mode<synchronous>, transform_indices = @transform_4, window_bounds = array<i64: 256, 32>}, {pipeline_mode = #tpu.pipeline_mode<synchronous>, transform_indices = @transform_5, window_bounds = array<i64: 32, 128>}, {pipeline_mode = #tpu.pipeline_mode<synchronous>, transform_indices = @transform_6, window_bounds = array<i64: 1, 128>}, {transform_indices = @transform_7, window_bounds = array<i64: 8, 128>}]} {
    %cst = arith.constant 0.000000e+00 : f32
    %0 = vector.broadcast %cst : f32 to vector<16x128xf32>
    %c0 = arith.constant 0 : index
    %c0_0 = arith.constant 0 : index
    %1 = vector.load %arg9[%c0, %c0_0] : memref<160x128xf32, #tpu.memory_space<vmem>>, vector<16x128xf32>
    tpu.vector_store %arg9[%c0, %c0_0], %0 {strides = array<i32>} : memref<160x128xf32, #tpu.memory_space<vmem>>, vector<16x128xf32>,
    %cst_1 = arith.constant 0.000000e+00 : f32
    %2 = vector.broadcast %cst_1 : f32 to vector<16x128xf32>
    %c144 = arith.constant 144 : index
    %c0_2 = arith.constant 0 : index
    %3 = vector.load %arg9[%c144, %c0_2] : memref<160x128xf32, #tpu.memory_space<vmem>>, vector<16x128xf32>
    tpu.vector_store %arg9[%c144, %c0_2], %2 {strides = array<i32>} : memref<160x128xf32, #tpu.memory_space<vmem>>, vector<16x128xf32>,
    %cst_3 = arith.constant 0.000000e+00 : f32
    %4 = vector.broadcast %cst_3 : f32 to vector<8x256xf32>
    %c0_4 = arith.constant 0 : index
    %c0_5 = arith.constant 0 : index
    %5 = vector.load %arg10[%c0_4, %c0_5] : memref<80x256xf32, #tpu.memory_space<vmem>>, vector<8x256xf32>
    tpu.vector_store %arg10[%c0_4, %c0_5], %4 {strides = array<i32>} : memref<80x256xf32, #tpu.memory_space<vmem>>, vector<8x256xf32>,
    %cst_6 = arith.constant 0.000000e+00 : f32
    %6 = vector.broadcast %cst_6 : f32 to vector<8x256xf32>
    %c72 = arith.constant 72 : index
    %c0_7 = arith.constant 0 : index
    %7 = vector.load %arg10[%c72, %c0_7] : memref<80x256xf32, #tpu.memory_space<vmem>>, vector<8x256xf32>
    tpu.vector_store %arg10[%c72, %c0_7], %6 {strides = array<i32>} : memref<80x256xf32, #tpu.memory_space<vmem>>, vector<8x256xf32>,
    %cst_8 = arith.constant 0.000000e+00 : f32
    %8 = vector.broadcast %cst_8 : f32 to vector<16x256xf32>
    %c0_9 = arith.constant 0 : index
    %c0_10 = arith.constant 0 : index
    %9 = vector.load %arg11[%c0_9, %c0_10] : memref<96x256xf32, #tpu.memory_space<vmem>>, vector<16x256xf32>
    tpu.vector_store %arg11[%c0_9, %c0_10], %8 {strides = array<i32>} : memref<96x256xf32, #tpu.memory_space<vmem>>, vector<16x256xf32>,
    %cst_11 = arith.constant 0.000000e+00 : f32
    %10 = vector.broadcast %cst_11 : f32 to vector<16x256xf32>
    %c80 = arith.constant 80 : index
    %c0_12 = arith.constant 0 : index
    %11 = vector.load %arg11[%c80, %c0_12] : memref<96x256xf32, #tpu.memory_space<vmem>>, vector<16x256xf32>
    tpu.vector_store %arg11[%c80, %c0_12], %10 {strides = array<i32>} : memref<96x256xf32, #tpu.memory_space<vmem>>, vector<16x256xf32>,
    %c0_13 = arith.constant 0 : index
    %c0_14 = arith.constant 0 : index
    %12 = vector.load %arg1[%c0_13, %c0_14] : memref<128x128xf32, #tpu.memory_space<vmem>>, vector<128x128xf32>
    %c16 = arith.constant 16 : index
    %c0_15 = arith.constant 0 : index
    %13 = vector.load %arg9[%c16, %c0_15] : memref<160x128xf32, #tpu.memory_space<vmem>>, vector<128x128xf32>
    tpu.vector_store %arg9[%c16, %c0_15], %12 {strides = array<i32>} : memref<160x128xf32, #tpu.memory_space<vmem>>, vector<128x128xf32>,
    %c0_16 = arith.constant 0 : index
    %c0_17 = arith.constant 0 : index
    %14 = vector.load %arg9[%c0_16, %c0_17] : memref<160x128xf32, #tpu.memory_space<vmem>>, vector<128x128xf32>
    %c0_18 = arith.constant 0 : index
    %c0_19 = arith.constant 0 : index
    %c0_20 = arith.constant 0 : index
    %15 = vector.load %arg2[%c0_18, %c0_19, %c0_20] : memref<5x128x512xf32, #tpu.memory_space<vmem>>, vector<1x128x512xf32>
    %16 = vector.shape_cast %15 : vector<1x128x512xf32> to vector<128x512xf32>
    %cst_21 = arith.constant dense<0.000000e+00> : vector<128x512xf32>
    %17 = tpu.matmul %14, %16, %cst_21 {dimension_numbers = #tpu.dot_dimension_numbers<[1], [0], [0], [1], [0, 0, 1, 1], [], []>} : vector<128x128xf32>, vector<128x512xf32>, vector<128x512xf32> -> vector<128x512xf32>
    %c0_22 = arith.constant 0 : index
    %c0_23 = arith.constant 0 : index
    %18 = vector.load %arg12[%c0_22, %c0_23] : memref<128x512xf32, #tpu.memory_space<vmem>>, vector<128x512xf32>
    tpu.vector_store %arg12[%c0_22, %c0_23], %17 {strides = array<i32>} : memref<128x512xf32, #tpu.memory_space<vmem>>, vector<128x512xf32>,
    %c0_24 = arith.constant 0 : index
    %c0_25 = arith.constant 0 : index
    %19 = vector.load %arg12[%c0_24, %c0_25] : memref<128x512xf32, #tpu.memory_space<vmem>>, vector<128x512xf32>
    %c8 = arith.constant 8 : index
    %c0_26 = arith.constant 0 : index
    %20 = vector.load %arg9[%c8, %c0_26] : memref<160x128xf32, #tpu.memory_space<vmem>>, vector<128x128xf32>
    %c1 = arith.constant 1 : index
    %c0_27 = arith.constant 0 : index
    %c0_28 = arith.constant 0 : index
    %21 = vector.load %arg2[%c1, %c0_27, %c0_28] : memref<5x128x512xf32, #tpu.memory_space<vmem>>, vector<1x128x512xf32>
    %22 = vector.shape_cast %21 : vector<1x128x512xf32> to vector<128x512xf32>
    %cst_29 = arith.constant dense<0.000000e+00> : vector<128x512xf32>
    %23 = tpu.matmul %20, %22, %cst_29 {dimension_numbers = #tpu.dot_dimension_numbers<[1], [0], [0], [1], [0, 0, 1, 1], [], []>} : vector<128x128xf32>, vector<128x512xf32>, vector<128x512xf32> -> vector<128x512xf32>
    %24 = arith.addf %19, %23 : vector<128x512xf32>
    %c0_30 = arith.constant 0 : index
    %c0_31 = arith.constant 0 : index
    %25 = vector.load %arg12[%c0_30, %c0_31] : memref<128x512xf32, #tpu.memory_space<vmem>>, vector<128x512xf32>
    tpu.vector_store %arg12[%c0_30, %c0_31], %24 {strides = array<i32>} : memref<128x512xf32, #tpu.memory_space<vmem>>, vector<128x512xf32>,
    %c0_32 = arith.constant 0 : index
    %c0_33 = arith.constant 0 : index
    %26 = vector.load %arg12[%c0_32, %c0_33] : memref<128x512xf32, #tpu.memory_space<vmem>>, vector<128x512xf32>
    %c16_34 = arith.constant 16 : index
    %c0_35 = arith.constant 0 : index
    %27 = vector.load %arg9[%c16_34, %c0_35] : memref<160x128xf32, #tpu.memory_space<vmem>>, vector<128x128xf32>
    %c2 = arith.constant 2 : index
    %c0_36 = arith.constant 0 : index
    %c0_37 = arith.constant 0 : index
    %28 = vector.load %arg2[%c2, %c0_36, %c0_37] : memref<5x128x512xf32, #tpu.memory_space<vmem>>, vector<1x128x512xf32>
    %29 = vector.shape_cast %28 : vector<1x128x512xf32> to vector<128x512xf32>
    %cst_38 = arith.constant dense<0.000000e+00> : vector<128x512xf32>
    %30 = tpu.matmul %27, %29, %cst_38 {dimension_numbers = #tpu.dot_dimension_numbers<[1], [0], [0], [1], [0, 0, 1, 1], [], []>} : vector<128x128xf32>, vector<128x512xf32>, vector<128x512xf32> -> vector<128x512xf32>
    %31 = arith.addf %26, %30 : vector<128x512xf32>
    %c0_39 = arith.constant 0 : index
    %c0_40 = arith.constant 0 : index
    %32 = vector.load %arg12[%c0_39, %c0_40] : memref<128x512xf32, #tpu.memory_space<vmem>>, vector<128x512xf32>
    tpu.vector_store %arg12[%c0_39, %c0_40], %31 {strides = array<i32>} : memref<128x512xf32, #tpu.memory_space<vmem>>, vector<128x512xf32>,
    %c0_41 = arith.constant 0 : index
    %c0_42 = arith.constant 0 : index
    %33 = vector.load %arg12[%c0_41, %c0_42] : memref<128x512xf32, #tpu.memory_space<vmem>>, vector<128x512xf32>
    %c24 = arith.constant 24 : index
    %c0_43 = arith.constant 0 : index
    %34 = vector.load %arg9[%c24, %c0_43] : memref<160x128xf32, #tpu.memory_space<vmem>>, vector<128x128xf32>
    %c3 = arith.constant 3 : index
    %c0_44 = arith.constant 0 : index
    %c0_45 = arith.constant 0 : index
    %35 = vector.load %arg2[%c3, %c0_44, %c0_45] : memref<5x128x512xf32, #tpu.memory_space<vmem>>, vector<1x128x512xf32>
    %36 = vector.shape_cast %35 : vector<1x128x512xf32> to vector<128x512xf32>
    %cst_46 = arith.constant dense<0.000000e+00> : vector<128x512xf32>
    %37 = tpu.matmul %34, %36, %cst_46 {dimension_numbers = #tpu.dot_dimension_numbers<[1], [0], [0], [1], [0, 0, 1, 1], [], []>} : vector<128x128xf32>, vector<128x512xf32>, vector<128x512xf32> -> vector<128x512xf32>
    %38 = arith.addf %33, %37 : vector<128x512xf32>
    %c0_47 = arith.constant 0 : index
    %c0_48 = arith.constant 0 : index
    %39 = vector.load %arg12[%c0_47, %c0_48] : memref<128x512xf32, #tpu.memory_space<vmem>>, vector<128x512xf32>
    tpu.vector_store %arg12[%c0_47, %c0_48], %38 {strides = array<i32>} : memref<128x512xf32, #tpu.memory_space<vmem>>, vector<128x512xf32>,
    %c0_49 = arith.constant 0 : index
    %c0_50 = arith.constant 0 : index
    %40 = vector.load %arg12[%c0_49, %c0_50] : memref<128x512xf32, #tpu.memory_space<vmem>>, vector<128x512xf32>
    %c32 = arith.constant 32 : index
    %c0_51 = arith.constant 0 : index
    %41 = vector.load %arg9[%c32, %c0_51] : memref<160x128xf32, #tpu.memory_space<vmem>>, vector<128x128xf32>
    %c4 = arith.constant 4 : index
    %c0_52 = arith.constant 0 : index
    %c0_53 = arith.constant 0 : index
    %42 = vector.load %arg2[%c4, %c0_52, %c0_53] : memref<5x128x512xf32, #tpu.memory_space<vmem>>, vector<1x128x512xf32>
    %43 = vector.shape_cast %42 : vector<1x128x512xf32> to vector<128x512xf32>
    %cst_54 = arith.constant dense<0.000000e+00> : vector<128x512xf32>
    %44 = tpu.matmul %41, %43, %cst_54 {dimension_numbers = #tpu.dot_dimension_numbers<[1], [0], [0], [1], [0, 0, 1, 1], [], []>} : vector<128x128xf32>, vector<128x512xf32>, vector<128x512xf32> -> vector<128x512xf32>
    %45 = arith.addf %40, %44 : vector<128x512xf32>
    %c0_55 = arith.constant 0 : index
    %c0_56 = arith.constant 0 : index
    %46 = vector.load %arg12[%c0_55, %c0_56] : memref<128x512xf32, #tpu.memory_space<vmem>>, vector<128x512xf32>
    tpu.vector_store %arg12[%c0_55, %c0_56], %45 {strides = array<i32>} : memref<128x512xf32, #tpu.memory_space<vmem>>, vector<128x512xf32>,
    %c0_57 = arith.constant 0 : index
    %c0_58 = arith.constant 0 : index
    %47 = vector.load %arg12[%c0_57, %c0_58] : memref<128x512xf32, #tpu.memory_space<vmem>>, vector<128x512xf32>
    %48 = vector.extract_strided_slice %47 {offsets = [0, 0], sizes = [128, 256], strides = [1, 1]} : vector<128x512xf32> to vector<128x256xf32>
    %49 = vector.extract_strided_slice %47 {offsets = [0, 256], sizes = [128, 256], strides = [1, 1]} : vector<128x512xf32> to vector<128x256xf32>
    %50 = arith.maximumf %48, %49 : vector<128x256xf32>
    %51 = vector.extract_strided_slice %50 {offsets = [0, 0], sizes = [8, 256], strides = [1, 1]} : vector<128x256xf32> to vector<8x256xf32>
    %52 = vector.extract_strided_slice %50 {offsets = [8, 0], sizes = [8, 256], strides = [1, 1]} : vector<128x256xf32> to vector<8x256xf32>
    %53 = arith.maximumf %51, %52 : vector<8x256xf32>
    %cst_59 = arith.constant 0.000000e+00 : f32
    %54 = vector.broadcast %cst_59 : f32 to vector<8x256xf32>
    %55 = arith.maximumf %53, %54 : vector<8x256xf32>
    %c8_60 = arith.constant 8 : index
    %c0_61 = arith.constant 0 : index
    %56 = vector.load %arg10[%c8_60, %c0_61] : memref<80x256xf32, #tpu.memory_space<vmem>>, vector<8x256xf32>
    tpu.vector_store %arg10[%c8_60, %c0_61], %55 {strides = array<i32>} : memref<80x256xf32, #tpu.memory_space<vmem>>, vector<8x256xf32>,
    %57 = vector.extract_strided_slice %50 {offsets = [16, 0], sizes = [8, 256], strides = [1, 1]} : vector<128x256xf32> to vector<8x256xf32>
    %58 = vector.extract_strided_slice %50 {offsets = [24, 0], sizes = [8, 256], strides = [1, 1]} : vector<128x256xf32> to vector<8x256xf32>
    %59 = arith.maximumf %57, %58 : vector<8x256xf32>
    %cst_62 = arith.constant 0.000000e+00 : f32
    %60 = vector.broadcast %cst_62 : f32 to vector<8x256xf32>
    %61 = arith.maximumf %59, %60 : vector<8x256xf32>
    %c16_63 = arith.constant 16 : index
    %c0_64 = arith.constant 0 : index
    %62 = vector.load %arg10[%c16_63, %c0_64] : memref<80x256xf32, #tpu.memory_space<vmem>>, vector<8x256xf32>
    tpu.vector_store %arg10[%c16_63, %c0_64], %61 {strides = array<i32>} : memref<80x256xf32, #tpu.memory_space<vmem>>, vector<8x256xf32>,
    %63 = vector.extract_strided_slice %50 {offsets = [32, 0], sizes = [8, 256], strides = [1, 1]} : vector<128x256xf32> to vector<8x256xf32>
    %64 = vector.extract_strided_slice %50 {offsets = [40, 0], sizes = [8, 256], strides = [1, 1]} : vector<128x256xf32> to vector<8x256xf32>
    %65 = arith.maximumf %63, %64 : vector<8x256xf32>
    %cst_65 = arith.constant 0.000000e+00 : f32
    %66 = vector.broadcast %cst_65 : f32 to vector<8x256xf32>
    %67 = arith.maximumf %65, %66 : vector<8x256xf32>
    %c24_66 = arith.constant 24 : index
    %c0_67 = arith.constant 0 : index
    %68 = vector.load %arg10[%c24_66, %c0_67] : memref<80x256xf32, #tpu.memory_space<vmem>>, vector<8x256xf32>
    tpu.vector_store %arg10[%c24_66, %c0_67], %67 {strides = array<i32>} : memref<80x256xf32, #tpu.memory_space<vmem>>, vector<8x256xf32>,
    %69 = vector.extract_strided_slice %50 {offsets = [48, 0], sizes = [8, 256], strides = [1, 1]} : vector<128x256xf32> to vector<8x256xf32>
    %70 = vector.extract_strided_slice %50 {offsets = [56, 0], sizes = [8, 256], strides = [1, 1]} : vector<128x256xf32> to vector<8x256xf32>
    %71 = arith.maximumf %69, %70 : vector<8x256xf32>
    %cst_68 = arith.constant 0.000000e+00 : f32
    %72 = vector.broadcast %cst_68 : f32 to vector<8x256xf32>
    %73 = arith.maximumf %71, %72 : vector<8x256xf32>
    %c32_69 = arith.constant 32 : index
    %c0_70 = arith.constant 0 : index
    %74 = vector.load %arg10[%c32_69, %c0_70] : memref<80x256xf32, #tpu.memory_space<vmem>>, vector<8x256xf32>
    tpu.vector_store %arg10[%c32_69, %c0_70], %73 {strides = array<i32>} : memref<80x256xf32, #tpu.memory_space<vmem>>, vector<8x256xf32>,
    %75 = vector.extract_strided_slice %50 {offsets = [64, 0], sizes = [8, 256], strides = [1, 1]} : vector<128x256xf32> to vector<8x256xf32>
    %76 = vector.extract_strided_slice %50 {offsets = [72, 0], sizes = [8, 256], strides = [1, 1]} : vector<128x256xf32> to vector<8x256xf32>
    %77 = arith.maximumf %75, %76 : vector<8x256xf32>
    %cst_71 = arith.constant 0.000000e+00 : f32
    %78 = vector.broadcast %cst_71 : f32 to vector<8x256xf32>
    %79 = arith.maximumf %77, %78 : vector<8x256xf32>
    %c40 = arith.constant 40 : index
    %c0_72 = arith.constant 0 : index
    %80 = vector.load %arg10[%c40, %c0_72] : memref<80x256xf32, #tpu.memory_space<vmem>>, vector<8x256xf32>
    tpu.vector_store %arg10[%c40, %c0_72], %79 {strides = array<i32>} : memref<80x256xf32, #tpu.memory_space<vmem>>, vector<8x256xf32>,
    %81 = vector.extract_strided_slice %50 {offsets = [80, 0], sizes = [8, 256], strides = [1, 1]} : vector<128x256xf32> to vector<8x256xf32>
    %82 = vector.extract_strided_slice %50 {offsets = [88, 0], sizes = [8, 256], strides = [1, 1]} : vector<128x256xf32> to vector<8x256xf32>
    %83 = arith.maximumf %81, %82 : vector<8x256xf32>
    %cst_73 = arith.constant 0.000000e+00 : f32
    %84 = vector.broadcast %cst_73 : f32 to vector<8x256xf32>
    %85 = arith.maximumf %83, %84 : vector<8x256xf32>
    %c48 = arith.constant 48 : index
    %c0_74 = arith.constant 0 : index
    %86 = vector.load %arg10[%c48, %c0_74] : memref<80x256xf32, #tpu.memory_space<vmem>>, vector<8x256xf32>
    tpu.vector_store %arg10[%c48, %c0_74], %85 {strides = array<i32>} : memref<80x256xf32, #tpu.memory_space<vmem>>, vector<8x256xf32>,
    %87 = vector.extract_strided_slice %50 {offsets = [96, 0], sizes = [8, 256], strides = [1, 1]} : vector<128x256xf32> to vector<8x256xf32>
    %88 = vector.extract_strided_slice %50 {offsets = [104, 0], sizes = [8, 256], strides = [1, 1]} : vector<128x256xf32> to vector<8x256xf32>
    %89 = arith.maximumf %87, %88 : vector<8x256xf32>
    %cst_75 = arith.constant 0.000000e+00 : f32
    %90 = vector.broadcast %cst_75 : f32 to vector<8x256xf32>
    %91 = arith.maximumf %89, %90 : vector<8x256xf32>
    %c56 = arith.constant 56 : index
    %c0_76 = arith.constant 0 : index
    %92 = vector.load %arg10[%c56, %c0_76] : memref<80x256xf32, #tpu.memory_space<vmem>>, vector<8x256xf32>
    tpu.vector_store %arg10[%c56, %c0_76], %91 {strides = array<i32>} : memref<80x256xf32, #tpu.memory_space<vmem>>, vector<8x256xf32>,
    %93 = vector.extract_strided_slice %50 {offsets = [112, 0], sizes = [8, 256], strides = [1, 1]} : vector<128x256xf32> to vector<8x256xf32>
    %94 = vector.extract_strided_slice %50 {offsets = [120, 0], sizes = [8, 256], strides = [1, 1]} : vector<128x256xf32> to vector<8x256xf32>
    %95 = arith.maximumf %93, %94 : vector<8x256xf32>
    %cst_77 = arith.constant 0.000000e+00 : f32
    %96 = vector.broadcast %cst_77 : f32 to vector<8x256xf32>
    %97 = arith.maximumf %95, %96 : vector<8x256xf32>
    %c64 = arith.constant 64 : index
    %c0_78 = arith.constant 0 : index
    %98 = vector.load %arg10[%c64, %c0_78] : memref<80x256xf32, #tpu.memory_space<vmem>>, vector<8x256xf32>
    tpu.vector_store %arg10[%c64, %c0_78], %97 {strides = array<i32>} : memref<80x256xf32, #tpu.memory_space<vmem>>, vector<8x256xf32>,
    %c0_79 = arith.constant 0 : index
    %c0_80 = arith.constant 0 : index
    %99 = vector.load %arg10[%c0_79, %c0_80] : memref<80x256xf32, #tpu.memory_space<vmem>>, vector<64x256xf32>
    %c0_81 = arith.constant 0 : index
    %c0_82 = arith.constant 0 : index
    %c0_83 = arith.constant 0 : index
    %c0_84 = arith.constant 0 : index
    %100 = vector.load %arg3[%c0_81, %c0_82, %c0_83, %c0_84] : memref<2x3x256x256xf32, #tpu.memory_space<vmem>>, vector<1x1x256x256xf32>
    %101 = vector.shape_cast %100 : vector<1x1x256x256xf32> to vector<256x256xf32>
    %cst_85 = arith.constant dense<0.000000e+00> : vector<64x256xf32>
    %102 = tpu.matmul %99, %101, %cst_85 {dimension_numbers = #tpu.dot_dimension_numbers<[1], [0], [0], [1], [0, 0, 1, 1], [], []>} : vector<64x256xf32>, vector<256x256xf32>, vector<64x256xf32> -> vector<64x256xf32>
    %c0_86 = arith.constant 0 : index
    %c0_87 = arith.constant 0 : index
    %103 = vector.load %arg13[%c0_86, %c0_87] : memref<64x256xf32, #tpu.memory_space<vmem>>, vector<64x256xf32>
    tpu.vector_store %arg13[%c0_86, %c0_87], %102 {strides = array<i32>} : memref<64x256xf32, #tpu.memory_space<vmem>>, vector<64x256xf32>,
    %c0_88 = arith.constant 0 : index
    %c0_89 = arith.constant 0 : index
    %104 = vector.load %arg13[%c0_88, %c0_89] : memref<64x256xf32, #tpu.memory_space<vmem>>, vector<64x256xf32>
    %c8_90 = arith.constant 8 : index
    %c0_91 = arith.constant 0 : index
    %105 = vector.load %arg10[%c8_90, %c0_91] : memref<80x256xf32, #tpu.memory_space<vmem>>, vector<64x256xf32>
    %c0_92 = arith.constant 0 : index
    %c1_93 = arith.constant 1 : index
    %c0_94 = arith.constant 0 : index
    %c0_95 = arith.constant 0 : index
    %106 = vector.load %arg3[%c0_92, %c1_93, %c0_94, %c0_95] : memref<2x3x256x256xf32, #tpu.memory_space<vmem>>, vector<1x1x256x256xf32>
    %107 = vector.shape_cast %106 : vector<1x1x256x256xf32> to vector<256x256xf32>
    %cst_96 = arith.constant dense<0.000000e+00> : vector<64x256xf32>
    %108 = tpu.matmul %105, %107, %cst_96 {dimension_numbers = #tpu.dot_dimension_numbers<[1], [0], [0], [1], [0, 0, 1, 1], [], []>} : vector<64x256xf32>, vector<256x256xf32>, vector<64x256xf32> -> vector<64x256xf32>
    %109 = arith.addf %104, %108 : vector<64x256xf32>
    %c0_97 = arith.constant 0 : index
    %c0_98 = arith.constant 0 : index
    %110 = vector.load %arg13[%c0_97, %c0_98] : memref<64x256xf32, #tpu.memory_space<vmem>>, vector<64x256xf32>
    tpu.vector_store %arg13[%c0_97, %c0_98], %109 {strides = array<i32>} : memref<64x256xf32, #tpu.memory_space<vmem>>, vector<64x256xf32>,
    %c0_99 = arith.constant 0 : index
    %c0_100 = arith.constant 0 : index
    %111 = vector.load %arg13[%c0_99, %c0_100] : memref<64x256xf32, #tpu.memory_space<vmem>>, vector<64x256xf32>
    %c16_101 = arith.constant 16 : index
    %c0_102 = arith.constant 0 : index
    %112 = vector.load %arg10[%c16_101, %c0_102] : memref<80x256xf32, #tpu.memory_space<vmem>>, vector<64x256xf32>
    %c0_103 = arith.constant 0 : index
    %c2_104 = arith.constant 2 : index
    %c0_105 = arith.constant 0 : index
    %c0_106 = arith.constant 0 : index
    %113 = vector.load %arg3[%c0_103, %c2_104, %c0_105, %c0_106] : memref<2x3x256x256xf32, #tpu.memory_space<vmem>>, vector<1x1x256x256xf32>
    %114 = vector.shape_cast %113 : vector<1x1x256x256xf32> to vector<256x256xf32>
    %cst_107 = arith.constant dense<0.000000e+00> : vector<64x256xf32>
    %115 = tpu.matmul %112, %114, %cst_107 {dimension_numbers = #tpu.dot_dimension_numbers<[1], [0], [0], [1], [0, 0, 1, 1], [], []>} : vector<64x256xf32>, vector<256x256xf32>, vector<64x256xf32> -> vector<64x256xf32>
    %116 = arith.addf %111, %115 : vector<64x256xf32>
    %c0_108 = arith.constant 0 : index
    %c0_109 = arith.constant 0 : index
    %117 = vector.load %arg13[%c0_108, %c0_109] : memref<64x256xf32, #tpu.memory_space<vmem>>, vector<64x256xf32>
    tpu.vector_store %arg13[%c0_108, %c0_109], %116 {strides = array<i32>} : memref<64x256xf32, #tpu.memory_space<vmem>>, vector<64x256xf32>,
    %c0_110 = arith.constant 0 : index
    %c0_111 = arith.constant 0 : index
    %118 = vector.load %arg13[%c0_110, %c0_111] : memref<64x256xf32, #tpu.memory_space<vmem>>, vector<64x256xf32>
    %cst_112 = arith.constant 0.000000e+00 : f32
    %119 = vector.broadcast %cst_112 : f32 to vector<64x256xf32>
    %120 = arith.maximumf %118, %119 : vector<64x256xf32>
    %c8_113 = arith.constant 8 : index
    %c0_114 = arith.constant 0 : index
    %121 = vector.load %arg10[%c8_113, %c0_114] : memref<80x256xf32, #tpu.memory_space<vmem>>, vector<64x256xf32>
    tpu.vector_store %arg10[%c8_113, %c0_114], %120 {strides = array<i32>} : memref<80x256xf32, #tpu.memory_space<vmem>>, vector<64x256xf32>,
    %c0_115 = arith.constant 0 : index
    %c0_116 = arith.constant 0 : index
    %122 = vector.load %arg10[%c0_115, %c0_116] : memref<80x256xf32, #tpu.memory_space<vmem>>, vector<64x256xf32>
    %c1_117 = arith.constant 1 : index
    %c0_118 = arith.constant 0 : index
    %c0_119 = arith.constant 0 : index
    %c0_120 = arith.constant 0 : index
    %123 = vector.load %arg3[%c1_117, %c0_118, %c0_119, %c0_120] : memref<2x3x256x256xf32, #tpu.memory_space<vmem>>, vector<1x1x256x256xf32>
    %124 = vector.shape_cast %123 : vector<1x1x256x256xf32> to vector<256x256xf32>
    %cst_121 = arith.constant dense<0.000000e+00> : vector<64x256xf32>
    %125 = tpu.matmul %122, %124, %cst_121 {dimension_numbers = #tpu.dot_dimension_numbers<[1], [0], [0], [1], [0, 0, 1, 1], [], []>} : vector<64x256xf32>, vector<256x256xf32>, vector<64x256xf32> -> vector<64x256xf32>
    %c0_122 = arith.constant 0 : index
    %c0_123 = arith.constant 0 : index
    %126 = vector.load %arg13[%c0_122, %c0_123] : memref<64x256xf32, #tpu.memory_space<vmem>>, vector<64x256xf32>
    tpu.vector_store %arg13[%c0_122, %c0_123], %125 {strides = array<i32>} : memref<64x256xf32, #tpu.memory_space<vmem>>, vector<64x256xf32>,
    %c0_124 = arith.constant 0 : index
    %c0_125 = arith.constant 0 : index
    %127 = vector.load %arg13[%c0_124, %c0_125] : memref<64x256xf32, #tpu.memory_space<vmem>>, vector<64x256xf32>
    %c8_126 = arith.constant 8 : index
    %c0_127 = arith.constant 0 : index
    %128 = vector.load %arg10[%c8_126, %c0_127] : memref<80x256xf32, #tpu.memory_space<vmem>>, vector<64x256xf32>
    %c1_128 = arith.constant 1 : index
    %c1_129 = arith.constant 1 : index
    %c0_130 = arith.constant 0 : index
    %c0_131 = arith.constant 0 : index
    %129 = vector.load %arg3[%c1_128, %c1_129, %c0_130, %c0_131] : memref<2x3x256x256xf32, #tpu.memory_space<vmem>>, vector<1x1x256x256xf32>
    %130 = vector.shape_cast %129 : vector<1x1x256x256xf32> to vector<256x256xf32>
    %cst_132 = arith.constant dense<0.000000e+00> : vector<64x256xf32>
    %131 = tpu.matmul %128, %130, %cst_132 {dimension_numbers = #tpu.dot_dimension_numbers<[1], [0], [0], [1], [0, 0, 1, 1], [], []>} : vector<64x256xf32>, vector<256x256xf32>, vector<64x256xf32> -> vector<64x256xf32>
    %132 = arith.addf %127, %131 : vector<64x256xf32>
    %c0_133 = arith.constant 0 : index
    %c0_134 = arith.constant 0 : index
    %133 = vector.load %arg13[%c0_133, %c0_134] : memref<64x256xf32, #tpu.memory_space<vmem>>, vector<64x256xf32>
    tpu.vector_store %arg13[%c0_133, %c0_134], %132 {strides = array<i32>} : memref<64x256xf32, #tpu.memory_space<vmem>>, vector<64x256xf32>,
    %c0_135 = arith.constant 0 : index
    %c0_136 = arith.constant 0 : index
    %134 = vector.load %arg13[%c0_135, %c0_136] : memref<64x256xf32, #tpu.memory_space<vmem>>, vector<64x256xf32>
    %c16_137 = arith.constant 16 : index
    %c0_138 = arith.constant 0 : index
    %135 = vector.load %arg10[%c16_137, %c0_138] : memref<80x256xf32, #tpu.memory_space<vmem>>, vector<64x256xf32>
    %c1_139 = arith.constant 1 : index
    %c2_140 = arith.constant 2 : index
    %c0_141 = arith.constant 0 : index
    %c0_142 = arith.constant 0 : index
    %136 = vector.load %arg3[%c1_139, %c2_140, %c0_141, %c0_142] : memref<2x3x256x256xf32, #tpu.memory_space<vmem>>, vector<1x1x256x256xf32>
    %137 = vector.shape_cast %136 : vector<1x1x256x256xf32> to vector<256x256xf32>
    %cst_143 = arith.constant dense<0.000000e+00> : vector<64x256xf32>
    %138 = tpu.matmul %135, %137, %cst_143 {dimension_numbers = #tpu.dot_dimension_numbers<[1], [0], [0], [1], [0, 0, 1, 1], [], []>} : vector<64x256xf32>, vector<256x256xf32>, vector<64x256xf32> -> vector<64x256xf32>
    %139 = arith.addf %134, %138 : vector<64x256xf32>
    %c0_144 = arith.constant 0 : index
    %c0_145 = arith.constant 0 : index
    %140 = vector.load %arg13[%c0_144, %c0_145] : memref<64x256xf32, #tpu.memory_space<vmem>>, vector<64x256xf32>
    tpu.vector_store %arg13[%c0_144, %c0_145], %139 {strides = array<i32>} : memref<64x256xf32, #tpu.memory_space<vmem>>, vector<64x256xf32>,
    %c0_146 = arith.constant 0 : index
    %c0_147 = arith.constant 0 : index
    %141 = vector.load %arg13[%c0_146, %c0_147] : memref<64x256xf32, #tpu.memory_space<vmem>>, vector<64x256xf32>
    %cst_148 = arith.constant 0.000000e+00 : f32
    %142 = vector.broadcast %cst_148 : f32 to vector<64x256xf32>
    %143 = arith.maximumf %141, %142 : vector<64x256xf32>
    %c16_149 = arith.constant 16 : index
    %c0_150 = arith.constant 0 : index
    %144 = vector.load %arg11[%c16_149, %c0_150] : memref<96x256xf32, #tpu.memory_space<vmem>>, vector<64x256xf32>
    tpu.vector_store %arg11[%c16_149, %c0_150], %143 {strides = array<i32>} : memref<96x256xf32, #tpu.memory_space<vmem>>, vector<64x256xf32>,
    %c0_151 = arith.constant 0 : index
    %c0_152 = arith.constant 0 : index
    %145 = vector.load %arg11[%c0_151, %c0_152] : memref<96x256xf32, #tpu.memory_space<vmem>>, vector<64x256xf32>
    %c0_153 = arith.constant 0 : index
    %c0_154 = arith.constant 0 : index
    %c0_155 = arith.constant 0 : index
    %146 = vector.load %arg4[%c0_153, %c0_154, %c0_155] : memref<5x256x256xf32, #tpu.memory_space<vmem>>, vector<1x256x256xf32>
    %147 = vector.shape_cast %146 : vector<1x256x256xf32> to vector<256x256xf32>
    %cst_156 = arith.constant dense<0.000000e+00> : vector<64x256xf32>
    %148 = tpu.matmul %145, %147, %cst_156 {dimension_numbers = #tpu.dot_dimension_numbers<[1], [0], [0], [1], [0, 0, 1, 1], [], []>} : vector<64x256xf32>, vector<256x256xf32>, vector<64x256xf32> -> vector<64x256xf32>
    %c0_157 = arith.constant 0 : index
    %c0_158 = arith.constant 0 : index
    %149 = vector.load %arg13[%c0_157, %c0_158] : memref<64x256xf32, #tpu.memory_space<vmem>>, vector<64x256xf32>
    tpu.vector_store %arg13[%c0_157, %c0_158], %148 {strides = array<i32>} : memref<64x256xf32, #tpu.memory_space<vmem>>, vector<64x256xf32>,
    %c0_159 = arith.constant 0 : index
    %c0_160 = arith.constant 0 : index
    %150 = vector.load %arg13[%c0_159, %c0_160] : memref<64x256xf32, #tpu.memory_space<vmem>>, vector<64x256xf32>
    %c8_161 = arith.constant 8 : index
    %c0_162 = arith.constant 0 : index
    %151 = vector.load %arg11[%c8_161, %c0_162] : memref<96x256xf32, #tpu.memory_space<vmem>>, vector<64x256xf32>
    %c1_163 = arith.constant 1 : index
    %c0_164 = arith.constant 0 : index
    %c0_165 = arith.constant 0 : index
    %152 = vector.load %arg4[%c1_163, %c0_164, %c0_165] : memref<5x256x256xf32, #tpu.memory_space<vmem>>, vector<1x256x256xf32>
    %153 = vector.shape_cast %152 : vector<1x256x256xf32> to vector<256x256xf32>
    %cst_166 = arith.constant dense<0.000000e+00> : vector<64x256xf32>
    %154 = tpu.matmul %151, %153, %cst_166 {dimension_numbers = #tpu.dot_dimension_numbers<[1], [0], [0], [1], [0, 0, 1, 1], [], []>} : vector<64x256xf32>, vector<256x256xf32>, vector<64x256xf32> -> vector<64x256xf32>
    %155 = arith.addf %150, %154 : vector<64x256xf32>
    %c0_167 = arith.constant 0 : index
    %c0_168 = arith.constant 0 : index
    %156 = vector.load %arg13[%c0_167, %c0_168] : memref<64x256xf32, #tpu.memory_space<vmem>>, vector<64x256xf32>
    tpu.vector_store %arg13[%c0_167, %c0_168], %155 {strides = array<i32>} : memref<64x256xf32, #tpu.memory_space<vmem>>, vector<64x256xf32>,
    %c0_169 = arith.constant 0 : index
    %c0_170 = arith.constant 0 : index
    %157 = vector.load %arg13[%c0_169, %c0_170] : memref<64x256xf32, #tpu.memory_space<vmem>>, vector<64x256xf32>
    %c16_171 = arith.constant 16 : index
    %c0_172 = arith.constant 0 : index
    %158 = vector.load %arg11[%c16_171, %c0_172] : memref<96x256xf32, #tpu.memory_space<vmem>>, vector<64x256xf32>
    %c2_173 = arith.constant 2 : index
    %c0_174 = arith.constant 0 : index
    %c0_175 = arith.constant 0 : index
    %159 = vector.load %arg4[%c2_173, %c0_174, %c0_175] : memref<5x256x256xf32, #tpu.memory_space<vmem>>, vector<1x256x256xf32>
    %160 = vector.shape_cast %159 : vector<1x256x256xf32> to vector<256x256xf32>
    %cst_176 = arith.constant dense<0.000000e+00> : vector<64x256xf32>
    %161 = tpu.matmul %158, %160, %cst_176 {dimension_numbers = #tpu.dot_dimension_numbers<[1], [0], [0], [1], [0, 0, 1, 1], [], []>} : vector<64x256xf32>, vector<256x256xf32>, vector<64x256xf32> -> vector<64x256xf32>
    %162 = arith.addf %157, %161 : vector<64x256xf32>
    %c0_177 = arith.constant 0 : index
    %c0_178 = arith.constant 0 : index
    %163 = vector.load %arg13[%c0_177, %c0_178] : memref<64x256xf32, #tpu.memory_space<vmem>>, vector<64x256xf32>
    tpu.vector_store %arg13[%c0_177, %c0_178], %162 {strides = array<i32>} : memref<64x256xf32, #tpu.memory_space<vmem>>, vector<64x256xf32>,
    %c0_179 = arith.constant 0 : index
    %c0_180 = arith.constant 0 : index
    %164 = vector.load %arg13[%c0_179, %c0_180] : memref<64x256xf32, #tpu.memory_space<vmem>>, vector<64x256xf32>
    %c24_181 = arith.constant 24 : index
    %c0_182 = arith.constant 0 : index
    %165 = vector.load %arg11[%c24_181, %c0_182] : memref<96x256xf32, #tpu.memory_space<vmem>>, vector<64x256xf32>
    %c3_183 = arith.constant 3 : index
    %c0_184 = arith.constant 0 : index
    %c0_185 = arith.constant 0 : index
    %166 = vector.load %arg4[%c3_183, %c0_184, %c0_185] : memref<5x256x256xf32, #tpu.memory_space<vmem>>, vector<1x256x256xf32>
    %167 = vector.shape_cast %166 : vector<1x256x256xf32> to vector<256x256xf32>
    %cst_186 = arith.constant dense<0.000000e+00> : vector<64x256xf32>
    %168 = tpu.matmul %165, %167, %cst_186 {dimension_numbers = #tpu.dot_dimension_numbers<[1], [0], [0], [1], [0, 0, 1, 1], [], []>} : vector<64x256xf32>, vector<256x256xf32>, vector<64x256xf32> -> vector<64x256xf32>
    %169 = arith.addf %164, %168 : vector<64x256xf32>
    %c0_187 = arith.constant 0 : index
    %c0_188 = arith.constant 0 : index
    %170 = vector.load %arg13[%c0_187, %c0_188] : memref<64x256xf32, #tpu.memory_space<vmem>>, vector<64x256xf32>
    tpu.vector_store %arg13[%c0_187, %c0_188], %169 {strides = array<i32>} : memref<64x256xf32, #tpu.memory_space<vmem>>, vector<64x256xf32>,
    %c0_189 = arith.constant 0 : index
    %c0_190 = arith.constant 0 : index
    %171 = vector.load %arg13[%c0_189, %c0_190] : memref<64x256xf32, #tpu.memory_space<vmem>>, vector<64x256xf32>
    %c32_191 = arith.constant 32 : index
    %c0_192 = arith.constant 0 : index
    %172 = vector.load %arg11[%c32_191, %c0_192] : memref<96x256xf32, #tpu.memory_space<vmem>>, vector<64x256xf32>
    %c4_193 = arith.constant 4 : index
    %c0_194 = arith.constant 0 : index
    %c0_195 = arith.constant 0 : index
    %173 = vector.load %arg4[%c4_193, %c0_194, %c0_195] : memref<5x256x256xf32, #tpu.memory_space<vmem>>, vector<1x256x256xf32>
    %174 = vector.shape_cast %173 : vector<1x256x256xf32> to vector<256x256xf32>
    %cst_196 = arith.constant dense<0.000000e+00> : vector<64x256xf32>
    %175 = tpu.matmul %172, %174, %cst_196 {dimension_numbers = #tpu.dot_dimension_numbers<[1], [0], [0], [1], [0, 0, 1, 1], [], []>} : vector<64x256xf32>, vector<256x256xf32>, vector<64x256xf32> -> vector<64x256xf32>
    %176 = arith.addf %171, %175 : vector<64x256xf32>
    %c0_197 = arith.constant 0 : index
    %c0_198 = arith.constant 0 : index
    %177 = vector.load %arg13[%c0_197, %c0_198] : memref<64x256xf32, #tpu.memory_space<vmem>>, vector<64x256xf32>
    tpu.vector_store %arg13[%c0_197, %c0_198], %176 {strides = array<i32>} : memref<64x256xf32, #tpu.memory_space<vmem>>, vector<64x256xf32>,
    %c0_199 = arith.constant 0 : index
    %c0_200 = arith.constant 0 : index
    %178 = vector.load %arg13[%c0_199, %c0_200] : memref<64x256xf32, #tpu.memory_space<vmem>>, vector<64x256xf32>
    %cst_201 = arith.constant 0.000000e+00 : f32
    %179 = vector.broadcast %cst_201 : f32 to vector<64x256xf32>
    %180 = arith.maximumf %178, %179 : vector<64x256xf32>
    %c0_202 = arith.constant 0 : index
    %c0_203 = arith.constant 0 : index
    %181 = vector.load %arg5[%c0_202, %c0_203] : memref<256x32xf32, #tpu.memory_space<vmem>>, vector<256x32xf32>
    %cst_204 = arith.constant dense<0.000000e+00> : vector<64x32xf32>
    %182 = tpu.matmul %180, %181, %cst_204 {dimension_numbers = #tpu.dot_dimension_numbers<[1], [0], [0], [1], [0, 0, 1, 1], [], []>} : vector<64x256xf32>, vector<256x32xf32>, vector<64x32xf32> -> vector<64x32xf32>
    %183 = vector.extract_strided_slice %182 {offsets = [0, 0], sizes = [8, 32], strides = [1, 1]} : vector<64x32xf32> to vector<8x32xf32>
    %184 = vector.extract_strided_slice %182 {offsets = [8, 0], sizes = [8, 32], strides = [1, 1]} : vector<64x32xf32> to vector<8x32xf32>
    %185 = arith.addf %183, %184 : vector<8x32xf32>
    %186 = vector.extract_strided_slice %182 {offsets = [16, 0], sizes = [8, 32], strides = [1, 1]} : vector<64x32xf32> to vector<8x32xf32>
    %187 = arith.addf %185, %186 : vector<8x32xf32>
    %188 = vector.extract_strided_slice %182 {offsets = [24, 0], sizes = [8, 32], strides = [1, 1]} : vector<64x32xf32> to vector<8x32xf32>
    %189 = arith.addf %187, %188 : vector<8x32xf32>
    %190 = vector.extract_strided_slice %182 {offsets = [32, 0], sizes = [8, 32], strides = [1, 1]} : vector<64x32xf32> to vector<8x32xf32>
    %191 = arith.addf %189, %190 : vector<8x32xf32>
    %192 = vector.extract_strided_slice %182 {offsets = [40, 0], sizes = [8, 32], strides = [1, 1]} : vector<64x32xf32> to vector<8x32xf32>
    %193 = arith.addf %191, %192 : vector<8x32xf32>
    %194 = vector.extract_strided_slice %182 {offsets = [48, 0], sizes = [8, 32], strides = [1, 1]} : vector<64x32xf32> to vector<8x32xf32>
    %195 = arith.addf %193, %194 : vector<8x32xf32>
    %196 = vector.extract_strided_slice %182 {offsets = [56, 0], sizes = [8, 32], strides = [1, 1]} : vector<64x32xf32> to vector<8x32xf32>
    %197 = arith.addf %195, %196 : vector<8x32xf32>
    %cst_205 = arith.constant 0.000000e+00 : f32
    %198 = vector.broadcast %cst_205 : f32 to vector<8x32xf32>
    %199 = arith.maximumf %197, %198 : vector<8x32xf32>
    %c0_206 = arith.constant 0 : index
    %c0_207 = arith.constant 0 : index
    %200 = vector.load %arg6[%c0_206, %c0_207] : memref<32x128xf32, #tpu.memory_space<vmem>>, vector<32x128xf32>
    %cst_208 = arith.constant dense<0.000000e+00> : vector<8x128xf32>
    %201 = tpu.matmul %199, %200, %cst_208 {dimension_numbers = #tpu.dot_dimension_numbers<[1], [0], [0], [1], [0, 0, 1, 1], [], []>} : vector<8x32xf32>, vector<32x128xf32>, vector<8x128xf32> -> vector<8x128xf32>
    %c0_209 = arith.constant 0 : index
    %c0_210 = arith.constant 0 : index
    %202 = vector.load %arg7[%c0_209, %c0_210] : memref<1x128xf32, #tpu.memory_space<vmem>>, vector<1x128xf32>
    %203 = vector.broadcast %202 : vector<1x128xf32> to vector<8x128xf32>
    %204 = arith.addf %201, %203 : vector<8x128xf32>
    %c0_211 = arith.constant 0 : index
    %c0_212 = arith.constant 0 : index
    %205 = vector.load %arg8[%c0_211, %c0_212] : memref<8x128xf32, #tpu.memory_space<vmem>>, vector<8x128xf32>
    tpu.vector_store %arg8[%c0_211, %c0_212], %204 {strides = array<i32>} : memref<8x128xf32, #tpu.memory_space<vmem>>, vector<8x128xf32>,
    return
  }
  func.func @transform_0(%arg0: i32) -> (i32, i32) {
    %c0_i32 = arith.constant 0 : i32
    %c0_i32_0 = arith.constant 0 : i32
    return %arg0, %c0_i32 : i32, i32
  }
  func.func @transform_1(%arg0: i32) -> (i32, i32, i32) {
    %c0_i32 = arith.constant 0 : i32
    %c0_i32_0 = arith.constant 0 : i32
    %c0_i32_1 = arith.constant 0 : i32
    %c0_i32_2 = arith.constant 0 : i32
    return %c0_i32, %c0_i32_0, %c0_i32_1 : i32, i32, i32
  }
  func.func @transform_2(%arg0: i32) -> (i32, i32, i32, i32) {
    %c0_i32 = arith.constant 0 : i32
    %c0_i32_0 = arith.constant 0 : i32
    %c0_i32_1 = arith.constant 0 : i32
    %c0_i32_2 = arith.constant 0 : i32
    %c0_i32_3 = arith.constant 0 : i32
    return %c0_i32, %c0_i32_0, %c0_i32_1, %c0_i32_2 : i32, i32, i32, i32
  }
  func.func @transform_3(%arg0: i32) -> (i32, i32, i32) {
    %c0_i32 = arith.constant 0 : i32
    %c0_i32_0 = arith.constant 0 : i32
    %c0_i32_1 = arith.constant 0 : i32
    %c0_i32_2 = arith.constant 0 : i32
    return %c0_i32, %c0_i32_0, %c0_i32_1 : i32, i32, i32
  }
  func.func @transform_4(%arg0: i32) -> (i32, i32) {
    %c0_i32 = arith.constant 0 : i32
    %c0_i32_0 = arith.constant 0 : i32
    %c0_i32_1 = arith.constant 0 : i32
    return %c0_i32, %c0_i32_0 : i32, i32
  }
  func.func @transform_5(%arg0: i32) -> (i32, i32) {
    %c0_i32 = arith.constant 0 : i32
    %c0_i32_0 = arith.constant 0 : i32
    %c0_i32_1 = arith.constant 0 : i32
    return %c0_i32, %c0_i32_0 : i32, i32
  }
  func.func @transform_6(%arg0: i32) -> (i32, i32) {
    %c0_i32 = arith.constant 0 : i32
    %c0_i32_0 = arith.constant 0 : i32
    %c0_i32_1 = arith.constant 0 : i32
    return %c0_i32, %c0_i32_0 : i32, i32
  }
  func.func @transform_7(%arg0: i32) -> (i32, i32) {
    %c0_i32 = arith.constant 0 : i32
    %c0_i32_0 = arith.constant 0 : i32
    return %arg0, %c0_i32 : i32, i32
  }
}

</mosaic_0001>

<llo_original>
// kernel: basic_cnn1_forward.1
$region0: #{basic_cnn1_forward.1}
  #allocation0 [shape = 'u32[]', space=smem, size = 0x4, offset = 0x4, fixed_abs, tag = 'smem constant byte address 0x4 - core index']
  #allocation1 [shape = 'u32[72,128]{1,0:T(1,128)}', space=vmem, size = 0x9000, scoped, tag = 'internal scratch']
  #allocation2 [shape = 'f32[160,128]{1,0:T(8,128)}', space=vmem, size = 0x14000, scoped, tag = 'scratch operand']
  #allocation3 [shape = 'f32[80,256]{1,0:T(8,128)}', space=vmem, size = 0x14000, scoped, tag = 'scratch operand']
  #allocation4 [shape = 'f32[96,256]{1,0:T(8,128)}', space=vmem, size = 0x18000, scoped, tag = 'scratch operand']
  #allocation5 [shape = 'f32[128,512]{1,0:T(8,128)}', space=vmem, size = 0x40000, scoped, tag = 'scratch operand']
  #allocation6 [shape = 'f32[64,256]{1,0:T(8,128)}', space=vmem, size = 0x10000, scoped, tag = 'scratch operand']
  %s0 = inlined_call_operand.vmem [shape: f32[128,128], index: 0, kind: input, shape index: {}]
  %s1 = inlined_call_operand.vmem [shape: f32[5,128,512], index: 1, kind: input, shape index: {}]
  %s2 = inlined_call_operand.hbm [shape: f32[2,3,256,256], index: 2, kind: input, shape index: {}]
  %s3 = inlined_call_operand.hbm [shape: f32[5,256,256], index: 3, kind: input, shape index: {}]
  %s4 = inlined_call_operand.vmem [shape: f32[256,32], index: 4, kind: input, shape index: {}]
  %s5 = inlined_call_operand.vmem [shape: f32[32,128], index: 5, kind: input, shape index: {}]
  %s6 = inlined_call_operand.vmem [shape: f32[1,128], index: 6, kind: input, shape index: {}]
  %s7 = inlined_call_operand.vmem [shape: f32[8,128], index: 7, kind: output, shape index: {}]
  %s8 = sld [smem:[#allocation0]]
  $region46: #{basic_cnn1_forward.1} parent=0
    _
  %s10 = ssub.s32 1, %s8
  %s11 = scalar_select 0, %s10, %s8
  $region1: #{basic_cnn1_forward.1} parent=0
    #allocation7 [shape = 'u8[1572864]{0}', space=vmem, size = 0x180000, scoped, tag = 'input window, operand 2, single buffered']
    #allocation8 [shape = 's32[1]{0}', space=sflag, size = 0x4, scoped, tag = 'scoped memory for basic_cnn1_forward.1']
    #allocation9 [shape = 'u8[1310720]{0}', space=vmem, size = 0x140000, scoped, tag = 'input window, operand 3, single buffered']
    #allocation10 [shape = 's32[1]{0}', space=sflag, size = 0x4, scoped, tag = 'scoped memory for basic_cnn1_forward.1']
    %12 = vsyncpa [#allocation8], 0
    %13 = vsyncpa [#allocation10], 0
    // Predicated region
    $region2: #{basic_cnn1_forward.1} parent=1 // pred_check
      _
    $region3: #{basic_cnn1_forward.1} parent=1 // pred_check_branch
      %15 = sbr.rel (0) target = $region5
    $region4: #{basic_cnn1_forward.1} parent=1 // pred_region
      _
    $region5: #{basic_cnn1_forward.1} parent=1 // pred_fallthru
      _
    // Predicated region
    $region6: #{basic_cnn1_forward.1} parent=1 // pred_check
      _
    $region7: #{basic_cnn1_forward.1} parent=1 // pred_check_branch
      %17 = sbr.rel (0) target = $region9
    $region8: #{basic_cnn1_forward.1} parent=1 // pred_region
      _
    $region9: #{basic_cnn1_forward.1} parent=1 // pred_fallthru
      _
    // Predicated region
    $region10: #{basic_cnn1_forward.1} parent=1 // pred_check
      _
    $region11: #{basic_cnn1_forward.1} parent=1 // pred_check_branch
      %19 = sbr.rel (0) target = $region13
    $region12: #{basic_cnn1_forward.1} parent=1 // pred_region
      %21 = vsyncadd [#allocation8], 0
      %s22 = sshll.u32 %s2, 4
      %s23 = int_to_ptr.hbm [resolvable:$true] %s22
      %s24 = sshll.u32 [#allocation7], 4
      %s25 = int_to_ptr.vmem [resolvable:$true] %s24
      %30 = dma.hbm_to_vmem [thread:$0]  %s23, 49152, %s25, [#allocation8], 256, 256, 16
    $region13: #{basic_cnn1_forward.1} parent=1 // pred_fallthru
      _
    // Predicated region
    $region14: #{basic_cnn1_forward.1} parent=1 // pred_check
      _
    $region15: #{basic_cnn1_forward.1} parent=1 // pred_check_branch
      %32 = sbr.rel (0) target = $region17
    $region16: #{basic_cnn1_forward.1} parent=1 // pred_region
      %34 = vsyncadd [#allocation10], 0
      %s35 = sshll.u32 %s3, 4
      %s36 = int_to_ptr.hbm [resolvable:$true] %s35
      %s37 = sshll.u32 [#allocation9], 4
      %s38 = int_to_ptr.vmem [resolvable:$true] %s37
      %43 = dma.hbm_to_vmem [thread:$0]  %s36, 40960, %s38, [#allocation10], 256, 256, 16
    $region17: #{basic_cnn1_forward.1} parent=1 // pred_fallthru
      _
    // Predicated region
    $region18: #{basic_cnn1_forward.1} parent=1 // pred_check
      _
    $region19: #{basic_cnn1_forward.1} parent=1 // pred_check_branch
      %45 = sbr.rel (0) target = $region21
    $region20: #{basic_cnn1_forward.1} parent=1 // pred_region
      _
    $region21: #{basic_cnn1_forward.1} parent=1 // pred_fallthru
      _
    // Predicated region
    $region22: #{basic_cnn1_forward.1} parent=1 // pred_check
      _
    $region23: #{basic_cnn1_forward.1} parent=1 // pred_check_branch
      %47 = sbr.rel (0) target = $region25
    $region24: #{basic_cnn1_forward.1} parent=1 // pred_region
      _
    $region25: #{basic_cnn1_forward.1} parent=1 // pred_fallthru
      _
    // Predicated region
    $region26: #{basic_cnn1_forward.1} parent=1 // pred_check
      _
    $region27: #{basic_cnn1_forward.1} parent=1 // pred_check_branch
      %49 = sbr.rel (0) target = $region29
    $region28: #{basic_cnn1_forward.1} parent=1 // pred_region
      _
    $region29: #{basic_cnn1_forward.1} parent=1 // pred_fallthru
      _
    // Predicated region
    $region30: #{basic_cnn1_forward.1} parent=1 // pred_check
      _
    $region31: #{basic_cnn1_forward.1} parent=1 // pred_check_branch
      %51 = sbr.rel (0) target = $region33
    $region32: #{basic_cnn1_forward.1} parent=1 // pred_region
      %53 = dma.done [#allocation8], 49152
    $region33: #{basic_cnn1_forward.1} parent=1 // pred_fallthru
      _
    // Predicated region
    $region34: #{basic_cnn1_forward.1} parent=1 // pred_check
      _
    $region35: #{basic_cnn1_forward.1} parent=1 // pred_check_branch
      %55 = sbr.rel (0) target = $region37
    $region36: #{basic_cnn1_forward.1} parent=1 // pred_region
      %57 = dma.done [#allocation10], 40960
    $region37: #{basic_cnn1_forward.1} parent=1 // pred_fallthru
      _
    %58 = vst [vmem:[#allocation2] sm:$0xff] 0.0
    %59 = vst [vmem:[#allocation2 + $0x8] sm:$0xff] 0.0
    %60 = vst [vmem:[#allocation2 + $0x90] sm:$0xff] 0.0
    %61 = vst [vmem:[#allocation2 + $0x98] sm:$0xff] 0.0
    %62 = vst [vmem:[#allocation3] sm:$0xff] 0.0
    %63 = vst [vmem:[#allocation3 + $0x8] sm:$0xff] 0.0
    %64 = vst [vmem:[#allocation3 + $0x90] sm:$0xff] 0.0
    %65 = vst [vmem:[#allocation3 + $0x98] sm:$0xff] 0.0
    %66 = vst [vmem:[#allocation4] sm:$0xff] 0.0
    %67 = vst [vmem:[#allocation4 + $0x8] sm:$0xff] 0.0
    %68 = vst [vmem:[#allocation4 + $0x10] sm:$0xff] 0.0
    %69 = vst [vmem:[#allocation4 + $0x18] sm:$0xff] 0.0
    %70 = vst [vmem:[#allocation4 + $0xa0] sm:$0xff] 0.0
    %71 = vst [vmem:[#allocation4 + $0xa8] sm:$0xff] 0.0
    %72 = vst [vmem:[#allocation4 + $0xb0] sm:$0xff] 0.0
    %73 = vst [vmem:[#allocation4 + $0xb8] sm:$0xff] 0.0
    %v74 = vld [vmem:[%s0] sm:$0xff]
    %v75 = vld [vmem:[%s0 + $0x8] sm:$0xff]
    %v76 = vld [vmem:[%s0 + $0x10] sm:$0xff]
    %v77 = vld [vmem:[%s0 + $0x18] sm:$0xff]
    %v78 = vld [vmem:[%s0 + $0x20] sm:$0xff]
    %v79 = vld [vmem:[%s0 + $0x28] sm:$0xff]
    %v80 = vld [vmem:[%s0 + $0x30] sm:$0xff]
    %v81 = vld [vmem:[%s0 + $0x38] sm:$0xff]
    %v82 = vld [vmem:[%s0 + $0x40] sm:$0xff]
    %v83 = vld [vmem:[%s0 + $0x48] sm:$0xff]
    %v84 = vld [vmem:[%s0 + $0x50] sm:$0xff]
    %v85 = vld [vmem:[%s0 + $0x58] sm:$0xff]
    %v86 = vld [vmem:[%s0 + $0x60] sm:$0xff]
    %v87 = vld [vmem:[%s0 + $0x68] sm:$0xff]
    %v88 = vld [vmem:[%s0 + $0x70] sm:$0xff]
    %v89 = vld [vmem:[%s0 + $0x78] sm:$0xff]
    %90 = vst [vmem:[#allocation2 + $0x10] sm:$0xff] %v74
    %91 = vst [vmem:[#allocation2 + $0x18] sm:$0xff] %v75
    %92 = vst [vmem:[#allocation2 + $0x20] sm:$0xff] %v76
    %93 = vst [vmem:[#allocation2 + $0x28] sm:$0xff] %v77
    %94 = vst [vmem:[#allocation2 + $0x30] sm:$0xff] %v78
    %95 = vst [vmem:[#allocation2 + $0x38] sm:$0xff] %v79
    %96 = vst [vmem:[#allocation2 + $0x40] sm:$0xff] %v80
    %97 = vst [vmem:[#allocation2 + $0x48] sm:$0xff] %v81
    %98 = vst [vmem:[#allocation2 + $0x50] sm:$0xff] %v82
    %99 = vst [vmem:[#allocation2 + $0x58] sm:$0xff] %v83
    %100 = vst [vmem:[#allocation2 + $0x60] sm:$0xff] %v84
    %101 = vst [vmem:[#allocation2 + $0x68] sm:$0xff] %v85
    %102 = vst [vmem:[#allocation2 + $0x70] sm:$0xff] %v86
    %103 = vst [vmem:[#allocation2 + $0x78] sm:$0xff] %v87
    %104 = vst [vmem:[#allocation2 + $0x80] sm:$0xff] %v88
    %105 = vst [vmem:[#allocation2 + $0x88] sm:$0xff] %v89
    %v106 = vld [vmem:[#allocation2] sm:$0xff]
    %v107 = vld [vmem:[#allocation2 + $0x8] sm:$0xff]
    %v108 = vld [vmem:[#allocation2 + $0x10] sm:$0xff]
    %v109 = vld [vmem:[#allocation2 + $0x18] sm:$0xff]
    %v110 = vld [vmem:[#allocation2 + $0x20] sm:$0xff]
    %v111 = vld [vmem:[#allocation2 + $0x28] sm:$0xff]
    %v112 = vld [vmem:[#allocation2 + $0x30] sm:$0xff]
    %v113 = vld [vmem:[#allocation2 + $0x38] sm:$0xff]
    %v114 = vld [vmem:[#allocation2 + $0x40] sm:$0xff]
    %v115 = vld [vmem:[#allocation2 + $0x48] sm:$0xff]
    %v116 = vld [vmem:[#allocation2 + $0x50] sm:$0xff]
    %v117 = vld [vmem:[#allocation2 + $0x58] sm:$0xff]
    %v118 = vld [vmem:[#allocation2 + $0x60] sm:$0xff]
    %v119 = vld [vmem:[#allocation2 + $0x68] sm:$0xff]
    %v120 = vld [vmem:[#allocation2 + $0x70] sm:$0xff]
    %v121 = vld [vmem:[#allocation2 + $0x78] sm:$0xff]
    %v122 = vld [vmem:[%s1] sm:$0xff]
    %v123 = vld [vmem:[%s1 + $0x8] sm:$0xff]
    %v124 = vld [vmem:[%s1 + $0x10] sm:$0xff]
    %v125 = vld [vmem:[%s1 + $0x18] sm:$0xff]
    %v126 = vld [vmem:[%s1 + $0x20] sm:$0xff]
    %v127 = vld [vmem:[%s1 + $0x28] sm:$0xff]
    %v128 = vld [vmem:[%s1 + $0x30] sm:$0xff]
    %v129 = vld [vmem:[%s1 + $0x38] sm:$0xff]
    %v130 = vld [vmem:[%s1 + $0x40] sm:$0xff]
    %v131 = vld [vmem:[%s1 + $0x48] sm:$0xff]
    %v132 = vld [vmem:[%s1 + $0x50] sm:$0xff]
    %v133 = vld [vmem:[%s1 + $0x58] sm:$0xff]
    %v134 = vld [vmem:[%s1 + $0x60] sm:$0xff]
    %v135 = vld [vmem:[%s1 + $0x68] sm:$0xff]
    %v136 = vld [vmem:[%s1 + $0x70] sm:$0xff]
    %v137 = vld [vmem:[%s1 + $0x78] sm:$0xff]
    %v138 = vld [vmem:[%s1 + $0x80] sm:$0xff]
    %v139 = vld [vmem:[%s1 + $0x88] sm:$0xff]
    %v140 = vld [vmem:[%s1 + $0x90] sm:$0xff]
    %v141 = vld [vmem:[%s1 + $0x98] sm:$0xff]
    %v142 = vld [vmem:[%s1 + $0xa0] sm:$0xff]
    %v143 = vld [vmem:[%s1 + $0xa8] sm:$0xff]
    %v144 = vld [vmem:[%s1 + $0xb0] sm:$0xff]
    %v145 = vld [vmem:[%s1 + $0xb8] sm:$0xff]
    %v146 = vld [vmem:[%s1 + $0xc0] sm:$0xff]
    %v147 = vld [vmem:[%s1 + $0xc8] sm:$0xff]
    %v148 = vld [vmem:[%s1 + $0xd0] sm:$0xff]
    %v149 = vld [vmem:[%s1 + $0xd8] sm:$0xff]
    %v150 = vld [vmem:[%s1 + $0xe0] sm:$0xff]
    %v151 = vld [vmem:[%s1 + $0xe8] sm:$0xff]
    %v152 = vld [vmem:[%s1 + $0xf0] sm:$0xff]
    %v153 = vld [vmem:[%s1 + $0xf8] sm:$0xff]
    %v154 = vld [vmem:[%s1 + $0x100] sm:$0xff]
    %v155 = vld [vmem:[%s1 + $0x108] sm:$0xff]
    %v156 = vld [vmem:[%s1 + $0x110] sm:$0xff]
    %v157 = vld [vmem:[%s1 + $0x118] sm:$0xff]
    %v158 = vld [vmem:[%s1 + $0x120] sm:$0xff]
    %v159 = vld [vmem:[%s1 + $0x128] sm:$0xff]
    %v160 = vld [vmem:[%s1 + $0x130] sm:$0xff]
    %v161 = vld [vmem:[%s1 + $0x138] sm:$0xff]
    %v162 = vld [vmem:[%s1 + $0x140] sm:$0xff]
    %v163 = vld [vmem:[%s1 + $0x148] sm:$0xff]
    %v164 = vld [vmem:[%s1 + $0x150] sm:$0xff]
    %v165 = vld [vmem:[%s1 + $0x158] sm:$0xff]
    %v166 = vld [vmem:[%s1 + $0x160] sm:$0xff]
    %v167 = vld [vmem:[%s1 + $0x168] sm:$0xff]
    %v168 = vld [vmem:[%s1 + $0x170] sm:$0xff]
    %v169 = vld [vmem:[%s1 + $0x178] sm:$0xff]
    %v170 = vld [vmem:[%s1 + $0x180] sm:$0xff]
    %v171 = vld [vmem:[%s1 + $0x188] sm:$0xff]
    %v172 = vld [vmem:[%s1 + $0x190] sm:$0xff]
    %v173 = vld [vmem:[%s1 + $0x198] sm:$0xff]
    %v174 = vld [vmem:[%s1 + $0x1a0] sm:$0xff]
    %v175 = vld [vmem:[%s1 + $0x1a8] sm:$0xff]
    %v176 = vld [vmem:[%s1 + $0x1b0] sm:$0xff]
    %v177 = vld [vmem:[%s1 + $0x1b8] sm:$0xff]
    %v178 = vld [vmem:[%s1 + $0x1c0] sm:$0xff]
    %v179 = vld [vmem:[%s1 + $0x1c8] sm:$0xff]
    %v180 = vld [vmem:[%s1 + $0x1d0] sm:$0xff]
    %v181 = vld [vmem:[%s1 + $0x1d8] sm:$0xff]
    %v182 = vld [vmem:[%s1 + $0x1e0] sm:$0xff]
    %v183 = vld [vmem:[%s1 + $0x1e8] sm:$0xff]
    %v184 = vld [vmem:[%s1 + $0x1f0] sm:$0xff]
    %v185 = vld [vmem:[%s1 + $0x1f8] sm:$0xff]
    %186 = vmatpush.msra.mxu0 %v182
    %187 = vmatpush.msra.mxu0 %v178
    %188 = vmatpush.msra.mxu0 %v174
    %189 = vmatpush.msra.mxu0 %v170
    %190 = vmatpush.msra.mxu0 %v166
    %191 = vmatpush.msra.mxu0 %v162
    %192 = vmatpush.msra.mxu0 %v158
    %193 = vmatpush.msra.mxu0 %v154
    %194 = vmatpush.msra.mxu0 %v150
    %195 = vmatpush.msra.mxu0 %v146
    %196 = vmatpush.msra.mxu0 %v142
    %197 = vmatpush.msra.mxu0 %v138
    %198 = vmatpush.msra.mxu0 %v134
    %199 = vmatpush.msra.mxu0 %v130
    %200 = vmatpush.msra.mxu0 %v126
    %201 = vmatpush.msra.mxu0 %v122
    %202 = vmatmul.f32.gmra.mxu0 %v106
    %v203 = vpop.f32.mrf.mxu0
    %v204 = vadd.f32 0.0, %v203
    %205 = vmatmul.f32.gmra.mxu0 %v107
    %v206 = vpop.f32.mrf.mxu0
    %v207 = vadd.f32 0.0, %v206
    %208 = vmatmul.f32.gmra.mxu0 %v108
    %v209 = vpop.f32.mrf.mxu0
    %v210 = vadd.f32 0.0, %v209
    %211 = vmatmul.f32.gmra.mxu0 %v109
    %v212 = vpop.f32.mrf.mxu0
    %v213 = vadd.f32 0.0, %v212
    %214 = vmatmul.f32.gmra.mxu0 %v110
    %v215 = vpop.f32.mrf.mxu0
    %v216 = vadd.f32 0.0, %v215
    %217 = vmatmul.f32.gmra.mxu0 %v111
    %v218 = vpop.f32.mrf.mxu0
    %v219 = vadd.f32 0.0, %v218
    %220 = vmatmul.f32.gmra.mxu0 %v112
    %v221 = vpop.f32.mrf.mxu0
    %v222 = vadd.f32 0.0, %v221
    %223 = vmatmul.f32.gmra.mxu0 %v113
    %v224 = vpop.f32.mrf.mxu0
    %v225 = vadd.f32 0.0, %v224
    %226 = vmatmul.f32.gmra.mxu0 %v114
    %v227 = vpop.f32.mrf.mxu0
    %v228 = vadd.f32 0.0, %v227
    %229 = vmatmul.f32.gmra.mxu0 %v115
    %v230 = vpop.f32.mrf.mxu0
    %v231 = vadd.f32 0.0, %v230
    %232 = vmatmul.f32.gmra.mxu0 %v116
    %v233 = vpop.f32.mrf.mxu0
    %v234 = vadd.f32 0.0, %v233
    %235 = vmatmul.f32.gmra.mxu0 %v117
    %v236 = vpop.f32.mrf.mxu0
    %v237 = vadd.f32 0.0, %v236
    %238 = vmatmul.f32.gmra.mxu0 %v118
    %v239 = vpop.f32.mrf.mxu0
    %v240 = vadd.f32 0.0, %v239
    %241 = vmatmul.f32.gmra.mxu0 %v119
    %v242 = vpop.f32.mrf.mxu0
    %v243 = vadd.f32 0.0, %v242
    %244 = vmatmul.f32.gmra.mxu0 %v120
    %v245 = vpop.f32.mrf.mxu0
    %v246 = vadd.f32 0.0, %v245
    %247 = vmatmul.f32.gmra.mxu0 %v121
    %v248 = vpop.f32.mrf.mxu0
    %v249 = vadd.f32 0.0, %v248
    %250 = vdwg.mxu0
    %251 = vmatpush.msra.mxu0 %v183
    %252 = vmatpush.msra.mxu0 %v179
    %253 = vmatpush.msra.mxu0 %v175
    %254 = vmatpush.msra.mxu0 %v171
    %255 = vmatpush.msra.mxu0 %v167
    %256 = vmatpush.msra.mxu0 %v163
    %257 = vmatpush.msra.mxu0 %v159
    %258 = vmatpush.msra.mxu0 %v155
    %259 = vmatpush.msra.mxu0 %v151
    %260 = vmatpush.msra.mxu0 %v147
    %261 = vmatpush.msra.mxu0 %v143
    %262 = vmatpush.msra.mxu0 %v139
    %263 = vmatpush.msra.mxu0 %v135
    %264 = vmatpush.msra.mxu0 %v131
    %265 = vmatpush.msra.mxu0 %v127
    %266 = vmatpush.msra.mxu0 %v123
    %267 = vmatmul.f32.gmra.mxu0 %v106
    %v268 = vpop.f32.mrf.mxu0
    %v269 = vadd.f32 0.0, %v268
    %270 = vmatmul.f32.gmra.mxu0 %v107
    %v271 = vpop.f32.mrf.mxu0
    %v272 = vadd.f32 0.0, %v271
    %273 = vmatmul.f32.gmra.mxu0 %v108
    %v274 = vpop.f32.mrf.mxu0
    %v275 = vadd.f32 0.0, %v274
    %276 = vmatmul.f32.gmra.mxu0 %v109
    %v277 = vpop.f32.mrf.mxu0
    %v278 = vadd.f32 0.0, %v277
    %279 = vmatmul.f32.gmra.mxu0 %v110
    %v280 = vpop.f32.mrf.mxu0
    %v281 = vadd.f32 0.0, %v280
    %282 = vmatmul.f32.gmra.mxu0 %v111
    %v283 = vpop.f32.mrf.mxu0
    %v284 = vadd.f32 0.0, %v283
    %285 = vmatmul.f32.gmra.mxu0 %v112
    %v286 = vpop.f32.mrf.mxu0
    %v287 = vadd.f32 0.0, %v286
    %288 = vmatmul.f32.gmra.mxu0 %v113
    %v289 = vpop.f32.mrf.mxu0
    %v290 = vadd.f32 0.0, %v289
    %291 = vmatmul.f32.gmra.mxu0 %v114
    %v292 = vpop.f32.mrf.mxu0
    %v293 = vadd.f32 0.0, %v292
    %294 = vmatmul.f32.gmra.mxu0 %v115
    %v295 = vpop.f32.mrf.mxu0
    %v296 = vadd.f32 0.0, %v295
    %297 = vmatmul.f32.gmra.mxu0 %v116
    %v298 = vpop.f32.mrf.mxu0
    %v299 = vadd.f32 0.0, %v298
    %300 = vmatmul.f32.gmra.mxu0 %v117
    %v301 = vpop.f32.mrf.mxu0
    %v302 = vadd.f32 0.0, %v301
    %303 = vmatmul.f32.gmra.mxu0 %v118
    %v304 = vpop.f32.mrf.mxu0
    %v305 = vadd.f32 0.0, %v304
    %306 = vmatmul.f32.gmra.mxu0 %v119
    %v307 = vpop.f32.mrf.mxu0
    %v308 = vadd.f32 0.0, %v307
    %309 = vmatmul.f32.gmra.mxu0 %v120
    %v310 = vpop.f32.mrf.mxu0
    %v311 = vadd.f32 0.0, %v310
    %312 = vmatmul.f32.gmra.mxu0 %v121
    %v313 = vpop.f32.mrf.mxu0
    %v314 = vadd.f32 0.0, %v313
    %315 = vdwg.mxu0
    %316 = vmatpush.msra.mxu0 %v184
    %317 = vmatpush.msra.mxu0 %v180
    %318 = vmatpush.msra.mxu0 %v176
    %319 = vmatpush.msra.mxu0 %v172
    %320 = vmatpush.msra.mxu0 %v168
    %321 = vmatpush.msra.mxu0 %v164
    %322 = vmatpush.msra.mxu0 %v160
    %323 = vmatpush.msra.mxu0 %v156
    %324 = vmatpush.msra.mxu0 %v152
    %325 = vmatpush.msra.mxu0 %v148
    %326 = vmatpush.msra.mxu0 %v144
    %327 = vmatpush.msra.mxu0 %v140
    %328 = vmatpush.msra.mxu0 %v136
    %329 = vmatpush.msra.mxu0 %v132
    %330 = vmatpush.msra.mxu0 %v128
    %331 = vmatpush.msra.mxu0 %v124
    %332 = vmatmul.f32.gmra.mxu0 %v106
    %v333 = vpop.f32.mrf.mxu0
    %v334 = vadd.f32 0.0, %v333
    %335 = vmatmul.f32.gmra.mxu0 %v107
    %v336 = vpop.f32.mrf.mxu0
    %v337 = vadd.f32 0.0, %v336
    %338 = vmatmul.f32.gmra.mxu0 %v108
    %v339 = vpop.f32.mrf.mxu0
    %v340 = vadd.f32 0.0, %v339
    %341 = vmatmul.f32.gmra.mxu0 %v109
    %v342 = vpop.f32.mrf.mxu0
    %v343 = vadd.f32 0.0, %v342
    %344 = vmatmul.f32.gmra.mxu0 %v110
    %v345 = vpop.f32.mrf.mxu0
    %v346 = vadd.f32 0.0, %v345
    %347 = vmatmul.f32.gmra.mxu0 %v111
    %v348 = vpop.f32.mrf.mxu0
    %v349 = vadd.f32 0.0, %v348
    %350 = vmatmul.f32.gmra.mxu0 %v112
    %v351 = vpop.f32.mrf.mxu0
    %v352 = vadd.f32 0.0, %v351
    %353 = vmatmul.f32.gmra.mxu0 %v113
    %v354 = vpop.f32.mrf.mxu0
    %v355 = vadd.f32 0.0, %v354
    %356 = vmatmul.f32.gmra.mxu0 %v114
    %v357 = vpop.f32.mrf.mxu0
    %v358 = vadd.f32 0.0, %v357
    %359 = vmatmul.f32.gmra.mxu0 %v115
    %v360 = vpop.f32.mrf.mxu0
    %v361 = vadd.f32 0.0, %v360
    %362 = vmatmul.f32.gmra.mxu0 %v116
    %v363 = vpop.f32.mrf.mxu0
    %v364 = vadd.f32 0.0, %v363
    %365 = vmatmul.f32.gmra.mxu0 %v117
    %v366 = vpop.f32.mrf.mxu0
    %v367 = vadd.f32 0.0, %v366
    %368 = vmatmul.f32.gmra.mxu0 %v118
    %v369 = vpop.f32.mrf.mxu0
    %v370 = vadd.f32 0.0, %v369
    %371 = vmatmul.f32.gmra.mxu0 %v119
    %v372 = vpop.f32.mrf.mxu0
    %v373 = vadd.f32 0.0, %v372
    %374 = vmatmul.f32.gmra.mxu0 %v120
    %v375 = vpop.f32.mrf.mxu0
    %v376 = vadd.f32 0.0, %v375
    %377 = vmatmul.f32.gmra.mxu0 %v121
    %v378 = vpop.f32.mrf.mxu0
    %v379 = vadd.f32 0.0, %v378
    %380 = vdwg.mxu0
    %381 = vmatpush.msra.mxu0 %v185
    %382 = vmatpush.msra.mxu0 %v181
    %383 = vmatpush.msra.mxu0 %v177
    %384 = vmatpush.msra.mxu0 %v173
    %385 = vmatpush.msra.mxu0 %v169
    %386 = vmatpush.msra.mxu0 %v165
    %387 = vmatpush.msra.mxu0 %v161
    %388 = vmatpush.msra.mxu0 %v157
    %389 = vmatpush.msra.mxu0 %v153
    %390 = vmatpush.msra.mxu0 %v149
    %391 = vmatpush.msra.mxu0 %v145
    %392 = vmatpush.msra.mxu0 %v141
    %393 = vmatpush.msra.mxu0 %v137
    %394 = vmatpush.msra.mxu0 %v133
    %395 = vmatpush.msra.mxu0 %v129
    %396 = vmatpush.msra.mxu0 %v125
    %397 = vmatmul.f32.gmra.mxu0 %v106
    %v398 = vpop.f32.mrf.mxu0
    %v399 = vadd.f32 0.0, %v398
    %400 = vmatmul.f32.gmra.mxu0 %v107
    %v401 = vpop.f32.mrf.mxu0
    %v402 = vadd.f32 0.0, %v401
    %403 = vmatmul.f32.gmra.mxu0 %v108
    %v404 = vpop.f32.mrf.mxu0
    %v405 = vadd.f32 0.0, %v404
    %406 = vmatmul.f32.gmra.mxu0 %v109
    %v407 = vpop.f32.mrf.mxu0
    %v408 = vadd.f32 0.0, %v407
    %409 = vmatmul.f32.gmra.mxu0 %v110
    %v410 = vpop.f32.mrf.mxu0
    %v411 = vadd.f32 0.0, %v410
    %412 = vmatmul.f32.gmra.mxu0 %v111
    %v413 = vpop.f32.mrf.mxu0
    %v414 = vadd.f32 0.0, %v413
    %415 = vmatmul.f32.gmra.mxu0 %v112
    %v416 = vpop.f32.mrf.mxu0
    %v417 = vadd.f32 0.0, %v416
    %418 = vmatmul.f32.gmra.mxu0 %v113
    %v419 = vpop.f32.mrf.mxu0
    %v420 = vadd.f32 0.0, %v419
    %421 = vmatmul.f32.gmra.mxu0 %v114
    %v422 = vpop.f32.mrf.mxu0
    %v423 = vadd.f32 0.0, %v422
    %424 = vmatmul.f32.gmra.mxu0 %v115
    %v425 = vpop.f32.mrf.mxu0
    %v426 = vadd.f32 0.0, %v425
    %427 = vmatmul.f32.gmra.mxu0 %v116
    %v428 = vpop.f32.mrf.mxu0
    %v429 = vadd.f32 0.0, %v428
    %430 = vmatmul.f32.gmra.mxu0 %v117
    %v431 = vpop.f32.mrf.mxu0
    %v432 = vadd.f32 0.0, %v431
    %433 = vmatmul.f32.gmra.mxu0 %v118
    %v434 = vpop.f32.mrf.mxu0
    %v435 = vadd.f32 0.0, %v434
    %436 = vmatmul.f32.gmra.mxu0 %v119
    %v437 = vpop.f32.mrf.mxu0
    %v438 = vadd.f32 0.0, %v437
    %439 = vmatmul.f32.gmra.mxu0 %v120
    %v440 = vpop.f32.mrf.mxu0
    %v441 = vadd.f32 0.0, %v440
    %442 = vmatmul.f32.gmra.mxu0 %v121
    %v443 = vpop.f32.mrf.mxu0
    %v444 = vadd.f32 0.0, %v443
    %445 = vdwg.mxu0
    %446 = vst [vmem:[#allocation5] sm:$0xff] %v204
    %447 = vst [vmem:[#allocation5 + $0x8] sm:$0xff] %v269
    %448 = vst [vmem:[#allocation5 + $0x10] sm:$0xff] %v334
    %449 = vst [vmem:[#allocation5 + $0x18] sm:$0xff] %v399
    %450 = vst [vmem:[#allocation5 + $0x20] sm:$0xff] %v207
    %451 = vst [vmem:[#allocation5 + $0x28] sm:$0xff] %v272
    %452 = vst [vmem:[#allocation5 + $0x30] sm:$0xff] %v337
    %453 = vst [vmem:[#allocation5 + $0x38] sm:$0xff] %v402
    %454 = vst [vmem:[#allocation5 + $0x40] sm:$0xff] %v210
    %455 = vst [vmem:[#allocation5 + $0x48] sm:$0xff] %v275
    %456 = vst [vmem:[#allocation5 + $0x50] sm:$0xff] %v340
    %457 = vst [vmem:[#allocation5 + $0x58] sm:$0xff] %v405
    %458 = vst [vmem:[#allocation5 + $0x60] sm:$0xff] %v213
    %459 = vst [vmem:[#allocation5 + $0x68] sm:$0xff] %v278
    %460 = vst [vmem:[#allocation5 + $0x70] sm:$0xff] %v343
    %461 = vst [vmem:[#allocation5 + $0x78] sm:$0xff] %v408
    %462 = vst [vmem:[#allocation5 + $0x80] sm:$0xff] %v216
    %463 = vst [vmem:[#allocation5 + $0x88] sm:$0xff] %v281
    %464 = vst [vmem:[#allocation5 + $0x90] sm:$0xff] %v346
    %465 = vst [vmem:[#allocation5 + $0x98] sm:$0xff] %v411
    %466 = vst [vmem:[#allocation5 + $0xa0] sm:$0xff] %v219
    %467 = vst [vmem:[#allocation5 + $0xa8] sm:$0xff] %v284
    %468 = vst [vmem:[#allocation5 + $0xb0] sm:$0xff] %v349
    %469 = vst [vmem:[#allocation5 + $0xb8] sm:$0xff] %v414
    %470 = vst [vmem:[#allocation5 + $0xc0] sm:$0xff] %v222
    %471 = vst [vmem:[#allocation5 + $0xc8] sm:$0xff] %v287
    %472 = vst [vmem:[#allocation5 + $0xd0] sm:$0xff] %v352
    %473 = vst [vmem:[#allocation5 + $0xd8] sm:$0xff] %v417
    %474 = vst [vmem:[#allocation5 + $0xe0] sm:$0xff] %v225
    %475 = vst [vmem:[#allocation5 + $0xe8] sm:$0xff] %v290
    %476 = vst [vmem:[#allocation5 + $0xf0] sm:$0xff] %v355
    %477 = vst [vmem:[#allocation5 + $0xf8] sm:$0xff] %v420
    %478 = vst [vmem:[#allocation5 + $0x100] sm:$0xff] %v228
    %479 = vst [vmem:[#allocation5 + $0x108] sm:$0xff] %v293
    %480 = vst [vmem:[#allocation5 + $0x110] sm:$0xff] %v358
    %481 = vst [vmem:[#allocation5 + $0x118] sm:$0xff] %v423
    %482 = vst [vmem:[#allocation5 + $0x120] sm:$0xff] %v231
    %483 = vst [vmem:[#allocation5 + $0x128] sm:$0xff] %v296
    %484 = vst [vmem:[#allocation5 + $0x130] sm:$0xff] %v361
    %485 = vst [vmem:[#allocation5 + $0x138] sm:$0xff] %v426
    %486 = vst [vmem:[#allocation5 + $0x140] sm:$0xff] %v234
    %487 = vst [vmem:[#allocation5 + $0x148] sm:$0xff] %v299
    %488 = vst [vmem:[#allocation5 + $0x150] sm:$0xff] %v364
    %489 = vst [vmem:[#allocation5 + $0x158] sm:$0xff] %v429
    %490 = vst [vmem:[#allocation5 + $0x160] sm:$0xff] %v237
    %491 = vst [vmem:[#allocation5 + $0x168] sm:$0xff] %v302
    %492 = vst [vmem:[#allocation5 + $0x170] sm:$0xff] %v367
    %493 = vst [vmem:[#allocation5 + $0x178] sm:$0xff] %v432
    %494 = vst [vmem:[#allocation5 + $0x180] sm:$0xff] %v240
    %495 = vst [vmem:[#allocation5 + $0x188] sm:$0xff] %v305
    %496 = vst [vmem:[#allocation5 + $0x190] sm:$0xff] %v370
    %497 = vst [vmem:[#allocation5 + $0x198] sm:$0xff] %v435
    %498 = vst [vmem:[#allocation5 + $0x1a0] sm:$0xff] %v243
    %499 = vst [vmem:[#allocation5 + $0x1a8] sm:$0xff] %v308
    %500 = vst [vmem:[#allocation5 + $0x1b0] sm:$0xff] %v373
    %501 = vst [vmem:[#allocation5 + $0x1b8] sm:$0xff] %v438
    %502 = vst [vmem:[#allocation5 + $0x1c0] sm:$0xff] %v246
    %503 = vst [vmem:[#allocation5 + $0x1c8] sm:$0xff] %v311
    %504 = vst [vmem:[#allocation5 + $0x1d0] sm:$0xff] %v376
    %505 = vst [vmem:[#allocation5 + $0x1d8] sm:$0xff] %v441
    %506 = vst [vmem:[#allocation5 + $0x1e0] sm:$0xff] %v249
    %507 = vst [vmem:[#allocation5 + $0x1e8] sm:$0xff] %v314
    %508 = vst [vmem:[#allocation5 + $0x1f0] sm:$0xff] %v379
    %509 = vst [vmem:[#allocation5 + $0x1f8] sm:$0xff] %v444
    %v510 = vld [vmem:[#allocation5] sm:$0xff]
    %v511 = vld [vmem:[#allocation5 + $0x8] sm:$0xff]
    %v512 = vld [vmem:[#allocation5 + $0x10] sm:$0xff]
    %v513 = vld [vmem:[#allocation5 + $0x18] sm:$0xff]
    %v514 = vld [vmem:[#allocation5 + $0x20] sm:$0xff]
    %v515 = vld [vmem:[#allocation5 + $0x28] sm:$0xff]
    %v516 = vld [vmem:[#allocation5 + $0x30] sm:$0xff]
    %v517 = vld [vmem:[#allocation5 + $0x38] sm:$0xff]
    %v518 = vld [vmem:[#allocation5 + $0x40] sm:$0xff]
    %v519 = vld [vmem:[#allocation5 + $0x48] sm:$0xff]
    %v520 = vld [vmem:[#allocation5 + $0x50] sm:$0xff]
    %v521 = vld [vmem:[#allocation5 + $0x58] sm:$0xff]
    %v522 = vld [vmem:[#allocation5 + $0x60] sm:$0xff]
    %v523 = vld [vmem:[#allocation5 + $0x68] sm:$0xff]
    %v524 = vld [vmem:[#allocation5 + $0x70] sm:$0xff]
    %v525 = vld [vmem:[#allocation5 + $0x78] sm:$0xff]
    %v526 = vld [vmem:[#allocation5 + $0x80] sm:$0xff]
    %v527 = vld [vmem:[#allocation5 + $0x88] sm:$0xff]
    %v528 = vld [vmem:[#allocation5 + $0x90] sm:$0xff]
    %v529 = vld [vmem:[#allocation5 + $0x98] sm:$0xff]
    %v530 = vld [vmem:[#allocation5 + $0xa0] sm:$0xff]
    %v531 = vld [vmem:[#allocation5 + $0xa8] sm:$0xff]
    %v532 = vld [vmem:[#allocation5 + $0xb0] sm:$0xff]
    %v533 = vld [vmem:[#allocation5 + $0xb8] sm:$0xff]
    %v534 = vld [vmem:[#allocation5 + $0xc0] sm:$0xff]
    %v535 = vld [vmem:[#allocation5 + $0xc8] sm:$0xff]
    %v536 = vld [vmem:[#allocation5 + $0xd0] sm:$0xff]
    %v537 = vld [vmem:[#allocation5 + $0xd8] sm:$0xff]
    %v538 = vld [vmem:[#allocation5 + $0xe0] sm:$0xff]
    %v539 = vld [vmem:[#allocation5 + $0xe8] sm:$0xff]
    %v540 = vld [vmem:[#allocation5 + $0xf0] sm:$0xff]
    %v541 = vld [vmem:[#allocation5 + $0xf8] sm:$0xff]
    %v542 = vld [vmem:[#allocation5 + $0x100] sm:$0xff]
    %v543 = vld [vmem:[#allocation5 + $0x108] sm:$0xff]
    %v544 = vld [vmem:[#allocation5 + $0x110] sm:$0xff]
    %v545 = vld [vmem:[#allocation5 + $0x118] sm:$0xff]
    %v546 = vld [vmem:[#allocation5 + $0x120] sm:$0xff]
    %v547 = vld [vmem:[#allocation5 + $0x128] sm:$0xff]
    %v548 = vld [vmem:[#allocation5 + $0x130] sm:$0xff]
    %v549 = vld [vmem:[#allocation5 + $0x138] sm:$0xff]
    %v550 = vld [vmem:[#allocation5 + $0x140] sm:$0xff]
    %v551 = vld [vmem:[#allocation5 + $0x148] sm:$0xff]
    %v552 = vld [vmem:[#allocation5 + $0x150] sm:$0xff]
    %v553 = vld [vmem:[#allocation5 + $0x158] sm:$0xff]
    %v554 = vld [vmem:[#allocation5 + $0x160] sm:$0xff]
    %v555 = vld [vmem:[#allocation5 + $0x168] sm:$0xff]
    %v556 = vld [vmem:[#allocation5 + $0x170] sm:$0xff]
    %v557 = vld [vmem:[#allocation5 + $0x178] sm:$0xff]
    %v558 = vld [vmem:[#allocation5 + $0x180] sm:$0xff]
    %v559 = vld [vmem:[#allocation5 + $0x188] sm:$0xff]
    %v560 = vld [vmem:[#allocation5 + $0x190] sm:$0xff]
    %v561 = vld [vmem:[#allocation5 + $0x198] sm:$0xff]
    %v562 = vld [vmem:[#allocation5 + $0x1a0] sm:$0xff]
    %v563 = vld [vmem:[#allocation5 + $0x1a8] sm:$0xff]
    %v564 = vld [vmem:[#allocation5 + $0x1b0] sm:$0xff]
    %v565 = vld [vmem:[#allocation5 + $0x1b8] sm:$0xff]
    %v566 = vld [vmem:[#allocation5 + $0x1c0] sm:$0xff]
    %v567 = vld [vmem:[#allocation5 + $0x1c8] sm:$0xff]
    %v568 = vld [vmem:[#allocation5 + $0x1d0] sm:$0xff]
    %v569 = vld [vmem:[#allocation5 + $0x1d8] sm:$0xff]
    %v570 = vld [vmem:[#allocation5 + $0x1e0] sm:$0xff]
    %v571 = vld [vmem:[#allocation5 + $0x1e8] sm:$0xff]
    %v572 = vld [vmem:[#allocation5 + $0x1f0] sm:$0xff]
    %v573 = vld [vmem:[#allocation5 + $0x1f8] sm:$0xff]
    %v574 = vld [vmem:[#allocation2 + $0x8] sm:$0xff]
    %v575 = vld [vmem:[#allocation2 + $0x10] sm:$0xff]
    %v576 = vld [vmem:[#allocation2 + $0x18] sm:$0xff]
    %v577 = vld [vmem:[#allocation2 + $0x20] sm:$0xff]
    %v578 = vld [vmem:[#allocation2 + $0x28] sm:$0xff]
    %v579 = vld [vmem:[#allocation2 + $0x30] sm:$0xff]
    %v580 = vld [vmem:[#allocation2 + $0x38] sm:$0xff]
    %v581 = vld [vmem:[#allocation2 + $0x40] sm:$0xff]
    %v582 = vld [vmem:[#allocation2 + $0x48] sm:$0xff]
    %v583 = vld [vmem:[#allocation2 + $0x50] sm:$0xff]
    %v584 = vld [vmem:[#allocation2 + $0x58] sm:$0xff]
    %v585 = vld [vmem:[#allocation2 + $0x60] sm:$0xff]
    %v586 = vld [vmem:[#allocation2 + $0x68] sm:$0xff]
    %v587 = vld [vmem:[#allocation2 + $0x70] sm:$0xff]
    %v588 = vld [vmem:[#allocation2 + $0x78] sm:$0xff]
    %v589 = vld [vmem:[#allocation2 + $0x80] sm:$0xff]
    %s590 = scalar_lea.vmem %s1, 512
    %v591 = vld [vmem:[%s590] sm:$0xff]
    %v592 = vld [vmem:[%s590 + $0x8] sm:$0xff]
    %v593 = vld [vmem:[%s590 + $0x10] sm:$0xff]
    %v594 = vld [vmem:[%s590 + $0x18] sm:$0xff]
    %v595 = vld [vmem:[%s590 + $0x20] sm:$0xff]
    %v596 = vld [vmem:[%s590 + $0x28] sm:$0xff]
    %v597 = vld [vmem:[%s590 + $0x30] sm:$0xff]
    %v598 = vld [vmem:[%s590 + $0x38] sm:$0xff]
    %v599 = vld [vmem:[%s590 + $0x40] sm:$0xff]
    %v600 = vld [vmem:[%s590 + $0x48] sm:$0xff]
    %v601 = vld [vmem:[%s590 + $0x50] sm:$0xff]
    %v602 = vld [vmem:[%s590 + $0x58] sm:$0xff]
    %v603 = vld [vmem:[%s590 + $0x60] sm:$0xff]
    %v604 = vld [vmem:[%s590 + $0x68] sm:$0xff]
    %v605 = vld [vmem:[%s590 + $0x70] sm:$0xff]
    %v606 = vld [vmem:[%s590 + $0x78] sm:$0xff]
    %v607 = vld [vmem:[%s590 + $0x80] sm:$0xff]
    %v608 = vld [vmem:[%s590 + $0x88] sm:$0xff]
    %v609 = vld [vmem:[%s590 + $0x90] sm:$0xff]
    %v610 = vld [vmem:[%s590 + $0x98] sm:$0xff]
    %v611 = vld [vmem:[%s590 + $0xa0] sm:$0xff]
    %v612 = vld [vmem:[%s590 + $0xa8] sm:$0xff]
    %v613 = vld [vmem:[%s590 + $0xb0] sm:$0xff]
    %v614 = vld [vmem:[%s590 + $0xb8] sm:$0xff]
    %v615 = vld [vmem:[%s590 + $0xc0] sm:$0xff]
    %v616 = vld [vmem:[%s590 + $0xc8] sm:$0xff]
    %v617 = vld [vmem:[%s590 + $0xd0] sm:$0xff]
    %v618 = vld [vmem:[%s590 + $0xd8] sm:$0xff]
    %v619 = vld [vmem:[%s590 + $0xe0] sm:$0xff]
    %v620 = vld [vmem:[%s590 + $0xe8] sm:$0xff]
    %v621 = vld [vmem:[%s590 + $0xf0] sm:$0xff]
    %v622 = vld [vmem:[%s590 + $0xf8] sm:$0xff]
    %v623 = vld [vmem:[%s590 + $0x100] sm:$0xff]
    %v624 = vld [vmem:[%s590 + $0x108] sm:$0xff]
    %v625 = vld [vmem:[%s590 + $0x110] sm:$0xff]
    %v626 = vld [vmem:[%s590 + $0x118] sm:$0xff]
    %v627 = vld [vmem:[%s590 + $0x120] sm:$0xff]
    %v628 = vld [vmem:[%s590 + $0x128] sm:$0xff]
    %v629 = vld [vmem:[%s590 + $0x130] sm:$0xff]
    %v630 = vld [vmem:[%s590 + $0x138] sm:$0xff]
    %v631 = vld [vmem:[%s590 + $0x140] sm:$0xff]
    %v632 = vld [vmem:[%s590 + $0x148] sm:$0xff]
    %v633 = vld [vmem:[%s590 + $0x150] sm:$0xff]
    %v634 = vld [vmem:[%s590 + $0x158] sm:$0xff]
    %v635 = vld [vmem:[%s590 + $0x160] sm:$0xff]
    %v636 = vld [vmem:[%s590 + $0x168] sm:$0xff]
    %v637 = vld [vmem:[%s590 + $0x170] sm:$0xff]
    %v638 = vld [vmem:[%s590 + $0x178] sm:$0xff]
    %v639 = vld [vmem:[%s590 + $0x180] sm:$0xff]
    %v640 = vld [vmem:[%s590 + $0x188] sm:$0xff]
    %v641 = vld [vmem:[%s590 + $0x190] sm:$0xff]
    %v642 = vld [vmem:[%s590 + $0x198] sm:$0xff]
    %v643 = vld [vmem:[%s590 + $0x1a0] sm:$0xff]
    %v644 = vld [vmem:[%s590 + $0x1a8] sm:$0xff]
    %v645 = vld [vmem:[%s590 + $0x1b0] sm:$0xff]
    %v646 = vld [vmem:[%s590 + $0x1b8] sm:$0xff]
    %v647 = vld [vmem:[%s590 + $0x1c0] sm:$0xff]
    %v648 = vld [vmem:[%s590 + $0x1c8] sm:$0xff]
    %v649 = vld [vmem:[%s590 + $0x1d0] sm:$0xff]
    %v650 = vld [vmem:[%s590 + $0x1d8] sm:$0xff]
    %v651 = vld [vmem:[%s590 + $0x1e0] sm:$0xff]
    %v652 = vld [vmem:[%s590 + $0x1e8] sm:$0xff]
    %v653 = vld [vmem:[%s590 + $0x1f0] sm:$0xff]
    %v654 = vld [vmem:[%s590 + $0x1f8] sm:$0xff]
    %655 = vmatpush.msra.mxu0 %v651
    %656 = vmatpush.msra.mxu0 %v647
    %657 = vmatpush.msra.mxu0 %v643
    %658 = vmatpush.msra.mxu0 %v639
    %659 = vmatpush.msra.mxu0 %v635
    %660 = vmatpush.msra.mxu0 %v631
    %661 = vmatpush.msra.mxu0 %v627
    %662 = vmatpush.msra.mxu0 %v623
    %663 = vmatpush.msra.mxu0 %v619
    %664 = vmatpush.msra.mxu0 %v615
    %665 = vmatpush.msra.mxu0 %v611
    %666 = vmatpush.msra.mxu0 %v607
    %667 = vmatpush.msra.mxu0 %v603
    %668 = vmatpush.msra.mxu0 %v599
    %669 = vmatpush.msra.mxu0 %v595
    %670 = vmatpush.msra.mxu0 %v591
    %671 = vmatmul.f32.gmra.mxu0 %v574
    %v672 = vpop.f32.mrf.mxu0
    %v673 = vadd.f32 0.0, %v672
    %674 = vmatmul.f32.gmra.mxu0 %v575
    %v675 = vpop.f32.mrf.mxu0
    %v676 = vadd.f32 0.0, %v675
    %677 = vmatmul.f32.gmra.mxu0 %v576
    %v678 = vpop.f32.mrf.mxu0
    %v679 = vadd.f32 0.0, %v678
    %680 = vmatmul.f32.gmra.mxu0 %v577
    %v681 = vpop.f32.mrf.mxu0
    %v682 = vadd.f32 0.0, %v681
    %683 = vmatmul.f32.gmra.mxu0 %v578
    %v684 = vpop.f32.mrf.mxu0
    %v685 = vadd.f32 0.0, %v684
    %686 = vmatmul.f32.gmra.mxu0 %v579
    %v687 = vpop.f32.mrf.mxu0
    %v688 = vadd.f32 0.0, %v687
    %689 = vmatmul.f32.gmra.mxu0 %v580
    %v690 = vpop.f32.mrf.mxu0
    %v691 = vadd.f32 0.0, %v690
    %692 = vmatmul.f32.gmra.mxu0 %v581
    %v693 = vpop.f32.mrf.mxu0
    %v694 = vadd.f32 0.0, %v693
    %695 = vmatmul.f32.gmra.mxu0 %v582
    %v696 = vpop.f32.mrf.mxu0
    %v697 = vadd.f32 0.0, %v696
    %698 = vmatmul.f32.gmra.mxu0 %v583
    %v699 = vpop.f32.mrf.mxu0
    %v700 = vadd.f32 0.0, %v699
    %701 = vmatmul.f32.gmra.mxu0 %v584
    %v702 = vpop.f32.mrf.mxu0
    %v703 = vadd.f32 0.0, %v702
    %704 = vmatmul.f32.gmra.mxu0 %v585
    %v705 = vpop.f32.mrf.mxu0
    %v706 = vadd.f32 0.0, %v705
    %707 = vmatmul.f32.gmra.mxu0 %v586
    %v708 = vpop.f32.mrf.mxu0
    %v709 = vadd.f32 0.0, %v708
    %710 = vmatmul.f32.gmra.mxu0 %v587
    %v711 = vpop.f32.mrf.mxu0
    %v712 = vadd.f32 0.0, %v711
    %713 = vmatmul.f32.gmra.mxu0 %v588
    %v714 = vpop.f32.mrf.mxu0
    %v715 = vadd.f32 0.0, %v714
    %716 = vmatmul.f32.gmra.mxu0 %v589
    %v717 = vpop.f32.mrf.mxu0
    %v718 = vadd.f32 0.0, %v717
    %719 = vdwg.mxu0
    %720 = vmatpush.msra.mxu0 %v652
    %721 = vmatpush.msra.mxu0 %v648
    %722 = vmatpush.msra.mxu0 %v644
    %723 = vmatpush.msra.mxu0 %v640
    %724 = vmatpush.msra.mxu0 %v636
    %725 = vmatpush.msra.mxu0 %v632
    %726 = vmatpush.msra.mxu0 %v628
    %727 = vmatpush.msra.mxu0 %v624
    %728 = vmatpush.msra.mxu0 %v620
    %729 = vmatpush.msra.mxu0 %v616
    %730 = vmatpush.msra.mxu0 %v612
    %731 = vmatpush.msra.mxu0 %v608
    %732 = vmatpush.msra.mxu0 %v604
    %733 = vmatpush.msra.mxu0 %v600
    %734 = vmatpush.msra.mxu0 %v596
    %735 = vmatpush.msra.mxu0 %v592
    %736 = vmatmul.f32.gmra.mxu0 %v574
    %v737 = vpop.f32.mrf.mxu0
    %v738 = vadd.f32 0.0, %v737
    %739 = vmatmul.f32.gmra.mxu0 %v575
    %v740 = vpop.f32.mrf.mxu0
    %v741 = vadd.f32 0.0, %v740
    %742 = vmatmul.f32.gmra.mxu0 %v576
    %v743 = vpop.f32.mrf.mxu0
    %v744 = vadd.f32 0.0, %v743
    %745 = vmatmul.f32.gmra.mxu0 %v577
    %v746 = vpop.f32.mrf.mxu0
    %v747 = vadd.f32 0.0, %v746
    %748 = vmatmul.f32.gmra.mxu0 %v578
    %v749 = vpop.f32.mrf.mxu0
    %v750 = vadd.f32 0.0, %v749
    %751 = vmatmul.f32.gmra.mxu0 %v579
    %v752 = vpop.f32.mrf.mxu0
    %v753 = vadd.f32 0.0, %v752
    %754 = vmatmul.f32.gmra.mxu0 %v580
    %v755 = vpop.f32.mrf.mxu0
    %v756 = vadd.f32 0.0, %v755
    %757 = vmatmul.f32.gmra.mxu0 %v581
    %v758 = vpop.f32.mrf.mxu0
    %v759 = vadd.f32 0.0, %v758
    %760 = vmatmul.f32.gmra.mxu0 %v582
    %v761 = vpop.f32.mrf.mxu0
    %v762 = vadd.f32 0.0, %v761
    %763 = vmatmul.f32.gmra.mxu0 %v583
    %v764 = vpop.f32.mrf.mxu0
    %v765 = vadd.f32 0.0, %v764
    %766 = vmatmul.f32.gmra.mxu0 %v584
    %v767 = vpop.f32.mrf.mxu0
    %v768 = vadd.f32 0.0, %v767
    %769 = vmatmul.f32.gmra.mxu0 %v585
    %v770 = vpop.f32.mrf.mxu0
    %v771 = vadd.f32 0.0, %v770
    %772 = vmatmul.f32.gmra.mxu0 %v586
    %v773 = vpop.f32.mrf.mxu0
    %v774 = vadd.f32 0.0, %v773
    %775 = vmatmul.f32.gmra.mxu0 %v587
    %v776 = vpop.f32.mrf.mxu0
    %v777 = vadd.f32 0.0, %v776
    %778 = vmatmul.f32.gmra.mxu0 %v588
    %v779 = vpop.f32.mrf.mxu0
    %v780 = vadd.f32 0.0, %v779
    %781 = vmatmul.f32.gmra.mxu0 %v589
    %v782 = vpop.f32.mrf.mxu0
    %v783 = vadd.f32 0.0, %v782
    %784 = vdwg.mxu0
    %785 = vmatpush.msra.mxu0 %v653
    %786 = vmatpush.msra.mxu0 %v649
    %787 = vmatpush.msra.mxu0 %v645
    %788 = vmatpush.msra.mxu0 %v641
    %789 = vmatpush.msra.mxu0 %v637
    %790 = vmatpush.msra.mxu0 %v633
    %791 = vmatpush.msra.mxu0 %v629
    %792 = vmatpush.msra.mxu0 %v625
    %793 = vmatpush.msra.mxu0 %v621
    %794 = vmatpush.msra.mxu0 %v617
    %795 = vmatpush.msra.mxu0 %v613
    %796 = vmatpush.msra.mxu0 %v609
    %797 = vmatpush.msra.mxu0 %v605
    %798 = vmatpush.msra.mxu0 %v601
    %799 = vmatpush.msra.mxu0 %v597
    %800 = vmatpush.msra.mxu0 %v593
    %801 = vmatmul.f32.gmra.mxu0 %v574
    %v802 = vpop.f32.mrf.mxu0
    %v803 = vadd.f32 0.0, %v802
    %804 = vmatmul.f32.gmra.mxu0 %v575
    %v805 = vpop.f32.mrf.mxu0
    %v806 = vadd.f32 0.0, %v805
    %807 = vmatmul.f32.gmra.mxu0 %v576
    %v808 = vpop.f32.mrf.mxu0
    %v809 = vadd.f32 0.0, %v808
    %810 = vmatmul.f32.gmra.mxu0 %v577
    %v811 = vpop.f32.mrf.mxu0
    %v812 = vadd.f32 0.0, %v811
    %813 = vmatmul.f32.gmra.mxu0 %v578
    %v814 = vpop.f32.mrf.mxu0
    %v815 = vadd.f32 0.0, %v814
    %816 = vmatmul.f32.gmra.mxu0 %v579
    %v817 = vpop.f32.mrf.mxu0
    %v818 = vadd.f32 0.0, %v817
    %819 = vmatmul.f32.gmra.mxu0 %v580
    %v820 = vpop.f32.mrf.mxu0
    %v821 = vadd.f32 0.0, %v820
    %822 = vmatmul.f32.gmra.mxu0 %v581
    %v823 = vpop.f32.mrf.mxu0
    %v824 = vadd.f32 0.0, %v823
    %825 = vmatmul.f32.gmra.mxu0 %v582
    %v826 = vpop.f32.mrf.mxu0
    %v827 = vadd.f32 0.0, %v826
    %828 = vmatmul.f32.gmra.mxu0 %v583
    %v829 = vpop.f32.mrf.mxu0
    %v830 = vadd.f32 0.0, %v829
    %831 = vmatmul.f32.gmra.mxu0 %v584
    %v832 = vpop.f32.mrf.mxu0
    %v833 = vadd.f32 0.0, %v832
    %834 = vmatmul.f32.gmra.mxu0 %v585
    %v835 = vpop.f32.mrf.mxu0
    %v836 = vadd.f32 0.0, %v835
    %837 = vmatmul.f32.gmra.mxu0 %v586
    %v838 = vpop.f32.mrf.mxu0
    %v839 = vadd.f32 0.0, %v838
    %840 = vmatmul.f32.gmra.mxu0 %v587
    %v841 = vpop.f32.mrf.mxu0
    %v842 = vadd.f32 0.0, %v841
    %843 = vmatmul.f32.gmra.mxu0 %v588
    %v844 = vpop.f32.mrf.mxu0
    %v845 = vadd.f32 0.0, %v844
    %846 = vmatmul.f32.gmra.mxu0 %v589
    %v847 = vpop.f32.mrf.mxu0
    %v848 = vadd.f32 0.0, %v847
    %849 = vdwg.mxu0
    %850 = vmatpush.msra.mxu0 %v654
    %851 = vmatpush.msra.mxu0 %v650
    %852 = vmatpush.msra.mxu0 %v646
    %853 = vmatpush.msra.mxu0 %v642
    %854 = vmatpush.msra.mxu0 %v638
    %855 = vmatpush.msra.mxu0 %v634
    %856 = vmatpush.msra.mxu0 %v630
    %857 = vmatpush.msra.mxu0 %v626
    %858 = vmatpush.msra.mxu0 %v622
    %859 = vmatpush.msra.mxu0 %v618
    %860 = vmatpush.msra.mxu0 %v614
    %861 = vmatpush.msra.mxu0 %v610
    %862 = vmatpush.msra.mxu0 %v606
    %863 = vmatpush.msra.mxu0 %v602
    %864 = vmatpush.msra.mxu0 %v598
    %865 = vmatpush.msra.mxu0 %v594
    %866 = vmatmul.f32.gmra.mxu0 %v574
    %v867 = vpop.f32.mrf.mxu0
    %v868 = vadd.f32 0.0, %v867
    %869 = vmatmul.f32.gmra.mxu0 %v575
    %v870 = vpop.f32.mrf.mxu0
    %v871 = vadd.f32 0.0, %v870
    %872 = vmatmul.f32.gmra.mxu0 %v576
    %v873 = vpop.f32.mrf.mxu0
    %v874 = vadd.f32 0.0, %v873
    %875 = vmatmul.f32.gmra.mxu0 %v577
    %v876 = vpop.f32.mrf.mxu0
    %v877 = vadd.f32 0.0, %v876
    %878 = vmatmul.f32.gmra.mxu0 %v578
    %v879 = vpop.f32.mrf.mxu0
    %v880 = vadd.f32 0.0, %v879
    %881 = vmatmul.f32.gmra.mxu0 %v579
    %v882 = vpop.f32.mrf.mxu0
    %v883 = vadd.f32 0.0, %v882
    %884 = vmatmul.f32.gmra.mxu0 %v580
    %v885 = vpop.f32.mrf.mxu0
    %v886 = vadd.f32 0.0, %v885
    %887 = vmatmul.f32.gmra.mxu0 %v581
    %v888 = vpop.f32.mrf.mxu0
    %v889 = vadd.f32 0.0, %v888
    %890 = vmatmul.f32.gmra.mxu0 %v582
    %v891 = vpop.f32.mrf.mxu0
    %v892 = vadd.f32 0.0, %v891
    %893 = vmatmul.f32.gmra.mxu0 %v583
    %v894 = vpop.f32.mrf.mxu0
    %v895 = vadd.f32 0.0, %v894
    %896 = vmatmul.f32.gmra.mxu0 %v584
    %v897 = vpop.f32.mrf.mxu0
    %v898 = vadd.f32 0.0, %v897
    %899 = vmatmul.f32.gmra.mxu0 %v585
    %v900 = vpop.f32.mrf.mxu0
    %v901 = vadd.f32 0.0, %v900
    %902 = vmatmul.f32.gmra.mxu0 %v586
    %v903 = vpop.f32.mrf.mxu0
    %v904 = vadd.f32 0.0, %v903
    %905 = vmatmul.f32.gmra.mxu0 %v587
    %v906 = vpop.f32.mrf.mxu0
    %v907 = vadd.f32 0.0, %v906
    %908 = vmatmul.f32.gmra.mxu0 %v588
    %v909 = vpop.f32.mrf.mxu0
    %v910 = vadd.f32 0.0, %v909
    %911 = vmatmul.f32.gmra.mxu0 %v589
    %v912 = vpop.f32.mrf.mxu0
    %v913 = vadd.f32 0.0, %v912
    %914 = vdwg.mxu0
    %v915 = vadd.f32 %v510, %v673
    %v916 = vadd.f32 %v511, %v738
    %v917 = vadd.f32 %v512, %v803
    %v918 = vadd.f32 %v513, %v868
    %v919 = vadd.f32 %v514, %v676
    %v920 = vadd.f32 %v515, %v741
    %v921 = vadd.f32 %v516, %v806
    %v922 = vadd.f32 %v517, %v871
    %v923 = vadd.f32 %v518, %v679
    %v924 = vadd.f32 %v519, %v744
    %v925 = vadd.f32 %v520, %v809
    %v926 = vadd.f32 %v521, %v874
    %v927 = vadd.f32 %v522, %v682
    %v928 = vadd.f32 %v523, %v747
    %v929 = vadd.f32 %v524, %v812
    %v930 = vadd.f32 %v525, %v877
    %v931 = vadd.f32 %v526, %v685
    %v932 = vadd.f32 %v527, %v750
    %v933 = vadd.f32 %v528, %v815
    %v934 = vadd.f32 %v529, %v880
    %v935 = vadd.f32 %v530, %v688
    %v936 = vadd.f32 %v531, %v753
    %v937 = vadd.f32 %v532, %v818
    %v938 = vadd.f32 %v533, %v883
    %v939 = vadd.f32 %v534, %v691
    %v940 = vadd.f32 %v535, %v756
    %v941 = vadd.f32 %v536, %v821
    %v942 = vadd.f32 %v537, %v886
    %v943 = vadd.f32 %v538, %v694
    %v944 = vadd.f32 %v539, %v759
    %v945 = vadd.f32 %v540, %v824
    %v946 = vadd.f32 %v541, %v889
    %v947 = vadd.f32 %v542, %v697
    %v948 = vadd.f32 %v543, %v762
    %v949 = vadd.f32 %v544, %v827
    %v950 = vadd.f32 %v545, %v892
    %v951 = vadd.f32 %v546, %v700
    %v952 = vadd.f32 %v547, %v765
    %v953 = vadd.f32 %v548, %v830
    %v954 = vadd.f32 %v549, %v895
    %v955 = vadd.f32 %v550, %v703
    %v956 = vadd.f32 %v551, %v768
    %v957 = vadd.f32 %v552, %v833
    %v958 = vadd.f32 %v553, %v898
    %v959 = vadd.f32 %v554, %v706
    %v960 = vadd.f32 %v555, %v771
    %v961 = vadd.f32 %v556, %v836
    %v962 = vadd.f32 %v557, %v901
    %v963 = vadd.f32 %v558, %v709
    %v964 = vadd.f32 %v559, %v774
    %v965 = vadd.f32 %v560, %v839
    %v966 = vadd.f32 %v561, %v904
    %v967 = vadd.f32 %v562, %v712
    %v968 = vadd.f32 %v563, %v777
    %v969 = vadd.f32 %v564, %v842
    %v970 = vadd.f32 %v565, %v907
    %v971 = vadd.f32 %v566, %v715
    %v972 = vadd.f32 %v567, %v780
    %v973 = vadd.f32 %v568, %v845
    %v974 = vadd.f32 %v569, %v910
    %v975 = vadd.f32 %v570, %v718
    %v976 = vadd.f32 %v571, %v783
    %v977 = vadd.f32 %v572, %v848
    %v978 = vadd.f32 %v573, %v913
    %979 = vst [vmem:[#allocation5] sm:$0xff] %v915
    %980 = vst [vmem:[#allocation5 + $0x8] sm:$0xff] %v916
    %981 = vst [vmem:[#allocation5 + $0x10] sm:$0xff] %v917
    %982 = vst [vmem:[#allocation5 + $0x18] sm:$0xff] %v918
    %983 = vst [vmem:[#allocation5 + $0x20] sm:$0xff] %v919
    %984 = vst [vmem:[#allocation5 + $0x28] sm:$0xff] %v920
    %985 = vst [vmem:[#allocation5 + $0x30] sm:$0xff] %v921
    %986 = vst [vmem:[#allocation5 + $0x38] sm:$0xff] %v922
    %987 = vst [vmem:[#allocation5 + $0x40] sm:$0xff] %v923
    %988 = vst [vmem:[#allocation5 + $0x48] sm:$0xff] %v924
    %989 = vst [vmem:[#allocation5 + $0x50] sm:$0xff] %v925
    %990 = vst [vmem:[#allocation5 + $0x58] sm:$0xff] %v926
    %991 = vst [vmem:[#allocation5 + $0x60] sm:$0xff] %v927
    %992 = vst [vmem:[#allocation5 + $0x68] sm:$0xff] %v928
    %993 = vst [vmem:[#allocation5 + $0x70] sm:$0xff] %v929
    %994 = vst [vmem:[#allocation5 + $0x78] sm:$0xff] %v930
    %995 = vst [vmem:[#allocation5 + $0x80] sm:$0xff] %v931
    %996 = vst [vmem:[#allocation5 + $0x88] sm:$0xff] %v932
    %997 = vst [vmem:[#allocation5 + $0x90] sm:$0xff] %v933
    %998 = vst [vmem:[#allocation5 + $0x98] sm:$0xff] %v934
    %999 = vst [vmem:[#allocation5 + $0xa0] sm:$0xff] %v935
    %1000 = vst [vmem:[#allocation5 + $0xa8] sm:$0xff] %v936
    %1001 = vst [vmem:[#allocation5 + $0xb0] sm:$0xff] %v937
    %1002 = vst [vmem:[#allocation5 + $0xb8] sm:$0xff] %v938
    %1003 = vst [vmem:[#allocation5 + $0xc0] sm:$0xff] %v939
    %1004 = vst [vmem:[#allocation5 + $0xc8] sm:$0xff] %v940
    %1005 = vst [vmem:[#allocation5 + $0xd0] sm:$0xff] %v941
    %1006 = vst [vmem:[#allocation5 + $0xd8] sm:$0xff] %v942
    %1007 = vst [vmem:[#allocation5 + $0xe0] sm:$0xff] %v943
    %1008 = vst [vmem:[#allocation5 + $0xe8] sm:$0xff] %v944
    %1009 = vst [vmem:[#allocation5 + $0xf0] sm:$0xff] %v945
    %1010 = vst [vmem:[#allocation5 + $0xf8] sm:$0xff] %v946
    %1011 = vst [vmem:[#allocation5 + $0x100] sm:$0xff] %v947
    %1012 = vst [vmem:[#allocation5 + $0x108] sm:$0xff] %v948
    %1013 = vst [vmem:[#allocation5 + $0x110] sm:$0xff] %v949
    %1014 = vst [vmem:[#allocation5 + $0x118] sm:$0xff] %v950
    %1015 = vst [vmem:[#allocation5 + $0x120] sm:$0xff] %v951
    %1016 = vst [vmem:[#allocation5 + $0x128] sm:$0xff] %v952
    %1017 = vst [vmem:[#allocation5 + $0x130] sm:$0xff] %v953
    %1018 = vst [vmem:[#allocation5 + $0x138] sm:$0xff] %v954
    %1019 = vst [vmem:[#allocation5 + $0x140] sm:$0xff] %v955
    %1020 = vst [vmem:[#allocation5 + $0x148] sm:$0xff] %v956
    %1021 = vst [vmem:[#allocation5 + $0x150] sm:$0xff] %v957
    %1022 = vst [vmem:[#allocation5 + $0x158] sm:$0xff] %v958
    %1023 = vst [vmem:[#allocation5 + $0x160] sm:$0xff] %v959
    %1024 = vst [vmem:[#allocation5 + $0x168] sm:$0xff] %v960
    %1025 = vst [vmem:[#allocation5 + $0x170] sm:$0xff] %v961
    %1026 = vst [vmem:[#allocation5 + $0x178] sm:$0xff] %v962
    %1027 = vst [vmem:[#allocation5 + $0x180] sm:$0xff] %v963
    %1028 = vst [vmem:[#allocation5 + $0x188] sm:$0xff] %v964
    %1029 = vst [vmem:[#allocation5 + $0x190] sm:$0xff] %v965
    %1030 = vst [vmem:[#allocation5 + $0x198] sm:$0xff] %v966
    %1031 = vst [vmem:[#allocation5 + $0x1a0] sm:$0xff] %v967
    %1032 = vst [vmem:[#allocation5 + $0x1a8] sm:$0xff] %v968
    %1033 = vst [vmem:[#allocation5 + $0x1b0] sm:$0xff] %v969
    %1034 = vst [vmem:[#allocation5 + $0x1b8] sm:$0xff] %v970
    %1035 = vst [vmem:[#allocation5 + $0x1c0] sm:$0xff] %v971
    %1036 = vst [vmem:[#allocation5 + $0x1c8] sm:$0xff] %v972
    %1037 = vst [vmem:[#allocation5 + $0x1d0] sm:$0xff] %v973
    %1038 = vst [vmem:[#allocation5 + $0x1d8] sm:$0xff] %v974
    %1039 = vst [vmem:[#allocation5 + $0x1e0] sm:$0xff] %v975
    %1040 = vst [vmem:[#allocation5 + $0x1e8] sm:$0xff] %v976
    %1041 = vst [vmem:[#allocation5 + $0x1f0] sm:$0xff] %v977
    %1042 = vst [vmem:[#allocation5 + $0x1f8] sm:$0xff] %v978
    %v1043 = vld [vmem:[#allocation5] sm:$0xff]
    %v1044 = vld [vmem:[#allocation5 + $0x8] sm:$0xff]
    %v1045 = vld [vmem:[#allocation5 + $0x10] sm:$0xff]
    %v1046 = vld [vmem:[#allocation5 + $0x18] sm:$0xff]
    %v1047 = vld [vmem:[#allocation5 + $0x20] sm:$0xff]
    %v1048 = vld [vmem:[#allocation5 + $0x28] sm:$0xff]
    %v1049 = vld [vmem:[#allocation5 + $0x30] sm:$0xff]
    %v1050 = vld [vmem:[#allocation5 + $0x38] sm:$0xff]
    %v1051 = vld [vmem:[#allocation5 + $0x40] sm:$0xff]
    %v1052 = vld [vmem:[#allocation5 + $0x48] sm:$0xff]
    %v1053 = vld [vmem:[#allocation5 + $0x50] sm:$0xff]
    %v1054 = vld [vmem:[#allocation5 + $0x58] sm:$0xff]
    %v1055 = vld [vmem:[#allocation5 + $0x60] sm:$0xff]
    %v1056 = vld [vmem:[#allocation5 + $0x68] sm:$0xff]
    %v1057 = vld [vmem:[#allocation5 + $0x70] sm:$0xff]
    %v1058 = vld [vmem:[#allocation5 + $0x78] sm:$0xff]
    %v1059 = vld [vmem:[#allocation5 + $0x80] sm:$0xff]
    %v1060 = vld [vmem:[#allocation5 + $0x88] sm:$0xff]
    %v1061 = vld [vmem:[#allocation5 + $0x90] sm:$0xff]
    %v1062 = vld [vmem:[#allocation5 + $0x98] sm:$0xff]
    %v1063 = vld [vmem:[#allocation5 + $0xa0] sm:$0xff]
    %v1064 = vld [vmem:[#allocation5 + $0xa8] sm:$0xff]
    %v1065 = vld [vmem:[#allocation5 + $0xb0] sm:$0xff]
    %v1066 = vld [vmem:[#allocation5 + $0xb8] sm:$0xff]
    %v1067 = vld [vmem:[#allocation5 + $0xc0] sm:$0xff]
    %v1068 = vld [vmem:[#allocation5 + $0xc8] sm:$0xff]
    %v1069 = vld [vmem:[#allocation5 + $0xd0] sm:$0xff]
    %v1070 = vld [vmem:[#allocation5 + $0xd8] sm:$0xff]
    %v1071 = vld [vmem:[#allocation5 + $0xe0] sm:$0xff]
    %v1072 = vld [vmem:[#allocation5 + $0xe8] sm:$0xff]
    %v1073 = vld [vmem:[#allocation5 + $0xf0] sm:$0xff]
    %v1074 = vld [vmem:[#allocation5 + $0xf8] sm:$0xff]
    %v1075 = vld [vmem:[#allocation5 + $0x100] sm:$0xff]
    %v1076 = vld [vmem:[#allocation5 + $0x108] sm:$0xff]
    %v1077 = vld [vmem:[#allocation5 + $0x110] sm:$0xff]
    %v1078 = vld [vmem:[#allocation5 + $0x118] sm:$0xff]
    %v1079 = vld [vmem:[#allocation5 + $0x120] sm:$0xff]
    %v1080 = vld [vmem:[#allocation5 + $0x128] sm:$0xff]
    %v1081 = vld [vmem:[#allocation5 + $0x130] sm:$0xff]
    %v1082 = vld [vmem:[#allocation5 + $0x138] sm:$0xff]
    %v1083 = vld [vmem:[#allocation5 + $0x140] sm:$0xff]
    %v1084 = vld [vmem:[#allocation5 + $0x148] sm:$0xff]
    %v1085 = vld [vmem:[#allocation5 + $0x150] sm:$0xff]
    %v1086 = vld [vmem:[#allocation5 + $0x158] sm:$0xff]
    %v1087 = vld [vmem:[#allocation5 + $0x160] sm:$0xff]
    %v1088 = vld [vmem:[#allocation5 + $0x168] sm:$0xff]
    %v1089 = vld [vmem:[#allocation5 + $0x170] sm:$0xff]
    %v1090 = vld [vmem:[#allocation5 + $0x178] sm:$0xff]
    %v1091 = vld [vmem:[#allocation5 + $0x180] sm:$0xff]
    %v1092 = vld [vmem:[#allocation5 + $0x188] sm:$0xff]
    %v1093 = vld [vmem:[#allocation5 + $0x190] sm:$0xff]
    %v1094 = vld [vmem:[#allocation5 + $0x198] sm:$0xff]
    %v1095 = vld [vmem:[#allocation5 + $0x1a0] sm:$0xff]
    %v1096 = vld [vmem:[#allocation5 + $0x1a8] sm:$0xff]
    %v1097 = vld [vmem:[#allocation5 + $0x1b0] sm:$0xff]
    %v1098 = vld [vmem:[#allocation5 + $0x1b8] sm:$0xff]
    %v1099 = vld [vmem:[#allocation5 + $0x1c0] sm:$0xff]
    %v1100 = vld [vmem:[#allocation5 + $0x1c8] sm:$0xff]
    %v1101 = vld [vmem:[#allocation5 + $0x1d0] sm:$0xff]
    %v1102 = vld [vmem:[#allocation5 + $0x1d8] sm:$0xff]
    %v1103 = vld [vmem:[#allocation5 + $0x1e0] sm:$0xff]
    %v1104 = vld [vmem:[#allocation5 + $0x1e8] sm:$0xff]
    %v1105 = vld [vmem:[#allocation5 + $0x1f0] sm:$0xff]
    %v1106 = vld [vmem:[#allocation5 + $0x1f8] sm:$0xff]
    %v1107 = vld [vmem:[#allocation2 + $0x10] sm:$0xff]
    %v1108 = vld [vmem:[#allocation2 + $0x18] sm:$0xff]
    %v1109 = vld [vmem:[#allocation2 + $0x20] sm:$0xff]
    %v1110 = vld [vmem:[#allocation2 + $0x28] sm:$0xff]
    %v1111 = vld [vmem:[#allocation2 + $0x30] sm:$0xff]
    %v1112 = vld [vmem:[#allocation2 + $0x38] sm:$0xff]
    %v1113 = vld [vmem:[#allocation2 + $0x40] sm:$0xff]
    %v1114 = vld [vmem:[#allocation2 + $0x48] sm:$0xff]
    %v1115 = vld [vmem:[#allocation2 + $0x50] sm:$0xff]
    %v1116 = vld [vmem:[#allocation2 + $0x58] sm:$0xff]
    %v1117 = vld [vmem:[#allocation2 + $0x60] sm:$0xff]
    %v1118 = vld [vmem:[#allocation2 + $0x68] sm:$0xff]
    %v1119 = vld [vmem:[#allocation2 + $0x70] sm:$0xff]
    %v1120 = vld [vmem:[#allocation2 + $0x78] sm:$0xff]
    %v1121 = vld [vmem:[#allocation2 + $0x80] sm:$0xff]
    %v1122 = vld [vmem:[#allocation2 + $0x88] sm:$0xff]
    %s1123 = scalar_lea.vmem %s1, 1024
    %v1124 = vld [vmem:[%s1123] sm:$0xff]
    %v1125 = vld [vmem:[%s1123 + $0x8] sm:$0xff]
    %v1126 = vld [vmem:[%s1123 + $0x10] sm:$0xff]
    %v1127 = vld [vmem:[%s1123 + $0x18] sm:$0xff]
    %v1128 = vld [vmem:[%s1123 + $0x20] sm:$0xff]
    %v1129 = vld [vmem:[%s1123 + $0x28] sm:$0xff]
    %v1130 = vld [vmem:[%s1123 + $0x30] sm:$0xff]
    %v1131 = vld [vmem:[%s1123 + $0x38] sm:$0xff]
    %v1132 = vld [vmem:[%s1123 + $0x40] sm:$0xff]
    %v1133 = vld [vmem:[%s1123 + $0x48] sm:$0xff]
    %v1134 = vld [vmem:[%s1123 + $0x50] sm:$0xff]
    %v1135 = vld [vmem:[%s1123 + $0x58] sm:$0xff]
    %v1136 = vld [vmem:[%s1123 + $0x60] sm:$0xff]
    %v1137 = vld [vmem:[%s1123 + $0x68] sm:$0xff]
    %v1138 = vld [vmem:[%s1123 + $0x70] sm:$0xff]
    %v1139 = vld [vmem:[%s1123 + $0x78] sm:$0xff]
    %v1140 = vld [vmem:[%s1123 + $0x80] sm:$0xff]
    %v1141 = vld [vmem:[%s1123 + $0x88] sm:$0xff]
    %v1142 = vld [vmem:[%s1123 + $0x90] sm:$0xff]
    %v1143 = vld [vmem:[%s1123 + $0x98] sm:$0xff]
    %v1144 = vld [vmem:[%s1123 + $0xa0] sm:$0xff]
    %v1145 = vld [vmem:[%s1123 + $0xa8] sm:$0xff]
    %v1146 = vld [vmem:[%s1123 + $0xb0] sm:$0xff]
    %v1147 = vld [vmem:[%s1123 + $0xb8] sm:$0xff]
    %v1148 = vld [vmem:[%s1123 + $0xc0] sm:$0xff]
    %v1149 = vld [vmem:[%s1123 + $0xc8] sm:$0xff]
    %v1150 = vld [vmem:[%s1123 + $0xd0] sm:$0xff]
    %v1151 = vld [vmem:[%s1123 + $0xd8] sm:$0xff]
    %v1152 = vld [vmem:[%s1123 + $0xe0] sm:$0xff]
    %v1153 = vld [vmem:[%s1123 + $0xe8] sm:$0xff]
    %v1154 = vld [vmem:[%s1123 + $0xf0] sm:$0xff]
    %v1155 = vld [vmem:[%s1123 + $0xf8] sm:$0xff]
    %v1156 = vld [vmem:[%s1123 + $0x100] sm:$0xff]
    %v1157 = vld [vmem:[%s1123 + $0x108] sm:$0xff]
    %v1158 = vld [vmem:[%s1123 + $0x110] sm:$0xff]
    %v1159 = vld [vmem:[%s1123 + $0x118] sm:$0xff]
    %v1160 = vld [vmem:[%s1123 + $0x120] sm:$0xff]
    %v1161 = vld [vmem:[%s1123 + $0x128] sm:$0xff]
    %v1162 = vld [vmem:[%s1123 + $0x130] sm:$0xff]
    %v1163 = vld [vmem:[%s1123 + $0x138] sm:$0xff]
    %v1164 = vld [vmem:[%s1123 + $0x140] sm:$0xff]
    %v1165 = vld [vmem:[%s1123 + $0x148] sm:$0xff]
    %v1166 = vld [vmem:[%s1123 + $0x150] sm:$0xff]
    %v1167 = vld [vmem:[%s1123 + $0x158] sm:$0xff]
    %v1168 = vld [vmem:[%s1123 + $0x160] sm:$0xff]
    %v1169 = vld [vmem:[%s1123 + $0x168] sm:$0xff]
    %v1170 = vld [vmem:[%s1123 + $0x170] sm:$0xff]
    %v1171 = vld [vmem:[%s1123 + $0x178] sm:$0xff]
    %v1172 = vld [vmem:[%s1123 + $0x180] sm:$0xff]
    %v1173 = vld [vmem:[%s1123 + $0x188] sm:$0xff]
    %v1174 = vld [vmem:[%s1123 + $0x190] sm:$0xff]
    %v1175 = vld [vmem:[%s1123 + $0x198] sm:$0xff]
    %v1176 = vld [vmem:[%s1123 + $0x1a0] sm:$0xff]
    %v1177 = vld [vmem:[%s1123 + $0x1a8] sm:$0xff]
    %v1178 = vld [vmem:[%s1123 + $0x1b0] sm:$0xff]
    %v1179 = vld [vmem:[%s1123 + $0x1b8] sm:$0xff]
    %v1180 = vld [vmem:[%s1123 + $0x1c0] sm:$0xff]
    %v1181 = vld [vmem:[%s1123 + $0x1c8] sm:$0xff]
    %v1182 = vld [vmem:[%s1123 + $0x1d0] sm:$0xff]
    %v1183 = vld [vmem:[%s1123 + $0x1d8] sm:$0xff]
    %v1184 = vld [vmem:[%s1123 + $0x1e0] sm:$0xff]
    %v1185 = vld [vmem:[%s1123 + $0x1e8] sm:$0xff]
    %v1186 = vld [vmem:[%s1123 + $0x1f0] sm:$0xff]
    %v1187 = vld [vmem:[%s1123 + $0x1f8] sm:$0xff]
    %1188 = vmatpush.msra.mxu0 %v1184
    %1189 = vmatpush.msra.mxu0 %v1180
    %1190 = vmatpush.msra.mxu0 %v1176
    %1191 = vmatpush.msra.mxu0 %v1172
    %1192 = vmatpush.msra.mxu0 %v1168
    %1193 = vmatpush.msra.mxu0 %v1164
    %1194 = vmatpush.msra.mxu0 %v1160
    %1195 = vmatpush.msra.mxu0 %v1156
    %1196 = vmatpush.msra.mxu0 %v1152
    %1197 = vmatpush.msra.mxu0 %v1148
    %1198 = vmatpush.msra.mxu0 %v1144
    %1199 = vmatpush.msra.mxu0 %v1140
    %1200 = vmatpush.msra.mxu0 %v1136
    %1201 = vmatpush.msra.mxu0 %v1132
    %1202 = vmatpush.msra.mxu0 %v1128
    %1203 = vmatpush.msra.mxu0 %v1124
    %1204 = vmatmul.f32.gmra.mxu0 %v1107
    %v1205 = vpop.f32.mrf.mxu0
    %v1206 = vadd.f32 0.0, %v1205
    %1207 = vmatmul.f32.gmra.mxu0 %v1108
    %v1208 = vpop.f32.mrf.mxu0
    %v1209 = vadd.f32 0.0, %v1208
    %1210 = vmatmul.f32.gmra.mxu0 %v1109
    %v1211 = vpop.f32.mrf.mxu0
    %v1212 = vadd.f32 0.0, %v1211
    %1213 = vmatmul.f32.gmra.mxu0 %v1110
    %v1214 = vpop.f32.mrf.mxu0
    %v1215 = vadd.f32 0.0, %v1214
    %1216 = vmatmul.f32.gmra.mxu0 %v1111
    %v1217 = vpop.f32.mrf.mxu0
    %v1218 = vadd.f32 0.0, %v1217
    %1219 = vmatmul.f32.gmra.mxu0 %v1112
    %v1220 = vpop.f32.mrf.mxu0
    %v1221 = vadd.f32 0.0, %v1220
    %1222 = vmatmul.f32.gmra.mxu0 %v1113
    %v1223 = vpop.f32.mrf.mxu0
    %v1224 = vadd.f32 0.0, %v1223
    %1225 = vmatmul.f32.gmra.mxu0 %v1114
    %v1226 = vpop.f32.mrf.mxu0
    %v1227 = vadd.f32 0.0, %v1226
    %1228 = vmatmul.f32.gmra.mxu0 %v1115
    %v1229 = vpop.f32.mrf.mxu0
    %v1230 = vadd.f32 0.0, %v1229
    %1231 = vmatmul.f32.gmra.mxu0 %v1116
    %v1232 = vpop.f32.mrf.mxu0
    %v1233 = vadd.f32 0.0, %v1232
    %1234 = vmatmul.f32.gmra.mxu0 %v1117
    %v1235 = vpop.f32.mrf.mxu0
    %v1236 = vadd.f32 0.0, %v1235
    %1237 = vmatmul.f32.gmra.mxu0 %v1118
    %v1238 = vpop.f32.mrf.mxu0
    %v1239 = vadd.f32 0.0, %v1238
    %1240 = vmatmul.f32.gmra.mxu0 %v1119
    %v1241 = vpop.f32.mrf.mxu0
    %v1242 = vadd.f32 0.0, %v1241
    %1243 = vmatmul.f32.gmra.mxu0 %v1120
    %v1244 = vpop.f32.mrf.mxu0
    %v1245 = vadd.f32 0.0, %v1244
    %1246 = vmatmul.f32.gmra.mxu0 %v1121
    %v1247 = vpop.f32.mrf.mxu0
    %v1248 = vadd.f32 0.0, %v1247
    %1249 = vmatmul.f32.gmra.mxu0 %v1122
    %v1250 = vpop.f32.mrf.mxu0
    %v1251 = vadd.f32 0.0, %v1250
    %1252 = vdwg.mxu0
    %1253 = vmatpush.msra.mxu0 %v1185
    %1254 = vmatpush.msra.mxu0 %v1181
    %1255 = vmatpush.msra.mxu0 %v1177
    %1256 = vmatpush.msra.mxu0 %v1173
    %1257 = vmatpush.msra.mxu0 %v1169
    %1258 = vmatpush.msra.mxu0 %v1165
    %1259 = vmatpush.msra.mxu0 %v1161
    %1260 = vmatpush.msra.mxu0 %v1157
    %1261 = vmatpush.msra.mxu0 %v1153
    %1262 = vmatpush.msra.mxu0 %v1149
    %1263 = vmatpush.msra.mxu0 %v1145
    %1264 = vmatpush.msra.mxu0 %v1141
    %1265 = vmatpush.msra.mxu0 %v1137
    %1266 = vmatpush.msra.mxu0 %v1133
    %1267 = vmatpush.msra.mxu0 %v1129
    %1268 = vmatpush.msra.mxu0 %v1125
    %1269 = vmatmul.f32.gmra.mxu0 %v1107
    %v1270 = vpop.f32.mrf.mxu0
    %v1271 = vadd.f32 0.0, %v1270
    %1272 = vmatmul.f32.gmra.mxu0 %v1108
    %v1273 = vpop.f32.mrf.mxu0
    %v1274 = vadd.f32 0.0, %v1273
    %1275 = vmatmul.f32.gmra.mxu0 %v1109
    %v1276 = vpop.f32.mrf.mxu0
    %v1277 = vadd.f32 0.0, %v1276
    %1278 = vmatmul.f32.gmra.mxu0 %v1110
    %v1279 = vpop.f32.mrf.mxu0
    %v1280 = vadd.f32 0.0, %v1279
    %1281 = vmatmul.f32.gmra.mxu0 %v1111
    %v1282 = vpop.f32.mrf.mxu0
    %v1283 = vadd.f32 0.0, %v1282
    %1284 = vmatmul.f32.gmra.mxu0 %v1112
    %v1285 = vpop.f32.mrf.mxu0
    %v1286 = vadd.f32 0.0, %v1285
    %1287 = vmatmul.f32.gmra.mxu0 %v1113
    %v1288 = vpop.f32.mrf.mxu0
    %v1289 = vadd.f32 0.0, %v1288
    %1290 = vmatmul.f32.gmra.mxu0 %v1114
    %v1291 = vpop.f32.mrf.mxu0
    %v1292 = vadd.f32 0.0, %v1291
    %1293 = vmatmul.f32.gmra.mxu0 %v1115
    %v1294 = vpop.f32.mrf.mxu0
    %v1295 = vadd.f32 0.0, %v1294
    %1296 = vmatmul.f32.gmra.mxu0 %v1116
    %v1297 = vpop.f32.mrf.mxu0
    %v1298 = vadd.f32 0.0, %v1297
    %1299 = vmatmul.f32.gmra.mxu0 %v1117
    %v1300 = vpop.f32.mrf.mxu0
    %v1301 = vadd.f32 0.0, %v1300
    %1302 = vmatmul.f32.gmra.mxu0 %v1118
    %v1303 = vpop.f32.mrf.mxu0
    %v1304 = vadd.f32 0.0, %v1303
    %1305 = vmatmul.f32.gmra.mxu0 %v1119
    %v1306 = vpop.f32.mrf.mxu0
    %v1307 = vadd.f32 0.0, %v1306
    %1308 = vmatmul.f32.gmra.mxu0 %v1120
    %v1309 = vpop.f32.mrf.mxu0
    %v1310 = vadd.f32 0.0, %v1309
    %1311 = vmatmul.f32.gmra.mxu0 %v1121
    %v1312 = vpop.f32.mrf.mxu0
    %v1313 = vadd.f32 0.0, %v1312
    %1314 = vmatmul.f32.gmra.mxu0 %v1122
    %v1315 = vpop.f32.mrf.mxu0
    %v1316 = vadd.f32 0.0, %v1315
    %1317 = vdwg.mxu0
    %1318 = vmatpush.msra.mxu0 %v1186
    %1319 = vmatpush.msra.mxu0 %v1182
    %1320 = vmatpush.msra.mxu0 %v1178
    %1321 = vmatpush.msra.mxu0 %v1174
    %1322 = vmatpush.msra.mxu0 %v1170
    %1323 = vmatpush.msra.mxu0 %v1166
    %1324 = vmatpush.msra.mxu0 %v1162
    %1325 = vmatpush.msra.mxu0 %v1158
    %1326 = vmatpush.msra.mxu0 %v1154
    %1327 = vmatpush.msra.mxu0 %v1150
    %1328 = vmatpush.msra.mxu0 %v1146
    %1329 = vmatpush.msra.mxu0 %v1142
    %1330 = vmatpush.msra.mxu0 %v1138
    %1331 = vmatpush.msra.mxu0 %v1134
    %1332 = vmatpush.msra.mxu0 %v1130
    %1333 = vmatpush.msra.mxu0 %v1126
    %1334 = vmatmul.f32.gmra.mxu0 %v1107
    %v1335 = vpop.f32.mrf.mxu0
    %v1336 = vadd.f32 0.0, %v1335
    %1337 = vmatmul.f32.gmra.mxu0 %v1108
    %v1338 = vpop.f32.mrf.mxu0
    %v1339 = vadd.f32 0.0, %v1338
    %1340 = vmatmul.f32.gmra.mxu0 %v1109
    %v1341 = vpop.f32.mrf.mxu0
    %v1342 = vadd.f32 0.0, %v1341
    %1343 = vmatmul.f32.gmra.mxu0 %v1110
    %v1344 = vpop.f32.mrf.mxu0
    %v1345 = vadd.f32 0.0, %v1344
    %1346 = vmatmul.f32.gmra.mxu0 %v1111
    %v1347 = vpop.f32.mrf.mxu0
    %v1348 = vadd.f32 0.0, %v1347
    %1349 = vmatmul.f32.gmra.mxu0 %v1112
    %v1350 = vpop.f32.mrf.mxu0
    %v1351 = vadd.f32 0.0, %v1350
    %1352 = vmatmul.f32.gmra.mxu0 %v1113
    %v1353 = vpop.f32.mrf.mxu0
    %v1354 = vadd.f32 0.0, %v1353
    %1355 = vmatmul.f32.gmra.mxu0 %v1114
    %v1356 = vpop.f32.mrf.mxu0
    %v1357 = vadd.f32 0.0, %v1356
    %1358 = vmatmul.f32.gmra.mxu0 %v1115
    %v1359 = vpop.f32.mrf.mxu0
    %v1360 = vadd.f32 0.0, %v1359
    %1361 = vmatmul.f32.gmra.mxu0 %v1116
    %v1362 = vpop.f32.mrf.mxu0
    %v1363 = vadd.f32 0.0, %v1362
    %1364 = vmatmul.f32.gmra.mxu0 %v1117
    %v1365 = vpop.f32.mrf.mxu0
    %v1366 = vadd.f32 0.0, %v1365
    %1367 = vmatmul.f32.gmra.mxu0 %v1118
    %v1368 = vpop.f32.mrf.mxu0
    %v1369 = vadd.f32 0.0, %v1368
    %1370 = vmatmul.f32.gmra.mxu0 %v1119
    %v1371 = vpop.f32.mrf.mxu0
    %v1372 = vadd.f32 0.0, %v1371
    %1373 = vmatmul.f32.gmra.mxu0 %v1120
    %v1374 = vpop.f32.mrf.mxu0
    %v1375 = vadd.f32 0.0, %v1374
    %1376 = vmatmul.f32.gmra.mxu0 %v1121
    %v1377 = vpop.f32.mrf.mxu0
    %v1378 = vadd.f32 0.0, %v1377
    %1379 = vmatmul.f32.gmra.mxu0 %v1122
    %v1380 = vpop.f32.mrf.mxu0
    %v1381 = vadd.f32 0.0, %v1380
    %1382 = vdwg.mxu0
    %1383 = vmatpush.msra.mxu0 %v1187
    %1384 = vmatpush.msra.mxu0 %v1183
    %1385 = vmatpush.msra.mxu0 %v1179
    %1386 = vmatpush.msra.mxu0 %v1175
    %1387 = vmatpush.msra.mxu0 %v1171
    %1388 = vmatpush.msra.mxu0 %v1167
    %1389 = vmatpush.msra.mxu0 %v1163
    %1390 = vmatpush.msra.mxu0 %v1159
    %1391 = vmatpush.msra.mxu0 %v1155
    %1392 = vmatpush.msra.mxu0 %v1151
    %1393 = vmatpush.msra.mxu0 %v1147
    %1394 = vmatpush.msra.mxu0 %v1143
    %1395 = vmatpush.msra.mxu0 %v1139
    %1396 = vmatpush.msra.mxu0 %v1135
    %1397 = vmatpush.msra.mxu0 %v1131
    %1398 = vmatpush.msra.mxu0 %v1127
    %1399 = vmatmul.f32.gmra.mxu0 %v1107
    %v1400 = vpop.f32.mrf.mxu0
    %v1401 = vadd.f32 0.0, %v1400
    %1402 = vmatmul.f32.gmra.mxu0 %v1108
    %v1403 = vpop.f32.mrf.mxu0
    %v1404 = vadd.f32 0.0, %v1403
    %1405 = vmatmul.f32.gmra.mxu0 %v1109
    %v1406 = vpop.f32.mrf.mxu0
    %v1407 = vadd.f32 0.0, %v1406
    %1408 = vmatmul.f32.gmra.mxu0 %v1110
    %v1409 = vpop.f32.mrf.mxu0
    %v1410 = vadd.f32 0.0, %v1409
    %1411 = vmatmul.f32.gmra.mxu0 %v1111
    %v1412 = vpop.f32.mrf.mxu0
    %v1413 = vadd.f32 0.0, %v1412
    %1414 = vmatmul.f32.gmra.mxu0 %v1112
    %v1415 = vpop.f32.mrf.mxu0
    %v1416 = vadd.f32 0.0, %v1415
    %1417 = vmatmul.f32.gmra.mxu0 %v1113
    %v1418 = vpop.f32.mrf.mxu0
    %v1419 = vadd.f32 0.0, %v1418
    %1420 = vmatmul.f32.gmra.mxu0 %v1114
    %v1421 = vpop.f32.mrf.mxu0
    %v1422 = vadd.f32 0.0, %v1421
    %1423 = vmatmul.f32.gmra.mxu0 %v1115
    %v1424 = vpop.f32.mrf.mxu0
    %v1425 = vadd.f32 0.0, %v1424
    %1426 = vmatmul.f32.gmra.mxu0 %v1116
    %v1427 = vpop.f32.mrf.mxu0
    %v1428 = vadd.f32 0.0, %v1427
    %1429 = vmatmul.f32.gmra.mxu0 %v1117
    %v1430 = vpop.f32.mrf.mxu0
    %v1431 = vadd.f32 0.0, %v1430
    %1432 = vmatmul.f32.gmra.mxu0 %v1118
    %v1433 = vpop.f32.mrf.mxu0
    %v1434 = vadd.f32 0.0, %v1433
    %1435 = vmatmul.f32.gmra.mxu0 %v1119
    %v1436 = vpop.f32.mrf.mxu0
    %v1437 = vadd.f32 0.0, %v1436
    %1438 = vmatmul.f32.gmra.mxu0 %v1120
    %v1439 = vpop.f32.mrf.mxu0
    %v1440 = vadd.f32 0.0, %v1439
    %1441 = vmatmul.f32.gmra.mxu0 %v1121
    %v1442 = vpop.f32.mrf.mxu0
    %v1443 = vadd.f32 0.0, %v1442
    %1444 = vmatmul.f32.gmra.mxu0 %v1122
    %v1445 = vpop.f32.mrf.mxu0
    %v1446 = vadd.f32 0.0, %v1445
    %1447 = vdwg.mxu0
    %v1448 = vadd.f32 %v1043, %v1206
    %v1449 = vadd.f32 %v1044, %v1271
    %v1450 = vadd.f32 %v1045, %v1336
    %v1451 = vadd.f32 %v1046, %v1401
    %v1452 = vadd.f32 %v1047, %v1209
    %v1453 = vadd.f32 %v1048, %v1274
    %v1454 = vadd.f32 %v1049, %v1339
    %v1455 = vadd.f32 %v1050, %v1404
    %v1456 = vadd.f32 %v1051, %v1212
    %v1457 = vadd.f32 %v1052, %v1277
    %v1458 = vadd.f32 %v1053, %v1342
    %v1459 = vadd.f32 %v1054, %v1407
    %v1460 = vadd.f32 %v1055, %v1215
    %v1461 = vadd.f32 %v1056, %v1280
    %v1462 = vadd.f32 %v1057, %v1345
    %v1463 = vadd.f32 %v1058, %v1410
    %v1464 = vadd.f32 %v1059, %v1218
    %v1465 = vadd.f32 %v1060, %v1283
    %v1466 = vadd.f32 %v1061, %v1348
    %v1467 = vadd.f32 %v1062, %v1413
    %v1468 = vadd.f32 %v1063, %v1221
    %v1469 = vadd.f32 %v1064, %v1286
    %v1470 = vadd.f32 %v1065, %v1351
    %v1471 = vadd.f32 %v1066, %v1416
    %v1472 = vadd.f32 %v1067, %v1224
    %v1473 = vadd.f32 %v1068, %v1289
    %v1474 = vadd.f32 %v1069, %v1354
    %v1475 = vadd.f32 %v1070, %v1419
    %v1476 = vadd.f32 %v1071, %v1227
    %v1477 = vadd.f32 %v1072, %v1292
    %v1478 = vadd.f32 %v1073, %v1357
    %v1479 = vadd.f32 %v1074, %v1422
    %v1480 = vadd.f32 %v1075, %v1230
    %v1481 = vadd.f32 %v1076, %v1295
    %v1482 = vadd.f32 %v1077, %v1360
    %v1483 = vadd.f32 %v1078, %v1425
    %v1484 = vadd.f32 %v1079, %v1233
    %v1485 = vadd.f32 %v1080, %v1298
    %v1486 = vadd.f32 %v1081, %v1363
    %v1487 = vadd.f32 %v1082, %v1428
    %v1488 = vadd.f32 %v1083, %v1236
    %v1489 = vadd.f32 %v1084, %v1301
    %v1490 = vadd.f32 %v1085, %v1366
    %v1491 = vadd.f32 %v1086, %v1431
    %v1492 = vadd.f32 %v1087, %v1239
    %v1493 = vadd.f32 %v1088, %v1304
    %v1494 = vadd.f32 %v1089, %v1369
    %v1495 = vadd.f32 %v1090, %v1434
    %v1496 = vadd.f32 %v1091, %v1242
    %v1497 = vadd.f32 %v1092, %v1307
    %v1498 = vadd.f32 %v1093, %v1372
    %v1499 = vadd.f32 %v1094, %v1437
    %v1500 = vadd.f32 %v1095, %v1245
    %v1501 = vadd.f32 %v1096, %v1310
    %v1502 = vadd.f32 %v1097, %v1375
    %v1503 = vadd.f32 %v1098, %v1440
    %v1504 = vadd.f32 %v1099, %v1248
    %v1505 = vadd.f32 %v1100, %v1313
    %v1506 = vadd.f32 %v1101, %v1378
    %v1507 = vadd.f32 %v1102, %v1443
    %v1508 = vadd.f32 %v1103, %v1251
    %v1509 = vadd.f32 %v1104, %v1316
    %v1510 = vadd.f32 %v1105, %v1381
    %v1511 = vadd.f32 %v1106, %v1446
    %1512 = vst [vmem:[#allocation5] sm:$0xff] %v1448
    %1513 = vst [vmem:[#allocation5 + $0x8] sm:$0xff] %v1449
    %1514 = vst [vmem:[#allocation5 + $0x10] sm:$0xff] %v1450
    %1515 = vst [vmem:[#allocation5 + $0x18] sm:$0xff] %v1451
    %1516 = vst [vmem:[#allocation5 + $0x20] sm:$0xff] %v1452
    %1517 = vst [vmem:[#allocation5 + $0x28] sm:$0xff] %v1453
    %1518 = vst [vmem:[#allocation5 + $0x30] sm:$0xff] %v1454
    %1519 = vst [vmem:[#allocation5 + $0x38] sm:$0xff] %v1455
    %1520 = vst [vmem:[#allocation5 + $0x40] sm:$0xff] %v1456
    %1521 = vst [vmem:[#allocation5 + $0x48] sm:$0xff] %v1457
    %1522 = vst [vmem:[#allocation5 + $0x50] sm:$0xff] %v1458
    %1523 = vst [vmem:[#allocation5 + $0x58] sm:$0xff] %v1459
    %1524 = vst [vmem:[#allocation5 + $0x60] sm:$0xff] %v1460
    %1525 = vst [vmem:[#allocation5 + $0x68] sm:$0xff] %v1461
    %1526 = vst [vmem:[#allocation5 + $0x70] sm:$0xff] %v1462
    %1527 = vst [vmem:[#allocation5 + $0x78] sm:$0xff] %v1463
    %1528 = vst [vmem:[#allocation5 + $0x80] sm:$0xff] %v1464
    %1529 = vst [vmem:[#allocation5 + $0x88] sm:$0xff] %v1465
    %1530 = vst [vmem:[#allocation5 + $0x90] sm:$0xff] %v1466
    %1531 = vst [vmem:[#allocation5 + $0x98] sm:$0xff] %v1467
    %1532 = vst [vmem:[#allocation5 + $0xa0] sm:$0xff] %v1468
    %1533 = vst [vmem:[#allocation5 + $0xa8] sm:$0xff] %v1469
    %1534 = vst [vmem:[#allocation5 + $0xb0] sm:$0xff] %v1470
    %1535 = vst [vmem:[#allocation5 + $0xb8] sm:$0xff] %v1471
    %1536 = vst [vmem:[#allocation5 + $0xc0] sm:$0xff] %v1472
    %1537 = vst [vmem:[#allocation5 + $0xc8] sm:$0xff] %v1473
    %1538 = vst [vmem:[#allocation5 + $0xd0] sm:$0xff] %v1474
    %1539 = vst [vmem:[#allocation5 + $0xd8] sm:$0xff] %v1475
    %1540 = vst [vmem:[#allocation5 + $0xe0] sm:$0xff] %v1476
    %1541 = vst [vmem:[#allocation5 + $0xe8] sm:$0xff] %v1477
    %1542 = vst [vmem:[#allocation5 + $0xf0] sm:$0xff] %v1478
    %1543 = vst [vmem:[#allocation5 + $0xf8] sm:$0xff] %v1479
    %1544 = vst [vmem:[#allocation5 + $0x100] sm:$0xff] %v1480
    %1545 = vst [vmem:[#allocation5 + $0x108] sm:$0xff] %v1481
    %1546 = vst [vmem:[#allocation5 + $0x110] sm:$0xff] %v1482
    %1547 = vst [vmem:[#allocation5 + $0x118] sm:$0xff] %v1483
    %1548 = vst [vmem:[#allocation5 + $0x120] sm:$0xff] %v1484
    %1549 = vst [vmem:[#allocation5 + $0x128] sm:$0xff] %v1485
    %1550 = vst [vmem:[#allocation5 + $0x130] sm:$0xff] %v1486
    %1551 = vst [vmem:[#allocation5 + $0x138] sm:$0xff] %v1487
    %1552 = vst [vmem:[#allocation5 + $0x140] sm:$0xff] %v1488
    %1553 = vst [vmem:[#allocation5 + $0x148] sm:$0xff] %v1489
    %1554 = vst [vmem:[#allocation5 + $0x150] sm:$0xff] %v1490
    %1555 = vst [vmem:[#allocation5 + $0x158] sm:$0xff] %v1491
    %1556 = vst [vmem:[#allocation5 + $0x160] sm:$0xff] %v1492
    %1557 = vst [vmem:[#allocation5 + $0x168] sm:$0xff] %v1493
    %1558 = vst [vmem:[#allocation5 + $0x170] sm:$0xff] %v1494
    %1559 = vst [vmem:[#allocation5 + $0x178] sm:$0xff] %v1495
    %1560 = vst [vmem:[#allocation5 + $0x180] sm:$0xff] %v1496
    %1561 = vst [vmem:[#allocation5 + $0x188] sm:$0xff] %v1497
    %1562 = vst [vmem:[#allocation5 + $0x190] sm:$0xff] %v1498
    %1563 = vst [vmem:[#allocation5 + $0x198] sm:$0xff] %v1499
    %1564 = vst [vmem:[#allocation5 + $0x1a0] sm:$0xff] %v1500
    %1565 = vst [vmem:[#allocation5 + $0x1a8] sm:$0xff] %v1501
    %1566 = vst [vmem:[#allocation5 + $0x1b0] sm:$0xff] %v1502
    %1567 = vst [vmem:[#allocation5 + $0x1b8] sm:$0xff] %v1503
    %1568 = vst [vmem:[#allocation5 + $0x1c0] sm:$0xff] %v1504
    %1569 = vst [vmem:[#allocation5 + $0x1c8] sm:$0xff] %v1505
    %1570 = vst [vmem:[#allocation5 + $0x1d0] sm:$0xff] %v1506
    %1571 = vst [vmem:[#allocation5 + $0x1d8] sm:$0xff] %v1507
    %1572 = vst [vmem:[#allocation5 + $0x1e0] sm:$0xff] %v1508
    %1573 = vst [vmem:[#allocation5 + $0x1e8] sm:$0xff] %v1509
    %1574 = vst [vmem:[#allocation5 + $0x1f0] sm:$0xff] %v1510
    %1575 = vst [vmem:[#allocation5 + $0x1f8] sm:$0xff] %v1511
    %v1576 = vld [vmem:[#allocation5] sm:$0xff]
    %v1577 = vld [vmem:[#allocation5 + $0x8] sm:$0xff]
    %v1578 = vld [vmem:[#allocation5 + $0x10] sm:$0xff]
    %v1579 = vld [vmem:[#allocation5 + $0x18] sm:$0xff]
    %v1580 = vld [vmem:[#allocation5 + $0x20] sm:$0xff]
    %v1581 = vld [vmem:[#allocation5 + $0x28] sm:$0xff]
    %v1582 = vld [vmem:[#allocation5 + $0x30] sm:$0xff]
    %v1583 = vld [vmem:[#allocation5 + $0x38] sm:$0xff]
    %v1584 = vld [vmem:[#allocation5 + $0x40] sm:$0xff]
    %v1585 = vld [vmem:[#allocation5 + $0x48] sm:$0xff]
    %v1586 = vld [vmem:[#allocation5 + $0x50] sm:$0xff]
    %v1587 = vld [vmem:[#allocation5 + $0x58] sm:$0xff]
    %v1588 = vld [vmem:[#allocation5 + $0x60] sm:$0xff]
    %v1589 = vld [vmem:[#allocation5 + $0x68] sm:$0xff]
    %v1590 = vld [vmem:[#allocation5 + $0x70] sm:$0xff]
    %v1591 = vld [vmem:[#allocation5 + $0x78] sm:$0xff]
    %v1592 = vld [vmem:[#allocation5 + $0x80] sm:$0xff]
    %v1593 = vld [vmem:[#allocation5 + $0x88] sm:$0xff]
    %v1594 = vld [vmem:[#allocation5 + $0x90] sm:$0xff]
    %v1595 = vld [vmem:[#allocation5 + $0x98] sm:$0xff]
    %v1596 = vld [vmem:[#allocation5 + $0xa0] sm:$0xff]
    %v1597 = vld [vmem:[#allocation5 + $0xa8] sm:$0xff]
    %v1598 = vld [vmem:[#allocation5 + $0xb0] sm:$0xff]
    %v1599 = vld [vmem:[#allocation5 + $0xb8] sm:$0xff]
    %v1600 = vld [vmem:[#allocation5 + $0xc0] sm:$0xff]
    %v1601 = vld [vmem:[#allocation5 + $0xc8] sm:$0xff]
    %v1602 = vld [vmem:[#allocation5 + $0xd0] sm:$0xff]
    %v1603 = vld [vmem:[#allocation5 + $0xd8] sm:$0xff]
    %v1604 = vld [vmem:[#allocation5 + $0xe0] sm:$0xff]
    %v1605 = vld [vmem:[#allocation5 + $0xe8] sm:$0xff]
    %v1606 = vld [vmem:[#allocation5 + $0xf0] sm:$0xff]
    %v1607 = vld [vmem:[#allocation5 + $0xf8] sm:$0xff]
    %v1608 = vld [vmem:[#allocation5 + $0x100] sm:$0xff]
    %v1609 = vld [vmem:[#allocation5 + $0x108] sm:$0xff]
    %v1610 = vld [vmem:[#allocation5 + $0x110] sm:$0xff]
    %v1611 = vld [vmem:[#allocation5 + $0x118] sm:$0xff]
    %v1612 = vld [vmem:[#allocation5 + $0x120] sm:$0xff]
    %v1613 = vld [vmem:[#allocation5 + $0x128] sm:$0xff]
    %v1614 = vld [vmem:[#allocation5 + $0x130] sm:$0xff]
    %v1615 = vld [vmem:[#allocation5 + $0x138] sm:$0xff]
    %v1616 = vld [vmem:[#allocation5 + $0x140] sm:$0xff]
    %v1617 = vld [vmem:[#allocation5 + $0x148] sm:$0xff]
    %v1618 = vld [vmem:[#allocation5 + $0x150] sm:$0xff]
    %v1619 = vld [vmem:[#allocation5 + $0x158] sm:$0xff]
    %v1620 = vld [vmem:[#allocation5 + $0x160] sm:$0xff]
    %v1621 = vld [vmem:[#allocation5 + $0x168] sm:$0xff]
    %v1622 = vld [vmem:[#allocation5 + $0x170] sm:$0xff]
    %v1623 = vld [vmem:[#allocation5 + $0x178] sm:$0xff]
    %v1624 = vld [vmem:[#allocation5 + $0x180] sm:$0xff]
    %v1625 = vld [vmem:[#allocation5 + $0x188] sm:$0xff]
    %v1626 = vld [vmem:[#allocation5 + $0x190] sm:$0xff]
    %v1627 = vld [vmem:[#allocation5 + $0x198] sm:$0xff]
    %v1628 = vld [vmem:[#allocation5 + $0x1a0] sm:$0xff]
    %v1629 = vld [vmem:[#allocation5 + $0x1a8] sm:$0xff]
    %v1630 = vld [vmem:[#allocation5 + $0x1b0] sm:$0xff]
    %v1631 = vld [vmem:[#allocation5 + $0x1b8] sm:$0xff]
    %v1632 = vld [vmem:[#allocation5 + $0x1c0] sm:$0xff]
    %v1633 = vld [vmem:[#allocation5 + $0x1c8] sm:$0xff]
    %v1634 = vld [vmem:[#allocation5 + $0x1d0] sm:$0xff]
    %v1635 = vld [vmem:[#allocation5 + $0x1d8] sm:$0xff]
    %v1636 = vld [vmem:[#allocation5 + $0x1e0] sm:$0xff]
    %v1637 = vld [vmem:[#allocation5 + $0x1e8] sm:$0xff]
    %v1638 = vld [vmem:[#allocation5 + $0x1f0] sm:$0xff]
    %v1639 = vld [vmem:[#allocation5 + $0x1f8] sm:$0xff]
    %v1640 = vld [vmem:[#allocation2 + $0x18] sm:$0xff]
    %v1641 = vld [vmem:[#allocation2 + $0x20] sm:$0xff]
    %v1642 = vld [vmem:[#allocation2 + $0x28] sm:$0xff]
    %v1643 = vld [vmem:[#allocation2 + $0x30] sm:$0xff]
    %v1644 = vld [vmem:[#allocation2 + $0x38] sm:$0xff]
    %v1645 = vld [vmem:[#allocation2 + $0x40] sm:$0xff]
    %v1646 = vld [vmem:[#allocation2 + $0x48] sm:$0xff]
    %v1647 = vld [vmem:[#allocation2 + $0x50] sm:$0xff]
    %v1648 = vld [vmem:[#allocation2 + $0x58] sm:$0xff]
    %v1649 = vld [vmem:[#allocation2 + $0x60] sm:$0xff]
    %v1650 = vld [vmem:[#allocation2 + $0x68] sm:$0xff]
    %v1651 = vld [vmem:[#allocation2 + $0x70] sm:$0xff]
    %v1652 = vld [vmem:[#allocation2 + $0x78] sm:$0xff]
    %v1653 = vld [vmem:[#allocation2 + $0x80] sm:$0xff]
    %v1654 = vld [vmem:[#allocation2 + $0x88] sm:$0xff]
    %v1655 = vld [vmem:[#allocation2 + $0x90] sm:$0xff]
    %s1656 = scalar_lea.vmem %s1, 1536
    %v1657 = vld [vmem:[%s1656] sm:$0xff]
    %v1658 = vld [vmem:[%s1656 + $0x8] sm:$0xff]
    %v1659 = vld [vmem:[%s1656 + $0x10] sm:$0xff]
    %v1660 = vld [vmem:[%s1656 + $0x18] sm:$0xff]
    %v1661 = vld [vmem:[%s1656 + $0x20] sm:$0xff]
    %v1662 = vld [vmem:[%s1656 + $0x28] sm:$0xff]
    %v1663 = vld [vmem:[%s1656 + $0x30] sm:$0xff]
    %v1664 = vld [vmem:[%s1656 + $0x38] sm:$0xff]
    %v1665 = vld [vmem:[%s1656 + $0x40] sm:$0xff]
    %v1666 = vld [vmem:[%s1656 + $0x48] sm:$0xff]
    %v1667 = vld [vmem:[%s1656 + $0x50] sm:$0xff]
    %v1668 = vld [vmem:[%s1656 + $0x58] sm:$0xff]
    %v1669 = vld [vmem:[%s1656 + $0x60] sm:$0xff]
    %v1670 = vld [vmem:[%s1656 + $0x68] sm:$0xff]
    %v1671 = vld [vmem:[%s1656 + $0x70] sm:$0xff]
    %v1672 = vld [vmem:[%s1656 + $0x78] sm:$0xff]
    %v1673 = vld [vmem:[%s1656 + $0x80] sm:$0xff]
    %v1674 = vld [vmem:[%s1656 + $0x88] sm:$0xff]
    %v1675 = vld [vmem:[%s1656 + $0x90] sm:$0xff]
    %v1676 = vld [vmem:[%s1656 + $0x98] sm:$0xff]
    %v1677 = vld [vmem:[%s1656 + $0xa0] sm:$0xff]
    %v1678 = vld [vmem:[%s1656 + $0xa8] sm:$0xff]
    %v1679 = vld [vmem:[%s1656 + $0xb0] sm:$0xff]
    %v1680 = vld [vmem:[%s1656 + $0xb8] sm:$0xff]
    %v1681 = vld [vmem:[%s1656 + $0xc0] sm:$0xff]
    %v1682 = vld [vmem:[%s1656 + $0xc8] sm:$0xff]
    %v1683 = vld [vmem:[%s1656 + $0xd0] sm:$0xff]
    %v1684 = vld [vmem:[%s1656 + $0xd8] sm:$0xff]
    %v1685 = vld [vmem:[%s1656 + $0xe0] sm:$0xff]
    %v1686 = vld [vmem:[%s1656 + $0xe8] sm:$0xff]
    %v1687 = vld [vmem:[%s1656 + $0xf0] sm:$0xff]
    %v1688 = vld [vmem:[%s1656 + $0xf8] sm:$0xff]
    %v1689 = vld [vmem:[%s1656 + $0x100] sm:$0xff]
    %v1690 = vld [vmem:[%s1656 + $0x108] sm:$0xff]
    %v1691 = vld [vmem:[%s1656 + $0x110] sm:$0xff]
    %v1692 = vld [vmem:[%s1656 + $0x118] sm:$0xff]
    %v1693 = vld [vmem:[%s1656 + $0x120] sm:$0xff]
    %v1694 = vld [vmem:[%s1656 + $0x128] sm:$0xff]
    %v1695 = vld [vmem:[%s1656 + $0x130] sm:$0xff]
    %v1696 = vld [vmem:[%s1656 + $0x138] sm:$0xff]
    %v1697 = vld [vmem:[%s1656 + $0x140] sm:$0xff]
    %v1698 = vld [vmem:[%s1656 + $0x148] sm:$0xff]
    %v1699 = vld [vmem:[%s1656 + $0x150] sm:$0xff]
    %v1700 = vld [vmem:[%s1656 + $0x158] sm:$0xff]
    %v1701 = vld [vmem:[%s1656 + $0x160] sm:$0xff]
    %v1702 = vld [vmem:[%s1656 + $0x168] sm:$0xff]
    %v1703 = vld [vmem:[%s1656 + $0x170] sm:$0xff]
    %v1704 = vld [vmem:[%s1656 + $0x178] sm:$0xff]
    %v1705 = vld [vmem:[%s1656 + $0x180] sm:$0xff]
    %v1706 = vld [vmem:[%s1656 + $0x188] sm:$0xff]
    %v1707 = vld [vmem:[%s1656 + $0x190] sm:$0xff]
    %v1708 = vld [vmem:[%s1656 + $0x198] sm:$0xff]
    %v1709 = vld [vmem:[%s1656 + $0x1a0] sm:$0xff]
    %v1710 = vld [vmem:[%s1656 + $0x1a8] sm:$0xff]
    %v1711 = vld [vmem:[%s1656 + $0x1b0] sm:$0xff]
    %v1712 = vld [vmem:[%s1656 + $0x1b8] sm:$0xff]
    %v1713 = vld [vmem:[%s1656 + $0x1c0] sm:$0xff]
    %v1714 = vld [vmem:[%s1656 + $0x1c8] sm:$0xff]
    %v1715 = vld [vmem:[%s1656 + $0x1d0] sm:$0xff]
    %v1716 = vld [vmem:[%s1656 + $0x1d8] sm:$0xff]
    %v1717 = vld [vmem:[%s1656 + $0x1e0] sm:$0xff]
    %v1718 = vld [vmem:[%s1656 + $0x1e8] sm:$0xff]
    %v1719 = vld [vmem:[%s1656 + $0x1f0] sm:$0xff]
    %v1720 = vld [vmem:[%s1656 + $0x1f8] sm:$0xff]
    %1721 = vmatpush.msra.mxu0 %v1717
    %1722 = vmatpush.msra.mxu0 %v1713
    %1723 = vmatpush.msra.mxu0 %v1709
    %1724 = vmatpush.msra.mxu0 %v1705
    %1725 = vmatpush.msra.mxu0 %v1701
    %1726 = vmatpush.msra.mxu0 %v1697
    %1727 = vmatpush.msra.mxu0 %v1693
    %1728 = vmatpush.msra.mxu0 %v1689
    %1729 = vmatpush.msra.mxu0 %v1685
    %1730 = vmatpush.msra.mxu0 %v1681
    %1731 = vmatpush.msra.mxu0 %v1677
    %1732 = vmatpush.msra.mxu0 %v1673
    %1733 = vmatpush.msra.mxu0 %v1669
    %1734 = vmatpush.msra.mxu0 %v1665
    %1735 = vmatpush.msra.mxu0 %v1661
    %1736 = vmatpush.msra.mxu0 %v1657
    %1737 = vmatmul.f32.gmra.mxu0 %v1640
    %v1738 = vpop.f32.mrf.mxu0
    %v1739 = vadd.f32 0.0, %v1738
    %1740 = vmatmul.f32.gmra.mxu0 %v1641
    %v1741 = vpop.f32.mrf.mxu0
    %v1742 = vadd.f32 0.0, %v1741
    %1743 = vmatmul.f32.gmra.mxu0 %v1642
    %v1744 = vpop.f32.mrf.mxu0
    %v1745 = vadd.f32 0.0, %v1744
    %1746 = vmatmul.f32.gmra.mxu0 %v1643
    %v1747 = vpop.f32.mrf.mxu0
    %v1748 = vadd.f32 0.0, %v1747
    %1749 = vmatmul.f32.gmra.mxu0 %v1644
    %v1750 = vpop.f32.mrf.mxu0
    %v1751 = vadd.f32 0.0, %v1750
    %1752 = vmatmul.f32.gmra.mxu0 %v1645
    %v1753 = vpop.f32.mrf.mxu0
    %v1754 = vadd.f32 0.0, %v1753
    %1755 = vmatmul.f32.gmra.mxu0 %v1646
    %v1756 = vpop.f32.mrf.mxu0
    %v1757 = vadd.f32 0.0, %v1756
    %1758 = vmatmul.f32.gmra.mxu0 %v1647
    %v1759 = vpop.f32.mrf.mxu0
    %v1760 = vadd.f32 0.0, %v1759
    %1761 = vmatmul.f32.gmra.mxu0 %v1648
    %v1762 = vpop.f32.mrf.mxu0
    %v1763 = vadd.f32 0.0, %v1762
    %1764 = vmatmul.f32.gmra.mxu0 %v1649
    %v1765 = vpop.f32.mrf.mxu0
    %v1766 = vadd.f32 0.0, %v1765
    %1767 = vmatmul.f32.gmra.mxu0 %v1650
    %v1768 = vpop.f32.mrf.mxu0
    %v1769 = vadd.f32 0.0, %v1768
    %1770 = vmatmul.f32.gmra.mxu0 %v1651
    %v1771 = vpop.f32.mrf.mxu0
    %v1772 = vadd.f32 0.0, %v1771
    %1773 = vmatmul.f32.gmra.mxu0 %v1652
    %v1774 = vpop.f32.mrf.mxu0
    %v1775 = vadd.f32 0.0, %v1774
    %1776 = vmatmul.f32.gmra.mxu0 %v1653
    %v1777 = vpop.f32.mrf.mxu0
    %v1778 = vadd.f32 0.0, %v1777
    %1779 = vmatmul.f32.gmra.mxu0 %v1654
    %v1780 = vpop.f32.mrf.mxu0
    %v1781 = vadd.f32 0.0, %v1780
    %1782 = vmatmul.f32.gmra.mxu0 %v1655
    %v1783 = vpop.f32.mrf.mxu0
    %v1784 = vadd.f32 0.0, %v1783
    %1785 = vdwg.mxu0
    %1786 = vmatpush.msra.mxu0 %v1718
    %1787 = vmatpush.msra.mxu0 %v1714
    %1788 = vmatpush.msra.mxu0 %v1710
    %1789 = vmatpush.msra.mxu0 %v1706
    %1790 = vmatpush.msra.mxu0 %v1702
    %1791 = vmatpush.msra.mxu0 %v1698
    %1792 = vmatpush.msra.mxu0 %v1694
    %1793 = vmatpush.msra.mxu0 %v1690
    %1794 = vmatpush.msra.mxu0 %v1686
    %1795 = vmatpush.msra.mxu0 %v1682
    %1796 = vmatpush.msra.mxu0 %v1678
    %1797 = vmatpush.msra.mxu0 %v1674
    %1798 = vmatpush.msra.mxu0 %v1670
    %1799 = vmatpush.msra.mxu0 %v1666
    %1800 = vmatpush.msra.mxu0 %v1662
    %1801 = vmatpush.msra.mxu0 %v1658
    %1802 = vmatmul.f32.gmra.mxu0 %v1640
    %v1803 = vpop.f32.mrf.mxu0
    %v1804 = vadd.f32 0.0, %v1803
    %1805 = vmatmul.f32.gmra.mxu0 %v1641
    %v1806 = vpop.f32.mrf.mxu0
    %v1807 = vadd.f32 0.0, %v1806
    %1808 = vmatmul.f32.gmra.mxu0 %v1642
    %v1809 = vpop.f32.mrf.mxu0
    %v1810 = vadd.f32 0.0, %v1809
    %1811 = vmatmul.f32.gmra.mxu0 %v1643
    %v1812 = vpop.f32.mrf.mxu0
    %v1813 = vadd.f32 0.0, %v1812
    %1814 = vmatmul.f32.gmra.mxu0 %v1644
    %v1815 = vpop.f32.mrf.mxu0
    %v1816 = vadd.f32 0.0, %v1815
    %1817 = vmatmul.f32.gmra.mxu0 %v1645
    %v1818 = vpop.f32.mrf.mxu0
    %v1819 = vadd.f32 0.0, %v1818
    %1820 = vmatmul.f32.gmra.mxu0 %v1646
    %v1821 = vpop.f32.mrf.mxu0
    %v1822 = vadd.f32 0.0, %v1821
    %1823 = vmatmul.f32.gmra.mxu0 %v1647
    %v1824 = vpop.f32.mrf.mxu0
    %v1825 = vadd.f32 0.0, %v1824
    %1826 = vmatmul.f32.gmra.mxu0 %v1648
    %v1827 = vpop.f32.mrf.mxu0
    %v1828 = vadd.f32 0.0, %v1827
    %1829 = vmatmul.f32.gmra.mxu0 %v1649
    %v1830 = vpop.f32.mrf.mxu0
    %v1831 = vadd.f32 0.0, %v1830
    %1832 = vmatmul.f32.gmra.mxu0 %v1650
    %v1833 = vpop.f32.mrf.mxu0
    %v1834 = vadd.f32 0.0, %v1833
    %1835 = vmatmul.f32.gmra.mxu0 %v1651
    %v1836 = vpop.f32.mrf.mxu0
    %v1837 = vadd.f32 0.0, %v1836
    %1838 = vmatmul.f32.gmra.mxu0 %v1652
    %v1839 = vpop.f32.mrf.mxu0
    %v1840 = vadd.f32 0.0, %v1839
    %1841 = vmatmul.f32.gmra.mxu0 %v1653
    %v1842 = vpop.f32.mrf.mxu0
    %v1843 = vadd.f32 0.0, %v1842
    %1844 = vmatmul.f32.gmra.mxu0 %v1654
    %v1845 = vpop.f32.mrf.mxu0
    %v1846 = vadd.f32 0.0, %v1845
    %1847 = vmatmul.f32.gmra.mxu0 %v1655
    %v1848 = vpop.f32.mrf.mxu0
    %v1849 = vadd.f32 0.0, %v1848
    %1850 = vdwg.mxu0
    %1851 = vmatpush.msra.mxu0 %v1719
    %1852 = vmatpush.msra.mxu0 %v1715
    %1853 = vmatpush.msra.mxu0 %v1711
    %1854 = vmatpush.msra.mxu0 %v1707
    %1855 = vmatpush.msra.mxu0 %v1703
    %1856 = vmatpush.msra.mxu0 %v1699
    %1857 = vmatpush.msra.mxu0 %v1695
    %1858 = vmatpush.msra.mxu0 %v1691
    %1859 = vmatpush.msra.mxu0 %v1687
    %1860 = vmatpush.msra.mxu0 %v1683
    %1861 = vmatpush.msra.mxu0 %v1679
    %1862 = vmatpush.msra.mxu0 %v1675
    %1863 = vmatpush.msra.mxu0 %v1671
    %1864 = vmatpush.msra.mxu0 %v1667
    %1865 = vmatpush.msra.mxu0 %v1663
    %1866 = vmatpush.msra.mxu0 %v1659
    %1867 = vmatmul.f32.gmra.mxu0 %v1640
    %v1868 = vpop.f32.mrf.mxu0
    %v1869 = vadd.f32 0.0, %v1868
    %1870 = vmatmul.f32.gmra.mxu0 %v1641
    %v1871 = vpop.f32.mrf.mxu0
    %v1872 = vadd.f32 0.0, %v1871
    %1873 = vmatmul.f32.gmra.mxu0 %v1642
    %v1874 = vpop.f32.mrf.mxu0
    %v1875 = vadd.f32 0.0, %v1874
    %1876 = vmatmul.f32.gmra.mxu0 %v1643
    %v1877 = vpop.f32.mrf.mxu0
    %v1878 = vadd.f32 0.0, %v1877
    %1879 = vmatmul.f32.gmra.mxu0 %v1644
    %v1880 = vpop.f32.mrf.mxu0
    %v1881 = vadd.f32 0.0, %v1880
    %1882 = vmatmul.f32.gmra.mxu0 %v1645
    %v1883 = vpop.f32.mrf.mxu0
    %v1884 = vadd.f32 0.0, %v1883
    %1885 = vmatmul.f32.gmra.mxu0 %v1646
    %v1886 = vpop.f32.mrf.mxu0
    %v1887 = vadd.f32 0.0, %v1886
    %1888 = vmatmul.f32.gmra.mxu0 %v1647
    %v1889 = vpop.f32.mrf.mxu0
    %v1890 = vadd.f32 0.0, %v1889
    %1891 = vmatmul.f32.gmra.mxu0 %v1648
    %v1892 = vpop.f32.mrf.mxu0
    %v1893 = vadd.f32 0.0, %v1892
    %1894 = vmatmul.f32.gmra.mxu0 %v1649
    %v1895 = vpop.f32.mrf.mxu0
    %v1896 = vadd.f32 0.0, %v1895
    %1897 = vmatmul.f32.gmra.mxu0 %v1650
    %v1898 = vpop.f32.mrf.mxu0
    %v1899 = vadd.f32 0.0, %v1898
    %1900 = vmatmul.f32.gmra.mxu0 %v1651
    %v1901 = vpop.f32.mrf.mxu0
    %v1902 = vadd.f32 0.0, %v1901
    %1903 = vmatmul.f32.gmra.mxu0 %v1652
    %v1904 = vpop.f32.mrf.mxu0
    %v1905 = vadd.f32 0.0, %v1904
    %1906 = vmatmul.f32.gmra.mxu0 %v1653
    %v1907 = vpop.f32.mrf.mxu0
    %v1908 = vadd.f32 0.0, %v1907
    %1909 = vmatmul.f32.gmra.mxu0 %v1654
    %v1910 = vpop.f32.mrf.mxu0
    %v1911 = vadd.f32 0.0, %v1910
    %1912 = vmatmul.f32.gmra.mxu0 %v1655
    %v1913 = vpop.f32.mrf.mxu0
    %v1914 = vadd.f32 0.0, %v1913
    %1915 = vdwg.mxu0
    %1916 = vmatpush.msra.mxu0 %v1720
    %1917 = vmatpush.msra.mxu0 %v1716
    %1918 = vmatpush.msra.mxu0 %v1712
    %1919 = vmatpush.msra.mxu0 %v1708
    %1920 = vmatpush.msra.mxu0 %v1704
    %1921 = vmatpush.msra.mxu0 %v1700
    %1922 = vmatpush.msra.mxu0 %v1696
    %1923 = vmatpush.msra.mxu0 %v1692
    %1924 = vmatpush.msra.mxu0 %v1688
    %1925 = vmatpush.msra.mxu0 %v1684
    %1926 = vmatpush.msra.mxu0 %v1680
    %1927 = vmatpush.msra.mxu0 %v1676
    %1928 = vmatpush.msra.mxu0 %v1672
    %1929 = vmatpush.msra.mxu0 %v1668
    %1930 = vmatpush.msra.mxu0 %v1664
    %1931 = vmatpush.msra.mxu0 %v1660
    %1932 = vmatmul.f32.gmra.mxu0 %v1640
    %v1933 = vpop.f32.mrf.mxu0
    %v1934 = vadd.f32 0.0, %v1933
    %1935 = vmatmul.f32.gmra.mxu0 %v1641
    %v1936 = vpop.f32.mrf.mxu0
    %v1937 = vadd.f32 0.0, %v1936
    %1938 = vmatmul.f32.gmra.mxu0 %v1642
    %v1939 = vpop.f32.mrf.mxu0
    %v1940 = vadd.f32 0.0, %v1939
    %1941 = vmatmul.f32.gmra.mxu0 %v1643
    %v1942 = vpop.f32.mrf.mxu0
    %v1943 = vadd.f32 0.0, %v1942
    %1944 = vmatmul.f32.gmra.mxu0 %v1644
    %v1945 = vpop.f32.mrf.mxu0
    %v1946 = vadd.f32 0.0, %v1945
    %1947 = vmatmul.f32.gmra.mxu0 %v1645
    %v1948 = vpop.f32.mrf.mxu0
    %v1949 = vadd.f32 0.0, %v1948
    %1950 = vmatmul.f32.gmra.mxu0 %v1646
    %v1951 = vpop.f32.mrf.mxu0
    %v1952 = vadd.f32 0.0, %v1951
    %1953 = vmatmul.f32.gmra.mxu0 %v1647
    %v1954 = vpop.f32.mrf.mxu0
    %v1955 = vadd.f32 0.0, %v1954
    %1956 = vmatmul.f32.gmra.mxu0 %v1648
    %v1957 = vpop.f32.mrf.mxu0
    %v1958 = vadd.f32 0.0, %v1957
    %1959 = vmatmul.f32.gmra.mxu0 %v1649
    %v1960 = vpop.f32.mrf.mxu0
    %v1961 = vadd.f32 0.0, %v1960
    %1962 = vmatmul.f32.gmra.mxu0 %v1650
    %v1963 = vpop.f32.mrf.mxu0
    %v1964 = vadd.f32 0.0, %v1963
    %1965 = vmatmul.f32.gmra.mxu0 %v1651
    %v1966 = vpop.f32.mrf.mxu0
    %v1967 = vadd.f32 0.0, %v1966
    %1968 = vmatmul.f32.gmra.mxu0 %v1652
    %v1969 = vpop.f32.mrf.mxu0
    %v1970 = vadd.f32 0.0, %v1969
    %1971 = vmatmul.f32.gmra.mxu0 %v1653
    %v1972 = vpop.f32.mrf.mxu0
    %v1973 = vadd.f32 0.0, %v1972
    %1974 = vmatmul.f32.gmra.mxu0 %v1654
    %v1975 = vpop.f32.mrf.mxu0
    %v1976 = vadd.f32 0.0, %v1975
    %1977 = vmatmul.f32.gmra.mxu0 %v1655
    %v1978 = vpop.f32.mrf.mxu0
    %v1979 = vadd.f32 0.0, %v1978
    %1980 = vdwg.mxu0
    %v1981 = vadd.f32 %v1576, %v1739
    %v1982 = vadd.f32 %v1577, %v1804
    %v1983 = vadd.f32 %v1578, %v1869
    %v1984 = vadd.f32 %v1579, %v1934
    %v1985 = vadd.f32 %v1580, %v1742
    %v1986 = vadd.f32 %v1581, %v1807
    %v1987 = vadd.f32 %v1582, %v1872
    %v1988 = vadd.f32 %v1583, %v1937
    %v1989 = vadd.f32 %v1584, %v1745
    %v1990 = vadd.f32 %v1585, %v1810
    %v1991 = vadd.f32 %v1586, %v1875
    %v1992 = vadd.f32 %v1587, %v1940
    %v1993 = vadd.f32 %v1588, %v1748
    %v1994 = vadd.f32 %v1589, %v1813
    %v1995 = vadd.f32 %v1590, %v1878
    %v1996 = vadd.f32 %v1591, %v1943
    %v1997 = vadd.f32 %v1592, %v1751
    %v1998 = vadd.f32 %v1593, %v1816
    %v1999 = vadd.f32 %v1594, %v1881
    %v2000 = vadd.f32 %v1595, %v1946
    %v2001 = vadd.f32 %v1596, %v1754
    %v2002 = vadd.f32 %v1597, %v1819
    %v2003 = vadd.f32 %v1598, %v1884
    %v2004 = vadd.f32 %v1599, %v1949
    %v2005 = vadd.f32 %v1600, %v1757
    %v2006 = vadd.f32 %v1601, %v1822
    %v2007 = vadd.f32 %v1602, %v1887
    %v2008 = vadd.f32 %v1603, %v1952
    %v2009 = vadd.f32 %v1604, %v1760
    %v2010 = vadd.f32 %v1605, %v1825
    %v2011 = vadd.f32 %v1606, %v1890
    %v2012 = vadd.f32 %v1607, %v1955
    %v2013 = vadd.f32 %v1608, %v1763
    %v2014 = vadd.f32 %v1609, %v1828
    %v2015 = vadd.f32 %v1610, %v1893
    %v2016 = vadd.f32 %v1611, %v1958
    %v2017 = vadd.f32 %v1612, %v1766
    %v2018 = vadd.f32 %v1613, %v1831
    %v2019 = vadd.f32 %v1614, %v1896
    %v2020 = vadd.f32 %v1615, %v1961
    %v2021 = vadd.f32 %v1616, %v1769
    %v2022 = vadd.f32 %v1617, %v1834
    %v2023 = vadd.f32 %v1618, %v1899
    %v2024 = vadd.f32 %v1619, %v1964
    %v2025 = vadd.f32 %v1620, %v1772
    %v2026 = vadd.f32 %v1621, %v1837
    %v2027 = vadd.f32 %v1622, %v1902
    %v2028 = vadd.f32 %v1623, %v1967
    %v2029 = vadd.f32 %v1624, %v1775
    %v2030 = vadd.f32 %v1625, %v1840
    %v2031 = vadd.f32 %v1626, %v1905
    %v2032 = vadd.f32 %v1627, %v1970
    %v2033 = vadd.f32 %v1628, %v1778
    %v2034 = vadd.f32 %v1629, %v1843
    %v2035 = vadd.f32 %v1630, %v1908
    %v2036 = vadd.f32 %v1631, %v1973
    %v2037 = vadd.f32 %v1632, %v1781
    %v2038 = vadd.f32 %v1633, %v1846
    %v2039 = vadd.f32 %v1634, %v1911
    %v2040 = vadd.f32 %v1635, %v1976
    %v2041 = vadd.f32 %v1636, %v1784
    %v2042 = vadd.f32 %v1637, %v1849
    %v2043 = vadd.f32 %v1638, %v1914
    %v2044 = vadd.f32 %v1639, %v1979
    %2045 = vst [vmem:[#allocation5] sm:$0xff] %v1981
    %2046 = vst [vmem:[#allocation5 + $0x8] sm:$0xff] %v1982
    %2047 = vst [vmem:[#allocation5 + $0x10] sm:$0xff] %v1983
    %2048 = vst [vmem:[#allocation5 + $0x18] sm:$0xff] %v1984
    %2049 = vst [vmem:[#allocation5 + $0x20] sm:$0xff] %v1985
    %2050 = vst [vmem:[#allocation5 + $0x28] sm:$0xff] %v1986
    %2051 = vst [vmem:[#allocation5 + $0x30] sm:$0xff] %v1987
    %2052 = vst [vmem:[#allocation5 + $0x38] sm:$0xff] %v1988
    %2053 = vst [vmem:[#allocation5 + $0x40] sm:$0xff] %v1989
    %2054 = vst [vmem:[#allocation5 + $0x48] sm:$0xff] %v1990
    %2055 = vst [vmem:[#allocation5 + $0x50] sm:$0xff] %v1991
    %2056 = vst [vmem:[#allocation5 + $0x58] sm:$0xff] %v1992
    %2057 = vst [vmem:[#allocation5 + $0x60] sm:$0xff] %v1993
    %2058 = vst [vmem:[#allocation5 + $0x68] sm:$0xff] %v1994
    %2059 = vst [vmem:[#allocation5 + $0x70] sm:$0xff] %v1995
    %2060 = vst [vmem:[#allocation5 + $0x78] sm:$0xff] %v1996
    %2061 = vst [vmem:[#allocation5 + $0x80] sm:$0xff] %v1997
    %2062 = vst [vmem:[#allocation5 + $0x88] sm:$0xff] %v1998
    %2063 = vst [vmem:[#allocation5 + $0x90] sm:$0xff] %v1999
    %2064 = vst [vmem:[#allocation5 + $0x98] sm:$0xff] %v2000
    %2065 = vst [vmem:[#allocation5 + $0xa0] sm:$0xff] %v2001
    %2066 = vst [vmem:[#allocation5 + $0xa8] sm:$0xff] %v2002
    %2067 = vst [vmem:[#allocation5 + $0xb0] sm:$0xff] %v2003
    %2068 = vst [vmem:[#allocation5 + $0xb8] sm:$0xff] %v2004
    %2069 = vst [vmem:[#allocation5 + $0xc0] sm:$0xff] %v2005
    %2070 = vst [vmem:[#allocation5 + $0xc8] sm:$0xff] %v2006
    %2071 = vst [vmem:[#allocation5 + $0xd0] sm:$0xff] %v2007
    %2072 = vst [vmem:[#allocation5 + $0xd8] sm:$0xff] %v2008
    %2073 = vst [vmem:[#allocation5 + $0xe0] sm:$0xff] %v2009
    %2074 = vst [vmem:[#allocation5 + $0xe8] sm:$0xff] %v2010
    %2075 = vst [vmem:[#allocation5 + $0xf0] sm:$0xff] %v2011
    %2076 = vst [vmem:[#allocation5 + $0xf8] sm:$0xff] %v2012
    %2077 = vst [vmem:[#allocation5 + $0x100] sm:$0xff] %v2013
    %2078 = vst [vmem:[#allocation5 + $0x108] sm:$0xff] %v2014
    %2079 = vst [vmem:[#allocation5 + $0x110] sm:$0xff] %v2015
    %2080 = vst [vmem:[#allocation5 + $0x118] sm:$0xff] %v2016
    %2081 = vst [vmem:[#allocation5 + $0x120] sm:$0xff] %v2017
    %2082 = vst [vmem:[#allocation5 + $0x128] sm:$0xff] %v2018
    %2083 = vst [vmem:[#allocation5 + $0x130] sm:$0xff] %v2019
    %2084 = vst [vmem:[#allocation5 + $0x138] sm:$0xff] %v2020
    %2085 = vst [vmem:[#allocation5 + $0x140] sm:$0xff] %v2021
    %2086 = vst [vmem:[#allocation5 + $0x148] sm:$0xff] %v2022
    %2087 = vst [vmem:[#allocation5 + $0x150] sm:$0xff] %v2023
    %2088 = vst [vmem:[#allocation5 + $0x158] sm:$0xff] %v2024
    %2089 = vst [vmem:[#allocation5 + $0x160] sm:$0xff] %v2025
    %2090 = vst [vmem:[#allocation5 + $0x168] sm:$0xff] %v2026
    %2091 = vst [vmem:[#allocation5 + $0x170] sm:$0xff] %v2027
    %2092 = vst [vmem:[#allocation5 + $0x178] sm:$0xff] %v2028
    %2093 = vst [vmem:[#allocation5 + $0x180] sm:$0xff] %v2029
    %2094 = vst [vmem:[#allocation5 + $0x188] sm:$0xff] %v2030
    %2095 = vst [vmem:[#allocation5 + $0x190] sm:$0xff] %v2031
    %2096 = vst [vmem:[#allocation5 + $0x198] sm:$0xff] %v2032
    %2097 = vst [vmem:[#allocation5 + $0x1a0] sm:$0xff] %v2033
    %2098 = vst [vmem:[#allocation5 + $0x1a8] sm:$0xff] %v2034
    %2099 = vst [vmem:[#allocation5 + $0x1b0] sm:$0xff] %v2035
    %2100 = vst [vmem:[#allocation5 + $0x1b8] sm:$0xff] %v2036
    %2101 = vst [vmem:[#allocation5 + $0x1c0] sm:$0xff] %v2037
    %2102 = vst [vmem:[#allocation5 + $0x1c8] sm:$0xff] %v2038
    %2103 = vst [vmem:[#allocation5 + $0x1d0] sm:$0xff] %v2039
    %2104 = vst [vmem:[#allocation5 + $0x1d8] sm:$0xff] %v2040
    %2105 = vst [vmem:[#allocation5 + $0x1e0] sm:$0xff] %v2041
    %2106 = vst [vmem:[#allocation5 + $0x1e8] sm:$0xff] %v2042
    %2107 = vst [vmem:[#allocation5 + $0x1f0] sm:$0xff] %v2043
    %2108 = vst [vmem:[#allocation5 + $0x1f8] sm:$0xff] %v2044
    %v2109 = vld [vmem:[#allocation5] sm:$0xff]
    %v2110 = vld [vmem:[#allocation5 + $0x8] sm:$0xff]
    %v2111 = vld [vmem:[#allocation5 + $0x10] sm:$0xff]
    %v2112 = vld [vmem:[#allocation5 + $0x18] sm:$0xff]
    %v2113 = vld [vmem:[#allocation5 + $0x20] sm:$0xff]
    %v2114 = vld [vmem:[#allocation5 + $0x28] sm:$0xff]
    %v2115 = vld [vmem:[#allocation5 + $0x30] sm:$0xff]
    %v2116 = vld [vmem:[#allocation5 + $0x38] sm:$0xff]
    %v2117 = vld [vmem:[#allocation5 + $0x40] sm:$0xff]
    %v2118 = vld [vmem:[#allocation5 + $0x48] sm:$0xff]
    %v2119 = vld [vmem:[#allocation5 + $0x50] sm:$0xff]
    %v2120 = vld [vmem:[#allocation5 + $0x58] sm:$0xff]
    %v2121 = vld [vmem:[#allocation5 + $0x60] sm:$0xff]
    %v2122 = vld [vmem:[#allocation5 + $0x68] sm:$0xff]
    %v2123 = vld [vmem:[#allocation5 + $0x70] sm:$0xff]
    %v2124 = vld [vmem:[#allocation5 + $0x78] sm:$0xff]
    %v2125 = vld [vmem:[#allocation5 + $0x80] sm:$0xff]
    %v2126 = vld [vmem:[#allocation5 + $0x88] sm:$0xff]
    %v2127 = vld [vmem:[#allocation5 + $0x90] sm:$0xff]
    %v2128 = vld [vmem:[#allocation5 + $0x98] sm:$0xff]
    %v2129 = vld [vmem:[#allocation5 + $0xa0] sm:$0xff]
    %v2130 = vld [vmem:[#allocation5 + $0xa8] sm:$0xff]
    %v2131 = vld [vmem:[#allocation5 + $0xb0] sm:$0xff]
    %v2132 = vld [vmem:[#allocation5 + $0xb8] sm:$0xff]
    %v2133 = vld [vmem:[#allocation5 + $0xc0] sm:$0xff]
    %v2134 = vld [vmem:[#allocation5 + $0xc8] sm:$0xff]
    %v2135 = vld [vmem:[#allocation5 + $0xd0] sm:$0xff]
    %v2136 = vld [vmem:[#allocation5 + $0xd8] sm:$0xff]
    %v2137 = vld [vmem:[#allocation5 + $0xe0] sm:$0xff]
    %v2138 = vld [vmem:[#allocation5 + $0xe8] sm:$0xff]
    %v2139 = vld [vmem:[#allocation5 + $0xf0] sm:$0xff]
    %v2140 = vld [vmem:[#allocation5 + $0xf8] sm:$0xff]
    %v2141 = vld [vmem:[#allocation5 + $0x100] sm:$0xff]
    %v2142 = vld [vmem:[#allocation5 + $0x108] sm:$0xff]
    %v2143 = vld [vmem:[#allocation5 + $0x110] sm:$0xff]
    %v2144 = vld [vmem:[#allocation5 + $0x118] sm:$0xff]
    %v2145 = vld [vmem:[#allocation5 + $0x120] sm:$0xff]
    %v2146 = vld [vmem:[#allocation5 + $0x128] sm:$0xff]
    %v2147 = vld [vmem:[#allocation5 + $0x130] sm:$0xff]
    %v2148 = vld [vmem:[#allocation5 + $0x138] sm:$0xff]
    %v2149 = vld [vmem:[#allocation5 + $0x140] sm:$0xff]
    %v2150 = vld [vmem:[#allocation5 + $0x148] sm:$0xff]
    %v2151 = vld [vmem:[#allocation5 + $0x150] sm:$0xff]
    %v2152 = vld [vmem:[#allocation5 + $0x158] sm:$0xff]
    %v2153 = vld [vmem:[#allocation5 + $0x160] sm:$0xff]
    %v2154 = vld [vmem:[#allocation5 + $0x168] sm:$0xff]
    %v2155 = vld [vmem:[#allocation5 + $0x170] sm:$0xff]
    %v2156 = vld [vmem:[#allocation5 + $0x178] sm:$0xff]
    %v2157 = vld [vmem:[#allocation5 + $0x180] sm:$0xff]
    %v2158 = vld [vmem:[#allocation5 + $0x188] sm:$0xff]
    %v2159 = vld [vmem:[#allocation5 + $0x190] sm:$0xff]
    %v2160 = vld [vmem:[#allocation5 + $0x198] sm:$0xff]
    %v2161 = vld [vmem:[#allocation5 + $0x1a0] sm:$0xff]
    %v2162 = vld [vmem:[#allocation5 + $0x1a8] sm:$0xff]
    %v2163 = vld [vmem:[#allocation5 + $0x1b0] sm:$0xff]
    %v2164 = vld [vmem:[#allocation5 + $0x1b8] sm:$0xff]
    %v2165 = vld [vmem:[#allocation5 + $0x1c0] sm:$0xff]
    %v2166 = vld [vmem:[#allocation5 + $0x1c8] sm:$0xff]
    %v2167 = vld [vmem:[#allocation5 + $0x1d0] sm:$0xff]
    %v2168 = vld [vmem:[#allocation5 + $0x1d8] sm:$0xff]
    %v2169 = vld [vmem:[#allocation5 + $0x1e0] sm:$0xff]
    %v2170 = vld [vmem:[#allocation5 + $0x1e8] sm:$0xff]
    %v2171 = vld [vmem:[#allocation5 + $0x1f0] sm:$0xff]
    %v2172 = vld [vmem:[#allocation5 + $0x1f8] sm:$0xff]
    %v2173 = vld [vmem:[#allocation2 + $0x20] sm:$0xff]
    %v2174 = vld [vmem:[#allocation2 + $0x28] sm:$0xff]
    %v2175 = vld [vmem:[#allocation2 + $0x30] sm:$0xff]
    %v2176 = vld [vmem:[#allocation2 + $0x38] sm:$0xff]
    %v2177 = vld [vmem:[#allocation2 + $0x40] sm:$0xff]
    %v2178 = vld [vmem:[#allocation2 + $0x48] sm:$0xff]
    %v2179 = vld [vmem:[#allocation2 + $0x50] sm:$0xff]
    %v2180 = vld [vmem:[#allocation2 + $0x58] sm:$0xff]
    %v2181 = vld [vmem:[#allocation2 + $0x60] sm:$0xff]
    %v2182 = vld [vmem:[#allocation2 + $0x68] sm:$0xff]
    %v2183 = vld [vmem:[#allocation2 + $0x70] sm:$0xff]
    %v2184 = vld [vmem:[#allocation2 + $0x78] sm:$0xff]
    %v2185 = vld [vmem:[#allocation2 + $0x80] sm:$0xff]
    %v2186 = vld [vmem:[#allocation2 + $0x88] sm:$0xff]
    %v2187 = vld [vmem:[#allocation2 + $0x90] sm:$0xff]
    %v2188 = vld [vmem:[#allocation2 + $0x98] sm:$0xff]
    %s2189 = scalar_lea.vmem %s1, 2048
    %v2190 = vld [vmem:[%s2189] sm:$0xff]
    %v2191 = vld [vmem:[%s2189 + $0x8] sm:$0xff]
    %v2192 = vld [vmem:[%s2189 + $0x10] sm:$0xff]
    %v2193 = vld [vmem:[%s2189 + $0x18] sm:$0xff]
    %v2194 = vld [vmem:[%s2189 + $0x20] sm:$0xff]
    %v2195 = vld [vmem:[%s2189 + $0x28] sm:$0xff]
    %v2196 = vld [vmem:[%s2189 + $0x30] sm:$0xff]
    %v2197 = vld [vmem:[%s2189 + $0x38] sm:$0xff]
    %v2198 = vld [vmem:[%s2189 + $0x40] sm:$0xff]
    %v2199 = vld [vmem:[%s2189 + $0x48] sm:$0xff]
    %v2200 = vld [vmem:[%s2189 + $0x50] sm:$0xff]
    %v2201 = vld [vmem:[%s2189 + $0x58] sm:$0xff]
    %v2202 = vld [vmem:[%s2189 + $0x60] sm:$0xff]
    %v2203 = vld [vmem:[%s2189 + $0x68] sm:$0xff]
    %v2204 = vld [vmem:[%s2189 + $0x70] sm:$0xff]
    %v2205 = vld [vmem:[%s2189 + $0x78] sm:$0xff]
    %v2206 = vld [vmem:[%s2189 + $0x80] sm:$0xff]
    %v2207 = vld [vmem:[%s2189 + $0x88] sm:$0xff]
    %v2208 = vld [vmem:[%s2189 + $0x90] sm:$0xff]
    %v2209 = vld [vmem:[%s2189 + $0x98] sm:$0xff]
    %v2210 = vld [vmem:[%s2189 + $0xa0] sm:$0xff]
    %v2211 = vld [vmem:[%s2189 + $0xa8] sm:$0xff]
    %v2212 = vld [vmem:[%s2189 + $0xb0] sm:$0xff]
    %v2213 = vld [vmem:[%s2189 + $0xb8] sm:$0xff]
    %v2214 = vld [vmem:[%s2189 + $0xc0] sm:$0xff]
    %v2215 = vld [vmem:[%s2189 + $0xc8] sm:$0xff]
    %v2216 = vld [vmem:[%s2189 + $0xd0] sm:$0xff]
    %v2217 = vld [vmem:[%s2189 + $0xd8] sm:$0xff]
    %v2218 = vld [vmem:[%s2189 + $0xe0] sm:$0xff]
    %v2219 = vld [vmem:[%s2189 + $0xe8] sm:$0xff]
    %v2220 = vld [vmem:[%s2189 + $0xf0] sm:$0xff]
    %v2221 = vld [vmem:[%s2189 + $0xf8] sm:$0xff]
    %v2222 = vld [vmem:[%s2189 + $0x100] sm:$0xff]
    %v2223 = vld [vmem:[%s2189 + $0x108] sm:$0xff]
    %v2224 = vld [vmem:[%s2189 + $0x110] sm:$0xff]
    %v2225 = vld [vmem:[%s2189 + $0x118] sm:$0xff]
    %v2226 = vld [vmem:[%s2189 + $0x120] sm:$0xff]
    %v2227 = vld [vmem:[%s2189 + $0x128] sm:$0xff]
    %v2228 = vld [vmem:[%s2189 + $0x130] sm:$0xff]
    %v2229 = vld [vmem:[%s2189 + $0x138] sm:$0xff]
    %v2230 = vld [vmem:[%s2189 + $0x140] sm:$0xff]
    %v2231 = vld [vmem:[%s2189 + $0x148] sm:$0xff]
    %v2232 = vld [vmem:[%s2189 + $0x150] sm:$0xff]
    %v2233 = vld [vmem:[%s2189 + $0x158] sm:$0xff]
    %v2234 = vld [vmem:[%s2189 + $0x160] sm:$0xff]
    %v2235 = vld [vmem:[%s2189 + $0x168] sm:$0xff]
    %v2236 = vld [vmem:[%s2189 + $0x170] sm:$0xff]
    %v2237 = vld [vmem:[%s2189 + $0x178] sm:$0xff]
    %v2238 = vld [vmem:[%s2189 + $0x180] sm:$0xff]
    %v2239 = vld [vmem:[%s2189 + $0x188] sm:$0xff]
    %v2240 = vld [vmem:[%s2189 + $0x190] sm:$0xff]
    %v2241 = vld [vmem:[%s2189 + $0x198] sm:$0xff]
    %v2242 = vld [vmem:[%s2189 + $0x1a0] sm:$0xff]
    %v2243 = vld [vmem:[%s2189 + $0x1a8] sm:$0xff]
    %v2244 = vld [vmem:[%s2189 + $0x1b0] sm:$0xff]
    %v2245 = vld [vmem:[%s2189 + $0x1b8] sm:$0xff]
    %v2246 = vld [vmem:[%s2189 + $0x1c0] sm:$0xff]
    %v2247 = vld [vmem:[%s2189 + $0x1c8] sm:$0xff]
    %v2248 = vld [vmem:[%s2189 + $0x1d0] sm:$0xff]
    %v2249 = vld [vmem:[%s2189 + $0x1d8] sm:$0xff]
    %v2250 = vld [vmem:[%s2189 + $0x1e0] sm:$0xff]
    %v2251 = vld [vmem:[%s2189 + $0x1e8] sm:$0xff]
    %v2252 = vld [vmem:[%s2189 + $0x1f0] sm:$0xff]
    %v2253 = vld [vmem:[%s2189 + $0x1f8] sm:$0xff]
    %2254 = vmatpush.msra.mxu0 %v2250
    %2255 = vmatpush.msra.mxu0 %v2246
    %2256 = vmatpush.msra.mxu0 %v2242
    %2257 = vmatpush.msra.mxu0 %v2238
    %2258 = vmatpush.msra.mxu0 %v2234
    %2259 = vmatpush.msra.mxu0 %v2230
    %2260 = vmatpush.msra.mxu0 %v2226
    %2261 = vmatpush.msra.mxu0 %v2222
    %2262 = vmatpush.msra.mxu0 %v2218
    %2263 = vmatpush.msra.mxu0 %v2214
    %2264 = vmatpush.msra.mxu0 %v2210
    %2265 = vmatpush.msra.mxu0 %v2206
    %2266 = vmatpush.msra.mxu0 %v2202
    %2267 = vmatpush.msra.mxu0 %v2198
    %2268 = vmatpush.msra.mxu0 %v2194
    %2269 = vmatpush.msra.mxu0 %v2190
    %2270 = vmatmul.f32.gmra.mxu0 %v2173
    %v2271 = vpop.f32.mrf.mxu0
    %v2272 = vadd.f32 0.0, %v2271
    %2273 = vmatmul.f32.gmra.mxu0 %v2174
    %v2274 = vpop.f32.mrf.mxu0
    %v2275 = vadd.f32 0.0, %v2274
    %2276 = vmatmul.f32.gmra.mxu0 %v2175
    %v2277 = vpop.f32.mrf.mxu0
    %v2278 = vadd.f32 0.0, %v2277
    %2279 = vmatmul.f32.gmra.mxu0 %v2176
    %v2280 = vpop.f32.mrf.mxu0
    %v2281 = vadd.f32 0.0, %v2280
    %2282 = vmatmul.f32.gmra.mxu0 %v2177
    %v2283 = vpop.f32.mrf.mxu0
    %v2284 = vadd.f32 0.0, %v2283
    %2285 = vmatmul.f32.gmra.mxu0 %v2178
    %v2286 = vpop.f32.mrf.mxu0
    %v2287 = vadd.f32 0.0, %v2286
    %2288 = vmatmul.f32.gmra.mxu0 %v2179
    %v2289 = vpop.f32.mrf.mxu0
    %v2290 = vadd.f32 0.0, %v2289
    %2291 = vmatmul.f32.gmra.mxu0 %v2180
    %v2292 = vpop.f32.mrf.mxu0
    %v2293 = vadd.f32 0.0, %v2292
    %2294 = vmatmul.f32.gmra.mxu0 %v2181
    %v2295 = vpop.f32.mrf.mxu0
    %v2296 = vadd.f32 0.0, %v2295
    %2297 = vmatmul.f32.gmra.mxu0 %v2182
    %v2298 = vpop.f32.mrf.mxu0
    %v2299 = vadd.f32 0.0, %v2298
    %2300 = vmatmul.f32.gmra.mxu0 %v2183
    %v2301 = vpop.f32.mrf.mxu0
    %v2302 = vadd.f32 0.0, %v2301
    %2303 = vmatmul.f32.gmra.mxu0 %v2184
    %v2304 = vpop.f32.mrf.mxu0
    %v2305 = vadd.f32 0.0, %v2304
    %2306 = vmatmul.f32.gmra.mxu0 %v2185
    %v2307 = vpop.f32.mrf.mxu0
    %v2308 = vadd.f32 0.0, %v2307
    %2309 = vmatmul.f32.gmra.mxu0 %v2186
    %v2310 = vpop.f32.mrf.mxu0
    %v2311 = vadd.f32 0.0, %v2310
    %2312 = vmatmul.f32.gmra.mxu0 %v2187
    %v2313 = vpop.f32.mrf.mxu0
    %v2314 = vadd.f32 0.0, %v2313
    %2315 = vmatmul.f32.gmra.mxu0 %v2188
    %v2316 = vpop.f32.mrf.mxu0
    %v2317 = vadd.f32 0.0, %v2316
    %2318 = vdwg.mxu0
    %2319 = vmatpush.msra.mxu0 %v2251
    %2320 = vmatpush.msra.mxu0 %v2247
    %2321 = vmatpush.msra.mxu0 %v2243
    %2322 = vmatpush.msra.mxu0 %v2239
    %2323 = vmatpush.msra.mxu0 %v2235
    %2324 = vmatpush.msra.mxu0 %v2231
    %2325 = vmatpush.msra.mxu0 %v2227
    %2326 = vmatpush.msra.mxu0 %v2223
    %2327 = vmatpush.msra.mxu0 %v2219
    %2328 = vmatpush.msra.mxu0 %v2215
    %2329 = vmatpush.msra.mxu0 %v2211
    %2330 = vmatpush.msra.mxu0 %v2207
    %2331 = vmatpush.msra.mxu0 %v2203
    %2332 = vmatpush.msra.mxu0 %v2199
    %2333 = vmatpush.msra.mxu0 %v2195
    %2334 = vmatpush.msra.mxu0 %v2191
    %2335 = vmatmul.f32.gmra.mxu0 %v2173
    %v2336 = vpop.f32.mrf.mxu0
    %v2337 = vadd.f32 0.0, %v2336
    %2338 = vmatmul.f32.gmra.mxu0 %v2174
    %v2339 = vpop.f32.mrf.mxu0
    %v2340 = vadd.f32 0.0, %v2339
    %2341 = vmatmul.f32.gmra.mxu0 %v2175
    %v2342 = vpop.f32.mrf.mxu0
    %v2343 = vadd.f32 0.0, %v2342
    %2344 = vmatmul.f32.gmra.mxu0 %v2176
    %v2345 = vpop.f32.mrf.mxu0
    %v2346 = vadd.f32 0.0, %v2345
    %2347 = vmatmul.f32.gmra.mxu0 %v2177
    %v2348 = vpop.f32.mrf.mxu0
    %v2349 = vadd.f32 0.0, %v2348
    %2350 = vmatmul.f32.gmra.mxu0 %v2178
    %v2351 = vpop.f32.mrf.mxu0
    %v2352 = vadd.f32 0.0, %v2351
    %2353 = vmatmul.f32.gmra.mxu0 %v2179
    %v2354 = vpop.f32.mrf.mxu0
    %v2355 = vadd.f32 0.0, %v2354
    %2356 = vmatmul.f32.gmra.mxu0 %v2180
    %v2357 = vpop.f32.mrf.mxu0
    %v2358 = vadd.f32 0.0, %v2357
    %2359 = vmatmul.f32.gmra.mxu0 %v2181
    %v2360 = vpop.f32.mrf.mxu0
    %v2361 = vadd.f32 0.0, %v2360
    %2362 = vmatmul.f32.gmra.mxu0 %v2182
    %v2363 = vpop.f32.mrf.mxu0
    %v2364 = vadd.f32 0.0, %v2363
    %2365 = vmatmul.f32.gmra.mxu0 %v2183
    %v2366 = vpop.f32.mrf.mxu0
    %v2367 = vadd.f32 0.0, %v2366
    %2368 = vmatmul.f32.gmra.mxu0 %v2184
    %v2369 = vpop.f32.mrf.mxu0
    %v2370 = vadd.f32 0.0, %v2369
    %2371 = vmatmul.f32.gmra.mxu0 %v2185
    %v2372 = vpop.f32.mrf.mxu0
    %v2373 = vadd.f32 0.0, %v2372
    %2374 = vmatmul.f32.gmra.mxu0 %v2186
    %v2375 = vpop.f32.mrf.mxu0
    %v2376 = vadd.f32 0.0, %v2375
    %2377 = vmatmul.f32.gmra.mxu0 %v2187
    %v2378 = vpop.f32.mrf.mxu0
    %v2379 = vadd.f32 0.0, %v2378
    %2380 = vmatmul.f32.gmra.mxu0 %v2188
    %v2381 = vpop.f32.mrf.mxu0
    %v2382 = vadd.f32 0.0, %v2381
    %2383 = vdwg.mxu0
    %2384 = vmatpush.msra.mxu0 %v2252
    %2385 = vmatpush.msra.mxu0 %v2248
    %2386 = vmatpush.msra.mxu0 %v2244
    %2387 = vmatpush.msra.mxu0 %v2240
    %2388 = vmatpush.msra.mxu0 %v2236
    %2389 = vmatpush.msra.mxu0 %v2232
    %2390 = vmatpush.msra.mxu0 %v2228
    %2391 = vmatpush.msra.mxu0 %v2224
    %2392 = vmatpush.msra.mxu0 %v2220
    %2393 = vmatpush.msra.mxu0 %v2216
    %2394 = vmatpush.msra.mxu0 %v2212
    %2395 = vmatpush.msra.mxu0 %v2208
    %2396 = vmatpush.msra.mxu0 %v2204
    %2397 = vmatpush.msra.mxu0 %v2200
    %2398 = vmatpush.msra.mxu0 %v2196
    %2399 = vmatpush.msra.mxu0 %v2192
    %2400 = vmatmul.f32.gmra.mxu0 %v2173
    %v2401 = vpop.f32.mrf.mxu0
    %v2402 = vadd.f32 0.0, %v2401
    %2403 = vmatmul.f32.gmra.mxu0 %v2174
    %v2404 = vpop.f32.mrf.mxu0
    %v2405 = vadd.f32 0.0, %v2404
    %2406 = vmatmul.f32.gmra.mxu0 %v2175
    %v2407 = vpop.f32.mrf.mxu0
    %v2408 = vadd.f32 0.0, %v2407
    %2409 = vmatmul.f32.gmra.mxu0 %v2176
    %v2410 = vpop.f32.mrf.mxu0
    %v2411 = vadd.f32 0.0, %v2410
    %2412 = vmatmul.f32.gmra.mxu0 %v2177
    %v2413 = vpop.f32.mrf.mxu0
    %v2414 = vadd.f32 0.0, %v2413
    %2415 = vmatmul.f32.gmra.mxu0 %v2178
    %v2416 = vpop.f32.mrf.mxu0
    %v2417 = vadd.f32 0.0, %v2416
    %2418 = vmatmul.f32.gmra.mxu0 %v2179
    %v2419 = vpop.f32.mrf.mxu0
    %v2420 = vadd.f32 0.0, %v2419
    %2421 = vmatmul.f32.gmra.mxu0 %v2180
    %v2422 = vpop.f32.mrf.mxu0
    %v2423 = vadd.f32 0.0, %v2422
    %2424 = vmatmul.f32.gmra.mxu0 %v2181
    %v2425 = vpop.f32.mrf.mxu0
    %v2426 = vadd.f32 0.0, %v2425
    %2427 = vmatmul.f32.gmra.mxu0 %v2182
    %v2428 = vpop.f32.mrf.mxu0
    %v2429 = vadd.f32 0.0, %v2428
    %2430 = vmatmul.f32.gmra.mxu0 %v2183
    %v2431 = vpop.f32.mrf.mxu0
    %v2432 = vadd.f32 0.0, %v2431
    %2433 = vmatmul.f32.gmra.mxu0 %v2184
    %v2434 = vpop.f32.mrf.mxu0
    %v2435 = vadd.f32 0.0, %v2434
    %2436 = vmatmul.f32.gmra.mxu0 %v2185
    %v2437 = vpop.f32.mrf.mxu0
    %v2438 = vadd.f32 0.0, %v2437
    %2439 = vmatmul.f32.gmra.mxu0 %v2186
    %v2440 = vpop.f32.mrf.mxu0
    %v2441 = vadd.f32 0.0, %v2440
    %2442 = vmatmul.f32.gmra.mxu0 %v2187
    %v2443 = vpop.f32.mrf.mxu0
    %v2444 = vadd.f32 0.0, %v2443
    %2445 = vmatmul.f32.gmra.mxu0 %v2188
    %v2446 = vpop.f32.mrf.mxu0
    %v2447 = vadd.f32 0.0, %v2446
    %2448 = vdwg.mxu0
    %2449 = vmatpush.msra.mxu0 %v2253
    %2450 = vmatpush.msra.mxu0 %v2249
    %2451 = vmatpush.msra.mxu0 %v2245
    %2452 = vmatpush.msra.mxu0 %v2241
    %2453 = vmatpush.msra.mxu0 %v2237
    %2454 = vmatpush.msra.mxu0 %v2233
    %2455 = vmatpush.msra.mxu0 %v2229
    %2456 = vmatpush.msra.mxu0 %v2225
    %2457 = vmatpush.msra.mxu0 %v2221
    %2458 = vmatpush.msra.mxu0 %v2217
    %2459 = vmatpush.msra.mxu0 %v2213
    %2460 = vmatpush.msra.mxu0 %v2209
    %2461 = vmatpush.msra.mxu0 %v2205
    %2462 = vmatpush.msra.mxu0 %v2201
    %2463 = vmatpush.msra.mxu0 %v2197
    %2464 = vmatpush.msra.mxu0 %v2193
    %2465 = vmatmul.f32.gmra.mxu0 %v2173
    %v2466 = vpop.f32.mrf.mxu0
    %v2467 = vadd.f32 0.0, %v2466
    %2468 = vmatmul.f32.gmra.mxu0 %v2174
    %v2469 = vpop.f32.mrf.mxu0
    %v2470 = vadd.f32 0.0, %v2469
    %2471 = vmatmul.f32.gmra.mxu0 %v2175
    %v2472 = vpop.f32.mrf.mxu0
    %v2473 = vadd.f32 0.0, %v2472
    %2474 = vmatmul.f32.gmra.mxu0 %v2176
    %v2475 = vpop.f32.mrf.mxu0
    %v2476 = vadd.f32 0.0, %v2475
    %2477 = vmatmul.f32.gmra.mxu0 %v2177
    %v2478 = vpop.f32.mrf.mxu0
    %v2479 = vadd.f32 0.0, %v2478
    %2480 = vmatmul.f32.gmra.mxu0 %v2178
    %v2481 = vpop.f32.mrf.mxu0
    %v2482 = vadd.f32 0.0, %v2481
    %2483 = vmatmul.f32.gmra.mxu0 %v2179
    %v2484 = vpop.f32.mrf.mxu0
    %v2485 = vadd.f32 0.0, %v2484
    %2486 = vmatmul.f32.gmra.mxu0 %v2180
    %v2487 = vpop.f32.mrf.mxu0
    %v2488 = vadd.f32 0.0, %v2487
    %2489 = vmatmul.f32.gmra.mxu0 %v2181
    %v2490 = vpop.f32.mrf.mxu0
    %v2491 = vadd.f32 0.0, %v2490
    %2492 = vmatmul.f32.gmra.mxu0 %v2182
    %v2493 = vpop.f32.mrf.mxu0
    %v2494 = vadd.f32 0.0, %v2493
    %2495 = vmatmul.f32.gmra.mxu0 %v2183
    %v2496 = vpop.f32.mrf.mxu0
    %v2497 = vadd.f32 0.0, %v2496
    %2498 = vmatmul.f32.gmra.mxu0 %v2184
    %v2499 = vpop.f32.mrf.mxu0
    %v2500 = vadd.f32 0.0, %v2499
    %2501 = vmatmul.f32.gmra.mxu0 %v2185
    %v2502 = vpop.f32.mrf.mxu0
    %v2503 = vadd.f32 0.0, %v2502
    %2504 = vmatmul.f32.gmra.mxu0 %v2186
    %v2505 = vpop.f32.mrf.mxu0
    %v2506 = vadd.f32 0.0, %v2505
    %2507 = vmatmul.f32.gmra.mxu0 %v2187
    %v2508 = vpop.f32.mrf.mxu0
    %v2509 = vadd.f32 0.0, %v2508
    %2510 = vmatmul.f32.gmra.mxu0 %v2188
    %v2511 = vpop.f32.mrf.mxu0
    %v2512 = vadd.f32 0.0, %v2511
    %2513 = vdwg.mxu0
    %v2514 = vadd.f32 %v2109, %v2272
    %v2515 = vadd.f32 %v2110, %v2337
    %v2516 = vadd.f32 %v2111, %v2402
    %v2517 = vadd.f32 %v2112, %v2467
    %v2518 = vadd.f32 %v2113, %v2275
    %v2519 = vadd.f32 %v2114, %v2340
    %v2520 = vadd.f32 %v2115, %v2405
    %v2521 = vadd.f32 %v2116, %v2470
    %v2522 = vadd.f32 %v2117, %v2278
    %v2523 = vadd.f32 %v2118, %v2343
    %v2524 = vadd.f32 %v2119, %v2408
    %v2525 = vadd.f32 %v2120, %v2473
    %v2526 = vadd.f32 %v2121, %v2281
    %v2527 = vadd.f32 %v2122, %v2346
    %v2528 = vadd.f32 %v2123, %v2411
    %v2529 = vadd.f32 %v2124, %v2476
    %v2530 = vadd.f32 %v2125, %v2284
    %v2531 = vadd.f32 %v2126, %v2349
    %v2532 = vadd.f32 %v2127, %v2414
    %v2533 = vadd.f32 %v2128, %v2479
    %v2534 = vadd.f32 %v2129, %v2287
    %v2535 = vadd.f32 %v2130, %v2352
    %v2536 = vadd.f32 %v2131, %v2417
    %v2537 = vadd.f32 %v2132, %v2482
    %v2538 = vadd.f32 %v2133, %v2290
    %v2539 = vadd.f32 %v2134, %v2355
    %v2540 = vadd.f32 %v2135, %v2420
    %v2541 = vadd.f32 %v2136, %v2485
    %v2542 = vadd.f32 %v2137, %v2293
    %v2543 = vadd.f32 %v2138, %v2358
    %v2544 = vadd.f32 %v2139, %v2423
    %v2545 = vadd.f32 %v2140, %v2488
    %v2546 = vadd.f32 %v2141, %v2296
    %v2547 = vadd.f32 %v2142, %v2361
    %v2548 = vadd.f32 %v2143, %v2426
    %v2549 = vadd.f32 %v2144, %v2491
    %v2550 = vadd.f32 %v2145, %v2299
    %v2551 = vadd.f32 %v2146, %v2364
    %v2552 = vadd.f32 %v2147, %v2429
    %v2553 = vadd.f32 %v2148, %v2494
    %v2554 = vadd.f32 %v2149, %v2302
    %v2555 = vadd.f32 %v2150, %v2367
    %v2556 = vadd.f32 %v2151, %v2432
    %v2557 = vadd.f32 %v2152, %v2497
    %v2558 = vadd.f32 %v2153, %v2305
    %v2559 = vadd.f32 %v2154, %v2370
    %v2560 = vadd.f32 %v2155, %v2435
    %v2561 = vadd.f32 %v2156, %v2500
    %v2562 = vadd.f32 %v2157, %v2308
    %v2563 = vadd.f32 %v2158, %v2373
    %v2564 = vadd.f32 %v2159, %v2438
    %v2565 = vadd.f32 %v2160, %v2503
    %v2566 = vadd.f32 %v2161, %v2311
    %v2567 = vadd.f32 %v2162, %v2376
    %v2568 = vadd.f32 %v2163, %v2441
    %v2569 = vadd.f32 %v2164, %v2506
    %v2570 = vadd.f32 %v2165, %v2314
    %v2571 = vadd.f32 %v2166, %v2379
    %v2572 = vadd.f32 %v2167, %v2444
    %v2573 = vadd.f32 %v2168, %v2509
    %v2574 = vadd.f32 %v2169, %v2317
    %v2575 = vadd.f32 %v2170, %v2382
    %v2576 = vadd.f32 %v2171, %v2447
    %v2577 = vadd.f32 %v2172, %v2512
    %2578 = vst [vmem:[#allocation5] sm:$0xff] %v2514
    %2579 = vst [vmem:[#allocation5 + $0x8] sm:$0xff] %v2515
    %2580 = vst [vmem:[#allocation5 + $0x10] sm:$0xff] %v2516
    %2581 = vst [vmem:[#allocation5 + $0x18] sm:$0xff] %v2517
    %2582 = vst [vmem:[#allocation5 + $0x20] sm:$0xff] %v2518
    %2583 = vst [vmem:[#allocation5 + $0x28] sm:$0xff] %v2519
    %2584 = vst [vmem:[#allocation5 + $0x30] sm:$0xff] %v2520
    %2585 = vst [vmem:[#allocation5 + $0x38] sm:$0xff] %v2521
    %2586 = vst [vmem:[#allocation5 + $0x40] sm:$0xff] %v2522
    %2587 = vst [vmem:[#allocation5 + $0x48] sm:$0xff] %v2523
    %2588 = vst [vmem:[#allocation5 + $0x50] sm:$0xff] %v2524
    %2589 = vst [vmem:[#allocation5 + $0x58] sm:$0xff] %v2525
    %2590 = vst [vmem:[#allocation5 + $0x60] sm:$0xff] %v2526
    %2591 = vst [vmem:[#allocation5 + $0x68] sm:$0xff] %v2527
    %2592 = vst [vmem:[#allocation5 + $0x70] sm:$0xff] %v2528
    %2593 = vst [vmem:[#allocation5 + $0x78] sm:$0xff] %v2529
    %2594 = vst [vmem:[#allocation5 + $0x80] sm:$0xff] %v2530
    %2595 = vst [vmem:[#allocation5 + $0x88] sm:$0xff] %v2531
    %2596 = vst [vmem:[#allocation5 + $0x90] sm:$0xff] %v2532
    %2597 = vst [vmem:[#allocation5 + $0x98] sm:$0xff] %v2533
    %2598 = vst [vmem:[#allocation5 + $0xa0] sm:$0xff] %v2534
    %2599 = vst [vmem:[#allocation5 + $0xa8] sm:$0xff] %v2535
    %2600 = vst [vmem:[#allocation5 + $0xb0] sm:$0xff] %v2536
    %2601 = vst [vmem:[#allocation5 + $0xb8] sm:$0xff] %v2537
    %2602 = vst [vmem:[#allocation5 + $0xc0] sm:$0xff] %v2538
    %2603 = vst [vmem:[#allocation5 + $0xc8] sm:$0xff] %v2539
    %2604 = vst [vmem:[#allocation5 + $0xd0] sm:$0xff] %v2540
    %2605 = vst [vmem:[#allocation5 + $0xd8] sm:$0xff] %v2541
    %2606 = vst [vmem:[#allocation5 + $0xe0] sm:$0xff] %v2542
    %2607 = vst [vmem:[#allocation5 + $0xe8] sm:$0xff] %v2543
    %2608 = vst [vmem:[#allocation5 + $0xf0] sm:$0xff] %v2544
    %2609 = vst [vmem:[#allocation5 + $0xf8] sm:$0xff] %v2545
    %2610 = vst [vmem:[#allocation5 + $0x100] sm:$0xff] %v2546
    %2611 = vst [vmem:[#allocation5 + $0x108] sm:$0xff] %v2547
    %2612 = vst [vmem:[#allocation5 + $0x110] sm:$0xff] %v2548
    %2613 = vst [vmem:[#allocation5 + $0x118] sm:$0xff] %v2549
    %2614 = vst [vmem:[#allocation5 + $0x120] sm:$0xff] %v2550
    %2615 = vst [vmem:[#allocation5 + $0x128] sm:$0xff] %v2551
    %2616 = vst [vmem:[#allocation5 + $0x130] sm:$0xff] %v2552
    %2617 = vst [vmem:[#allocation5 + $0x138] sm:$0xff] %v2553
    %2618 = vst [vmem:[#allocation5 + $0x140] sm:$0xff] %v2554
    %2619 = vst [vmem:[#allocation5 + $0x148] sm:$0xff] %v2555
    %2620 = vst [vmem:[#allocation5 + $0x150] sm:$0xff] %v2556
    %2621 = vst [vmem:[#allocation5 + $0x158] sm:$0xff] %v2557
    %2622 = vst [vmem:[#allocation5 + $0x160] sm:$0xff] %v2558
    %2623 = vst [vmem:[#allocation5 + $0x168] sm:$0xff] %v2559
    %2624 = vst [vmem:[#allocation5 + $0x170] sm:$0xff] %v2560
    %2625 = vst [vmem:[#allocation5 + $0x178] sm:$0xff] %v2561
    %2626 = vst [vmem:[#allocation5 + $0x180] sm:$0xff] %v2562
    %2627 = vst [vmem:[#allocation5 + $0x188] sm:$0xff] %v2563
    %2628 = vst [vmem:[#allocation5 + $0x190] sm:$0xff] %v2564
    %2629 = vst [vmem:[#allocation5 + $0x198] sm:$0xff] %v2565
    %2630 = vst [vmem:[#allocation5 + $0x1a0] sm:$0xff] %v2566
    %2631 = vst [vmem:[#allocation5 + $0x1a8] sm:$0xff] %v2567
    %2632 = vst [vmem:[#allocation5 + $0x1b0] sm:$0xff] %v2568
    %2633 = vst [vmem:[#allocation5 + $0x1b8] sm:$0xff] %v2569
    %2634 = vst [vmem:[#allocation5 + $0x1c0] sm:$0xff] %v2570
    %2635 = vst [vmem:[#allocation5 + $0x1c8] sm:$0xff] %v2571
    %2636 = vst [vmem:[#allocation5 + $0x1d0] sm:$0xff] %v2572
    %2637 = vst [vmem:[#allocation5 + $0x1d8] sm:$0xff] %v2573
    %2638 = vst [vmem:[#allocation5 + $0x1e0] sm:$0xff] %v2574
    %2639 = vst [vmem:[#allocation5 + $0x1e8] sm:$0xff] %v2575
    %2640 = vst [vmem:[#allocation5 + $0x1f0] sm:$0xff] %v2576
    %2641 = vst [vmem:[#allocation5 + $0x1f8] sm:$0xff] %v2577
    %v2642 = vld [vmem:[#allocation5] sm:$0xff]
    %v2643 = vld [vmem:[#allocation5 + $0x8] sm:$0xff]
    %v2644 = vld [vmem:[#allocation5 + $0x10] sm:$0xff]
    %v2645 = vld [vmem:[#allocation5 + $0x18] sm:$0xff]
    %v2646 = vld [vmem:[#allocation5 + $0x20] sm:$0xff]
    %v2647 = vld [vmem:[#allocation5 + $0x28] sm:$0xff]
    %v2648 = vld [vmem:[#allocation5 + $0x30] sm:$0xff]
    %v2649 = vld [vmem:[#allocation5 + $0x38] sm:$0xff]
    %v2650 = vld [vmem:[#allocation5 + $0x40] sm:$0xff]
    %v2651 = vld [vmem:[#allocation5 + $0x48] sm:$0xff]
    %v2652 = vld [vmem:[#allocation5 + $0x50] sm:$0xff]
    %v2653 = vld [vmem:[#allocation5 + $0x58] sm:$0xff]
    %v2654 = vld [vmem:[#allocation5 + $0x60] sm:$0xff]
    %v2655 = vld [vmem:[#allocation5 + $0x68] sm:$0xff]
    %v2656 = vld [vmem:[#allocation5 + $0x70] sm:$0xff]
    %v2657 = vld [vmem:[#allocation5 + $0x78] sm:$0xff]
    %v2658 = vld [vmem:[#allocation5 + $0x80] sm:$0xff]
    %v2659 = vld [vmem:[#allocation5 + $0x88] sm:$0xff]
    %v2660 = vld [vmem:[#allocation5 + $0x90] sm:$0xff]
    %v2661 = vld [vmem:[#allocation5 + $0x98] sm:$0xff]
    %v2662 = vld [vmem:[#allocation5 + $0xa0] sm:$0xff]
    %v2663 = vld [vmem:[#allocation5 + $0xa8] sm:$0xff]
    %v2664 = vld [vmem:[#allocation5 + $0xb0] sm:$0xff]
    %v2665 = vld [vmem:[#allocation5 + $0xb8] sm:$0xff]
    %v2666 = vld [vmem:[#allocation5 + $0xc0] sm:$0xff]
    %v2667 = vld [vmem:[#allocation5 + $0xc8] sm:$0xff]
    %v2668 = vld [vmem:[#allocation5 + $0xd0] sm:$0xff]
    %v2669 = vld [vmem:[#allocation5 + $0xd8] sm:$0xff]
    %v2670 = vld [vmem:[#allocation5 + $0xe0] sm:$0xff]
    %v2671 = vld [vmem:[#allocation5 + $0xe8] sm:$0xff]
    %v2672 = vld [vmem:[#allocation5 + $0xf0] sm:$0xff]
    %v2673 = vld [vmem:[#allocation5 + $0xf8] sm:$0xff]
    %v2674 = vld [vmem:[#allocation5 + $0x100] sm:$0xff]
    %v2675 = vld [vmem:[#allocation5 + $0x108] sm:$0xff]
    %v2676 = vld [vmem:[#allocation5 + $0x110] sm:$0xff]
    %v2677 = vld [vmem:[#allocation5 + $0x118] sm:$0xff]
    %v2678 = vld [vmem:[#allocation5 + $0x120] sm:$0xff]
    %v2679 = vld [vmem:[#allocation5 + $0x128] sm:$0xff]
    %v2680 = vld [vmem:[#allocation5 + $0x130] sm:$0xff]
    %v2681 = vld [vmem:[#allocation5 + $0x138] sm:$0xff]
    %v2682 = vld [vmem:[#allocation5 + $0x140] sm:$0xff]
    %v2683 = vld [vmem:[#allocation5 + $0x148] sm:$0xff]
    %v2684 = vld [vmem:[#allocation5 + $0x150] sm:$0xff]
    %v2685 = vld [vmem:[#allocation5 + $0x158] sm:$0xff]
    %v2686 = vld [vmem:[#allocation5 + $0x160] sm:$0xff]
    %v2687 = vld [vmem:[#allocation5 + $0x168] sm:$0xff]
    %v2688 = vld [vmem:[#allocation5 + $0x170] sm:$0xff]
    %v2689 = vld [vmem:[#allocation5 + $0x178] sm:$0xff]
    %v2690 = vld [vmem:[#allocation5 + $0x180] sm:$0xff]
    %v2691 = vld [vmem:[#allocation5 + $0x188] sm:$0xff]
    %v2692 = vld [vmem:[#allocation5 + $0x190] sm:$0xff]
    %v2693 = vld [vmem:[#allocation5 + $0x198] sm:$0xff]
    %v2694 = vld [vmem:[#allocation5 + $0x1a0] sm:$0xff]
    %v2695 = vld [vmem:[#allocation5 + $0x1a8] sm:$0xff]
    %v2696 = vld [vmem:[#allocation5 + $0x1b0] sm:$0xff]
    %v2697 = vld [vmem:[#allocation5 + $0x1b8] sm:$0xff]
    %v2698 = vld [vmem:[#allocation5 + $0x1c0] sm:$0xff]
    %v2699 = vld [vmem:[#allocation5 + $0x1c8] sm:$0xff]
    %v2700 = vld [vmem:[#allocation5 + $0x1d0] sm:$0xff]
    %v2701 = vld [vmem:[#allocation5 + $0x1d8] sm:$0xff]
    %v2702 = vld [vmem:[#allocation5 + $0x1e0] sm:$0xff]
    %v2703 = vld [vmem:[#allocation5 + $0x1e8] sm:$0xff]
    %v2704 = vld [vmem:[#allocation5 + $0x1f0] sm:$0xff]
    %v2705 = vld [vmem:[#allocation5 + $0x1f8] sm:$0xff]
    %v2706 = vmax.f32 %v2642, %v2644
    %v2707 = vmax.f32 %v2643, %v2645
    %v2708 = vmax.f32 %v2646, %v2648
    %v2709 = vmax.f32 %v2647, %v2649
    %v2710 = vmax.f32 %v2650, %v2652
    %v2711 = vmax.f32 %v2651, %v2653
    %v2712 = vmax.f32 %v2654, %v2656
    %v2713 = vmax.f32 %v2655, %v2657
    %v2714 = vmax.f32 %v2658, %v2660
    %v2715 = vmax.f32 %v2659, %v2661
    %v2716 = vmax.f32 %v2662, %v2664
    %v2717 = vmax.f32 %v2663, %v2665
    %v2718 = vmax.f32 %v2666, %v2668
    %v2719 = vmax.f32 %v2667, %v2669
    %v2720 = vmax.f32 %v2670, %v2672
    %v2721 = vmax.f32 %v2671, %v2673
    %v2722 = vmax.f32 %v2674, %v2676
    %v2723 = vmax.f32 %v2675, %v2677
    %v2724 = vmax.f32 %v2678, %v2680
    %v2725 = vmax.f32 %v2679, %v2681
    %v2726 = vmax.f32 %v2682, %v2684
    %v2727 = vmax.f32 %v2683, %v2685
    %v2728 = vmax.f32 %v2686, %v2688
    %v2729 = vmax.f32 %v2687, %v2689
    %v2730 = vmax.f32 %v2690, %v2692
    %v2731 = vmax.f32 %v2691, %v2693
    %v2732 = vmax.f32 %v2694, %v2696
    %v2733 = vmax.f32 %v2695, %v2697
    %v2734 = vmax.f32 %v2698, %v2700
    %v2735 = vmax.f32 %v2699, %v2701
    %v2736 = vmax.f32 %v2702, %v2704
    %v2737 = vmax.f32 %v2703, %v2705
    %v2738 = vmax.f32 %v2706, %v2708
    %v2739 = vmax.f32 %v2707, %v2709
    %v2740 = vmax.f32 %v2738, 0.0
    %v2741 = vmax.f32 %v2739, 0.0
    %2742 = vst [vmem:[#allocation3 + $0x10] sm:$0xff] %v2740
    %2743 = vst [vmem:[#allocation3 + $0x18] sm:$0xff] %v2741
    %v2744 = vmax.f32 %v2710, %v2712
    %v2745 = vmax.f32 %v2711, %v2713
    %v2746 = vmax.f32 %v2744, 0.0
    %v2747 = vmax.f32 %v2745, 0.0
    %2748 = vst [vmem:[#allocation3 + $0x20] sm:$0xff] %v2746
    %2749 = vst [vmem:[#allocation3 + $0x28] sm:$0xff] %v2747
    %v2750 = vmax.f32 %v2714, %v2716
    %v2751 = vmax.f32 %v2715, %v2717
    %v2752 = vmax.f32 %v2750, 0.0
    %v2753 = vmax.f32 %v2751, 0.0
    %2754 = vst [vmem:[#allocation3 + $0x30] sm:$0xff] %v2752
    %2755 = vst [vmem:[#allocation3 + $0x38] sm:$0xff] %v2753
    %v2756 = vmax.f32 %v2718, %v2720
    %v2757 = vmax.f32 %v2719, %v2721
    %v2758 = vmax.f32 %v2756, 0.0
    %v2759 = vmax.f32 %v2757, 0.0
    %2760 = vst [vmem:[#allocation3 + $0x40] sm:$0xff] %v2758
    %2761 = vst [vmem:[#allocation3 + $0x48] sm:$0xff] %v2759
    %v2762 = vmax.f32 %v2722, %v2724
    %v2763 = vmax.f32 %v2723, %v2725
    %v2764 = vmax.f32 %v2762, 0.0
    %v2765 = vmax.f32 %v2763, 0.0
    %2766 = vst [vmem:[#allocation3 + $0x50] sm:$0xff] %v2764
    %2767 = vst [vmem:[#allocation3 + $0x58] sm:$0xff] %v2765
    %v2768 = vmax.f32 %v2726, %v2728
    %v2769 = vmax.f32 %v2727, %v2729
    %v2770 = vmax.f32 %v2768, 0.0
    %v2771 = vmax.f32 %v2769, 0.0
    %2772 = vst [vmem:[#allocation3 + $0x60] sm:$0xff] %v2770
    %2773 = vst [vmem:[#allocation3 + $0x68] sm:$0xff] %v2771
    %v2774 = vmax.f32 %v2730, %v2732
    %v2775 = vmax.f32 %v2731, %v2733
    %v2776 = vmax.f32 %v2774, 0.0
    %v2777 = vmax.f32 %v2775, 0.0
    %2778 = vst [vmem:[#allocation3 + $0x70] sm:$0xff] %v2776
    %2779 = vst [vmem:[#allocation3 + $0x78] sm:$0xff] %v2777
    %v2780 = vmax.f32 %v2734, %v2736
    %v2781 = vmax.f32 %v2735, %v2737
    %v2782 = vmax.f32 %v2780, 0.0
    %v2783 = vmax.f32 %v2781, 0.0
    %2784 = vst [vmem:[#allocation3 + $0x80] sm:$0xff] %v2782
    %2785 = vst [vmem:[#allocation3 + $0x88] sm:$0xff] %v2783
    %v2786 = vld [vmem:[#allocation3] sm:$0xff]
    %v2787 = vld [vmem:[#allocation3 + $0x8] sm:$0xff]
    %v2788 = vld [vmem:[#allocation3 + $0x10] sm:$0xff]
    %v2789 = vld [vmem:[#allocation3 + $0x18] sm:$0xff]
    %v2790 = vld [vmem:[#allocation3 + $0x20] sm:$0xff]
    %v2791 = vld [vmem:[#allocation3 + $0x28] sm:$0xff]
    %v2792 = vld [vmem:[#allocation3 + $0x30] sm:$0xff]
    %v2793 = vld [vmem:[#allocation3 + $0x38] sm:$0xff]
    %v2794 = vld [vmem:[#allocation3 + $0x40] sm:$0xff]
    %v2795 = vld [vmem:[#allocation3 + $0x48] sm:$0xff]
    %v2796 = vld [vmem:[#allocation3 + $0x50] sm:$0xff]
    %v2797 = vld [vmem:[#allocation3 + $0x58] sm:$0xff]
    %v2798 = vld [vmem:[#allocation3 + $0x60] sm:$0xff]
    %v2799 = vld [vmem:[#allocation3 + $0x68] sm:$0xff]
    %v2800 = vld [vmem:[#allocation3 + $0x70] sm:$0xff]
    %v2801 = vld [vmem:[#allocation3 + $0x78] sm:$0xff]
    %v2802 = vld [vmem:[#allocation7] sm:$0xff]
    %v2803 = vld [vmem:[#allocation7 + $0x8] sm:$0xff]
    %v2804 = vld [vmem:[#allocation7 + $0x10] sm:$0xff]
    %v2805 = vld [vmem:[#allocation7 + $0x18] sm:$0xff]
    %v2806 = vld [vmem:[#allocation7 + $0x20] sm:$0xff]
    %v2807 = vld [vmem:[#allocation7 + $0x28] sm:$0xff]
    %v2808 = vld [vmem:[#allocation7 + $0x30] sm:$0xff]
    %v2809 = vld [vmem:[#allocation7 + $0x38] sm:$0xff]
    %v2810 = vld [vmem:[#allocation7 + $0x40] sm:$0xff]
    %v2811 = vld [vmem:[#allocation7 + $0x48] sm:$0xff]
    %v2812 = vld [vmem:[#allocation7 + $0x50] sm:$0xff]
    %v2813 = vld [vmem:[#allocation7 + $0x58] sm:$0xff]
    %v2814 = vld [vmem:[#allocation7 + $0x60] sm:$0xff]
    %v2815 = vld [vmem:[#allocation7 + $0x68] sm:$0xff]
    %v2816 = vld [vmem:[#allocation7 + $0x70] sm:$0xff]
    %v2817 = vld [vmem:[#allocation7 + $0x78] sm:$0xff]
    %v2818 = vld [vmem:[#allocation7 + $0x80] sm:$0xff]
    %v2819 = vld [vmem:[#allocation7 + $0x88] sm:$0xff]
    %v2820 = vld [vmem:[#allocation7 + $0x90] sm:$0xff]
    %v2821 = vld [vmem:[#allocation7 + $0x98] sm:$0xff]
    %v2822 = vld [vmem:[#allocation7 + $0xa0] sm:$0xff]
    %v2823 = vld [vmem:[#allocation7 + $0xa8] sm:$0xff]
    %v2824 = vld [vmem:[#allocation7 + $0xb0] sm:$0xff]
    %v2825 = vld [vmem:[#allocation7 + $0xb8] sm:$0xff]
    %v2826 = vld [vmem:[#allocation7 + $0xc0] sm:$0xff]
    %v2827 = vld [vmem:[#allocation7 + $0xc8] sm:$0xff]
    %v2828 = vld [vmem:[#allocation7 + $0xd0] sm:$0xff]
    %v2829 = vld [vmem:[#allocation7 + $0xd8] sm:$0xff]
    %v2830 = vld [vmem:[#allocation7 + $0xe0] sm:$0xff]
    %v2831 = vld [vmem:[#allocation7 + $0xe8] sm:$0xff]
    %v2832 = vld [vmem:[#allocation7 + $0xf0] sm:$0xff]
    %v2833 = vld [vmem:[#allocation7 + $0xf8] sm:$0xff]
    %v2834 = vld [vmem:[#allocation7 + $0x100] sm:$0xff]
    %v2835 = vld [vmem:[#allocation7 + $0x108] sm:$0xff]
    %v2836 = vld [vmem:[#allocation7 + $0x110] sm:$0xff]
    %v2837 = vld [vmem:[#allocation7 + $0x118] sm:$0xff]
    %v2838 = vld [vmem:[#allocation7 + $0x120] sm:$0xff]
    %v2839 = vld [vmem:[#allocation7 + $0x128] sm:$0xff]
    %v2840 = vld [vmem:[#allocation7 + $0x130] sm:$0xff]
    %v2841 = vld [vmem:[#allocation7 + $0x138] sm:$0xff]
    %v2842 = vld [vmem:[#allocation7 + $0x140] sm:$0xff]
    %v2843 = vld [vmem:[#allocation7 + $0x148] sm:$0xff]
    %v2844 = vld [vmem:[#allocation7 + $0x150] sm:$0xff]
    %v2845 = vld [vmem:[#allocation7 + $0x158] sm:$0xff]
    %v2846 = vld [vmem:[#allocation7 + $0x160] sm:$0xff]
    %v2847 = vld [vmem:[#allocation7 + $0x168] sm:$0xff]
    %v2848 = vld [vmem:[#allocation7 + $0x170] sm:$0xff]
    %v2849 = vld [vmem:[#allocation7 + $0x178] sm:$0xff]
    %v2850 = vld [vmem:[#allocation7 + $0x180] sm:$0xff]
    %v2851 = vld [vmem:[#allocation7 + $0x188] sm:$0xff]
    %v2852 = vld [vmem:[#allocation7 + $0x190] sm:$0xff]
    %v2853 = vld [vmem:[#allocation7 + $0x198] sm:$0xff]
    %v2854 = vld [vmem:[#allocation7 + $0x1a0] sm:$0xff]
    %v2855 = vld [vmem:[#allocation7 + $0x1a8] sm:$0xff]
    %v2856 = vld [vmem:[#allocation7 + $0x1b0] sm:$0xff]
    %v2857 = vld [vmem:[#allocation7 + $0x1b8] sm:$0xff]
    %v2858 = vld [vmem:[#allocation7 + $0x1c0] sm:$0xff]
    %v2859 = vld [vmem:[#allocation7 + $0x1c8] sm:$0xff]
    %v2860 = vld [vmem:[#allocation7 + $0x1d0] sm:$0xff]
    %v2861 = vld [vmem:[#allocation7 + $0x1d8] sm:$0xff]
    %v2862 = vld [vmem:[#allocation7 + $0x1e0] sm:$0xff]
    %v2863 = vld [vmem:[#allocation7 + $0x1e8] sm:$0xff]
    %v2864 = vld [vmem:[#allocation7 + $0x1f0] sm:$0xff]
    %v2865 = vld [vmem:[#allocation7 + $0x1f8] sm:$0xff]
    %2866 = vmatpush.msra.mxu0 %v2832
    %2867 = vmatpush.msra.mxu0 %v2830
    %2868 = vmatpush.msra.mxu0 %v2828
    %2869 = vmatpush.msra.mxu0 %v2826
    %2870 = vmatpush.msra.mxu0 %v2824
    %2871 = vmatpush.msra.mxu0 %v2822
    %2872 = vmatpush.msra.mxu0 %v2820
    %2873 = vmatpush.msra.mxu0 %v2818
    %2874 = vmatpush.msra.mxu0 %v2816
    %2875 = vmatpush.msra.mxu0 %v2814
    %2876 = vmatpush.msra.mxu0 %v2812
    %2877 = vmatpush.msra.mxu0 %v2810
    %2878 = vmatpush.msra.mxu0 %v2808
    %2879 = vmatpush.msra.mxu0 %v2806
    %2880 = vmatpush.msra.mxu0 %v2804
    %2881 = vmatpush.msra.mxu0 %v2802
    %2882 = vmatmul.f32.gmra.mxu0 %v2786
    %v2883 = vpop.f32.mrf.mxu0
    %v2884 = vadd.f32 0.0, %v2883
    %2885 = vmatmul.f32.gmra.mxu0 %v2788
    %v2886 = vpop.f32.mrf.mxu0
    %v2887 = vadd.f32 0.0, %v2886
    %2888 = vmatmul.f32.gmra.mxu0 %v2790
    %v2889 = vpop.f32.mrf.mxu0
    %v2890 = vadd.f32 0.0, %v2889
    %2891 = vmatmul.f32.gmra.mxu0 %v2792
    %v2892 = vpop.f32.mrf.mxu0
    %v2893 = vadd.f32 0.0, %v2892
    %2894 = vmatmul.f32.gmra.mxu0 %v2794
    %v2895 = vpop.f32.mrf.mxu0
    %v2896 = vadd.f32 0.0, %v2895
    %2897 = vmatmul.f32.gmra.mxu0 %v2796
    %v2898 = vpop.f32.mrf.mxu0
    %v2899 = vadd.f32 0.0, %v2898
    %2900 = vmatmul.f32.gmra.mxu0 %v2798
    %v2901 = vpop.f32.mrf.mxu0
    %v2902 = vadd.f32 0.0, %v2901
    %2903 = vmatmul.f32.gmra.mxu0 %v2800
    %v2904 = vpop.f32.mrf.mxu0
    %v2905 = vadd.f32 0.0, %v2904
    %2906 = vdwg.mxu0
    %2907 = vmatpush.msra.mxu0 %v2864
    %2908 = vmatpush.msra.mxu0 %v2862
    %2909 = vmatpush.msra.mxu0 %v2860
    %2910 = vmatpush.msra.mxu0 %v2858
    %2911 = vmatpush.msra.mxu0 %v2856
    %2912 = vmatpush.msra.mxu0 %v2854
    %2913 = vmatpush.msra.mxu0 %v2852
    %2914 = vmatpush.msra.mxu0 %v2850
    %2915 = vmatpush.msra.mxu0 %v2848
    %2916 = vmatpush.msra.mxu0 %v2846
    %2917 = vmatpush.msra.mxu0 %v2844
    %2918 = vmatpush.msra.mxu0 %v2842
    %2919 = vmatpush.msra.mxu0 %v2840
    %2920 = vmatpush.msra.mxu0 %v2838
    %2921 = vmatpush.msra.mxu0 %v2836
    %2922 = vmatpush.msra.mxu0 %v2834
    %2923 = vmatmul.f32.gmra.mxu0 %v2787
    %v2924 = vpop.f32.mrf.mxu0
    %v2925 = vadd.f32 %v2884, %v2924
    %2926 = vmatmul.f32.gmra.mxu0 %v2789
    %v2927 = vpop.f32.mrf.mxu0
    %v2928 = vadd.f32 %v2887, %v2927
    %2929 = vmatmul.f32.gmra.mxu0 %v2791
    %v2930 = vpop.f32.mrf.mxu0
    %v2931 = vadd.f32 %v2890, %v2930
    %2932 = vmatmul.f32.gmra.mxu0 %v2793
    %v2933 = vpop.f32.mrf.mxu0
    %v2934 = vadd.f32 %v2893, %v2933
    %2935 = vmatmul.f32.gmra.mxu0 %v2795
    %v2936 = vpop.f32.mrf.mxu0
    %v2937 = vadd.f32 %v2896, %v2936
    %2938 = vmatmul.f32.gmra.mxu0 %v2797
    %v2939 = vpop.f32.mrf.mxu0
    %v2940 = vadd.f32 %v2899, %v2939
    %2941 = vmatmul.f32.gmra.mxu0 %v2799
    %v2942 = vpop.f32.mrf.mxu0
    %v2943 = vadd.f32 %v2902, %v2942
    %2944 = vmatmul.f32.gmra.mxu0 %v2801
    %v2945 = vpop.f32.mrf.mxu0
    %v2946 = vadd.f32 %v2905, %v2945
    %2947 = vdwg.mxu0
    %2948 = vmatpush.msra.mxu0 %v2833
    %2949 = vmatpush.msra.mxu0 %v2831
    %2950 = vmatpush.msra.mxu0 %v2829
    %2951 = vmatpush.msra.mxu0 %v2827
    %2952 = vmatpush.msra.mxu0 %v2825
    %2953 = vmatpush.msra.mxu0 %v2823
    %2954 = vmatpush.msra.mxu0 %v2821
    %2955 = vmatpush.msra.mxu0 %v2819
    %2956 = vmatpush.msra.mxu0 %v2817
    %2957 = vmatpush.msra.mxu0 %v2815
    %2958 = vmatpush.msra.mxu0 %v2813
    %2959 = vmatpush.msra.mxu0 %v2811
    %2960 = vmatpush.msra.mxu0 %v2809
    %2961 = vmatpush.msra.mxu0 %v2807
    %2962 = vmatpush.msra.mxu0 %v2805
    %2963 = vmatpush.msra.mxu0 %v2803
    %2964 = vmatmul.f32.gmra.mxu0 %v2786
    %v2965 = vpop.f32.mrf.mxu0
    %v2966 = vadd.f32 0.0, %v2965
    %2967 = vmatmul.f32.gmra.mxu0 %v2788
    %v2968 = vpop.f32.mrf.mxu0
    %v2969 = vadd.f32 0.0, %v2968
    %2970 = vmatmul.f32.gmra.mxu0 %v2790
    %v2971 = vpop.f32.mrf.mxu0
    %v2972 = vadd.f32 0.0, %v2971
    %2973 = vmatmul.f32.gmra.mxu0 %v2792
    %v2974 = vpop.f32.mrf.mxu0
    %v2975 = vadd.f32 0.0, %v2974
    %2976 = vmatmul.f32.gmra.mxu0 %v2794
    %v2977 = vpop.f32.mrf.mxu0
    %v2978 = vadd.f32 0.0, %v2977
    %2979 = vmatmul.f32.gmra.mxu0 %v2796
    %v2980 = vpop.f32.mrf.mxu0
    %v2981 = vadd.f32 0.0, %v2980
    %2982 = vmatmul.f32.gmra.mxu0 %v2798
    %v2983 = vpop.f32.mrf.mxu0
    %v2984 = vadd.f32 0.0, %v2983
    %2985 = vmatmul.f32.gmra.mxu0 %v2800
    %v2986 = vpop.f32.mrf.mxu0
    %v2987 = vadd.f32 0.0, %v2986
    %2988 = vdwg.mxu0
    %2989 = vmatpush.msra.mxu0 %v2865
    %2990 = vmatpush.msra.mxu0 %v2863
    %2991 = vmatpush.msra.mxu0 %v2861
    %2992 = vmatpush.msra.mxu0 %v2859
    %2993 = vmatpush.msra.mxu0 %v2857
    %2994 = vmatpush.msra.mxu0 %v2855
    %2995 = vmatpush.msra.mxu0 %v2853
    %2996 = vmatpush.msra.mxu0 %v2851
    %2997 = vmatpush.msra.mxu0 %v2849
    %2998 = vmatpush.msra.mxu0 %v2847
    %2999 = vmatpush.msra.mxu0 %v2845
    %3000 = vmatpush.msra.mxu0 %v2843
    %3001 = vmatpush.msra.mxu0 %v2841
    %3002 = vmatpush.msra.mxu0 %v2839
    %3003 = vmatpush.msra.mxu0 %v2837
    %3004 = vmatpush.msra.mxu0 %v2835
    %3005 = vmatmul.f32.gmra.mxu0 %v2787
    %v3006 = vpop.f32.mrf.mxu0
    %v3007 = vadd.f32 %v2966, %v3006
    %3008 = vmatmul.f32.gmra.mxu0 %v2789
    %v3009 = vpop.f32.mrf.mxu0
    %v3010 = vadd.f32 %v2969, %v3009
    %3011 = vmatmul.f32.gmra.mxu0 %v2791
    %v3012 = vpop.f32.mrf.mxu0
    %v3013 = vadd.f32 %v2972, %v3012
    %3014 = vmatmul.f32.gmra.mxu0 %v2793
    %v3015 = vpop.f32.mrf.mxu0
    %v3016 = vadd.f32 %v2975, %v3015
    %3017 = vmatmul.f32.gmra.mxu0 %v2795
    %v3018 = vpop.f32.mrf.mxu0
    %v3019 = vadd.f32 %v2978, %v3018
    %3020 = vmatmul.f32.gmra.mxu0 %v2797
    %v3021 = vpop.f32.mrf.mxu0
    %v3022 = vadd.f32 %v2981, %v3021
    %3023 = vmatmul.f32.gmra.mxu0 %v2799
    %v3024 = vpop.f32.mrf.mxu0
    %v3025 = vadd.f32 %v2984, %v3024
    %3026 = vmatmul.f32.gmra.mxu0 %v2801
    %v3027 = vpop.f32.mrf.mxu0
    %v3028 = vadd.f32 %v2987, %v3027
    %3029 = vdwg.mxu0
    %3030 = vst [vmem:[#allocation6] sm:$0xff] %v2925
    %3031 = vst [vmem:[#allocation6 + $0x8] sm:$0xff] %v3007
    %3032 = vst [vmem:[#allocation6 + $0x10] sm:$0xff] %v2928
    %3033 = vst [vmem:[#allocation6 + $0x18] sm:$0xff] %v3010
    %3034 = vst [vmem:[#allocation6 + $0x20] sm:$0xff] %v2931
    %3035 = vst [vmem:[#allocation6 + $0x28] sm:$0xff] %v3013
    %3036 = vst [vmem:[#allocation6 + $0x30] sm:$0xff] %v2934
    %3037 = vst [vmem:[#allocation6 + $0x38] sm:$0xff] %v3016
    %3038 = vst [vmem:[#allocation6 + $0x40] sm:$0xff] %v2937
    %3039 = vst [vmem:[#allocation6 + $0x48] sm:$0xff] %v3019
    %3040 = vst [vmem:[#allocation6 + $0x50] sm:$0xff] %v2940
    %3041 = vst [vmem:[#allocation6 + $0x58] sm:$0xff] %v3022
    %3042 = vst [vmem:[#allocation6 + $0x60] sm:$0xff] %v2943
    %3043 = vst [vmem:[#allocation6 + $0x68] sm:$0xff] %v3025
    %3044 = vst [vmem:[#allocation6 + $0x70] sm:$0xff] %v2946
    %3045 = vst [vmem:[#allocation6 + $0x78] sm:$0xff] %v3028
    %v3046 = vld [vmem:[#allocation6] sm:$0xff]
    %v3047 = vld [vmem:[#allocation6 + $0x8] sm:$0xff]
    %v3048 = vld [vmem:[#allocation6 + $0x10] sm:$0xff]
    %v3049 = vld [vmem:[#allocation6 + $0x18] sm:$0xff]
    %v3050 = vld [vmem:[#allocation6 + $0x20] sm:$0xff]
    %v3051 = vld [vmem:[#allocation6 + $0x28] sm:$0xff]
    %v3052 = vld [vmem:[#allocation6 + $0x30] sm:$0xff]
    %v3053 = vld [vmem:[#allocation6 + $0x38] sm:$0xff]
    %v3054 = vld [vmem:[#allocation6 + $0x40] sm:$0xff]
    %v3055 = vld [vmem:[#allocation6 + $0x48] sm:$0xff]
    %v3056 = vld [vmem:[#allocation6 + $0x50] sm:$0xff]
    %v3057 = vld [vmem:[#allocation6 + $0x58] sm:$0xff]
    %v3058 = vld [vmem:[#allocation6 + $0x60] sm:$0xff]
    %v3059 = vld [vmem:[#allocation6 + $0x68] sm:$0xff]
    %v3060 = vld [vmem:[#allocation6 + $0x70] sm:$0xff]
    %v3061 = vld [vmem:[#allocation6 + $0x78] sm:$0xff]
    %v3062 = vld [vmem:[#allocation3 + $0x10] sm:$0xff]
    %v3063 = vld [vmem:[#allocation3 + $0x18] sm:$0xff]
    %v3064 = vld [vmem:[#allocation3 + $0x20] sm:$0xff]
    %v3065 = vld [vmem:[#allocation3 + $0x28] sm:$0xff]
    %v3066 = vld [vmem:[#allocation3 + $0x30] sm:$0xff]
    %v3067 = vld [vmem:[#allocation3 + $0x38] sm:$0xff]
    %v3068 = vld [vmem:[#allocation3 + $0x40] sm:$0xff]
    %v3069 = vld [vmem:[#allocation3 + $0x48] sm:$0xff]
    %v3070 = vld [vmem:[#allocation3 + $0x50] sm:$0xff]
    %v3071 = vld [vmem:[#allocation3 + $0x58] sm:$0xff]
    %v3072 = vld [vmem:[#allocation3 + $0x60] sm:$0xff]
    %v3073 = vld [vmem:[#allocation3 + $0x68] sm:$0xff]
    %v3074 = vld [vmem:[#allocation3 + $0x70] sm:$0xff]
    %v3075 = vld [vmem:[#allocation3 + $0x78] sm:$0xff]
    %v3076 = vld [vmem:[#allocation3 + $0x80] sm:$0xff]
    %v3077 = vld [vmem:[#allocation3 + $0x88] sm:$0xff]
    %s3078 = scalar_lea.vmem [#allocation7], 512
    %v3079 = vld [vmem:[%s3078] sm:$0xff]
    %v3080 = vld [vmem:[%s3078 + $0x8] sm:$0xff]
    %v3081 = vld [vmem:[%s3078 + $0x10] sm:$0xff]
    %v3082 = vld [vmem:[%s3078 + $0x18] sm:$0xff]
    %v3083 = vld [vmem:[%s3078 + $0x20] sm:$0xff]
    %v3084 = vld [vmem:[%s3078 + $0x28] sm:$0xff]
    %v3085 = vld [vmem:[%s3078 + $0x30] sm:$0xff]
    %v3086 = vld [vmem:[%s3078 + $0x38] sm:$0xff]
    %v3087 = vld [vmem:[%s3078 + $0x40] sm:$0xff]
    %v3088 = vld [vmem:[%s3078 + $0x48] sm:$0xff]
    %v3089 = vld [vmem:[%s3078 + $0x50] sm:$0xff]
    %v3090 = vld [vmem:[%s3078 + $0x58] sm:$0xff]
    %v3091 = vld [vmem:[%s3078 + $0x60] sm:$0xff]
    %v3092 = vld [vmem:[%s3078 + $0x68] sm:$0xff]
    %v3093 = vld [vmem:[%s3078 + $0x70] sm:$0xff]
    %v3094 = vld [vmem:[%s3078 + $0x78] sm:$0xff]
    %v3095 = vld [vmem:[%s3078 + $0x80] sm:$0xff]
    %v3096 = vld [vmem:[%s3078 + $0x88] sm:$0xff]
    %v3097 = vld [vmem:[%s3078 + $0x90] sm:$0xff]
    %v3098 = vld [vmem:[%s3078 + $0x98] sm:$0xff]
    %v3099 = vld [vmem:[%s3078 + $0xa0] sm:$0xff]
    %v3100 = vld [vmem:[%s3078 + $0xa8] sm:$0xff]
    %v3101 = vld [vmem:[%s3078 + $0xb0] sm:$0xff]
    %v3102 = vld [vmem:[%s3078 + $0xb8] sm:$0xff]
    %v3103 = vld [vmem:[%s3078 + $0xc0] sm:$0xff]
    %v3104 = vld [vmem:[%s3078 + $0xc8] sm:$0xff]
    %v3105 = vld [vmem:[%s3078 + $0xd0] sm:$0xff]
    %v3106 = vld [vmem:[%s3078 + $0xd8] sm:$0xff]
    %v3107 = vld [vmem:[%s3078 + $0xe0] sm:$0xff]
    %v3108 = vld [vmem:[%s3078 + $0xe8] sm:$0xff]
    %v3109 = vld [vmem:[%s3078 + $0xf0] sm:$0xff]
    %v3110 = vld [vmem:[%s3078 + $0xf8] sm:$0xff]
    %v3111 = vld [vmem:[%s3078 + $0x100] sm:$0xff]
    %v3112 = vld [vmem:[%s3078 + $0x108] sm:$0xff]
    %v3113 = vld [vmem:[%s3078 + $0x110] sm:$0xff]
    %v3114 = vld [vmem:[%s3078 + $0x118] sm:$0xff]
    %v3115 = vld [vmem:[%s3078 + $0x120] sm:$0xff]
    %v3116 = vld [vmem:[%s3078 + $0x128] sm:$0xff]
    %v3117 = vld [vmem:[%s3078 + $0x130] sm:$0xff]
    %v3118 = vld [vmem:[%s3078 + $0x138] sm:$0xff]
    %v3119 = vld [vmem:[%s3078 + $0x140] sm:$0xff]
    %v3120 = vld [vmem:[%s3078 + $0x148] sm:$0xff]
    %v3121 = vld [vmem:[%s3078 + $0x150] sm:$0xff]
    %v3122 = vld [vmem:[%s3078 + $0x158] sm:$0xff]
    %v3123 = vld [vmem:[%s3078 + $0x160] sm:$0xff]
    %v3124 = vld [vmem:[%s3078 + $0x168] sm:$0xff]
    %v3125 = vld [vmem:[%s3078 + $0x170] sm:$0xff]
    %v3126 = vld [vmem:[%s3078 + $0x178] sm:$0xff]
    %v3127 = vld [vmem:[%s3078 + $0x180] sm:$0xff]
    %v3128 = vld [vmem:[%s3078 + $0x188] sm:$0xff]
    %v3129 = vld [vmem:[%s3078 + $0x190] sm:$0xff]
    %v3130 = vld [vmem:[%s3078 + $0x198] sm:$0xff]
    %v3131 = vld [vmem:[%s3078 + $0x1a0] sm:$0xff]
    %v3132 = vld [vmem:[%s3078 + $0x1a8] sm:$0xff]
    %v3133 = vld [vmem:[%s3078 + $0x1b0] sm:$0xff]
    %v3134 = vld [vmem:[%s3078 + $0x1b8] sm:$0xff]
    %v3135 = vld [vmem:[%s3078 + $0x1c0] sm:$0xff]
    %v3136 = vld [vmem:[%s3078 + $0x1c8] sm:$0xff]
    %v3137 = vld [vmem:[%s3078 + $0x1d0] sm:$0xff]
    %v3138 = vld [vmem:[%s3078 + $0x1d8] sm:$0xff]
    %v3139 = vld [vmem:[%s3078 + $0x1e0] sm:$0xff]
    %v3140 = vld [vmem:[%s3078 + $0x1e8] sm:$0xff]
    %v3141 = vld [vmem:[%s3078 + $0x1f0] sm:$0xff]
    %v3142 = vld [vmem:[%s3078 + $0x1f8] sm:$0xff]
    %3143 = vmatpush.msra.mxu0 %v3109
    %3144 = vmatpush.msra.mxu0 %v3107
    %3145 = vmatpush.msra.mxu0 %v3105
    %3146 = vmatpush.msra.mxu0 %v3103
    %3147 = vmatpush.msra.mxu0 %v3101
    %3148 = vmatpush.msra.mxu0 %v3099
    %3149 = vmatpush.msra.mxu0 %v3097
    %3150 = vmatpush.msra.mxu0 %v3095
    %3151 = vmatpush.msra.mxu0 %v3093
    %3152 = vmatpush.msra.mxu0 %v3091
    %3153 = vmatpush.msra.mxu0 %v3089
    %3154 = vmatpush.msra.mxu0 %v3087
    %3155 = vmatpush.msra.mxu0 %v3085
    %3156 = vmatpush.msra.mxu0 %v3083
    %3157 = vmatpush.msra.mxu0 %v3081
    %3158 = vmatpush.msra.mxu0 %v3079
    %3159 = vmatmul.f32.gmra.mxu0 %v3062
    %v3160 = vpop.f32.mrf.mxu0
    %v3161 = vadd.f32 0.0, %v3160
    %3162 = vmatmul.f32.gmra.mxu0 %v3064
    %v3163 = vpop.f32.mrf.mxu0
    %v3164 = vadd.f32 0.0, %v3163
    %3165 = vmatmul.f32.gmra.mxu0 %v3066
    %v3166 = vpop.f32.mrf.mxu0
    %v3167 = vadd.f32 0.0, %v3166
    %3168 = vmatmul.f32.gmra.mxu0 %v3068
    %v3169 = vpop.f32.mrf.mxu0
    %v3170 = vadd.f32 0.0, %v3169
    %3171 = vmatmul.f32.gmra.mxu0 %v3070
    %v3172 = vpop.f32.mrf.mxu0
    %v3173 = vadd.f32 0.0, %v3172
    %3174 = vmatmul.f32.gmra.mxu0 %v3072
    %v3175 = vpop.f32.mrf.mxu0
    %v3176 = vadd.f32 0.0, %v3175
    %3177 = vmatmul.f32.gmra.mxu0 %v3074
    %v3178 = vpop.f32.mrf.mxu0
    %v3179 = vadd.f32 0.0, %v3178
    %3180 = vmatmul.f32.gmra.mxu0 %v3076
    %v3181 = vpop.f32.mrf.mxu0
    %v3182 = vadd.f32 0.0, %v3181
    %3183 = vdwg.mxu0
    %3184 = vmatpush.msra.mxu0 %v3141
    %3185 = vmatpush.msra.mxu0 %v3139
    %3186 = vmatpush.msra.mxu0 %v3137
    %3187 = vmatpush.msra.mxu0 %v3135
    %3188 = vmatpush.msra.mxu0 %v3133
    %3189 = vmatpush.msra.mxu0 %v3131
    %3190 = vmatpush.msra.mxu0 %v3129
    %3191 = vmatpush.msra.mxu0 %v3127
    %3192 = vmatpush.msra.mxu0 %v3125
    %3193 = vmatpush.msra.mxu0 %v3123
    %3194 = vmatpush.msra.mxu0 %v3121
    %3195 = vmatpush.msra.mxu0 %v3119
    %3196 = vmatpush.msra.mxu0 %v3117
    %3197 = vmatpush.msra.mxu0 %v3115
    %3198 = vmatpush.msra.mxu0 %v3113
    %3199 = vmatpush.msra.mxu0 %v3111
    %3200 = vmatmul.f32.gmra.mxu0 %v3063
    %v3201 = vpop.f32.mrf.mxu0
    %v3202 = vadd.f32 %v3161, %v3201
    %3203 = vmatmul.f32.gmra.mxu0 %v3065
    %v3204 = vpop.f32.mrf.mxu0
    %v3205 = vadd.f32 %v3164, %v3204
    %3206 = vmatmul.f32.gmra.mxu0 %v3067
    %v3207 = vpop.f32.mrf.mxu0
    %v3208 = vadd.f32 %v3167, %v3207
    %3209 = vmatmul.f32.gmra.mxu0 %v3069
    %v3210 = vpop.f32.mrf.mxu0
    %v3211 = vadd.f32 %v3170, %v3210
    %3212 = vmatmul.f32.gmra.mxu0 %v3071
    %v3213 = vpop.f32.mrf.mxu0
    %v3214 = vadd.f32 %v3173, %v3213
    %3215 = vmatmul.f32.gmra.mxu0 %v3073
    %v3216 = vpop.f32.mrf.mxu0
    %v3217 = vadd.f32 %v3176, %v3216
    %3218 = vmatmul.f32.gmra.mxu0 %v3075
    %v3219 = vpop.f32.mrf.mxu0
    %v3220 = vadd.f32 %v3179, %v3219
    %3221 = vmatmul.f32.gmra.mxu0 %v3077
    %v3222 = vpop.f32.mrf.mxu0
    %v3223 = vadd.f32 %v3182, %v3222
    %3224 = vdwg.mxu0
    %3225 = vmatpush.msra.mxu0 %v3110
    %3226 = vmatpush.msra.mxu0 %v3108
    %3227 = vmatpush.msra.mxu0 %v3106
    %3228 = vmatpush.msra.mxu0 %v3104
    %3229 = vmatpush.msra.mxu0 %v3102
    %3230 = vmatpush.msra.mxu0 %v3100
    %3231 = vmatpush.msra.mxu0 %v3098
    %3232 = vmatpush.msra.mxu0 %v3096
    %3233 = vmatpush.msra.mxu0 %v3094
    %3234 = vmatpush.msra.mxu0 %v3092
    %3235 = vmatpush.msra.mxu0 %v3090
    %3236 = vmatpush.msra.mxu0 %v3088
    %3237 = vmatpush.msra.mxu0 %v3086
    %3238 = vmatpush.msra.mxu0 %v3084
    %3239 = vmatpush.msra.mxu0 %v3082
    %3240 = vmatpush.msra.mxu0 %v3080
    %3241 = vmatmul.f32.gmra.mxu0 %v3062
    %v3242 = vpop.f32.mrf.mxu0
    %v3243 = vadd.f32 0.0, %v3242
    %3244 = vmatmul.f32.gmra.mxu0 %v3064
    %v3245 = vpop.f32.mrf.mxu0
    %v3246 = vadd.f32 0.0, %v3245
    %3247 = vmatmul.f32.gmra.mxu0 %v3066
    %v3248 = vpop.f32.mrf.mxu0
    %v3249 = vadd.f32 0.0, %v3248
    %3250 = vmatmul.f32.gmra.mxu0 %v3068
    %v3251 = vpop.f32.mrf.mxu0
    %v3252 = vadd.f32 0.0, %v3251
    %3253 = vmatmul.f32.gmra.mxu0 %v3070
    %v3254 = vpop.f32.mrf.mxu0
    %v3255 = vadd.f32 0.0, %v3254
    %3256 = vmatmul.f32.gmra.mxu0 %v3072
    %v3257 = vpop.f32.mrf.mxu0
    %v3258 = vadd.f32 0.0, %v3257
    %3259 = vmatmul.f32.gmra.mxu0 %v3074
    %v3260 = vpop.f32.mrf.mxu0
    %v3261 = vadd.f32 0.0, %v3260
    %3262 = vmatmul.f32.gmra.mxu0 %v3076
    %v3263 = vpop.f32.mrf.mxu0
    %v3264 = vadd.f32 0.0, %v3263
    %3265 = vdwg.mxu0
    %3266 = vmatpush.msra.mxu0 %v3142
    %3267 = vmatpush.msra.mxu0 %v3140
    %3268 = vmatpush.msra.mxu0 %v3138
    %3269 = vmatpush.msra.mxu0 %v3136
    %3270 = vmatpush.msra.mxu0 %v3134
    %3271 = vmatpush.msra.mxu0 %v3132
    %3272 = vmatpush.msra.mxu0 %v3130
    %3273 = vmatpush.msra.mxu0 %v3128
    %3274 = vmatpush.msra.mxu0 %v3126
    %3275 = vmatpush.msra.mxu0 %v3124
    %3276 = vmatpush.msra.mxu0 %v3122
    %3277 = vmatpush.msra.mxu0 %v3120
    %3278 = vmatpush.msra.mxu0 %v3118
    %3279 = vmatpush.msra.mxu0 %v3116
    %3280 = vmatpush.msra.mxu0 %v3114
    %3281 = vmatpush.msra.mxu0 %v3112
    %3282 = vmatmul.f32.gmra.mxu0 %v3063
    %v3283 = vpop.f32.mrf.mxu0
    %v3284 = vadd.f32 %v3243, %v3283
    %3285 = vmatmul.f32.gmra.mxu0 %v3065
    %v3286 = vpop.f32.mrf.mxu0
    %v3287 = vadd.f32 %v3246, %v3286
    %3288 = vmatmul.f32.gmra.mxu0 %v3067
    %v3289 = vpop.f32.mrf.mxu0
    %v3290 = vadd.f32 %v3249, %v3289
    %3291 = vmatmul.f32.gmra.mxu0 %v3069
    %v3292 = vpop.f32.mrf.mxu0
    %v3293 = vadd.f32 %v3252, %v3292
    %3294 = vmatmul.f32.gmra.mxu0 %v3071
    %v3295 = vpop.f32.mrf.mxu0
    %v3296 = vadd.f32 %v3255, %v3295
    %3297 = vmatmul.f32.gmra.mxu0 %v3073
    %v3298 = vpop.f32.mrf.mxu0
    %v3299 = vadd.f32 %v3258, %v3298
    %3300 = vmatmul.f32.gmra.mxu0 %v3075
    %v3301 = vpop.f32.mrf.mxu0
    %v3302 = vadd.f32 %v3261, %v3301
    %3303 = vmatmul.f32.gmra.mxu0 %v3077
    %v3304 = vpop.f32.mrf.mxu0
    %v3305 = vadd.f32 %v3264, %v3304
    %3306 = vdwg.mxu0
    %v3307 = vadd.f32 %v3046, %v3202
    %v3308 = vadd.f32 %v3047, %v3284
    %v3309 = vadd.f32 %v3048, %v3205
    %v3310 = vadd.f32 %v3049, %v3287
    %v3311 = vadd.f32 %v3050, %v3208
    %v3312 = vadd.f32 %v3051, %v3290
    %v3313 = vadd.f32 %v3052, %v3211
    %v3314 = vadd.f32 %v3053, %v3293
    %v3315 = vadd.f32 %v3054, %v3214
    %v3316 = vadd.f32 %v3055, %v3296
    %v3317 = vadd.f32 %v3056, %v3217
    %v3318 = vadd.f32 %v3057, %v3299
    %v3319 = vadd.f32 %v3058, %v3220
    %v3320 = vadd.f32 %v3059, %v3302
    %v3321 = vadd.f32 %v3060, %v3223
    %v3322 = vadd.f32 %v3061, %v3305
    %3323 = vst [vmem:[#allocation6] sm:$0xff] %v3307
    %3324 = vst [vmem:[#allocation6 + $0x8] sm:$0xff] %v3308
    %3325 = vst [vmem:[#allocation6 + $0x10] sm:$0xff] %v3309
    %3326 = vst [vmem:[#allocation6 + $0x18] sm:$0xff] %v3310
    %3327 = vst [vmem:[#allocation6 + $0x20] sm:$0xff] %v3311
    %3328 = vst [vmem:[#allocation6 + $0x28] sm:$0xff] %v3312
    %3329 = vst [vmem:[#allocation6 + $0x30] sm:$0xff] %v3313
    %3330 = vst [vmem:[#allocation6 + $0x38] sm:$0xff] %v3314
    %3331 = vst [vmem:[#allocation6 + $0x40] sm:$0xff] %v3315
    %3332 = vst [vmem:[#allocation6 + $0x48] sm:$0xff] %v3316
    %3333 = vst [vmem:[#allocation6 + $0x50] sm:$0xff] %v3317
    %3334 = vst [vmem:[#allocation6 + $0x58] sm:$0xff] %v3318
    %3335 = vst [vmem:[#allocation6 + $0x60] sm:$0xff] %v3319
    %3336 = vst [vmem:[#allocation6 + $0x68] sm:$0xff] %v3320
    %3337 = vst [vmem:[#allocation6 + $0x70] sm:$0xff] %v3321
    %3338 = vst [vmem:[#allocation6 + $0x78] sm:$0xff] %v3322
    %v3339 = vld [vmem:[#allocation6] sm:$0xff]
    %v3340 = vld [vmem:[#allocation6 + $0x8] sm:$0xff]
    %v3341 = vld [vmem:[#allocation6 + $0x10] sm:$0xff]
    %v3342 = vld [vmem:[#allocation6 + $0x18] sm:$0xff]
    %v3343 = vld [vmem:[#allocation6 + $0x20] sm:$0xff]
    %v3344 = vld [vmem:[#allocation6 + $0x28] sm:$0xff]
    %v3345 = vld [vmem:[#allocation6 + $0x30] sm:$0xff]
    %v3346 = vld [vmem:[#allocation6 + $0x38] sm:$0xff]
    %v3347 = vld [vmem:[#allocation6 + $0x40] sm:$0xff]
    %v3348 = vld [vmem:[#allocation6 + $0x48] sm:$0xff]
    %v3349 = vld [vmem:[#allocation6 + $0x50] sm:$0xff]
    %v3350 = vld [vmem:[#allocation6 + $0x58] sm:$0xff]
    %v3351 = vld [vmem:[#allocation6 + $0x60] sm:$0xff]
    %v3352 = vld [vmem:[#allocation6 + $0x68] sm:$0xff]
    %v3353 = vld [vmem:[#allocation6 + $0x70] sm:$0xff]
    %v3354 = vld [vmem:[#allocation6 + $0x78] sm:$0xff]
    %v3355 = vld [vmem:[#allocation3 + $0x20] sm:$0xff]
    %v3356 = vld [vmem:[#allocation3 + $0x28] sm:$0xff]
    %v3357 = vld [vmem:[#allocation3 + $0x30] sm:$0xff]
    %v3358 = vld [vmem:[#allocation3 + $0x38] sm:$0xff]
    %v3359 = vld [vmem:[#allocation3 + $0x40] sm:$0xff]
    %v3360 = vld [vmem:[#allocation3 + $0x48] sm:$0xff]
    %v3361 = vld [vmem:[#allocation3 + $0x50] sm:$0xff]
    %v3362 = vld [vmem:[#allocation3 + $0x58] sm:$0xff]
    %v3363 = vld [vmem:[#allocation3 + $0x60] sm:$0xff]
    %v3364 = vld [vmem:[#allocation3 + $0x68] sm:$0xff]
    %v3365 = vld [vmem:[#allocation3 + $0x70] sm:$0xff]
    %v3366 = vld [vmem:[#allocation3 + $0x78] sm:$0xff]
    %v3367 = vld [vmem:[#allocation3 + $0x80] sm:$0xff]
    %v3368 = vld [vmem:[#allocation3 + $0x88] sm:$0xff]
    %v3369 = vld [vmem:[#allocation3 + $0x90] sm:$0xff]
    %v3370 = vld [vmem:[#allocation3 + $0x98] sm:$0xff]
    %s3371 = scalar_lea.vmem [#allocation7], 1024
    %v3372 = vld [vmem:[%s3371] sm:$0xff]
    %v3373 = vld [vmem:[%s3371 + $0x8] sm:$0xff]
    %v3374 = vld [vmem:[%s3371 + $0x10] sm:$0xff]
    %v3375 = vld [vmem:[%s3371 + $0x18] sm:$0xff]
    %v3376 = vld [vmem:[%s3371 + $0x20] sm:$0xff]
    %v3377 = vld [vmem:[%s3371 + $0x28] sm:$0xff]
    %v3378 = vld [vmem:[%s3371 + $0x30] sm:$0xff]
    %v3379 = vld [vmem:[%s3371 + $0x38] sm:$0xff]
    %v3380 = vld [vmem:[%s3371 + $0x40] sm:$0xff]
    %v3381 = vld [vmem:[%s3371 + $0x48] sm:$0xff]
    %v3382 = vld [vmem:[%s3371 + $0x50] sm:$0xff]
    %v3383 = vld [vmem:[%s3371 + $0x58] sm:$0xff]
    %v3384 = vld [vmem:[%s3371 + $0x60] sm:$0xff]
    %v3385 = vld [vmem:[%s3371 + $0x68] sm:$0xff]
    %v3386 = vld [vmem:[%s3371 + $0x70] sm:$0xff]
    %v3387 = vld [vmem:[%s3371 + $0x78] sm:$0xff]
    %v3388 = vld [vmem:[%s3371 + $0x80] sm:$0xff]
    %v3389 = vld [vmem:[%s3371 + $0x88] sm:$0xff]
    %v3390 = vld [vmem:[%s3371 + $0x90] sm:$0xff]
    %v3391 = vld [vmem:[%s3371 + $0x98] sm:$0xff]
    %v3392 = vld [vmem:[%s3371 + $0xa0] sm:$0xff]
    %v3393 = vld [vmem:[%s3371 + $0xa8] sm:$0xff]
    %v3394 = vld [vmem:[%s3371 + $0xb0] sm:$0xff]
    %v3395 = vld [vmem:[%s3371 + $0xb8] sm:$0xff]
    %v3396 = vld [vmem:[%s3371 + $0xc0] sm:$0xff]
    %v3397 = vld [vmem:[%s3371 + $0xc8] sm:$0xff]
    %v3398 = vld [vmem:[%s3371 + $0xd0] sm:$0xff]
    %v3399 = vld [vmem:[%s3371 + $0xd8] sm:$0xff]
    %v3400 = vld [vmem:[%s3371 + $0xe0] sm:$0xff]
    %v3401 = vld [vmem:[%s3371 + $0xe8] sm:$0xff]
    %v3402 = vld [vmem:[%s3371 + $0xf0] sm:$0xff]
    %v3403 = vld [vmem:[%s3371 + $0xf8] sm:$0xff]
    %v3404 = vld [vmem:[%s3371 + $0x100] sm:$0xff]
    %v3405 = vld [vmem:[%s3371 + $0x108] sm:$0xff]
    %v3406 = vld [vmem:[%s3371 + $0x110] sm:$0xff]
    %v3407 = vld [vmem:[%s3371 + $0x118] sm:$0xff]
    %v3408 = vld [vmem:[%s3371 + $0x120] sm:$0xff]
    %v3409 = vld [vmem:[%s3371 + $0x128] sm:$0xff]
    %v3410 = vld [vmem:[%s3371 + $0x130] sm:$0xff]
    %v3411 = vld [vmem:[%s3371 + $0x138] sm:$0xff]
    %v3412 = vld [vmem:[%s3371 + $0x140] sm:$0xff]
    %v3413 = vld [vmem:[%s3371 + $0x148] sm:$0xff]
    %v3414 = vld [vmem:[%s3371 + $0x150] sm:$0xff]
    %v3415 = vld [vmem:[%s3371 + $0x158] sm:$0xff]
    %v3416 = vld [vmem:[%s3371 + $0x160] sm:$0xff]
    %v3417 = vld [vmem:[%s3371 + $0x168] sm:$0xff]
    %v3418 = vld [vmem:[%s3371 + $0x170] sm:$0xff]
    %v3419 = vld [vmem:[%s3371 + $0x178] sm:$0xff]
    %v3420 = vld [vmem:[%s3371 + $0x180] sm:$0xff]
    %v3421 = vld [vmem:[%s3371 + $0x188] sm:$0xff]
    %v3422 = vld [vmem:[%s3371 + $0x190] sm:$0xff]
    %v3423 = vld [vmem:[%s3371 + $0x198] sm:$0xff]
    %v3424 = vld [vmem:[%s3371 + $0x1a0] sm:$0xff]
    %v3425 = vld [vmem:[%s3371 + $0x1a8] sm:$0xff]
    %v3426 = vld [vmem:[%s3371 + $0x1b0] sm:$0xff]
    %v3427 = vld [vmem:[%s3371 + $0x1b8] sm:$0xff]
    %v3428 = vld [vmem:[%s3371 + $0x1c0] sm:$0xff]
    %v3429 = vld [vmem:[%s3371 + $0x1c8] sm:$0xff]
    %v3430 = vld [vmem:[%s3371 + $0x1d0] sm:$0xff]
    %v3431 = vld [vmem:[%s3371 + $0x1d8] sm:$0xff]
    %v3432 = vld [vmem:[%s3371 + $0x1e0] sm:$0xff]
    %v3433 = vld [vmem:[%s3371 + $0x1e8] sm:$0xff]
    %v3434 = vld [vmem:[%s3371 + $0x1f0] sm:$0xff]
    %v3435 = vld [vmem:[%s3371 + $0x1f8] sm:$0xff]
    %3436 = vmatpush.msra.mxu0 %v3402
    %3437 = vmatpush.msra.mxu0 %v3400
    %3438 = vmatpush.msra.mxu0 %v3398
    %3439 = vmatpush.msra.mxu0 %v3396
    %3440 = vmatpush.msra.mxu0 %v3394
    %3441 = vmatpush.msra.mxu0 %v3392
    %3442 = vmatpush.msra.mxu0 %v3390
    %3443 = vmatpush.msra.mxu0 %v3388
    %3444 = vmatpush.msra.mxu0 %v3386
    %3445 = vmatpush.msra.mxu0 %v3384
    %3446 = vmatpush.msra.mxu0 %v3382
    %3447 = vmatpush.msra.mxu0 %v3380
    %3448 = vmatpush.msra.mxu0 %v3378
    %3449 = vmatpush.msra.mxu0 %v3376
    %3450 = vmatpush.msra.mxu0 %v3374
    %3451 = vmatpush.msra.mxu0 %v3372
    %3452 = vmatmul.f32.gmra.mxu0 %v3355
    %v3453 = vpop.f32.mrf.mxu0
    %v3454 = vadd.f32 0.0, %v3453
    %3455 = vmatmul.f32.gmra.mxu0 %v3357
    %v3456 = vpop.f32.mrf.mxu0
    %v3457 = vadd.f32 0.0, %v3456
    %3458 = vmatmul.f32.gmra.mxu0 %v3359
    %v3459 = vpop.f32.mrf.mxu0
    %v3460 = vadd.f32 0.0, %v3459
    %3461 = vmatmul.f32.gmra.mxu0 %v3361
    %v3462 = vpop.f32.mrf.mxu0
    %v3463 = vadd.f32 0.0, %v3462
    %3464 = vmatmul.f32.gmra.mxu0 %v3363
    %v3465 = vpop.f32.mrf.mxu0
    %v3466 = vadd.f32 0.0, %v3465
    %3467 = vmatmul.f32.gmra.mxu0 %v3365
    %v3468 = vpop.f32.mrf.mxu0
    %v3469 = vadd.f32 0.0, %v3468
    %3470 = vmatmul.f32.gmra.mxu0 %v3367
    %v3471 = vpop.f32.mrf.mxu0
    %v3472 = vadd.f32 0.0, %v3471
    %3473 = vmatmul.f32.gmra.mxu0 %v3369
    %v3474 = vpop.f32.mrf.mxu0
    %v3475 = vadd.f32 0.0, %v3474
    %3476 = vdwg.mxu0
    %3477 = vmatpush.msra.mxu0 %v3434
    %3478 = vmatpush.msra.mxu0 %v3432
    %3479 = vmatpush.msra.mxu0 %v3430
    %3480 = vmatpush.msra.mxu0 %v3428
    %3481 = vmatpush.msra.mxu0 %v3426
    %3482 = vmatpush.msra.mxu0 %v3424
    %3483 = vmatpush.msra.mxu0 %v3422
    %3484 = vmatpush.msra.mxu0 %v3420
    %3485 = vmatpush.msra.mxu0 %v3418
    %3486 = vmatpush.msra.mxu0 %v3416
    %3487 = vmatpush.msra.mxu0 %v3414
    %3488 = vmatpush.msra.mxu0 %v3412
    %3489 = vmatpush.msra.mxu0 %v3410
    %3490 = vmatpush.msra.mxu0 %v3408
    %3491 = vmatpush.msra.mxu0 %v3406
    %3492 = vmatpush.msra.mxu0 %v3404
    %3493 = vmatmul.f32.gmra.mxu0 %v3356
    %v3494 = vpop.f32.mrf.mxu0
    %v3495 = vadd.f32 %v3454, %v3494
    %3496 = vmatmul.f32.gmra.mxu0 %v3358
    %v3497 = vpop.f32.mrf.mxu0
    %v3498 = vadd.f32 %v3457, %v3497
    %3499 = vmatmul.f32.gmra.mxu0 %v3360
    %v3500 = vpop.f32.mrf.mxu0
    %v3501 = vadd.f32 %v3460, %v3500
    %3502 = vmatmul.f32.gmra.mxu0 %v3362
    %v3503 = vpop.f32.mrf.mxu0
    %v3504 = vadd.f32 %v3463, %v3503
    %3505 = vmatmul.f32.gmra.mxu0 %v3364
    %v3506 = vpop.f32.mrf.mxu0
    %v3507 = vadd.f32 %v3466, %v3506
    %3508 = vmatmul.f32.gmra.mxu0 %v3366
    %v3509 = vpop.f32.mrf.mxu0
    %v3510 = vadd.f32 %v3469, %v3509
    %3511 = vmatmul.f32.gmra.mxu0 %v3368
    %v3512 = vpop.f32.mrf.mxu0
    %v3513 = vadd.f32 %v3472, %v3512
    %3514 = vmatmul.f32.gmra.mxu0 %v3370
    %v3515 = vpop.f32.mrf.mxu0
    %v3516 = vadd.f32 %v3475, %v3515
    %3517 = vdwg.mxu0
    %3518 = vmatpush.msra.mxu0 %v3403
    %3519 = vmatpush.msra.mxu0 %v3401
    %3520 = vmatpush.msra.mxu0 %v3399
    %3521 = vmatpush.msra.mxu0 %v3397
    %3522 = vmatpush.msra.mxu0 %v3395
    %3523 = vmatpush.msra.mxu0 %v3393
    %3524 = vmatpush.msra.mxu0 %v3391
    %3525 = vmatpush.msra.mxu0 %v3389
    %3526 = vmatpush.msra.mxu0 %v3387
    %3527 = vmatpush.msra.mxu0 %v3385
    %3528 = vmatpush.msra.mxu0 %v3383
    %3529 = vmatpush.msra.mxu0 %v3381
    %3530 = vmatpush.msra.mxu0 %v3379
    %3531 = vmatpush.msra.mxu0 %v3377
    %3532 = vmatpush.msra.mxu0 %v3375
    %3533 = vmatpush.msra.mxu0 %v3373
    %3534 = vmatmul.f32.gmra.mxu0 %v3355
    %v3535 = vpop.f32.mrf.mxu0
    %v3536 = vadd.f32 0.0, %v3535
    %3537 = vmatmul.f32.gmra.mxu0 %v3357
    %v3538 = vpop.f32.mrf.mxu0
    %v3539 = vadd.f32 0.0, %v3538
    %3540 = vmatmul.f32.gmra.mxu0 %v3359
    %v3541 = vpop.f32.mrf.mxu0
    %v3542 = vadd.f32 0.0, %v3541
    %3543 = vmatmul.f32.gmra.mxu0 %v3361
    %v3544 = vpop.f32.mrf.mxu0
    %v3545 = vadd.f32 0.0, %v3544
    %3546 = vmatmul.f32.gmra.mxu0 %v3363
    %v3547 = vpop.f32.mrf.mxu0
    %v3548 = vadd.f32 0.0, %v3547
    %3549 = vmatmul.f32.gmra.mxu0 %v3365
    %v3550 = vpop.f32.mrf.mxu0
    %v3551 = vadd.f32 0.0, %v3550
    %3552 = vmatmul.f32.gmra.mxu0 %v3367
    %v3553 = vpop.f32.mrf.mxu0
    %v3554 = vadd.f32 0.0, %v3553
    %3555 = vmatmul.f32.gmra.mxu0 %v3369
    %v3556 = vpop.f32.mrf.mxu0
    %v3557 = vadd.f32 0.0, %v3556
    %3558 = vdwg.mxu0
    %3559 = vmatpush.msra.mxu0 %v3435
    %3560 = vmatpush.msra.mxu0 %v3433
    %3561 = vmatpush.msra.mxu0 %v3431
    %3562 = vmatpush.msra.mxu0 %v3429
    %3563 = vmatpush.msra.mxu0 %v3427
    %3564 = vmatpush.msra.mxu0 %v3425
    %3565 = vmatpush.msra.mxu0 %v3423
    %3566 = vmatpush.msra.mxu0 %v3421
    %3567 = vmatpush.msra.mxu0 %v3419
    %3568 = vmatpush.msra.mxu0 %v3417
    %3569 = vmatpush.msra.mxu0 %v3415
    %3570 = vmatpush.msra.mxu0 %v3413
    %3571 = vmatpush.msra.mxu0 %v3411
    %3572 = vmatpush.msra.mxu0 %v3409
    %3573 = vmatpush.msra.mxu0 %v3407
    %3574 = vmatpush.msra.mxu0 %v3405
    %3575 = vmatmul.f32.gmra.mxu0 %v3356
    %v3576 = vpop.f32.mrf.mxu0
    %v3577 = vadd.f32 %v3536, %v3576
    %3578 = vmatmul.f32.gmra.mxu0 %v3358
    %v3579 = vpop.f32.mrf.mxu0
    %v3580 = vadd.f32 %v3539, %v3579
    %3581 = vmatmul.f32.gmra.mxu0 %v3360
    %v3582 = vpop.f32.mrf.mxu0
    %v3583 = vadd.f32 %v3542, %v3582
    %3584 = vmatmul.f32.gmra.mxu0 %v3362
    %v3585 = vpop.f32.mrf.mxu0
    %v3586 = vadd.f32 %v3545, %v3585
    %3587 = vmatmul.f32.gmra.mxu0 %v3364
    %v3588 = vpop.f32.mrf.mxu0
    %v3589 = vadd.f32 %v3548, %v3588
    %3590 = vmatmul.f32.gmra.mxu0 %v3366
    %v3591 = vpop.f32.mrf.mxu0
    %v3592 = vadd.f32 %v3551, %v3591
    %3593 = vmatmul.f32.gmra.mxu0 %v3368
    %v3594 = vpop.f32.mrf.mxu0
    %v3595 = vadd.f32 %v3554, %v3594
    %3596 = vmatmul.f32.gmra.mxu0 %v3370
    %v3597 = vpop.f32.mrf.mxu0
    %v3598 = vadd.f32 %v3557, %v3597
    %3599 = vdwg.mxu0
    %v3600 = vadd.f32 %v3339, %v3495
    %v3601 = vadd.f32 %v3340, %v3577
    %v3602 = vadd.f32 %v3341, %v3498
    %v3603 = vadd.f32 %v3342, %v3580
    %v3604 = vadd.f32 %v3343, %v3501
    %v3605 = vadd.f32 %v3344, %v3583
    %v3606 = vadd.f32 %v3345, %v3504
    %v3607 = vadd.f32 %v3346, %v3586
    %v3608 = vadd.f32 %v3347, %v3507
    %v3609 = vadd.f32 %v3348, %v3589
    %v3610 = vadd.f32 %v3349, %v3510
    %v3611 = vadd.f32 %v3350, %v3592
    %v3612 = vadd.f32 %v3351, %v3513
    %v3613 = vadd.f32 %v3352, %v3595
    %v3614 = vadd.f32 %v3353, %v3516
    %v3615 = vadd.f32 %v3354, %v3598
    %3616 = vst [vmem:[#allocation6] sm:$0xff] %v3600
    %3617 = vst [vmem:[#allocation6 + $0x8] sm:$0xff] %v3601
    %3618 = vst [vmem:[#allocation6 + $0x10] sm:$0xff] %v3602
    %3619 = vst [vmem:[#allocation6 + $0x18] sm:$0xff] %v3603
    %3620 = vst [vmem:[#allocation6 + $0x20] sm:$0xff] %v3604
    %3621 = vst [vmem:[#allocation6 + $0x28] sm:$0xff] %v3605
    %3622 = vst [vmem:[#allocation6 + $0x30] sm:$0xff] %v3606
    %3623 = vst [vmem:[#allocation6 + $0x38] sm:$0xff] %v3607
    %3624 = vst [vmem:[#allocation6 + $0x40] sm:$0xff] %v3608
    %3625 = vst [vmem:[#allocation6 + $0x48] sm:$0xff] %v3609
    %3626 = vst [vmem:[#allocation6 + $0x50] sm:$0xff] %v3610
    %3627 = vst [vmem:[#allocation6 + $0x58] sm:$0xff] %v3611
    %3628 = vst [vmem:[#allocation6 + $0x60] sm:$0xff] %v3612
    %3629 = vst [vmem:[#allocation6 + $0x68] sm:$0xff] %v3613
    %3630 = vst [vmem:[#allocation6 + $0x70] sm:$0xff] %v3614
    %3631 = vst [vmem:[#allocation6 + $0x78] sm:$0xff] %v3615
    %v3632 = vld [vmem:[#allocation6] sm:$0xff]
    %v3633 = vld [vmem:[#allocation6 + $0x8] sm:$0xff]
    %v3634 = vld [vmem:[#allocation6 + $0x10] sm:$0xff]
    %v3635 = vld [vmem:[#allocation6 + $0x18] sm:$0xff]
    %v3636 = vld [vmem:[#allocation6 + $0x20] sm:$0xff]
    %v3637 = vld [vmem:[#allocation6 + $0x28] sm:$0xff]
    %v3638 = vld [vmem:[#allocation6 + $0x30] sm:$0xff]
    %v3639 = vld [vmem:[#allocation6 + $0x38] sm:$0xff]
    %v3640 = vld [vmem:[#allocation6 + $0x40] sm:$0xff]
    %v3641 = vld [vmem:[#allocation6 + $0x48] sm:$0xff]
    %v3642 = vld [vmem:[#allocation6 + $0x50] sm:$0xff]
    %v3643 = vld [vmem:[#allocation6 + $0x58] sm:$0xff]
    %v3644 = vld [vmem:[#allocation6 + $0x60] sm:$0xff]
    %v3645 = vld [vmem:[#allocation6 + $0x68] sm:$0xff]
    %v3646 = vld [vmem:[#allocation6 + $0x70] sm:$0xff]
    %v3647 = vld [vmem:[#allocation6 + $0x78] sm:$0xff]
    %v3648 = vmax.f32 %v3632, 0.0
    %v3649 = vmax.f32 %v3633, 0.0
    %v3650 = vmax.f32 %v3634, 0.0
    %v3651 = vmax.f32 %v3635, 0.0
    %v3652 = vmax.f32 %v3636, 0.0
    %v3653 = vmax.f32 %v3637, 0.0
    %v3654 = vmax.f32 %v3638, 0.0
    %v3655 = vmax.f32 %v3639, 0.0
    %v3656 = vmax.f32 %v3640, 0.0
    %v3657 = vmax.f32 %v3641, 0.0
    %v3658 = vmax.f32 %v3642, 0.0
    %v3659 = vmax.f32 %v3643, 0.0
    %v3660 = vmax.f32 %v3644, 0.0
    %v3661 = vmax.f32 %v3645, 0.0
    %v3662 = vmax.f32 %v3646, 0.0
    %v3663 = vmax.f32 %v3647, 0.0
    %3664 = vst [vmem:[#allocation3 + $0x10] sm:$0xff] %v3648
    %3665 = vst [vmem:[#allocation3 + $0x18] sm:$0xff] %v3649
    %3666 = vst [vmem:[#allocation3 + $0x20] sm:$0xff] %v3650
    %3667 = vst [vmem:[#allocation3 + $0x28] sm:$0xff] %v3651
    %3668 = vst [vmem:[#allocation3 + $0x30] sm:$0xff] %v3652
    %3669 = vst [vmem:[#allocation3 + $0x38] sm:$0xff] %v3653
    %3670 = vst [vmem:[#allocation3 + $0x40] sm:$0xff] %v3654
    %3671 = vst [vmem:[#allocation3 + $0x48] sm:$0xff] %v3655
    %3672 = vst [vmem:[#allocation3 + $0x50] sm:$0xff] %v3656
    %3673 = vst [vmem:[#allocation3 + $0x58] sm:$0xff] %v3657
    %3674 = vst [vmem:[#allocation3 + $0x60] sm:$0xff] %v3658
    %3675 = vst [vmem:[#allocation3 + $0x68] sm:$0xff] %v3659
    %3676 = vst [vmem:[#allocation3 + $0x70] sm:$0xff] %v3660
    %3677 = vst [vmem:[#allocation3 + $0x78] sm:$0xff] %v3661
    %3678 = vst [vmem:[#allocation3 + $0x80] sm:$0xff] %v3662
    %3679 = vst [vmem:[#allocation3 + $0x88] sm:$0xff] %v3663
    %v3680 = vld [vmem:[#allocation3] sm:$0xff]
    %v3681 = vld [vmem:[#allocation3 + $0x8] sm:$0xff]
    %v3682 = vld [vmem:[#allocation3 + $0x10] sm:$0xff]
    %v3683 = vld [vmem:[#allocation3 + $0x18] sm:$0xff]
    %v3684 = vld [vmem:[#allocation3 + $0x20] sm:$0xff]
    %v3685 = vld [vmem:[#allocation3 + $0x28] sm:$0xff]
    %v3686 = vld [vmem:[#allocation3 + $0x30] sm:$0xff]
    %v3687 = vld [vmem:[#allocation3 + $0x38] sm:$0xff]
    %v3688 = vld [vmem:[#allocation3 + $0x40] sm:$0xff]
    %v3689 = vld [vmem:[#allocation3 + $0x48] sm:$0xff]
    %v3690 = vld [vmem:[#allocation3 + $0x50] sm:$0xff]
    %v3691 = vld [vmem:[#allocation3 + $0x58] sm:$0xff]
    %v3692 = vld [vmem:[#allocation3 + $0x60] sm:$0xff]
    %v3693 = vld [vmem:[#allocation3 + $0x68] sm:$0xff]
    %v3694 = vld [vmem:[#allocation3 + $0x70] sm:$0xff]
    %v3695 = vld [vmem:[#allocation3 + $0x78] sm:$0xff]
    %s3696 = scalar_lea.vmem [#allocation7], 1536
    %v3697 = vld [vmem:[%s3696] sm:$0xff]
    %v3698 = vld [vmem:[%s3696 + $0x8] sm:$0xff]
    %v3699 = vld [vmem:[%s3696 + $0x10] sm:$0xff]
    %v3700 = vld [vmem:[%s3696 + $0x18] sm:$0xff]
    %v3701 = vld [vmem:[%s3696 + $0x20] sm:$0xff]
    %v3702 = vld [vmem:[%s3696 + $0x28] sm:$0xff]
    %v3703 = vld [vmem:[%s3696 + $0x30] sm:$0xff]
    %v3704 = vld [vmem:[%s3696 + $0x38] sm:$0xff]
    %v3705 = vld [vmem:[%s3696 + $0x40] sm:$0xff]
    %v3706 = vld [vmem:[%s3696 + $0x48] sm:$0xff]
    %v3707 = vld [vmem:[%s3696 + $0x50] sm:$0xff]
    %v3708 = vld [vmem:[%s3696 + $0x58] sm:$0xff]
    %v3709 = vld [vmem:[%s3696 + $0x60] sm:$0xff]
    %v3710 = vld [vmem:[%s3696 + $0x68] sm:$0xff]
    %v3711 = vld [vmem:[%s3696 + $0x70] sm:$0xff]
    %v3712 = vld [vmem:[%s3696 + $0x78] sm:$0xff]
    %v3713 = vld [vmem:[%s3696 + $0x80] sm:$0xff]
    %v3714 = vld [vmem:[%s3696 + $0x88] sm:$0xff]
    %v3715 = vld [vmem:[%s3696 + $0x90] sm:$0xff]
    %v3716 = vld [vmem:[%s3696 + $0x98] sm:$0xff]
    %v3717 = vld [vmem:[%s3696 + $0xa0] sm:$0xff]
    %v3718 = vld [vmem:[%s3696 + $0xa8] sm:$0xff]
    %v3719 = vld [vmem:[%s3696 + $0xb0] sm:$0xff]
    %v3720 = vld [vmem:[%s3696 + $0xb8] sm:$0xff]
    %v3721 = vld [vmem:[%s3696 + $0xc0] sm:$0xff]
    %v3722 = vld [vmem:[%s3696 + $0xc8] sm:$0xff]
    %v3723 = vld [vmem:[%s3696 + $0xd0] sm:$0xff]
    %v3724 = vld [vmem:[%s3696 + $0xd8] sm:$0xff]
    %v3725 = vld [vmem:[%s3696 + $0xe0] sm:$0xff]
    %v3726 = vld [vmem:[%s3696 + $0xe8] sm:$0xff]
    %v3727 = vld [vmem:[%s3696 + $0xf0] sm:$0xff]
    %v3728 = vld [vmem:[%s3696 + $0xf8] sm:$0xff]
    %v3729 = vld [vmem:[%s3696 + $0x100] sm:$0xff]
    %v3730 = vld [vmem:[%s3696 + $0x108] sm:$0xff]
    %v3731 = vld [vmem:[%s3696 + $0x110] sm:$0xff]
    %v3732 = vld [vmem:[%s3696 + $0x118] sm:$0xff]
    %v3733 = vld [vmem:[%s3696 + $0x120] sm:$0xff]
    %v3734 = vld [vmem:[%s3696 + $0x128] sm:$0xff]
    %v3735 = vld [vmem:[%s3696 + $0x130] sm:$0xff]
    %v3736 = vld [vmem:[%s3696 + $0x138] sm:$0xff]
    %v3737 = vld [vmem:[%s3696 + $0x140] sm:$0xff]
    %v3738 = vld [vmem:[%s3696 + $0x148] sm:$0xff]
    %v3739 = vld [vmem:[%s3696 + $0x150] sm:$0xff]
    %v3740 = vld [vmem:[%s3696 + $0x158] sm:$0xff]
    %v3741 = vld [vmem:[%s3696 + $0x160] sm:$0xff]
    %v3742 = vld [vmem:[%s3696 + $0x168] sm:$0xff]
    %v3743 = vld [vmem:[%s3696 + $0x170] sm:$0xff]
    %v3744 = vld [vmem:[%s3696 + $0x178] sm:$0xff]
    %v3745 = vld [vmem:[%s3696 + $0x180] sm:$0xff]
    %v3746 = vld [vmem:[%s3696 + $0x188] sm:$0xff]
    %v3747 = vld [vmem:[%s3696 + $0x190] sm:$0xff]
    %v3748 = vld [vmem:[%s3696 + $0x198] sm:$0xff]
    %v3749 = vld [vmem:[%s3696 + $0x1a0] sm:$0xff]
    %v3750 = vld [vmem:[%s3696 + $0x1a8] sm:$0xff]
    %v3751 = vld [vmem:[%s3696 + $0x1b0] sm:$0xff]
    %v3752 = vld [vmem:[%s3696 + $0x1b8] sm:$0xff]
    %v3753 = vld [vmem:[%s3696 + $0x1c0] sm:$0xff]
    %v3754 = vld [vmem:[%s3696 + $0x1c8] sm:$0xff]
    %v3755 = vld [vmem:[%s3696 + $0x1d0] sm:$0xff]
    %v3756 = vld [vmem:[%s3696 + $0x1d8] sm:$0xff]
    %v3757 = vld [vmem:[%s3696 + $0x1e0] sm:$0xff]
    %v3758 = vld [vmem:[%s3696 + $0x1e8] sm:$0xff]
    %v3759 = vld [vmem:[%s3696 + $0x1f0] sm:$0xff]
    %v3760 = vld [vmem:[%s3696 + $0x1f8] sm:$0xff]
    %3761 = vmatpush.msra.mxu0 %v3727
    %3762 = vmatpush.msra.mxu0 %v3725
    %3763 = vmatpush.msra.mxu0 %v3723
    %3764 = vmatpush.msra.mxu0 %v3721
    %3765 = vmatpush.msra.mxu0 %v3719
    %3766 = vmatpush.msra.mxu0 %v3717
    %3767 = vmatpush.msra.mxu0 %v3715
    %3768 = vmatpush.msra.mxu0 %v3713
    %3769 = vmatpush.msra.mxu0 %v3711
    %3770 = vmatpush.msra.mxu0 %v3709
    %3771 = vmatpush.msra.mxu0 %v3707
    %3772 = vmatpush.msra.mxu0 %v3705
    %3773 = vmatpush.msra.mxu0 %v3703
    %3774 = vmatpush.msra.mxu0 %v3701
    %3775 = vmatpush.msra.mxu0 %v3699
    %3776 = vmatpush.msra.mxu0 %v3697
    %3777 = vmatmul.f32.gmra.mxu0 %v3680
    %v3778 = vpop.f32.mrf.mxu0
    %v3779 = vadd.f32 0.0, %v3778
    %3780 = vmatmul.f32.gmra.mxu0 %v3682
    %v3781 = vpop.f32.mrf.mxu0
    %v3782 = vadd.f32 0.0, %v3781
    %3783 = vmatmul.f32.gmra.mxu0 %v3684
    %v3784 = vpop.f32.mrf.mxu0
    %v3785 = vadd.f32 0.0, %v3784
    %3786 = vmatmul.f32.gmra.mxu0 %v3686
    %v3787 = vpop.f32.mrf.mxu0
    %v3788 = vadd.f32 0.0, %v3787
    %3789 = vmatmul.f32.gmra.mxu0 %v3688
    %v3790 = vpop.f32.mrf.mxu0
    %v3791 = vadd.f32 0.0, %v3790
    %3792 = vmatmul.f32.gmra.mxu0 %v3690
    %v3793 = vpop.f32.mrf.mxu0
    %v3794 = vadd.f32 0.0, %v3793
    %3795 = vmatmul.f32.gmra.mxu0 %v3692
    %v3796 = vpop.f32.mrf.mxu0
    %v3797 = vadd.f32 0.0, %v3796
    %3798 = vmatmul.f32.gmra.mxu0 %v3694
    %v3799 = vpop.f32.mrf.mxu0
    %v3800 = vadd.f32 0.0, %v3799
    %3801 = vdwg.mxu0
    %3802 = vmatpush.msra.mxu0 %v3759
    %3803 = vmatpush.msra.mxu0 %v3757
    %3804 = vmatpush.msra.mxu0 %v3755
    %3805 = vmatpush.msra.mxu0 %v3753
    %3806 = vmatpush.msra.mxu0 %v3751
    %3807 = vmatpush.msra.mxu0 %v3749
    %3808 = vmatpush.msra.mxu0 %v3747
    %3809 = vmatpush.msra.mxu0 %v3745
    %3810 = vmatpush.msra.mxu0 %v3743
    %3811 = vmatpush.msra.mxu0 %v3741
    %3812 = vmatpush.msra.mxu0 %v3739
    %3813 = vmatpush.msra.mxu0 %v3737
    %3814 = vmatpush.msra.mxu0 %v3735
    %3815 = vmatpush.msra.mxu0 %v3733
    %3816 = vmatpush.msra.mxu0 %v3731
    %3817 = vmatpush.msra.mxu0 %v3729
    %3818 = vmatmul.f32.gmra.mxu0 %v3681
    %v3819 = vpop.f32.mrf.mxu0
    %v3820 = vadd.f32 %v3779, %v3819
    %3821 = vmatmul.f32.gmra.mxu0 %v3683
    %v3822 = vpop.f32.mrf.mxu0
    %v3823 = vadd.f32 %v3782, %v3822
    %3824 = vmatmul.f32.gmra.mxu0 %v3685
    %v3825 = vpop.f32.mrf.mxu0
    %v3826 = vadd.f32 %v3785, %v3825
    %3827 = vmatmul.f32.gmra.mxu0 %v3687
    %v3828 = vpop.f32.mrf.mxu0
    %v3829 = vadd.f32 %v3788, %v3828
    %3830 = vmatmul.f32.gmra.mxu0 %v3689
    %v3831 = vpop.f32.mrf.mxu0
    %v3832 = vadd.f32 %v3791, %v3831
    %3833 = vmatmul.f32.gmra.mxu0 %v3691
    %v3834 = vpop.f32.mrf.mxu0
    %v3835 = vadd.f32 %v3794, %v3834
    %3836 = vmatmul.f32.gmra.mxu0 %v3693
    %v3837 = vpop.f32.mrf.mxu0
    %v3838 = vadd.f32 %v3797, %v3837
    %3839 = vmatmul.f32.gmra.mxu0 %v3695
    %v3840 = vpop.f32.mrf.mxu0
    %v3841 = vadd.f32 %v3800, %v3840
    %3842 = vdwg.mxu0
    %3843 = vmatpush.msra.mxu0 %v3728
    %3844 = vmatpush.msra.mxu0 %v3726
    %3845 = vmatpush.msra.mxu0 %v3724
    %3846 = vmatpush.msra.mxu0 %v3722
    %3847 = vmatpush.msra.mxu0 %v3720
    %3848 = vmatpush.msra.mxu0 %v3718
    %3849 = vmatpush.msra.mxu0 %v3716
    %3850 = vmatpush.msra.mxu0 %v3714
    %3851 = vmatpush.msra.mxu0 %v3712
    %3852 = vmatpush.msra.mxu0 %v3710
    %3853 = vmatpush.msra.mxu0 %v3708
    %3854 = vmatpush.msra.mxu0 %v3706
    %3855 = vmatpush.msra.mxu0 %v3704
    %3856 = vmatpush.msra.mxu0 %v3702
    %3857 = vmatpush.msra.mxu0 %v3700
    %3858 = vmatpush.msra.mxu0 %v3698
    %3859 = vmatmul.f32.gmra.mxu0 %v3680
    %v3860 = vpop.f32.mrf.mxu0
    %v3861 = vadd.f32 0.0, %v3860
    %3862 = vmatmul.f32.gmra.mxu0 %v3682
    %v3863 = vpop.f32.mrf.mxu0
    %v3864 = vadd.f32 0.0, %v3863
    %3865 = vmatmul.f32.gmra.mxu0 %v3684
    %v3866 = vpop.f32.mrf.mxu0
    %v3867 = vadd.f32 0.0, %v3866
    %3868 = vmatmul.f32.gmra.mxu0 %v3686
    %v3869 = vpop.f32.mrf.mxu0
    %v3870 = vadd.f32 0.0, %v3869
    %3871 = vmatmul.f32.gmra.mxu0 %v3688
    %v3872 = vpop.f32.mrf.mxu0
    %v3873 = vadd.f32 0.0, %v3872
    %3874 = vmatmul.f32.gmra.mxu0 %v3690
    %v3875 = vpop.f32.mrf.mxu0
    %v3876 = vadd.f32 0.0, %v3875
    %3877 = vmatmul.f32.gmra.mxu0 %v3692
    %v3878 = vpop.f32.mrf.mxu0
    %v3879 = vadd.f32 0.0, %v3878
    %3880 = vmatmul.f32.gmra.mxu0 %v3694
    %v3881 = vpop.f32.mrf.mxu0
    %v3882 = vadd.f32 0.0, %v3881
    %3883 = vdwg.mxu0
    %3884 = vmatpush.msra.mxu0 %v3760
    %3885 = vmatpush.msra.mxu0 %v3758
    %3886 = vmatpush.msra.mxu0 %v3756
    %3887 = vmatpush.msra.mxu0 %v3754
    %3888 = vmatpush.msra.mxu0 %v3752
    %3889 = vmatpush.msra.mxu0 %v3750
    %3890 = vmatpush.msra.mxu0 %v3748
    %3891 = vmatpush.msra.mxu0 %v3746
    %3892 = vmatpush.msra.mxu0 %v3744
    %3893 = vmatpush.msra.mxu0 %v3742
    %3894 = vmatpush.msra.mxu0 %v3740
    %3895 = vmatpush.msra.mxu0 %v3738
    %3896 = vmatpush.msra.mxu0 %v3736
    %3897 = vmatpush.msra.mxu0 %v3734
    %3898 = vmatpush.msra.mxu0 %v3732
    %3899 = vmatpush.msra.mxu0 %v3730
    %3900 = vmatmul.f32.gmra.mxu0 %v3681
    %v3901 = vpop.f32.mrf.mxu0
    %v3902 = vadd.f32 %v3861, %v3901
    %3903 = vmatmul.f32.gmra.mxu0 %v3683
    %v3904 = vpop.f32.mrf.mxu0
    %v3905 = vadd.f32 %v3864, %v3904
    %3906 = vmatmul.f32.gmra.mxu0 %v3685
    %v3907 = vpop.f32.mrf.mxu0
    %v3908 = vadd.f32 %v3867, %v3907
    %3909 = vmatmul.f32.gmra.mxu0 %v3687
    %v3910 = vpop.f32.mrf.mxu0
    %v3911 = vadd.f32 %v3870, %v3910
    %3912 = vmatmul.f32.gmra.mxu0 %v3689
    %v3913 = vpop.f32.mrf.mxu0
    %v3914 = vadd.f32 %v3873, %v3913
    %3915 = vmatmul.f32.gmra.mxu0 %v3691
    %v3916 = vpop.f32.mrf.mxu0
    %v3917 = vadd.f32 %v3876, %v3916
    %3918 = vmatmul.f32.gmra.mxu0 %v3693
    %v3919 = vpop.f32.mrf.mxu0
    %v3920 = vadd.f32 %v3879, %v3919
    %3921 = vmatmul.f32.gmra.mxu0 %v3695
    %v3922 = vpop.f32.mrf.mxu0
    %v3923 = vadd.f32 %v3882, %v3922
    %3924 = vdwg.mxu0
    %3925 = vst [vmem:[#allocation6] sm:$0xff] %v3820
    %3926 = vst [vmem:[#allocation6 + $0x8] sm:$0xff] %v3902
    %3927 = vst [vmem:[#allocation6 + $0x10] sm:$0xff] %v3823
    %3928 = vst [vmem:[#allocation6 + $0x18] sm:$0xff] %v3905
    %3929 = vst [vmem:[#allocation6 + $0x20] sm:$0xff] %v3826
    %3930 = vst [vmem:[#allocation6 + $0x28] sm:$0xff] %v3908
    %3931 = vst [vmem:[#allocation6 + $0x30] sm:$0xff] %v3829
    %3932 = vst [vmem:[#allocation6 + $0x38] sm:$0xff] %v3911
    %3933 = vst [vmem:[#allocation6 + $0x40] sm:$0xff] %v3832
    %3934 = vst [vmem:[#allocation6 + $0x48] sm:$0xff] %v3914
    %3935 = vst [vmem:[#allocation6 + $0x50] sm:$0xff] %v3835
    %3936 = vst [vmem:[#allocation6 + $0x58] sm:$0xff] %v3917
    %3937 = vst [vmem:[#allocation6 + $0x60] sm:$0xff] %v3838
    %3938 = vst [vmem:[#allocation6 + $0x68] sm:$0xff] %v3920
    %3939 = vst [vmem:[#allocation6 + $0x70] sm:$0xff] %v3841
    %3940 = vst [vmem:[#allocation6 + $0x78] sm:$0xff] %v3923
    %v3941 = vld [vmem:[#allocation6] sm:$0xff]
    %v3942 = vld [vmem:[#allocation6 + $0x8] sm:$0xff]
    %v3943 = vld [vmem:[#allocation6 + $0x10] sm:$0xff]
    %v3944 = vld [vmem:[#allocation6 + $0x18] sm:$0xff]
    %v3945 = vld [vmem:[#allocation6 + $0x20] sm:$0xff]
    %v3946 = vld [vmem:[#allocation6 + $0x28] sm:$0xff]
    %v3947 = vld [vmem:[#allocation6 + $0x30] sm:$0xff]
    %v3948 = vld [vmem:[#allocation6 + $0x38] sm:$0xff]
    %v3949 = vld [vmem:[#allocation6 + $0x40] sm:$0xff]
    %v3950 = vld [vmem:[#allocation6 + $0x48] sm:$0xff]
    %v3951 = vld [vmem:[#allocation6 + $0x50] sm:$0xff]
    %v3952 = vld [vmem:[#allocation6 + $0x58] sm:$0xff]
    %v3953 = vld [vmem:[#allocation6 + $0x60] sm:$0xff]
    %v3954 = vld [vmem:[#allocation6 + $0x68] sm:$0xff]
    %v3955 = vld [vmem:[#allocation6 + $0x70] sm:$0xff]
    %v3956 = vld [vmem:[#allocation6 + $0x78] sm:$0xff]
    %v3957 = vld [vmem:[#allocation3 + $0x10] sm:$0xff]
    %v3958 = vld [vmem:[#allocation3 + $0x18] sm:$0xff]
    %v3959 = vld [vmem:[#allocation3 + $0x20] sm:$0xff]
    %v3960 = vld [vmem:[#allocation3 + $0x28] sm:$0xff]
    %v3961 = vld [vmem:[#allocation3 + $0x30] sm:$0xff]
    %v3962 = vld [vmem:[#allocation3 + $0x38] sm:$0xff]
    %v3963 = vld [vmem:[#allocation3 + $0x40] sm:$0xff]
    %v3964 = vld [vmem:[#allocation3 + $0x48] sm:$0xff]
    %v3965 = vld [vmem:[#allocation3 + $0x50] sm:$0xff]
    %v3966 = vld [vmem:[#allocation3 + $0x58] sm:$0xff]
    %v3967 = vld [vmem:[#allocation3 + $0x60] sm:$0xff]
    %v3968 = vld [vmem:[#allocation3 + $0x68] sm:$0xff]
    %v3969 = vld [vmem:[#allocation3 + $0x70] sm:$0xff]
    %v3970 = vld [vmem:[#allocation3 + $0x78] sm:$0xff]
    %v3971 = vld [vmem:[#allocation3 + $0x80] sm:$0xff]
    %v3972 = vld [vmem:[#allocation3 + $0x88] sm:$0xff]
    %s3973 = scalar_lea.vmem [#allocation7], 2048
    %v3974 = vld [vmem:[%s3973] sm:$0xff]
    %v3975 = vld [vmem:[%s3973 + $0x8] sm:$0xff]
    %v3976 = vld [vmem:[%s3973 + $0x10] sm:$0xff]
    %v3977 = vld [vmem:[%s3973 + $0x18] sm:$0xff]
    %v3978 = vld [vmem:[%s3973 + $0x20] sm:$0xff]
    %v3979 = vld [vmem:[%s3973 + $0x28] sm:$0xff]
    %v3980 = vld [vmem:[%s3973 + $0x30] sm:$0xff]
    %v3981 = vld [vmem:[%s3973 + $0x38] sm:$0xff]
    %v3982 = vld [vmem:[%s3973 + $0x40] sm:$0xff]
    %v3983 = vld [vmem:[%s3973 + $0x48] sm:$0xff]
    %v3984 = vld [vmem:[%s3973 + $0x50] sm:$0xff]
    %v3985 = vld [vmem:[%s3973 + $0x58] sm:$0xff]
    %v3986 = vld [vmem:[%s3973 + $0x60] sm:$0xff]
    %v3987 = vld [vmem:[%s3973 + $0x68] sm:$0xff]
    %v3988 = vld [vmem:[%s3973 + $0x70] sm:$0xff]
    %v3989 = vld [vmem:[%s3973 + $0x78] sm:$0xff]
    %v3990 = vld [vmem:[%s3973 + $0x80] sm:$0xff]
    %v3991 = vld [vmem:[%s3973 + $0x88] sm:$0xff]
    %v3992 = vld [vmem:[%s3973 + $0x90] sm:$0xff]
    %v3993 = vld [vmem:[%s3973 + $0x98] sm:$0xff]
    %v3994 = vld [vmem:[%s3973 + $0xa0] sm:$0xff]
    %v3995 = vld [vmem:[%s3973 + $0xa8] sm:$0xff]
    %v3996 = vld [vmem:[%s3973 + $0xb0] sm:$0xff]
    %v3997 = vld [vmem:[%s3973 + $0xb8] sm:$0xff]
    %v3998 = vld [vmem:[%s3973 + $0xc0] sm:$0xff]
    %v3999 = vld [vmem:[%s3973 + $0xc8] sm:$0xff]
    %v4000 = vld [vmem:[%s3973 + $0xd0] sm:$0xff]
    %v4001 = vld [vmem:[%s3973 + $0xd8] sm:$0xff]
    %v4002 = vld [vmem:[%s3973 + $0xe0] sm:$0xff]
    %v4003 = vld [vmem:[%s3973 + $0xe8] sm:$0xff]
    %v4004 = vld [vmem:[%s3973 + $0xf0] sm:$0xff]
    %v4005 = vld [vmem:[%s3973 + $0xf8] sm:$0xff]
    %v4006 = vld [vmem:[%s3973 + $0x100] sm:$0xff]
    %v4007 = vld [vmem:[%s3973 + $0x108] sm:$0xff]
    %v4008 = vld [vmem:[%s3973 + $0x110] sm:$0xff]
    %v4009 = vld [vmem:[%s3973 + $0x118] sm:$0xff]
    %v4010 = vld [vmem:[%s3973 + $0x120] sm:$0xff]
    %v4011 = vld [vmem:[%s3973 + $0x128] sm:$0xff]
    %v4012 = vld [vmem:[%s3973 + $0x130] sm:$0xff]
    %v4013 = vld [vmem:[%s3973 + $0x138] sm:$0xff]
    %v4014 = vld [vmem:[%s3973 + $0x140] sm:$0xff]
    %v4015 = vld [vmem:[%s3973 + $0x148] sm:$0xff]
    %v4016 = vld [vmem:[%s3973 + $0x150] sm:$0xff]
    %v4017 = vld [vmem:[%s3973 + $0x158] sm:$0xff]
    %v4018 = vld [vmem:[%s3973 + $0x160] sm:$0xff]
    %v4019 = vld [vmem:[%s3973 + $0x168] sm:$0xff]
    %v4020 = vld [vmem:[%s3973 + $0x170] sm:$0xff]
    %v4021 = vld [vmem:[%s3973 + $0x178] sm:$0xff]
    %v4022 = vld [vmem:[%s3973 + $0x180] sm:$0xff]
    %v4023 = vld [vmem:[%s3973 + $0x188] sm:$0xff]
    %v4024 = vld [vmem:[%s3973 + $0x190] sm:$0xff]
    %v4025 = vld [vmem:[%s3973 + $0x198] sm:$0xff]
    %v4026 = vld [vmem:[%s3973 + $0x1a0] sm:$0xff]
    %v4027 = vld [vmem:[%s3973 + $0x1a8] sm:$0xff]
    %v4028 = vld [vmem:[%s3973 + $0x1b0] sm:$0xff]
    %v4029 = vld [vmem:[%s3973 + $0x1b8] sm:$0xff]
    %v4030 = vld [vmem:[%s3973 + $0x1c0] sm:$0xff]
    %v4031 = vld [vmem:[%s3973 + $0x1c8] sm:$0xff]
    %v4032 = vld [vmem:[%s3973 + $0x1d0] sm:$0xff]
    %v4033 = vld [vmem:[%s3973 + $0x1d8] sm:$0xff]
    %v4034 = vld [vmem:[%s3973 + $0x1e0] sm:$0xff]
    %v4035 = vld [vmem:[%s3973 + $0x1e8] sm:$0xff]
    %v4036 = vld [vmem:[%s3973 + $0x1f0] sm:$0xff]
    %v4037 = vld [vmem:[%s3973 + $0x1f8] sm:$0xff]
    %4038 = vmatpush.msra.mxu0 %v4004
    %4039 = vmatpush.msra.mxu0 %v4002
    %4040 = vmatpush.msra.mxu0 %v4000
    %4041 = vmatpush.msra.mxu0 %v3998
    %4042 = vmatpush.msra.mxu0 %v3996
    %4043 = vmatpush.msra.mxu0 %v3994
    %4044 = vmatpush.msra.mxu0 %v3992
    %4045 = vmatpush.msra.mxu0 %v3990
    %4046 = vmatpush.msra.mxu0 %v3988
    %4047 = vmatpush.msra.mxu0 %v3986
    %4048 = vmatpush.msra.mxu0 %v3984
    %4049 = vmatpush.msra.mxu0 %v3982
    %4050 = vmatpush.msra.mxu0 %v3980
    %4051 = vmatpush.msra.mxu0 %v3978
    %4052 = vmatpush.msra.mxu0 %v3976
    %4053 = vmatpush.msra.mxu0 %v3974
    %4054 = vmatmul.f32.gmra.mxu0 %v3957
    %v4055 = vpop.f32.mrf.mxu0
    %v4056 = vadd.f32 0.0, %v4055
    %4057 = vmatmul.f32.gmra.mxu0 %v3959
    %v4058 = vpop.f32.mrf.mxu0
    %v4059 = vadd.f32 0.0, %v4058
    %4060 = vmatmul.f32.gmra.mxu0 %v3961
    %v4061 = vpop.f32.mrf.mxu0
    %v4062 = vadd.f32 0.0, %v4061
    %4063 = vmatmul.f32.gmra.mxu0 %v3963
    %v4064 = vpop.f32.mrf.mxu0
    %v4065 = vadd.f32 0.0, %v4064
    %4066 = vmatmul.f32.gmra.mxu0 %v3965
    %v4067 = vpop.f32.mrf.mxu0
    %v4068 = vadd.f32 0.0, %v4067
    %4069 = vmatmul.f32.gmra.mxu0 %v3967
    %v4070 = vpop.f32.mrf.mxu0
    %v4071 = vadd.f32 0.0, %v4070
    %4072 = vmatmul.f32.gmra.mxu0 %v3969
    %v4073 = vpop.f32.mrf.mxu0
    %v4074 = vadd.f32 0.0, %v4073
    %4075 = vmatmul.f32.gmra.mxu0 %v3971
    %v4076 = vpop.f32.mrf.mxu0
    %v4077 = vadd.f32 0.0, %v4076
    %4078 = vdwg.mxu0
    %4079 = vmatpush.msra.mxu0 %v4036
    %4080 = vmatpush.msra.mxu0 %v4034
    %4081 = vmatpush.msra.mxu0 %v4032
    %4082 = vmatpush.msra.mxu0 %v4030
    %4083 = vmatpush.msra.mxu0 %v4028
    %4084 = vmatpush.msra.mxu0 %v4026
    %4085 = vmatpush.msra.mxu0 %v4024
    %4086 = vmatpush.msra.mxu0 %v4022
    %4087 = vmatpush.msra.mxu0 %v4020
    %4088 = vmatpush.msra.mxu0 %v4018
    %4089 = vmatpush.msra.mxu0 %v4016
    %4090 = vmatpush.msra.mxu0 %v4014
    %4091 = vmatpush.msra.mxu0 %v4012
    %4092 = vmatpush.msra.mxu0 %v4010
    %4093 = vmatpush.msra.mxu0 %v4008
    %4094 = vmatpush.msra.mxu0 %v4006
    %4095 = vmatmul.f32.gmra.mxu0 %v3958
    %v4096 = vpop.f32.mrf.mxu0
    %v4097 = vadd.f32 %v4056, %v4096
    %4098 = vmatmul.f32.gmra.mxu0 %v3960
    %v4099 = vpop.f32.mrf.mxu0
    %v4100 = vadd.f32 %v4059, %v4099
    %4101 = vmatmul.f32.gmra.mxu0 %v3962
    %v4102 = vpop.f32.mrf.mxu0
    %v4103 = vadd.f32 %v4062, %v4102
    %4104 = vmatmul.f32.gmra.mxu0 %v3964
    %v4105 = vpop.f32.mrf.mxu0
    %v4106 = vadd.f32 %v4065, %v4105
    %4107 = vmatmul.f32.gmra.mxu0 %v3966
    %v4108 = vpop.f32.mrf.mxu0
    %v4109 = vadd.f32 %v4068, %v4108
    %4110 = vmatmul.f32.gmra.mxu0 %v3968
    %v4111 = vpop.f32.mrf.mxu0
    %v4112 = vadd.f32 %v4071, %v4111
    %4113 = vmatmul.f32.gmra.mxu0 %v3970
    %v4114 = vpop.f32.mrf.mxu0
    %v4115 = vadd.f32 %v4074, %v4114
    %4116 = vmatmul.f32.gmra.mxu0 %v3972
    %v4117 = vpop.f32.mrf.mxu0
    %v4118 = vadd.f32 %v4077, %v4117
    %4119 = vdwg.mxu0
    %4120 = vmatpush.msra.mxu0 %v4005
    %4121 = vmatpush.msra.mxu0 %v4003
    %4122 = vmatpush.msra.mxu0 %v4001
    %4123 = vmatpush.msra.mxu0 %v3999
    %4124 = vmatpush.msra.mxu0 %v3997
    %4125 = vmatpush.msra.mxu0 %v3995
    %4126 = vmatpush.msra.mxu0 %v3993
    %4127 = vmatpush.msra.mxu0 %v3991
    %4128 = vmatpush.msra.mxu0 %v3989
    %4129 = vmatpush.msra.mxu0 %v3987
    %4130 = vmatpush.msra.mxu0 %v3985
    %4131 = vmatpush.msra.mxu0 %v3983
    %4132 = vmatpush.msra.mxu0 %v3981
    %4133 = vmatpush.msra.mxu0 %v3979
    %4134 = vmatpush.msra.mxu0 %v3977
    %4135 = vmatpush.msra.mxu0 %v3975
    %4136 = vmatmul.f32.gmra.mxu0 %v3957
    %v4137 = vpop.f32.mrf.mxu0
    %v4138 = vadd.f32 0.0, %v4137
    %4139 = vmatmul.f32.gmra.mxu0 %v3959
    %v4140 = vpop.f32.mrf.mxu0
    %v4141 = vadd.f32 0.0, %v4140
    %4142 = vmatmul.f32.gmra.mxu0 %v3961
    %v4143 = vpop.f32.mrf.mxu0
    %v4144 = vadd.f32 0.0, %v4143
    %4145 = vmatmul.f32.gmra.mxu0 %v3963
    %v4146 = vpop.f32.mrf.mxu0
    %v4147 = vadd.f32 0.0, %v4146
    %4148 = vmatmul.f32.gmra.mxu0 %v3965
    %v4149 = vpop.f32.mrf.mxu0
    %v4150 = vadd.f32 0.0, %v4149
    %4151 = vmatmul.f32.gmra.mxu0 %v3967
    %v4152 = vpop.f32.mrf.mxu0
    %v4153 = vadd.f32 0.0, %v4152
    %4154 = vmatmul.f32.gmra.mxu0 %v3969
    %v4155 = vpop.f32.mrf.mxu0
    %v4156 = vadd.f32 0.0, %v4155
    %4157 = vmatmul.f32.gmra.mxu0 %v3971
    %v4158 = vpop.f32.mrf.mxu0
    %v4159 = vadd.f32 0.0, %v4158
    %4160 = vdwg.mxu0
    %4161 = vmatpush.msra.mxu0 %v4037
    %4162 = vmatpush.msra.mxu0 %v4035
    %4163 = vmatpush.msra.mxu0 %v4033
    %4164 = vmatpush.msra.mxu0 %v4031
    %4165 = vmatpush.msra.mxu0 %v4029
    %4166 = vmatpush.msra.mxu0 %v4027
    %4167 = vmatpush.msra.mxu0 %v4025
    %4168 = vmatpush.msra.mxu0 %v4023
    %4169 = vmatpush.msra.mxu0 %v4021
    %4170 = vmatpush.msra.mxu0 %v4019
    %4171 = vmatpush.msra.mxu0 %v4017
    %4172 = vmatpush.msra.mxu0 %v4015
    %4173 = vmatpush.msra.mxu0 %v4013
    %4174 = vmatpush.msra.mxu0 %v4011
    %4175 = vmatpush.msra.mxu0 %v4009
    %4176 = vmatpush.msra.mxu0 %v4007
    %4177 = vmatmul.f32.gmra.mxu0 %v3958
    %v4178 = vpop.f32.mrf.mxu0
    %v4179 = vadd.f32 %v4138, %v4178
    %4180 = vmatmul.f32.gmra.mxu0 %v3960
    %v4181 = vpop.f32.mrf.mxu0
    %v4182 = vadd.f32 %v4141, %v4181
    %4183 = vmatmul.f32.gmra.mxu0 %v3962
    %v4184 = vpop.f32.mrf.mxu0
    %v4185 = vadd.f32 %v4144, %v4184
    %4186 = vmatmul.f32.gmra.mxu0 %v3964
    %v4187 = vpop.f32.mrf.mxu0
    %v4188 = vadd.f32 %v4147, %v4187
    %4189 = vmatmul.f32.gmra.mxu0 %v3966
    %v4190 = vpop.f32.mrf.mxu0
    %v4191 = vadd.f32 %v4150, %v4190
    %4192 = vmatmul.f32.gmra.mxu0 %v3968
    %v4193 = vpop.f32.mrf.mxu0
    %v4194 = vadd.f32 %v4153, %v4193
    %4195 = vmatmul.f32.gmra.mxu0 %v3970
    %v4196 = vpop.f32.mrf.mxu0
    %v4197 = vadd.f32 %v4156, %v4196
    %4198 = vmatmul.f32.gmra.mxu0 %v3972
    %v4199 = vpop.f32.mrf.mxu0
    %v4200 = vadd.f32 %v4159, %v4199
    %4201 = vdwg.mxu0
    %v4202 = vadd.f32 %v3941, %v4097
    %v4203 = vadd.f32 %v3942, %v4179
    %v4204 = vadd.f32 %v3943, %v4100
    %v4205 = vadd.f32 %v3944, %v4182
    %v4206 = vadd.f32 %v3945, %v4103
    %v4207 = vadd.f32 %v3946, %v4185
    %v4208 = vadd.f32 %v3947, %v4106
    %v4209 = vadd.f32 %v3948, %v4188
    %v4210 = vadd.f32 %v3949, %v4109
    %v4211 = vadd.f32 %v3950, %v4191
    %v4212 = vadd.f32 %v3951, %v4112
    %v4213 = vadd.f32 %v3952, %v4194
    %v4214 = vadd.f32 %v3953, %v4115
    %v4215 = vadd.f32 %v3954, %v4197
    %v4216 = vadd.f32 %v3955, %v4118
    %v4217 = vadd.f32 %v3956, %v4200
    %4218 = vst [vmem:[#allocation6] sm:$0xff] %v4202
    %4219 = vst [vmem:[#allocation6 + $0x8] sm:$0xff] %v4203
    %4220 = vst [vmem:[#allocation6 + $0x10] sm:$0xff] %v4204
    %4221 = vst [vmem:[#allocation6 + $0x18] sm:$0xff] %v4205
    %4222 = vst [vmem:[#allocation6 + $0x20] sm:$0xff] %v4206
    %4223 = vst [vmem:[#allocation6 + $0x28] sm:$0xff] %v4207
    %4224 = vst [vmem:[#allocation6 + $0x30] sm:$0xff] %v4208
    %4225 = vst [vmem:[#allocation6 + $0x38] sm:$0xff] %v4209
    %4226 = vst [vmem:[#allocation6 + $0x40] sm:$0xff] %v4210
    %4227 = vst [vmem:[#allocation6 + $0x48] sm:$0xff] %v4211
    %4228 = vst [vmem:[#allocation6 + $0x50] sm:$0xff] %v4212
    %4229 = vst [vmem:[#allocation6 + $0x58] sm:$0xff] %v4213
    %4230 = vst [vmem:[#allocation6 + $0x60] sm:$0xff] %v4214
    %4231 = vst [vmem:[#allocation6 + $0x68] sm:$0xff] %v4215
    %4232 = vst [vmem:[#allocation6 + $0x70] sm:$0xff] %v4216
    %4233 = vst [vmem:[#allocation6 + $0x78] sm:$0xff] %v4217
    %v4234 = vld [vmem:[#allocation6] sm:$0xff]
    %v4235 = vld [vmem:[#allocation6 + $0x8] sm:$0xff]
    %v4236 = vld [vmem:[#allocation6 + $0x10] sm:$0xff]
    %v4237 = vld [vmem:[#allocation6 + $0x18] sm:$0xff]
    %v4238 = vld [vmem:[#allocation6 + $0x20] sm:$0xff]
    %v4239 = vld [vmem:[#allocation6 + $0x28] sm:$0xff]
    %v4240 = vld [vmem:[#allocation6 + $0x30] sm:$0xff]
    %v4241 = vld [vmem:[#allocation6 + $0x38] sm:$0xff]
    %v4242 = vld [vmem:[#allocation6 + $0x40] sm:$0xff]
    %v4243 = vld [vmem:[#allocation6 + $0x48] sm:$0xff]
    %v4244 = vld [vmem:[#allocation6 + $0x50] sm:$0xff]
    %v4245 = vld [vmem:[#allocation6 + $0x58] sm:$0xff]
    %v4246 = vld [vmem:[#allocation6 + $0x60] sm:$0xff]
    %v4247 = vld [vmem:[#allocation6 + $0x68] sm:$0xff]
    %v4248 = vld [vmem:[#allocation6 + $0x70] sm:$0xff]
    %v4249 = vld [vmem:[#allocation6 + $0x78] sm:$0xff]
    %v4250 = vld [vmem:[#allocation3 + $0x20] sm:$0xff]
    %v4251 = vld [vmem:[#allocation3 + $0x28] sm:$0xff]
    %v4252 = vld [vmem:[#allocation3 + $0x30] sm:$0xff]
    %v4253 = vld [vmem:[#allocation3 + $0x38] sm:$0xff]
    %v4254 = vld [vmem:[#allocation3 + $0x40] sm:$0xff]
    %v4255 = vld [vmem:[#allocation3 + $0x48] sm:$0xff]
    %v4256 = vld [vmem:[#allocation3 + $0x50] sm:$0xff]
    %v4257 = vld [vmem:[#allocation3 + $0x58] sm:$0xff]
    %v4258 = vld [vmem:[#allocation3 + $0x60] sm:$0xff]
    %v4259 = vld [vmem:[#allocation3 + $0x68] sm:$0xff]
    %v4260 = vld [vmem:[#allocation3 + $0x70] sm:$0xff]
    %v4261 = vld [vmem:[#allocation3 + $0x78] sm:$0xff]
    %v4262 = vld [vmem:[#allocation3 + $0x80] sm:$0xff]
    %v4263 = vld [vmem:[#allocation3 + $0x88] sm:$0xff]
    %v4264 = vld [vmem:[#allocation3 + $0x90] sm:$0xff]
    %v4265 = vld [vmem:[#allocation3 + $0x98] sm:$0xff]
    %s4266 = scalar_lea.vmem [#allocation7], 2560
    %v4267 = vld [vmem:[%s4266] sm:$0xff]
    %v4268 = vld [vmem:[%s4266 + $0x8] sm:$0xff]
    %v4269 = vld [vmem:[%s4266 + $0x10] sm:$0xff]
    %v4270 = vld [vmem:[%s4266 + $0x18] sm:$0xff]
    %v4271 = vld [vmem:[%s4266 + $0x20] sm:$0xff]
    %v4272 = vld [vmem:[%s4266 + $0x28] sm:$0xff]
    %v4273 = vld [vmem:[%s4266 + $0x30] sm:$0xff]
    %v4274 = vld [vmem:[%s4266 + $0x38] sm:$0xff]
    %v4275 = vld [vmem:[%s4266 + $0x40] sm:$0xff]
    %v4276 = vld [vmem:[%s4266 + $0x48] sm:$0xff]
    %v4277 = vld [vmem:[%s4266 + $0x50] sm:$0xff]
    %v4278 = vld [vmem:[%s4266 + $0x58] sm:$0xff]
    %v4279 = vld [vmem:[%s4266 + $0x60] sm:$0xff]
    %v4280 = vld [vmem:[%s4266 + $0x68] sm:$0xff]
    %v4281 = vld [vmem:[%s4266 + $0x70] sm:$0xff]
    %v4282 = vld [vmem:[%s4266 + $0x78] sm:$0xff]
    %v4283 = vld [vmem:[%s4266 + $0x80] sm:$0xff]
    %v4284 = vld [vmem:[%s4266 + $0x88] sm:$0xff]
    %v4285 = vld [vmem:[%s4266 + $0x90] sm:$0xff]
    %v4286 = vld [vmem:[%s4266 + $0x98] sm:$0xff]
    %v4287 = vld [vmem:[%s4266 + $0xa0] sm:$0xff]
    %v4288 = vld [vmem:[%s4266 + $0xa8] sm:$0xff]
    %v4289 = vld [vmem:[%s4266 + $0xb0] sm:$0xff]
    %v4290 = vld [vmem:[%s4266 + $0xb8] sm:$0xff]
    %v4291 = vld [vmem:[%s4266 + $0xc0] sm:$0xff]
    %v4292 = vld [vmem:[%s4266 + $0xc8] sm:$0xff]
    %v4293 = vld [vmem:[%s4266 + $0xd0] sm:$0xff]
    %v4294 = vld [vmem:[%s4266 + $0xd8] sm:$0xff]
    %v4295 = vld [vmem:[%s4266 + $0xe0] sm:$0xff]
    %v4296 = vld [vmem:[%s4266 + $0xe8] sm:$0xff]
    %v4297 = vld [vmem:[%s4266 + $0xf0] sm:$0xff]
    %v4298 = vld [vmem:[%s4266 + $0xf8] sm:$0xff]
    %v4299 = vld [vmem:[%s4266 + $0x100] sm:$0xff]
    %v4300 = vld [vmem:[%s4266 + $0x108] sm:$0xff]
    %v4301 = vld [vmem:[%s4266 + $0x110] sm:$0xff]
    %v4302 = vld [vmem:[%s4266 + $0x118] sm:$0xff]
    %v4303 = vld [vmem:[%s4266 + $0x120] sm:$0xff]
    %v4304 = vld [vmem:[%s4266 + $0x128] sm:$0xff]
    %v4305 = vld [vmem:[%s4266 + $0x130] sm:$0xff]
    %v4306 = vld [vmem:[%s4266 + $0x138] sm:$0xff]
    %v4307 = vld [vmem:[%s4266 + $0x140] sm:$0xff]
    %v4308 = vld [vmem:[%s4266 + $0x148] sm:$0xff]
    %v4309 = vld [vmem:[%s4266 + $0x150] sm:$0xff]
    %v4310 = vld [vmem:[%s4266 + $0x158] sm:$0xff]
    %v4311 = vld [vmem:[%s4266 + $0x160] sm:$0xff]
    %v4312 = vld [vmem:[%s4266 + $0x168] sm:$0xff]
    %v4313 = vld [vmem:[%s4266 + $0x170] sm:$0xff]
    %v4314 = vld [vmem:[%s4266 + $0x178] sm:$0xff]
    %v4315 = vld [vmem:[%s4266 + $0x180] sm:$0xff]
    %v4316 = vld [vmem:[%s4266 + $0x188] sm:$0xff]
    %v4317 = vld [vmem:[%s4266 + $0x190] sm:$0xff]
    %v4318 = vld [vmem:[%s4266 + $0x198] sm:$0xff]
    %v4319 = vld [vmem:[%s4266 + $0x1a0] sm:$0xff]
    %v4320 = vld [vmem:[%s4266 + $0x1a8] sm:$0xff]
    %v4321 = vld [vmem:[%s4266 + $0x1b0] sm:$0xff]
    %v4322 = vld [vmem:[%s4266 + $0x1b8] sm:$0xff]
    %v4323 = vld [vmem:[%s4266 + $0x1c0] sm:$0xff]
    %v4324 = vld [vmem:[%s4266 + $0x1c8] sm:$0xff]
    %v4325 = vld [vmem:[%s4266 + $0x1d0] sm:$0xff]
    %v4326 = vld [vmem:[%s4266 + $0x1d8] sm:$0xff]
    %v4327 = vld [vmem:[%s4266 + $0x1e0] sm:$0xff]
    %v4328 = vld [vmem:[%s4266 + $0x1e8] sm:$0xff]
    %v4329 = vld [vmem:[%s4266 + $0x1f0] sm:$0xff]
    %v4330 = vld [vmem:[%s4266 + $0x1f8] sm:$0xff]
    %4331 = vmatpush.msra.mxu0 %v4297
    %4332 = vmatpush.msra.mxu0 %v4295
    %4333 = vmatpush.msra.mxu0 %v4293
    %4334 = vmatpush.msra.mxu0 %v4291
    %4335 = vmatpush.msra.mxu0 %v4289
    %4336 = vmatpush.msra.mxu0 %v4287
    %4337 = vmatpush.msra.mxu0 %v4285
    %4338 = vmatpush.msra.mxu0 %v4283
    %4339 = vmatpush.msra.mxu0 %v4281
    %4340 = vmatpush.msra.mxu0 %v4279
    %4341 = vmatpush.msra.mxu0 %v4277
    %4342 = vmatpush.msra.mxu0 %v4275
    %4343 = vmatpush.msra.mxu0 %v4273
    %4344 = vmatpush.msra.mxu0 %v4271
    %4345 = vmatpush.msra.mxu0 %v4269
    %4346 = vmatpush.msra.mxu0 %v4267
    %4347 = vmatmul.f32.gmra.mxu0 %v4250
    %v4348 = vpop.f32.mrf.mxu0
    %v4349 = vadd.f32 0.0, %v4348
    %4350 = vmatmul.f32.gmra.mxu0 %v4252
    %v4351 = vpop.f32.mrf.mxu0
    %v4352 = vadd.f32 0.0, %v4351
    %4353 = vmatmul.f32.gmra.mxu0 %v4254
    %v4354 = vpop.f32.mrf.mxu0
    %v4355 = vadd.f32 0.0, %v4354
    %4356 = vmatmul.f32.gmra.mxu0 %v4256
    %v4357 = vpop.f32.mrf.mxu0
    %v4358 = vadd.f32 0.0, %v4357
    %4359 = vmatmul.f32.gmra.mxu0 %v4258
    %v4360 = vpop.f32.mrf.mxu0
    %v4361 = vadd.f32 0.0, %v4360
    %4362 = vmatmul.f32.gmra.mxu0 %v4260
    %v4363 = vpop.f32.mrf.mxu0
    %v4364 = vadd.f32 0.0, %v4363
    %4365 = vmatmul.f32.gmra.mxu0 %v4262
    %v4366 = vpop.f32.mrf.mxu0
    %v4367 = vadd.f32 0.0, %v4366
    %4368 = vmatmul.f32.gmra.mxu0 %v4264
    %v4369 = vpop.f32.mrf.mxu0
    %v4370 = vadd.f32 0.0, %v4369
    %4371 = vdwg.mxu0
    %4372 = vmatpush.msra.mxu0 %v4329
    %4373 = vmatpush.msra.mxu0 %v4327
    %4374 = vmatpush.msra.mxu0 %v4325
    %4375 = vmatpush.msra.mxu0 %v4323
    %4376 = vmatpush.msra.mxu0 %v4321
    %4377 = vmatpush.msra.mxu0 %v4319
    %4378 = vmatpush.msra.mxu0 %v4317
    %4379 = vmatpush.msra.mxu0 %v4315
    %4380 = vmatpush.msra.mxu0 %v4313
    %4381 = vmatpush.msra.mxu0 %v4311
    %4382 = vmatpush.msra.mxu0 %v4309
    %4383 = vmatpush.msra.mxu0 %v4307
    %4384 = vmatpush.msra.mxu0 %v4305
    %4385 = vmatpush.msra.mxu0 %v4303
    %4386 = vmatpush.msra.mxu0 %v4301
    %4387 = vmatpush.msra.mxu0 %v4299
    %4388 = vmatmul.f32.gmra.mxu0 %v4251
    %v4389 = vpop.f32.mrf.mxu0
    %v4390 = vadd.f32 %v4349, %v4389
    %4391 = vmatmul.f32.gmra.mxu0 %v4253
    %v4392 = vpop.f32.mrf.mxu0
    %v4393 = vadd.f32 %v4352, %v4392
    %4394 = vmatmul.f32.gmra.mxu0 %v4255
    %v4395 = vpop.f32.mrf.mxu0
    %v4396 = vadd.f32 %v4355, %v4395
    %4397 = vmatmul.f32.gmra.mxu0 %v4257
    %v4398 = vpop.f32.mrf.mxu0
    %v4399 = vadd.f32 %v4358, %v4398
    %4400 = vmatmul.f32.gmra.mxu0 %v4259
    %v4401 = vpop.f32.mrf.mxu0
    %v4402 = vadd.f32 %v4361, %v4401
    %4403 = vmatmul.f32.gmra.mxu0 %v4261
    %v4404 = vpop.f32.mrf.mxu0
    %v4405 = vadd.f32 %v4364, %v4404
    %4406 = vmatmul.f32.gmra.mxu0 %v4263
    %v4407 = vpop.f32.mrf.mxu0
    %v4408 = vadd.f32 %v4367, %v4407
    %4409 = vmatmul.f32.gmra.mxu0 %v4265
    %v4410 = vpop.f32.mrf.mxu0
    %v4411 = vadd.f32 %v4370, %v4410
    %4412 = vdwg.mxu0
    %4413 = vmatpush.msra.mxu0 %v4298
    %4414 = vmatpush.msra.mxu0 %v4296
    %4415 = vmatpush.msra.mxu0 %v4294
    %4416 = vmatpush.msra.mxu0 %v4292
    %4417 = vmatpush.msra.mxu0 %v4290
    %4418 = vmatpush.msra.mxu0 %v4288
    %4419 = vmatpush.msra.mxu0 %v4286
    %4420 = vmatpush.msra.mxu0 %v4284
    %4421 = vmatpush.msra.mxu0 %v4282
    %4422 = vmatpush.msra.mxu0 %v4280
    %4423 = vmatpush.msra.mxu0 %v4278
    %4424 = vmatpush.msra.mxu0 %v4276
    %4425 = vmatpush.msra.mxu0 %v4274
    %4426 = vmatpush.msra.mxu0 %v4272
    %4427 = vmatpush.msra.mxu0 %v4270
    %4428 = vmatpush.msra.mxu0 %v4268
    %4429 = vmatmul.f32.gmra.mxu0 %v4250
    %v4430 = vpop.f32.mrf.mxu0
    %v4431 = vadd.f32 0.0, %v4430
    %4432 = vmatmul.f32.gmra.mxu0 %v4252
    %v4433 = vpop.f32.mrf.mxu0
    %v4434 = vadd.f32 0.0, %v4433
    %4435 = vmatmul.f32.gmra.mxu0 %v4254
    %v4436 = vpop.f32.mrf.mxu0
    %v4437 = vadd.f32 0.0, %v4436
    %4438 = vmatmul.f32.gmra.mxu0 %v4256
    %v4439 = vpop.f32.mrf.mxu0
    %v4440 = vadd.f32 0.0, %v4439
    %4441 = vmatmul.f32.gmra.mxu0 %v4258
    %v4442 = vpop.f32.mrf.mxu0
    %v4443 = vadd.f32 0.0, %v4442
    %4444 = vmatmul.f32.gmra.mxu0 %v4260
    %v4445 = vpop.f32.mrf.mxu0
    %v4446 = vadd.f32 0.0, %v4445
    %4447 = vmatmul.f32.gmra.mxu0 %v4262
    %v4448 = vpop.f32.mrf.mxu0
    %v4449 = vadd.f32 0.0, %v4448
    %4450 = vmatmul.f32.gmra.mxu0 %v4264
    %v4451 = vpop.f32.mrf.mxu0
    %v4452 = vadd.f32 0.0, %v4451
    %4453 = vdwg.mxu0
    %4454 = vmatpush.msra.mxu0 %v4330
    %4455 = vmatpush.msra.mxu0 %v4328
    %4456 = vmatpush.msra.mxu0 %v4326
    %4457 = vmatpush.msra.mxu0 %v4324
    %4458 = vmatpush.msra.mxu0 %v4322
    %4459 = vmatpush.msra.mxu0 %v4320
    %4460 = vmatpush.msra.mxu0 %v4318
    %4461 = vmatpush.msra.mxu0 %v4316
    %4462 = vmatpush.msra.mxu0 %v4314
    %4463 = vmatpush.msra.mxu0 %v4312
    %4464 = vmatpush.msra.mxu0 %v4310
    %4465 = vmatpush.msra.mxu0 %v4308
    %4466 = vmatpush.msra.mxu0 %v4306
    %4467 = vmatpush.msra.mxu0 %v4304
    %4468 = vmatpush.msra.mxu0 %v4302
    %4469 = vmatpush.msra.mxu0 %v4300
    %4470 = vmatmul.f32.gmra.mxu0 %v4251
    %v4471 = vpop.f32.mrf.mxu0
    %v4472 = vadd.f32 %v4431, %v4471
    %4473 = vmatmul.f32.gmra.mxu0 %v4253
    %v4474 = vpop.f32.mrf.mxu0
    %v4475 = vadd.f32 %v4434, %v4474
    %4476 = vmatmul.f32.gmra.mxu0 %v4255
    %v4477 = vpop.f32.mrf.mxu0
    %v4478 = vadd.f32 %v4437, %v4477
    %4479 = vmatmul.f32.gmra.mxu0 %v4257
    %v4480 = vpop.f32.mrf.mxu0
    %v4481 = vadd.f32 %v4440, %v4480
    %4482 = vmatmul.f32.gmra.mxu0 %v4259
    %v4483 = vpop.f32.mrf.mxu0
    %v4484 = vadd.f32 %v4443, %v4483
    %4485 = vmatmul.f32.gmra.mxu0 %v4261
    %v4486 = vpop.f32.mrf.mxu0
    %v4487 = vadd.f32 %v4446, %v4486
    %4488 = vmatmul.f32.gmra.mxu0 %v4263
    %v4489 = vpop.f32.mrf.mxu0
    %v4490 = vadd.f32 %v4449, %v4489
    %4491 = vmatmul.f32.gmra.mxu0 %v4265
    %v4492 = vpop.f32.mrf.mxu0
    %v4493 = vadd.f32 %v4452, %v4492
    %4494 = vdwg.mxu0
    %v4495 = vadd.f32 %v4234, %v4390
    %v4496 = vadd.f32 %v4235, %v4472
    %v4497 = vadd.f32 %v4236, %v4393
    %v4498 = vadd.f32 %v4237, %v4475
    %v4499 = vadd.f32 %v4238, %v4396
    %v4500 = vadd.f32 %v4239, %v4478
    %v4501 = vadd.f32 %v4240, %v4399
    %v4502 = vadd.f32 %v4241, %v4481
    %v4503 = vadd.f32 %v4242, %v4402
    %v4504 = vadd.f32 %v4243, %v4484
    %v4505 = vadd.f32 %v4244, %v4405
    %v4506 = vadd.f32 %v4245, %v4487
    %v4507 = vadd.f32 %v4246, %v4408
    %v4508 = vadd.f32 %v4247, %v4490
    %v4509 = vadd.f32 %v4248, %v4411
    %v4510 = vadd.f32 %v4249, %v4493
    %4511 = vst [vmem:[#allocation6] sm:$0xff] %v4495
    %4512 = vst [vmem:[#allocation6 + $0x8] sm:$0xff] %v4496
    %4513 = vst [vmem:[#allocation6 + $0x10] sm:$0xff] %v4497
    %4514 = vst [vmem:[#allocation6 + $0x18] sm:$0xff] %v4498
    %4515 = vst [vmem:[#allocation6 + $0x20] sm:$0xff] %v4499
    %4516 = vst [vmem:[#allocation6 + $0x28] sm:$0xff] %v4500
    %4517 = vst [vmem:[#allocation6 + $0x30] sm:$0xff] %v4501
    %4518 = vst [vmem:[#allocation6 + $0x38] sm:$0xff] %v4502
    %4519 = vst [vmem:[#allocation6 + $0x40] sm:$0xff] %v4503
    %4520 = vst [vmem:[#allocation6 + $0x48] sm:$0xff] %v4504
    %4521 = vst [vmem:[#allocation6 + $0x50] sm:$0xff] %v4505
    %4522 = vst [vmem:[#allocation6 + $0x58] sm:$0xff] %v4506
    %4523 = vst [vmem:[#allocation6 + $0x60] sm:$0xff] %v4507
    %4524 = vst [vmem:[#allocation6 + $0x68] sm:$0xff] %v4508
    %4525 = vst [vmem:[#allocation6 + $0x70] sm:$0xff] %v4509
    %4526 = vst [vmem:[#allocation6 + $0x78] sm:$0xff] %v4510
    %v4527 = vld [vmem:[#allocation6] sm:$0xff]
    %v4528 = vld [vmem:[#allocation6 + $0x8] sm:$0xff]
    %v4529 = vld [vmem:[#allocation6 + $0x10] sm:$0xff]
    %v4530 = vld [vmem:[#allocation6 + $0x18] sm:$0xff]
    %v4531 = vld [vmem:[#allocation6 + $0x20] sm:$0xff]
    %v4532 = vld [vmem:[#allocation6 + $0x28] sm:$0xff]
    %v4533 = vld [vmem:[#allocation6 + $0x30] sm:$0xff]
    %v4534 = vld [vmem:[#allocation6 + $0x38] sm:$0xff]
    %v4535 = vld [vmem:[#allocation6 + $0x40] sm:$0xff]
    %v4536 = vld [vmem:[#allocation6 + $0x48] sm:$0xff]
    %v4537 = vld [vmem:[#allocation6 + $0x50] sm:$0xff]
    %v4538 = vld [vmem:[#allocation6 + $0x58] sm:$0xff]
    %v4539 = vld [vmem:[#allocation6 + $0x60] sm:$0xff]
    %v4540 = vld [vmem:[#allocation6 + $0x68] sm:$0xff]
    %v4541 = vld [vmem:[#allocation6 + $0x70] sm:$0xff]
    %v4542 = vld [vmem:[#allocation6 + $0x78] sm:$0xff]
    %v4543 = vmax.f32 %v4527, 0.0
    %v4544 = vmax.f32 %v4528, 0.0
    %v4545 = vmax.f32 %v4529, 0.0
    %v4546 = vmax.f32 %v4530, 0.0
    %v4547 = vmax.f32 %v4531, 0.0
    %v4548 = vmax.f32 %v4532, 0.0
    %v4549 = vmax.f32 %v4533, 0.0
    %v4550 = vmax.f32 %v4534, 0.0
    %v4551 = vmax.f32 %v4535, 0.0
    %v4552 = vmax.f32 %v4536, 0.0
    %v4553 = vmax.f32 %v4537, 0.0
    %v4554 = vmax.f32 %v4538, 0.0
    %v4555 = vmax.f32 %v4539, 0.0
    %v4556 = vmax.f32 %v4540, 0.0
    %v4557 = vmax.f32 %v4541, 0.0
    %v4558 = vmax.f32 %v4542, 0.0
    %4559 = vst [vmem:[#allocation4 + $0x20] sm:$0xff] %v4543
    %4560 = vst [vmem:[#allocation4 + $0x28] sm:$0xff] %v4544
    %4561 = vst [vmem:[#allocation4 + $0x30] sm:$0xff] %v4545
    %4562 = vst [vmem:[#allocation4 + $0x38] sm:$0xff] %v4546
    %4563 = vst [vmem:[#allocation4 + $0x40] sm:$0xff] %v4547
    %4564 = vst [vmem:[#allocation4 + $0x48] sm:$0xff] %v4548
    %4565 = vst [vmem:[#allocation4 + $0x50] sm:$0xff] %v4549
    %4566 = vst [vmem:[#allocation4 + $0x58] sm:$0xff] %v4550
    %4567 = vst [vmem:[#allocation4 + $0x60] sm:$0xff] %v4551
    %4568 = vst [vmem:[#allocation4 + $0x68] sm:$0xff] %v4552
    %4569 = vst [vmem:[#allocation4 + $0x70] sm:$0xff] %v4553
    %4570 = vst [vmem:[#allocation4 + $0x78] sm:$0xff] %v4554
    %4571 = vst [vmem:[#allocation4 + $0x80] sm:$0xff] %v4555
    %4572 = vst [vmem:[#allocation4 + $0x88] sm:$0xff] %v4556
    %4573 = vst [vmem:[#allocation4 + $0x90] sm:$0xff] %v4557
    %4574 = vst [vmem:[#allocation4 + $0x98] sm:$0xff] %v4558
    %v4575 = vld [vmem:[#allocation4] sm:$0xff]
    %v4576 = vld [vmem:[#allocation4 + $0x8] sm:$0xff]
    %v4577 = vld [vmem:[#allocation4 + $0x10] sm:$0xff]
    %v4578 = vld [vmem:[#allocation4 + $0x18] sm:$0xff]
    %v4579 = vld [vmem:[#allocation4 + $0x20] sm:$0xff]
    %v4580 = vld [vmem:[#allocation4 + $0x28] sm:$0xff]
    %v4581 = vld [vmem:[#allocation4 + $0x30] sm:$0xff]
    %v4582 = vld [vmem:[#allocation4 + $0x38] sm:$0xff]
    %v4583 = vld [vmem:[#allocation4 + $0x40] sm:$0xff]
    %v4584 = vld [vmem:[#allocation4 + $0x48] sm:$0xff]
    %v4585 = vld [vmem:[#allocation4 + $0x50] sm:$0xff]
    %v4586 = vld [vmem:[#allocation4 + $0x58] sm:$0xff]
    %v4587 = vld [vmem:[#allocation4 + $0x60] sm:$0xff]
    %v4588 = vld [vmem:[#allocation4 + $0x68] sm:$0xff]
    %v4589 = vld [vmem:[#allocation4 + $0x70] sm:$0xff]
    %v4590 = vld [vmem:[#allocation4 + $0x78] sm:$0xff]
    %v4591 = vld [vmem:[#allocation9] sm:$0xff]
    %v4592 = vld [vmem:[#allocation9 + $0x8] sm:$0xff]
    %v4593 = vld [vmem:[#allocation9 + $0x10] sm:$0xff]
    %v4594 = vld [vmem:[#allocation9 + $0x18] sm:$0xff]
    %v4595 = vld [vmem:[#allocation9 + $0x20] sm:$0xff]
    %v4596 = vld [vmem:[#allocation9 + $0x28] sm:$0xff]
    %v4597 = vld [vmem:[#allocation9 + $0x30] sm:$0xff]
    %v4598 = vld [vmem:[#allocation9 + $0x38] sm:$0xff]
    %v4599 = vld [vmem:[#allocation9 + $0x40] sm:$0xff]
    %v4600 = vld [vmem:[#allocation9 + $0x48] sm:$0xff]
    %v4601 = vld [vmem:[#allocation9 + $0x50] sm:$0xff]
    %v4602 = vld [vmem:[#allocation9 + $0x58] sm:$0xff]
    %v4603 = vld [vmem:[#allocation9 + $0x60] sm:$0xff]
    %v4604 = vld [vmem:[#allocation9 + $0x68] sm:$0xff]
    %v4605 = vld [vmem:[#allocation9 + $0x70] sm:$0xff]
    %v4606 = vld [vmem:[#allocation9 + $0x78] sm:$0xff]
    %v4607 = vld [vmem:[#allocation9 + $0x80] sm:$0xff]
    %v4608 = vld [vmem:[#allocation9 + $0x88] sm:$0xff]
    %v4609 = vld [vmem:[#allocation9 + $0x90] sm:$0xff]
    %v4610 = vld [vmem:[#allocation9 + $0x98] sm:$0xff]
    %v4611 = vld [vmem:[#allocation9 + $0xa0] sm:$0xff]
    %v4612 = vld [vmem:[#allocation9 + $0xa8] sm:$0xff]
    %v4613 = vld [vmem:[#allocation9 + $0xb0] sm:$0xff]
    %v4614 = vld [vmem:[#allocation9 + $0xb8] sm:$0xff]
    %v4615 = vld [vmem:[#allocation9 + $0xc0] sm:$0xff]
    %v4616 = vld [vmem:[#allocation9 + $0xc8] sm:$0xff]
    %v4617 = vld [vmem:[#allocation9 + $0xd0] sm:$0xff]
    %v4618 = vld [vmem:[#allocation9 + $0xd8] sm:$0xff]
    %v4619 = vld [vmem:[#allocation9 + $0xe0] sm:$0xff]
    %v4620 = vld [vmem:[#allocation9 + $0xe8] sm:$0xff]
    %v4621 = vld [vmem:[#allocation9 + $0xf0] sm:$0xff]
    %v4622 = vld [vmem:[#allocation9 + $0xf8] sm:$0xff]
    %v4623 = vld [vmem:[#allocation9 + $0x100] sm:$0xff]
    %v4624 = vld [vmem:[#allocation9 + $0x108] sm:$0xff]
    %v4625 = vld [vmem:[#allocation9 + $0x110] sm:$0xff]
    %v4626 = vld [vmem:[#allocation9 + $0x118] sm:$0xff]
    %v4627 = vld [vmem:[#allocation9 + $0x120] sm:$0xff]
    %v4628 = vld [vmem:[#allocation9 + $0x128] sm:$0xff]
    %v4629 = vld [vmem:[#allocation9 + $0x130] sm:$0xff]
    %v4630 = vld [vmem:[#allocation9 + $0x138] sm:$0xff]
    %v4631 = vld [vmem:[#allocation9 + $0x140] sm:$0xff]
    %v4632 = vld [vmem:[#allocation9 + $0x148] sm:$0xff]
    %v4633 = vld [vmem:[#allocation9 + $0x150] sm:$0xff]
    %v4634 = vld [vmem:[#allocation9 + $0x158] sm:$0xff]
    %v4635 = vld [vmem:[#allocation9 + $0x160] sm:$0xff]
    %v4636 = vld [vmem:[#allocation9 + $0x168] sm:$0xff]
    %v4637 = vld [vmem:[#allocation9 + $0x170] sm:$0xff]
    %v4638 = vld [vmem:[#allocation9 + $0x178] sm:$0xff]
    %v4639 = vld [vmem:[#allocation9 + $0x180] sm:$0xff]
    %v4640 = vld [vmem:[#allocation9 + $0x188] sm:$0xff]
    %v4641 = vld [vmem:[#allocation9 + $0x190] sm:$0xff]
    %v4642 = vld [vmem:[#allocation9 + $0x198] sm:$0xff]
    %v4643 = vld [vmem:[#allocation9 + $0x1a0] sm:$0xff]
    %v4644 = vld [vmem:[#allocation9 + $0x1a8] sm:$0xff]
    %v4645 = vld [vmem:[#allocation9 + $0x1b0] sm:$0xff]
    %v4646 = vld [vmem:[#allocation9 + $0x1b8] sm:$0xff]
    %v4647 = vld [vmem:[#allocation9 + $0x1c0] sm:$0xff]
    %v4648 = vld [vmem:[#allocation9 + $0x1c8] sm:$0xff]
    %v4649 = vld [vmem:[#allocation9 + $0x1d0] sm:$0xff]
    %v4650 = vld [vmem:[#allocation9 + $0x1d8] sm:$0xff]
    %v4651 = vld [vmem:[#allocation9 + $0x1e0] sm:$0xff]
    %v4652 = vld [vmem:[#allocation9 + $0x1e8] sm:$0xff]
    %v4653 = vld [vmem:[#allocation9 + $0x1f0] sm:$0xff]
    %v4654 = vld [vmem:[#allocation9 + $0x1f8] sm:$0xff]
    %4655 = vmatpush.msra.mxu0 %v4621
    %4656 = vmatpush.msra.mxu0 %v4619
    %4657 = vmatpush.msra.mxu0 %v4617
    %4658 = vmatpush.msra.mxu0 %v4615
    %4659 = vmatpush.msra.mxu0 %v4613
    %4660 = vmatpush.msra.mxu0 %v4611
    %4661 = vmatpush.msra.mxu0 %v4609
    %4662 = vmatpush.msra.mxu0 %v4607
    %4663 = vmatpush.msra.mxu0 %v4605
    %4664 = vmatpush.msra.mxu0 %v4603
    %4665 = vmatpush.msra.mxu0 %v4601
    %4666 = vmatpush.msra.mxu0 %v4599
    %4667 = vmatpush.msra.mxu0 %v4597
    %4668 = vmatpush.msra.mxu0 %v4595
    %4669 = vmatpush.msra.mxu0 %v4593
    %4670 = vmatpush.msra.mxu0 %v4591
    %4671 = vmatmul.f32.gmra.mxu0 %v4575
    %v4672 = vpop.f32.mrf.mxu0
    %v4673 = vadd.f32 0.0, %v4672
    %4674 = vmatmul.f32.gmra.mxu0 %v4577
    %v4675 = vpop.f32.mrf.mxu0
    %v4676 = vadd.f32 0.0, %v4675
    %4677 = vmatmul.f32.gmra.mxu0 %v4579
    %v4678 = vpop.f32.mrf.mxu0
    %v4679 = vadd.f32 0.0, %v4678
    %4680 = vmatmul.f32.gmra.mxu0 %v4581
    %v4681 = vpop.f32.mrf.mxu0
    %v4682 = vadd.f32 0.0, %v4681
    %4683 = vmatmul.f32.gmra.mxu0 %v4583
    %v4684 = vpop.f32.mrf.mxu0
    %v4685 = vadd.f32 0.0, %v4684
    %4686 = vmatmul.f32.gmra.mxu0 %v4585
    %v4687 = vpop.f32.mrf.mxu0
    %v4688 = vadd.f32 0.0, %v4687
    %4689 = vmatmul.f32.gmra.mxu0 %v4587
    %v4690 = vpop.f32.mrf.mxu0
    %v4691 = vadd.f32 0.0, %v4690
    %4692 = vmatmul.f32.gmra.mxu0 %v4589
    %v4693 = vpop.f32.mrf.mxu0
    %v4694 = vadd.f32 0.0, %v4693
    %4695 = vdwg.mxu0
    %4696 = vmatpush.msra.mxu0 %v4653
    %4697 = vmatpush.msra.mxu0 %v4651
    %4698 = vmatpush.msra.mxu0 %v4649
    %4699 = vmatpush.msra.mxu0 %v4647
    %4700 = vmatpush.msra.mxu0 %v4645
    %4701 = vmatpush.msra.mxu0 %v4643
    %4702 = vmatpush.msra.mxu0 %v4641
    %4703 = vmatpush.msra.mxu0 %v4639
    %4704 = vmatpush.msra.mxu0 %v4637
    %4705 = vmatpush.msra.mxu0 %v4635
    %4706 = vmatpush.msra.mxu0 %v4633
    %4707 = vmatpush.msra.mxu0 %v4631
    %4708 = vmatpush.msra.mxu0 %v4629
    %4709 = vmatpush.msra.mxu0 %v4627
    %4710 = vmatpush.msra.mxu0 %v4625
    %4711 = vmatpush.msra.mxu0 %v4623
    %4712 = vmatmul.f32.gmra.mxu0 %v4576
    %v4713 = vpop.f32.mrf.mxu0
    %v4714 = vadd.f32 %v4673, %v4713
    %4715 = vmatmul.f32.gmra.mxu0 %v4578
    %v4716 = vpop.f32.mrf.mxu0
    %v4717 = vadd.f32 %v4676, %v4716
    %4718 = vmatmul.f32.gmra.mxu0 %v4580
    %v4719 = vpop.f32.mrf.mxu0
    %v4720 = vadd.f32 %v4679, %v4719
    %4721 = vmatmul.f32.gmra.mxu0 %v4582
    %v4722 = vpop.f32.mrf.mxu0
    %v4723 = vadd.f32 %v4682, %v4722
    %4724 = vmatmul.f32.gmra.mxu0 %v4584
    %v4725 = vpop.f32.mrf.mxu0
    %v4726 = vadd.f32 %v4685, %v4725
    %4727 = vmatmul.f32.gmra.mxu0 %v4586
    %v4728 = vpop.f32.mrf.mxu0
    %v4729 = vadd.f32 %v4688, %v4728
    %4730 = vmatmul.f32.gmra.mxu0 %v4588
    %v4731 = vpop.f32.mrf.mxu0
    %v4732 = vadd.f32 %v4691, %v4731
    %4733 = vmatmul.f32.gmra.mxu0 %v4590
    %v4734 = vpop.f32.mrf.mxu0
    %v4735 = vadd.f32 %v4694, %v4734
    %4736 = vdwg.mxu0
    %4737 = vmatpush.msra.mxu0 %v4622
    %4738 = vmatpush.msra.mxu0 %v4620
    %4739 = vmatpush.msra.mxu0 %v4618
    %4740 = vmatpush.msra.mxu0 %v4616
    %4741 = vmatpush.msra.mxu0 %v4614
    %4742 = vmatpush.msra.mxu0 %v4612
    %4743 = vmatpush.msra.mxu0 %v4610
    %4744 = vmatpush.msra.mxu0 %v4608
    %4745 = vmatpush.msra.mxu0 %v4606
    %4746 = vmatpush.msra.mxu0 %v4604
    %4747 = vmatpush.msra.mxu0 %v4602
    %4748 = vmatpush.msra.mxu0 %v4600
    %4749 = vmatpush.msra.mxu0 %v4598
    %4750 = vmatpush.msra.mxu0 %v4596
    %4751 = vmatpush.msra.mxu0 %v4594
    %4752 = vmatpush.msra.mxu0 %v4592
    %4753 = vmatmul.f32.gmra.mxu0 %v4575
    %v4754 = vpop.f32.mrf.mxu0
    %v4755 = vadd.f32 0.0, %v4754
    %4756 = vmatmul.f32.gmra.mxu0 %v4577
    %v4757 = vpop.f32.mrf.mxu0
    %v4758 = vadd.f32 0.0, %v4757
    %4759 = vmatmul.f32.gmra.mxu0 %v4579
    %v4760 = vpop.f32.mrf.mxu0
    %v4761 = vadd.f32 0.0, %v4760
    %4762 = vmatmul.f32.gmra.mxu0 %v4581
    %v4763 = vpop.f32.mrf.mxu0
    %v4764 = vadd.f32 0.0, %v4763
    %4765 = vmatmul.f32.gmra.mxu0 %v4583
    %v4766 = vpop.f32.mrf.mxu0
    %v4767 = vadd.f32 0.0, %v4766
    %4768 = vmatmul.f32.gmra.mxu0 %v4585
    %v4769 = vpop.f32.mrf.mxu0
    %v4770 = vadd.f32 0.0, %v4769
    %4771 = vmatmul.f32.gmra.mxu0 %v4587
    %v4772 = vpop.f32.mrf.mxu0
    %v4773 = vadd.f32 0.0, %v4772
    %4774 = vmatmul.f32.gmra.mxu0 %v4589
    %v4775 = vpop.f32.mrf.mxu0
    %v4776 = vadd.f32 0.0, %v4775
    %4777 = vdwg.mxu0
    %4778 = vmatpush.msra.mxu0 %v4654
    %4779 = vmatpush.msra.mxu0 %v4652
    %4780 = vmatpush.msra.mxu0 %v4650
    %4781 = vmatpush.msra.mxu0 %v4648
    %4782 = vmatpush.msra.mxu0 %v4646
    %4783 = vmatpush.msra.mxu0 %v4644
    %4784 = vmatpush.msra.mxu0 %v4642
    %4785 = vmatpush.msra.mxu0 %v4640
    %4786 = vmatpush.msra.mxu0 %v4638
    %4787 = vmatpush.msra.mxu0 %v4636
    %4788 = vmatpush.msra.mxu0 %v4634
    %4789 = vmatpush.msra.mxu0 %v4632
    %4790 = vmatpush.msra.mxu0 %v4630
    %4791 = vmatpush.msra.mxu0 %v4628
    %4792 = vmatpush.msra.mxu0 %v4626
    %4793 = vmatpush.msra.mxu0 %v4624
    %4794 = vmatmul.f32.gmra.mxu0 %v4576
    %v4795 = vpop.f32.mrf.mxu0
    %v4796 = vadd.f32 %v4755, %v4795
    %4797 = vmatmul.f32.gmra.mxu0 %v4578
    %v4798 = vpop.f32.mrf.mxu0
    %v4799 = vadd.f32 %v4758, %v4798
    %4800 = vmatmul.f32.gmra.mxu0 %v4580
    %v4801 = vpop.f32.mrf.mxu0
    %v4802 = vadd.f32 %v4761, %v4801
    %4803 = vmatmul.f32.gmra.mxu0 %v4582
    %v4804 = vpop.f32.mrf.mxu0
    %v4805 = vadd.f32 %v4764, %v4804
    %4806 = vmatmul.f32.gmra.mxu0 %v4584
    %v4807 = vpop.f32.mrf.mxu0
    %v4808 = vadd.f32 %v4767, %v4807
    %4809 = vmatmul.f32.gmra.mxu0 %v4586
    %v4810 = vpop.f32.mrf.mxu0
    %v4811 = vadd.f32 %v4770, %v4810
    %4812 = vmatmul.f32.gmra.mxu0 %v4588
    %v4813 = vpop.f32.mrf.mxu0
    %v4814 = vadd.f32 %v4773, %v4813
    %4815 = vmatmul.f32.gmra.mxu0 %v4590
    %v4816 = vpop.f32.mrf.mxu0
    %v4817 = vadd.f32 %v4776, %v4816
    %4818 = vdwg.mxu0
    %4819 = vst [vmem:[#allocation6] sm:$0xff] %v4714
    %4820 = vst [vmem:[#allocation6 + $0x8] sm:$0xff] %v4796
    %4821 = vst [vmem:[#allocation6 + $0x10] sm:$0xff] %v4717
    %4822 = vst [vmem:[#allocation6 + $0x18] sm:$0xff] %v4799
    %4823 = vst [vmem:[#allocation6 + $0x20] sm:$0xff] %v4720
    %4824 = vst [vmem:[#allocation6 + $0x28] sm:$0xff] %v4802
    %4825 = vst [vmem:[#allocation6 + $0x30] sm:$0xff] %v4723
    %4826 = vst [vmem:[#allocation6 + $0x38] sm:$0xff] %v4805
    %4827 = vst [vmem:[#allocation6 + $0x40] sm:$0xff] %v4726
    %4828 = vst [vmem:[#allocation6 + $0x48] sm:$0xff] %v4808
    %4829 = vst [vmem:[#allocation6 + $0x50] sm:$0xff] %v4729
    %4830 = vst [vmem:[#allocation6 + $0x58] sm:$0xff] %v4811
    %4831 = vst [vmem:[#allocation6 + $0x60] sm:$0xff] %v4732
    %4832 = vst [vmem:[#allocation6 + $0x68] sm:$0xff] %v4814
    %4833 = vst [vmem:[#allocation6 + $0x70] sm:$0xff] %v4735
    %4834 = vst [vmem:[#allocation6 + $0x78] sm:$0xff] %v4817
    %v4835 = vld [vmem:[#allocation6] sm:$0xff]
    %v4836 = vld [vmem:[#allocation6 + $0x8] sm:$0xff]
    %v4837 = vld [vmem:[#allocation6 + $0x10] sm:$0xff]
    %v4838 = vld [vmem:[#allocation6 + $0x18] sm:$0xff]
    %v4839 = vld [vmem:[#allocation6 + $0x20] sm:$0xff]
    %v4840 = vld [vmem:[#allocation6 + $0x28] sm:$0xff]
    %v4841 = vld [vmem:[#allocation6 + $0x30] sm:$0xff]
    %v4842 = vld [vmem:[#allocation6 + $0x38] sm:$0xff]
    %v4843 = vld [vmem:[#allocation6 + $0x40] sm:$0xff]
    %v4844 = vld [vmem:[#allocation6 + $0x48] sm:$0xff]
    %v4845 = vld [vmem:[#allocation6 + $0x50] sm:$0xff]
    %v4846 = vld [vmem:[#allocation6 + $0x58] sm:$0xff]
    %v4847 = vld [vmem:[#allocation6 + $0x60] sm:$0xff]
    %v4848 = vld [vmem:[#allocation6 + $0x68] sm:$0xff]
    %v4849 = vld [vmem:[#allocation6 + $0x70] sm:$0xff]
    %v4850 = vld [vmem:[#allocation6 + $0x78] sm:$0xff]
    %v4851 = vld [vmem:[#allocation4 + $0x10] sm:$0xff]
    %v4852 = vld [vmem:[#allocation4 + $0x18] sm:$0xff]
    %v4853 = vld [vmem:[#allocation4 + $0x20] sm:$0xff]
    %v4854 = vld [vmem:[#allocation4 + $0x28] sm:$0xff]
    %v4855 = vld [vmem:[#allocation4 + $0x30] sm:$0xff]
    %v4856 = vld [vmem:[#allocation4 + $0x38] sm:$0xff]
    %v4857 = vld [vmem:[#allocation4 + $0x40] sm:$0xff]
    %v4858 = vld [vmem:[#allocation4 + $0x48] sm:$0xff]
    %v4859 = vld [vmem:[#allocation4 + $0x50] sm:$0xff]
    %v4860 = vld [vmem:[#allocation4 + $0x58] sm:$0xff]
    %v4861 = vld [vmem:[#allocation4 + $0x60] sm:$0xff]
    %v4862 = vld [vmem:[#allocation4 + $0x68] sm:$0xff]
    %v4863 = vld [vmem:[#allocation4 + $0x70] sm:$0xff]
    %v4864 = vld [vmem:[#allocation4 + $0x78] sm:$0xff]
    %v4865 = vld [vmem:[#allocation4 + $0x80] sm:$0xff]
    %v4866 = vld [vmem:[#allocation4 + $0x88] sm:$0xff]
    %s4867 = scalar_lea.vmem [#allocation9], 512
    %v4868 = vld [vmem:[%s4867] sm:$0xff]
    %v4869 = vld [vmem:[%s4867 + $0x8] sm:$0xff]
    %v4870 = vld [vmem:[%s4867 + $0x10] sm:$0xff]
    %v4871 = vld [vmem:[%s4867 + $0x18] sm:$0xff]
    %v4872 = vld [vmem:[%s4867 + $0x20] sm:$0xff]
    %v4873 = vld [vmem:[%s4867 + $0x28] sm:$0xff]
    %v4874 = vld [vmem:[%s4867 + $0x30] sm:$0xff]
    %v4875 = vld [vmem:[%s4867 + $0x38] sm:$0xff]
    %v4876 = vld [vmem:[%s4867 + $0x40] sm:$0xff]
    %v4877 = vld [vmem:[%s4867 + $0x48] sm:$0xff]
    %v4878 = vld [vmem:[%s4867 + $0x50] sm:$0xff]
    %v4879 = vld [vmem:[%s4867 + $0x58] sm:$0xff]
    %v4880 = vld [vmem:[%s4867 + $0x60] sm:$0xff]
    %v4881 = vld [vmem:[%s4867 + $0x68] sm:$0xff]
    %v4882 = vld [vmem:[%s4867 + $0x70] sm:$0xff]
    %v4883 = vld [vmem:[%s4867 + $0x78] sm:$0xff]
    %v4884 = vld [vmem:[%s4867 + $0x80] sm:$0xff]
    %v4885 = vld [vmem:[%s4867 + $0x88] sm:$0xff]
    %v4886 = vld [vmem:[%s4867 + $0x90] sm:$0xff]
    %v4887 = vld [vmem:[%s4867 + $0x98] sm:$0xff]
    %v4888 = vld [vmem:[%s4867 + $0xa0] sm:$0xff]
    %v4889 = vld [vmem:[%s4867 + $0xa8] sm:$0xff]
    %v4890 = vld [vmem:[%s4867 + $0xb0] sm:$0xff]
    %v4891 = vld [vmem:[%s4867 + $0xb8] sm:$0xff]
    %v4892 = vld [vmem:[%s4867 + $0xc0] sm:$0xff]
    %v4893 = vld [vmem:[%s4867 + $0xc8] sm:$0xff]
    %v4894 = vld [vmem:[%s4867 + $0xd0] sm:$0xff]
    %v4895 = vld [vmem:[%s4867 + $0xd8] sm:$0xff]
    %v4896 = vld [vmem:[%s4867 + $0xe0] sm:$0xff]
    %v4897 = vld [vmem:[%s4867 + $0xe8] sm:$0xff]
    %v4898 = vld [vmem:[%s4867 + $0xf0] sm:$0xff]
    %v4899 = vld [vmem:[%s4867 + $0xf8] sm:$0xff]
    %v4900 = vld [vmem:[%s4867 + $0x100] sm:$0xff]
    %v4901 = vld [vmem:[%s4867 + $0x108] sm:$0xff]
    %v4902 = vld [vmem:[%s4867 + $0x110] sm:$0xff]
    %v4903 = vld [vmem:[%s4867 + $0x118] sm:$0xff]
    %v4904 = vld [vmem:[%s4867 + $0x120] sm:$0xff]
    %v4905 = vld [vmem:[%s4867 + $0x128] sm:$0xff]
    %v4906 = vld [vmem:[%s4867 + $0x130] sm:$0xff]
    %v4907 = vld [vmem:[%s4867 + $0x138] sm:$0xff]
    %v4908 = vld [vmem:[%s4867 + $0x140] sm:$0xff]
    %v4909 = vld [vmem:[%s4867 + $0x148] sm:$0xff]
    %v4910 = vld [vmem:[%s4867 + $0x150] sm:$0xff]
    %v4911 = vld [vmem:[%s4867 + $0x158] sm:$0xff]
    %v4912 = vld [vmem:[%s4867 + $0x160] sm:$0xff]
    %v4913 = vld [vmem:[%s4867 + $0x168] sm:$0xff]
    %v4914 = vld [vmem:[%s4867 + $0x170] sm:$0xff]
    %v4915 = vld [vmem:[%s4867 + $0x178] sm:$0xff]
    %v4916 = vld [vmem:[%s4867 + $0x180] sm:$0xff]
    %v4917 = vld [vmem:[%s4867 + $0x188] sm:$0xff]
    %v4918 = vld [vmem:[%s4867 + $0x190] sm:$0xff]
    %v4919 = vld [vmem:[%s4867 + $0x198] sm:$0xff]
    %v4920 = vld [vmem:[%s4867 + $0x1a0] sm:$0xff]
    %v4921 = vld [vmem:[%s4867 + $0x1a8] sm:$0xff]
    %v4922 = vld [vmem:[%s4867 + $0x1b0] sm:$0xff]
    %v4923 = vld [vmem:[%s4867 + $0x1b8] sm:$0xff]
    %v4924 = vld [vmem:[%s4867 + $0x1c0] sm:$0xff]
    %v4925 = vld [vmem:[%s4867 + $0x1c8] sm:$0xff]
    %v4926 = vld [vmem:[%s4867 + $0x1d0] sm:$0xff]
    %v4927 = vld [vmem:[%s4867 + $0x1d8] sm:$0xff]
    %v4928 = vld [vmem:[%s4867 + $0x1e0] sm:$0xff]
    %v4929 = vld [vmem:[%s4867 + $0x1e8] sm:$0xff]
    %v4930 = vld [vmem:[%s4867 + $0x1f0] sm:$0xff]
    %v4931 = vld [vmem:[%s4867 + $0x1f8] sm:$0xff]
    %4932 = vmatpush.msra.mxu0 %v4898
    %4933 = vmatpush.msra.mxu0 %v4896
    %4934 = vmatpush.msra.mxu0 %v4894
    %4935 = vmatpush.msra.mxu0 %v4892
    %4936 = vmatpush.msra.mxu0 %v4890
    %4937 = vmatpush.msra.mxu0 %v4888
    %4938 = vmatpush.msra.mxu0 %v4886
    %4939 = vmatpush.msra.mxu0 %v4884
    %4940 = vmatpush.msra.mxu0 %v4882
    %4941 = vmatpush.msra.mxu0 %v4880
    %4942 = vmatpush.msra.mxu0 %v4878
    %4943 = vmatpush.msra.mxu0 %v4876
    %4944 = vmatpush.msra.mxu0 %v4874
    %4945 = vmatpush.msra.mxu0 %v4872
    %4946 = vmatpush.msra.mxu0 %v4870
    %4947 = vmatpush.msra.mxu0 %v4868
    %4948 = vmatmul.f32.gmra.mxu0 %v4851
    %v4949 = vpop.f32.mrf.mxu0
    %v4950 = vadd.f32 0.0, %v4949
    %4951 = vmatmul.f32.gmra.mxu0 %v4853
    %v4952 = vpop.f32.mrf.mxu0
    %v4953 = vadd.f32 0.0, %v4952
    %4954 = vmatmul.f32.gmra.mxu0 %v4855
    %v4955 = vpop.f32.mrf.mxu0
    %v4956 = vadd.f32 0.0, %v4955
    %4957 = vmatmul.f32.gmra.mxu0 %v4857
    %v4958 = vpop.f32.mrf.mxu0
    %v4959 = vadd.f32 0.0, %v4958
    %4960 = vmatmul.f32.gmra.mxu0 %v4859
    %v4961 = vpop.f32.mrf.mxu0
    %v4962 = vadd.f32 0.0, %v4961
    %4963 = vmatmul.f32.gmra.mxu0 %v4861
    %v4964 = vpop.f32.mrf.mxu0
    %v4965 = vadd.f32 0.0, %v4964
    %4966 = vmatmul.f32.gmra.mxu0 %v4863
    %v4967 = vpop.f32.mrf.mxu0
    %v4968 = vadd.f32 0.0, %v4967
    %4969 = vmatmul.f32.gmra.mxu0 %v4865
    %v4970 = vpop.f32.mrf.mxu0
    %v4971 = vadd.f32 0.0, %v4970
    %4972 = vdwg.mxu0
    %4973 = vmatpush.msra.mxu0 %v4930
    %4974 = vmatpush.msra.mxu0 %v4928
    %4975 = vmatpush.msra.mxu0 %v4926
    %4976 = vmatpush.msra.mxu0 %v4924
    %4977 = vmatpush.msra.mxu0 %v4922
    %4978 = vmatpush.msra.mxu0 %v4920
    %4979 = vmatpush.msra.mxu0 %v4918
    %4980 = vmatpush.msra.mxu0 %v4916
    %4981 = vmatpush.msra.mxu0 %v4914
    %4982 = vmatpush.msra.mxu0 %v4912
    %4983 = vmatpush.msra.mxu0 %v4910
    %4984 = vmatpush.msra.mxu0 %v4908
    %4985 = vmatpush.msra.mxu0 %v4906
    %4986 = vmatpush.msra.mxu0 %v4904
    %4987 = vmatpush.msra.mxu0 %v4902
    %4988 = vmatpush.msra.mxu0 %v4900
    %4989 = vmatmul.f32.gmra.mxu0 %v4852
    %v4990 = vpop.f32.mrf.mxu0
    %v4991 = vadd.f32 %v4950, %v4990
    %4992 = vmatmul.f32.gmra.mxu0 %v4854
    %v4993 = vpop.f32.mrf.mxu0
    %v4994 = vadd.f32 %v4953, %v4993
    %4995 = vmatmul.f32.gmra.mxu0 %v4856
    %v4996 = vpop.f32.mrf.mxu0
    %v4997 = vadd.f32 %v4956, %v4996
    %4998 = vmatmul.f32.gmra.mxu0 %v4858
    %v4999 = vpop.f32.mrf.mxu0
    %v5000 = vadd.f32 %v4959, %v4999
    %5001 = vmatmul.f32.gmra.mxu0 %v4860
    %v5002 = vpop.f32.mrf.mxu0
    %v5003 = vadd.f32 %v4962, %v5002
    %5004 = vmatmul.f32.gmra.mxu0 %v4862
    %v5005 = vpop.f32.mrf.mxu0
    %v5006 = vadd.f32 %v4965, %v5005
    %5007 = vmatmul.f32.gmra.mxu0 %v4864
    %v5008 = vpop.f32.mrf.mxu0
    %v5009 = vadd.f32 %v4968, %v5008
    %5010 = vmatmul.f32.gmra.mxu0 %v4866
    %v5011 = vpop.f32.mrf.mxu0
    %v5012 = vadd.f32 %v4971, %v5011
    %5013 = vdwg.mxu0
    %5014 = vmatpush.msra.mxu0 %v4899
    %5015 = vmatpush.msra.mxu0 %v4897
    %5016 = vmatpush.msra.mxu0 %v4895
    %5017 = vmatpush.msra.mxu0 %v4893
    %5018 = vmatpush.msra.mxu0 %v4891
    %5019 = vmatpush.msra.mxu0 %v4889
    %5020 = vmatpush.msra.mxu0 %v4887
    %5021 = vmatpush.msra.mxu0 %v4885
    %5022 = vmatpush.msra.mxu0 %v4883
    %5023 = vmatpush.msra.mxu0 %v4881
    %5024 = vmatpush.msra.mxu0 %v4879
    %5025 = vmatpush.msra.mxu0 %v4877
    %5026 = vmatpush.msra.mxu0 %v4875
    %5027 = vmatpush.msra.mxu0 %v4873
    %5028 = vmatpush.msra.mxu0 %v4871
    %5029 = vmatpush.msra.mxu0 %v4869
    %5030 = vmatmul.f32.gmra.mxu0 %v4851
    %v5031 = vpop.f32.mrf.mxu0
    %v5032 = vadd.f32 0.0, %v5031
    %5033 = vmatmul.f32.gmra.mxu0 %v4853
    %v5034 = vpop.f32.mrf.mxu0
    %v5035 = vadd.f32 0.0, %v5034
    %5036 = vmatmul.f32.gmra.mxu0 %v4855
    %v5037 = vpop.f32.mrf.mxu0
    %v5038 = vadd.f32 0.0, %v5037
    %5039 = vmatmul.f32.gmra.mxu0 %v4857
    %v5040 = vpop.f32.mrf.mxu0
    %v5041 = vadd.f32 0.0, %v5040
    %5042 = vmatmul.f32.gmra.mxu0 %v4859
    %v5043 = vpop.f32.mrf.mxu0
    %v5044 = vadd.f32 0.0, %v5043
    %5045 = vmatmul.f32.gmra.mxu0 %v4861
    %v5046 = vpop.f32.mrf.mxu0
    %v5047 = vadd.f32 0.0, %v5046
    %5048 = vmatmul.f32.gmra.mxu0 %v4863
    %v5049 = vpop.f32.mrf.mxu0
    %v5050 = vadd.f32 0.0, %v5049
    %5051 = vmatmul.f32.gmra.mxu0 %v4865
    %v5052 = vpop.f32.mrf.mxu0
    %v5053 = vadd.f32 0.0, %v5052
    %5054 = vdwg.mxu0
    %5055 = vmatpush.msra.mxu0 %v4931
    %5056 = vmatpush.msra.mxu0 %v4929
    %5057 = vmatpush.msra.mxu0 %v4927
    %5058 = vmatpush.msra.mxu0 %v4925
    %5059 = vmatpush.msra.mxu0 %v4923
    %5060 = vmatpush.msra.mxu0 %v4921
    %5061 = vmatpush.msra.mxu0 %v4919
    %5062 = vmatpush.msra.mxu0 %v4917
    %5063 = vmatpush.msra.mxu0 %v4915
    %5064 = vmatpush.msra.mxu0 %v4913
    %5065 = vmatpush.msra.mxu0 %v4911
    %5066 = vmatpush.msra.mxu0 %v4909
    %5067 = vmatpush.msra.mxu0 %v4907
    %5068 = vmatpush.msra.mxu0 %v4905
    %5069 = vmatpush.msra.mxu0 %v4903
    %5070 = vmatpush.msra.mxu0 %v4901
    %5071 = vmatmul.f32.gmra.mxu0 %v4852
    %v5072 = vpop.f32.mrf.mxu0
    %v5073 = vadd.f32 %v5032, %v5072
    %5074 = vmatmul.f32.gmra.mxu0 %v4854
    %v5075 = vpop.f32.mrf.mxu0
    %v5076 = vadd.f32 %v5035, %v5075
    %5077 = vmatmul.f32.gmra.mxu0 %v4856
    %v5078 = vpop.f32.mrf.mxu0
    %v5079 = vadd.f32 %v5038, %v5078
    %5080 = vmatmul.f32.gmra.mxu0 %v4858
    %v5081 = vpop.f32.mrf.mxu0
    %v5082 = vadd.f32 %v5041, %v5081
    %5083 = vmatmul.f32.gmra.mxu0 %v4860
    %v5084 = vpop.f32.mrf.mxu0
    %v5085 = vadd.f32 %v5044, %v5084
    %5086 = vmatmul.f32.gmra.mxu0 %v4862
    %v5087 = vpop.f32.mrf.mxu0
    %v5088 = vadd.f32 %v5047, %v5087
    %5089 = vmatmul.f32.gmra.mxu0 %v4864
    %v5090 = vpop.f32.mrf.mxu0
    %v5091 = vadd.f32 %v5050, %v5090
    %5092 = vmatmul.f32.gmra.mxu0 %v4866
    %v5093 = vpop.f32.mrf.mxu0
    %v5094 = vadd.f32 %v5053, %v5093
    %5095 = vdwg.mxu0
    %v5096 = vadd.f32 %v4835, %v4991
    %v5097 = vadd.f32 %v4836, %v5073
    %v5098 = vadd.f32 %v4837, %v4994
    %v5099 = vadd.f32 %v4838, %v5076
    %v5100 = vadd.f32 %v4839, %v4997
    %v5101 = vadd.f32 %v4840, %v5079
    %v5102 = vadd.f32 %v4841, %v5000
    %v5103 = vadd.f32 %v4842, %v5082
    %v5104 = vadd.f32 %v4843, %v5003
    %v5105 = vadd.f32 %v4844, %v5085
    %v5106 = vadd.f32 %v4845, %v5006
    %v5107 = vadd.f32 %v4846, %v5088
    %v5108 = vadd.f32 %v4847, %v5009
    %v5109 = vadd.f32 %v4848, %v5091
    %v5110 = vadd.f32 %v4849, %v5012
    %v5111 = vadd.f32 %v4850, %v5094
    %5112 = vst [vmem:[#allocation6] sm:$0xff] %v5096
    %5113 = vst [vmem:[#allocation6 + $0x8] sm:$0xff] %v5097
    %5114 = vst [vmem:[#allocation6 + $0x10] sm:$0xff] %v5098
    %5115 = vst [vmem:[#allocation6 + $0x18] sm:$0xff] %v5099
    %5116 = vst [vmem:[#allocation6 + $0x20] sm:$0xff] %v5100
    %5117 = vst [vmem:[#allocation6 + $0x28] sm:$0xff] %v5101
    %5118 = vst [vmem:[#allocation6 + $0x30] sm:$0xff] %v5102
    %5119 = vst [vmem:[#allocation6 + $0x38] sm:$0xff] %v5103
    %5120 = vst [vmem:[#allocation6 + $0x40] sm:$0xff] %v5104
    %5121 = vst [vmem:[#allocation6 + $0x48] sm:$0xff] %v5105
    %5122 = vst [vmem:[#allocation6 + $0x50] sm:$0xff] %v5106
    %5123 = vst [vmem:[#allocation6 + $0x58] sm:$0xff] %v5107
    %5124 = vst [vmem:[#allocation6 + $0x60] sm:$0xff] %v5108
    %5125 = vst [vmem:[#allocation6 + $0x68] sm:$0xff] %v5109
    %5126 = vst [vmem:[#allocation6 + $0x70] sm:$0xff] %v5110
    %5127 = vst [vmem:[#allocation6 + $0x78] sm:$0xff] %v5111
    %v5128 = vld [vmem:[#allocation6] sm:$0xff]
    %v5129 = vld [vmem:[#allocation6 + $0x8] sm:$0xff]
    %v5130 = vld [vmem:[#allocation6 + $0x10] sm:$0xff]
    %v5131 = vld [vmem:[#allocation6 + $0x18] sm:$0xff]
    %v5132 = vld [vmem:[#allocation6 + $0x20] sm:$0xff]
    %v5133 = vld [vmem:[#allocation6 + $0x28] sm:$0xff]
    %v5134 = vld [vmem:[#allocation6 + $0x30] sm:$0xff]
    %v5135 = vld [vmem:[#allocation6 + $0x38] sm:$0xff]
    %v5136 = vld [vmem:[#allocation6 + $0x40] sm:$0xff]
    %v5137 = vld [vmem:[#allocation6 + $0x48] sm:$0xff]
    %v5138 = vld [vmem:[#allocation6 + $0x50] sm:$0xff]
    %v5139 = vld [vmem:[#allocation6 + $0x58] sm:$0xff]
    %v5140 = vld [vmem:[#allocation6 + $0x60] sm:$0xff]
    %v5141 = vld [vmem:[#allocation6 + $0x68] sm:$0xff]
    %v5142 = vld [vmem:[#allocation6 + $0x70] sm:$0xff]
    %v5143 = vld [vmem:[#allocation6 + $0x78] sm:$0xff]
    %v5144 = vld [vmem:[#allocation4 + $0x20] sm:$0xff]
    %v5145 = vld [vmem:[#allocation4 + $0x28] sm:$0xff]
    %v5146 = vld [vmem:[#allocation4 + $0x30] sm:$0xff]
    %v5147 = vld [vmem:[#allocation4 + $0x38] sm:$0xff]
    %v5148 = vld [vmem:[#allocation4 + $0x40] sm:$0xff]
    %v5149 = vld [vmem:[#allocation4 + $0x48] sm:$0xff]
    %v5150 = vld [vmem:[#allocation4 + $0x50] sm:$0xff]
    %v5151 = vld [vmem:[#allocation4 + $0x58] sm:$0xff]
    %v5152 = vld [vmem:[#allocation4 + $0x60] sm:$0xff]
    %v5153 = vld [vmem:[#allocation4 + $0x68] sm:$0xff]
    %v5154 = vld [vmem:[#allocation4 + $0x70] sm:$0xff]
    %v5155 = vld [vmem:[#allocation4 + $0x78] sm:$0xff]
    %v5156 = vld [vmem:[#allocation4 + $0x80] sm:$0xff]
    %v5157 = vld [vmem:[#allocation4 + $0x88] sm:$0xff]
    %v5158 = vld [vmem:[#allocation4 + $0x90] sm:$0xff]
    %v5159 = vld [vmem:[#allocation4 + $0x98] sm:$0xff]
    %s5160 = scalar_lea.vmem [#allocation9], 1024
    %v5161 = vld [vmem:[%s5160] sm:$0xff]
    %v5162 = vld [vmem:[%s5160 + $0x8] sm:$0xff]
    %v5163 = vld [vmem:[%s5160 + $0x10] sm:$0xff]
    %v5164 = vld [vmem:[%s5160 + $0x18] sm:$0xff]
    %v5165 = vld [vmem:[%s5160 + $0x20] sm:$0xff]
    %v5166 = vld [vmem:[%s5160 + $0x28] sm:$0xff]
    %v5167 = vld [vmem:[%s5160 + $0x30] sm:$0xff]
    %v5168 = vld [vmem:[%s5160 + $0x38] sm:$0xff]
    %v5169 = vld [vmem:[%s5160 + $0x40] sm:$0xff]
    %v5170 = vld [vmem:[%s5160 + $0x48] sm:$0xff]
    %v5171 = vld [vmem:[%s5160 + $0x50] sm:$0xff]
    %v5172 = vld [vmem:[%s5160 + $0x58] sm:$0xff]
    %v5173 = vld [vmem:[%s5160 + $0x60] sm:$0xff]
    %v5174 = vld [vmem:[%s5160 + $0x68] sm:$0xff]
    %v5175 = vld [vmem:[%s5160 + $0x70] sm:$0xff]
    %v5176 = vld [vmem:[%s5160 + $0x78] sm:$0xff]
    %v5177 = vld [vmem:[%s5160 + $0x80] sm:$0xff]
    %v5178 = vld [vmem:[%s5160 + $0x88] sm:$0xff]
    %v5179 = vld [vmem:[%s5160 + $0x90] sm:$0xff]
    %v5180 = vld [vmem:[%s5160 + $0x98] sm:$0xff]
    %v5181 = vld [vmem:[%s5160 + $0xa0] sm:$0xff]
    %v5182 = vld [vmem:[%s5160 + $0xa8] sm:$0xff]
    %v5183 = vld [vmem:[%s5160 + $0xb0] sm:$0xff]
    %v5184 = vld [vmem:[%s5160 + $0xb8] sm:$0xff]
    %v5185 = vld [vmem:[%s5160 + $0xc0] sm:$0xff]
    %v5186 = vld [vmem:[%s5160 + $0xc8] sm:$0xff]
    %v5187 = vld [vmem:[%s5160 + $0xd0] sm:$0xff]
    %v5188 = vld [vmem:[%s5160 + $0xd8] sm:$0xff]
    %v5189 = vld [vmem:[%s5160 + $0xe0] sm:$0xff]
    %v5190 = vld [vmem:[%s5160 + $0xe8] sm:$0xff]
    %v5191 = vld [vmem:[%s5160 + $0xf0] sm:$0xff]
    %v5192 = vld [vmem:[%s5160 + $0xf8] sm:$0xff]
    %v5193 = vld [vmem:[%s5160 + $0x100] sm:$0xff]
    %v5194 = vld [vmem:[%s5160 + $0x108] sm:$0xff]
    %v5195 = vld [vmem:[%s5160 + $0x110] sm:$0xff]
    %v5196 = vld [vmem:[%s5160 + $0x118] sm:$0xff]
    %v5197 = vld [vmem:[%s5160 + $0x120] sm:$0xff]
    %v5198 = vld [vmem:[%s5160 + $0x128] sm:$0xff]
    %v5199 = vld [vmem:[%s5160 + $0x130] sm:$0xff]
    %v5200 = vld [vmem:[%s5160 + $0x138] sm:$0xff]
    %v5201 = vld [vmem:[%s5160 + $0x140] sm:$0xff]
    %v5202 = vld [vmem:[%s5160 + $0x148] sm:$0xff]
    %v5203 = vld [vmem:[%s5160 + $0x150] sm:$0xff]
    %v5204 = vld [vmem:[%s5160 + $0x158] sm:$0xff]
    %v5205 = vld [vmem:[%s5160 + $0x160] sm:$0xff]
    %v5206 = vld [vmem:[%s5160 + $0x168] sm:$0xff]
    %v5207 = vld [vmem:[%s5160 + $0x170] sm:$0xff]
    %v5208 = vld [vmem:[%s5160 + $0x178] sm:$0xff]
    %v5209 = vld [vmem:[%s5160 + $0x180] sm:$0xff]
    %v5210 = vld [vmem:[%s5160 + $0x188] sm:$0xff]
    %v5211 = vld [vmem:[%s5160 + $0x190] sm:$0xff]
    %v5212 = vld [vmem:[%s5160 + $0x198] sm:$0xff]
    %v5213 = vld [vmem:[%s5160 + $0x1a0] sm:$0xff]
    %v5214 = vld [vmem:[%s5160 + $0x1a8] sm:$0xff]
    %v5215 = vld [vmem:[%s5160 + $0x1b0] sm:$0xff]
    %v5216 = vld [vmem:[%s5160 + $0x1b8] sm:$0xff]
    %v5217 = vld [vmem:[%s5160 + $0x1c0] sm:$0xff]
    %v5218 = vld [vmem:[%s5160 + $0x1c8] sm:$0xff]
    %v5219 = vld [vmem:[%s5160 + $0x1d0] sm:$0xff]
    %v5220 = vld [vmem:[%s5160 + $0x1d8] sm:$0xff]
    %v5221 = vld [vmem:[%s5160 + $0x1e0] sm:$0xff]
    %v5222 = vld [vmem:[%s5160 + $0x1e8] sm:$0xff]
    %v5223 = vld [vmem:[%s5160 + $0x1f0] sm:$0xff]
    %v5224 = vld [vmem:[%s5160 + $0x1f8] sm:$0xff]
    %5225 = vmatpush.msra.mxu0 %v5191
    %5226 = vmatpush.msra.mxu0 %v5189
    %5227 = vmatpush.msra.mxu0 %v5187
    %5228 = vmatpush.msra.mxu0 %v5185
    %5229 = vmatpush.msra.mxu0 %v5183
    %5230 = vmatpush.msra.mxu0 %v5181
    %5231 = vmatpush.msra.mxu0 %v5179
    %5232 = vmatpush.msra.mxu0 %v5177
    %5233 = vmatpush.msra.mxu0 %v5175
    %5234 = vmatpush.msra.mxu0 %v5173
    %5235 = vmatpush.msra.mxu0 %v5171
    %5236 = vmatpush.msra.mxu0 %v5169
    %5237 = vmatpush.msra.mxu0 %v5167
    %5238 = vmatpush.msra.mxu0 %v5165
    %5239 = vmatpush.msra.mxu0 %v5163
    %5240 = vmatpush.msra.mxu0 %v5161
    %5241 = vmatmul.f32.gmra.mxu0 %v5144
    %v5242 = vpop.f32.mrf.mxu0
    %v5243 = vadd.f32 0.0, %v5242
    %5244 = vmatmul.f32.gmra.mxu0 %v5146
    %v5245 = vpop.f32.mrf.mxu0
    %v5246 = vadd.f32 0.0, %v5245
    %5247 = vmatmul.f32.gmra.mxu0 %v5148
    %v5248 = vpop.f32.mrf.mxu0
    %v5249 = vadd.f32 0.0, %v5248
    %5250 = vmatmul.f32.gmra.mxu0 %v5150
    %v5251 = vpop.f32.mrf.mxu0
    %v5252 = vadd.f32 0.0, %v5251
    %5253 = vmatmul.f32.gmra.mxu0 %v5152
    %v5254 = vpop.f32.mrf.mxu0
    %v5255 = vadd.f32 0.0, %v5254
    %5256 = vmatmul.f32.gmra.mxu0 %v5154
    %v5257 = vpop.f32.mrf.mxu0
    %v5258 = vadd.f32 0.0, %v5257
    %5259 = vmatmul.f32.gmra.mxu0 %v5156
    %v5260 = vpop.f32.mrf.mxu0
    %v5261 = vadd.f32 0.0, %v5260
    %5262 = vmatmul.f32.gmra.mxu0 %v5158
    %v5263 = vpop.f32.mrf.mxu0
    %v5264 = vadd.f32 0.0, %v5263
    %5265 = vdwg.mxu0
    %5266 = vmatpush.msra.mxu0 %v5223
    %5267 = vmatpush.msra.mxu0 %v5221
    %5268 = vmatpush.msra.mxu0 %v5219
    %5269 = vmatpush.msra.mxu0 %v5217
    %5270 = vmatpush.msra.mxu0 %v5215
    %5271 = vmatpush.msra.mxu0 %v5213
    %5272 = vmatpush.msra.mxu0 %v5211
    %5273 = vmatpush.msra.mxu0 %v5209
    %5274 = vmatpush.msra.mxu0 %v5207
    %5275 = vmatpush.msra.mxu0 %v5205
    %5276 = vmatpush.msra.mxu0 %v5203
    %5277 = vmatpush.msra.mxu0 %v5201
    %5278 = vmatpush.msra.mxu0 %v5199
    %5279 = vmatpush.msra.mxu0 %v5197
    %5280 = vmatpush.msra.mxu0 %v5195
    %5281 = vmatpush.msra.mxu0 %v5193
    %5282 = vmatmul.f32.gmra.mxu0 %v5145
    %v5283 = vpop.f32.mrf.mxu0
    %v5284 = vadd.f32 %v5243, %v5283
    %5285 = vmatmul.f32.gmra.mxu0 %v5147
    %v5286 = vpop.f32.mrf.mxu0
    %v5287 = vadd.f32 %v5246, %v5286
    %5288 = vmatmul.f32.gmra.mxu0 %v5149
    %v5289 = vpop.f32.mrf.mxu0
    %v5290 = vadd.f32 %v5249, %v5289
    %5291 = vmatmul.f32.gmra.mxu0 %v5151
    %v5292 = vpop.f32.mrf.mxu0
    %v5293 = vadd.f32 %v5252, %v5292
    %5294 = vmatmul.f32.gmra.mxu0 %v5153
    %v5295 = vpop.f32.mrf.mxu0
    %v5296 = vadd.f32 %v5255, %v5295
    %5297 = vmatmul.f32.gmra.mxu0 %v5155
    %v5298 = vpop.f32.mrf.mxu0
    %v5299 = vadd.f32 %v5258, %v5298
    %5300 = vmatmul.f32.gmra.mxu0 %v5157
    %v5301 = vpop.f32.mrf.mxu0
    %v5302 = vadd.f32 %v5261, %v5301
    %5303 = vmatmul.f32.gmra.mxu0 %v5159
    %v5304 = vpop.f32.mrf.mxu0
    %v5305 = vadd.f32 %v5264, %v5304
    %5306 = vdwg.mxu0
    %5307 = vmatpush.msra.mxu0 %v5192
    %5308 = vmatpush.msra.mxu0 %v5190
    %5309 = vmatpush.msra.mxu0 %v5188
    %5310 = vmatpush.msra.mxu0 %v5186
    %5311 = vmatpush.msra.mxu0 %v5184
    %5312 = vmatpush.msra.mxu0 %v5182
    %5313 = vmatpush.msra.mxu0 %v5180
    %5314 = vmatpush.msra.mxu0 %v5178
    %5315 = vmatpush.msra.mxu0 %v5176
    %5316 = vmatpush.msra.mxu0 %v5174
    %5317 = vmatpush.msra.mxu0 %v5172
    %5318 = vmatpush.msra.mxu0 %v5170
    %5319 = vmatpush.msra.mxu0 %v5168
    %5320 = vmatpush.msra.mxu0 %v5166
    %5321 = vmatpush.msra.mxu0 %v5164
    %5322 = vmatpush.msra.mxu0 %v5162
    %5323 = vmatmul.f32.gmra.mxu0 %v5144
    %v5324 = vpop.f32.mrf.mxu0
    %v5325 = vadd.f32 0.0, %v5324
    %5326 = vmatmul.f32.gmra.mxu0 %v5146
    %v5327 = vpop.f32.mrf.mxu0
    %v5328 = vadd.f32 0.0, %v5327
    %5329 = vmatmul.f32.gmra.mxu0 %v5148
    %v5330 = vpop.f32.mrf.mxu0
    %v5331 = vadd.f32 0.0, %v5330
    %5332 = vmatmul.f32.gmra.mxu0 %v5150
    %v5333 = vpop.f32.mrf.mxu0
    %v5334 = vadd.f32 0.0, %v5333
    %5335 = vmatmul.f32.gmra.mxu0 %v5152
    %v5336 = vpop.f32.mrf.mxu0
    %v5337 = vadd.f32 0.0, %v5336
    %5338 = vmatmul.f32.gmra.mxu0 %v5154
    %v5339 = vpop.f32.mrf.mxu0
    %v5340 = vadd.f32 0.0, %v5339
    %5341 = vmatmul.f32.gmra.mxu0 %v5156
    %v5342 = vpop.f32.mrf.mxu0
    %v5343 = vadd.f32 0.0, %v5342
    %5344 = vmatmul.f32.gmra.mxu0 %v5158
    %v5345 = vpop.f32.mrf.mxu0
    %v5346 = vadd.f32 0.0, %v5345
    %5347 = vdwg.mxu0
    %5348 = vmatpush.msra.mxu0 %v5224
    %5349 = vmatpush.msra.mxu0 %v5222
    %5350 = vmatpush.msra.mxu0 %v5220
    %5351 = vmatpush.msra.mxu0 %v5218
    %5352 = vmatpush.msra.mxu0 %v5216
    %5353 = vmatpush.msra.mxu0 %v5214
    %5354 = vmatpush.msra.mxu0 %v5212
    %5355 = vmatpush.msra.mxu0 %v5210
    %5356 = vmatpush.msra.mxu0 %v5208
    %5357 = vmatpush.msra.mxu0 %v5206
    %5358 = vmatpush.msra.mxu0 %v5204
    %5359 = vmatpush.msra.mxu0 %v5202
    %5360 = vmatpush.msra.mxu0 %v5200
    %5361 = vmatpush.msra.mxu0 %v5198
    %5362 = vmatpush.msra.mxu0 %v5196
    %5363 = vmatpush.msra.mxu0 %v5194
    %5364 = vmatmul.f32.gmra.mxu0 %v5145
    %v5365 = vpop.f32.mrf.mxu0
    %v5366 = vadd.f32 %v5325, %v5365
    %5367 = vmatmul.f32.gmra.mxu0 %v5147
    %v5368 = vpop.f32.mrf.mxu0
    %v5369 = vadd.f32 %v5328, %v5368
    %5370 = vmatmul.f32.gmra.mxu0 %v5149
    %v5371 = vpop.f32.mrf.mxu0
    %v5372 = vadd.f32 %v5331, %v5371
    %5373 = vmatmul.f32.gmra.mxu0 %v5151
    %v5374 = vpop.f32.mrf.mxu0
    %v5375 = vadd.f32 %v5334, %v5374
    %5376 = vmatmul.f32.gmra.mxu0 %v5153
    %v5377 = vpop.f32.mrf.mxu0
    %v5378 = vadd.f32 %v5337, %v5377
    %5379 = vmatmul.f32.gmra.mxu0 %v5155
    %v5380 = vpop.f32.mrf.mxu0
    %v5381 = vadd.f32 %v5340, %v5380
    %5382 = vmatmul.f32.gmra.mxu0 %v5157
    %v5383 = vpop.f32.mrf.mxu0
    %v5384 = vadd.f32 %v5343, %v5383
    %5385 = vmatmul.f32.gmra.mxu0 %v5159
    %v5386 = vpop.f32.mrf.mxu0
    %v5387 = vadd.f32 %v5346, %v5386
    %5388 = vdwg.mxu0
    %v5389 = vadd.f32 %v5128, %v5284
    %v5390 = vadd.f32 %v5129, %v5366
    %v5391 = vadd.f32 %v5130, %v5287
    %v5392 = vadd.f32 %v5131, %v5369
    %v5393 = vadd.f32 %v5132, %v5290
    %v5394 = vadd.f32 %v5133, %v5372
    %v5395 = vadd.f32 %v5134, %v5293
    %v5396 = vadd.f32 %v5135, %v5375
    %v5397 = vadd.f32 %v5136, %v5296
    %v5398 = vadd.f32 %v5137, %v5378
    %v5399 = vadd.f32 %v5138, %v5299
    %v5400 = vadd.f32 %v5139, %v5381
    %v5401 = vadd.f32 %v5140, %v5302
    %v5402 = vadd.f32 %v5141, %v5384
    %v5403 = vadd.f32 %v5142, %v5305
    %v5404 = vadd.f32 %v5143, %v5387
    %5405 = vst [vmem:[#allocation6] sm:$0xff] %v5389
    %5406 = vst [vmem:[#allocation6 + $0x8] sm:$0xff] %v5390
    %5407 = vst [vmem:[#allocation6 + $0x10] sm:$0xff] %v5391
    %5408 = vst [vmem:[#allocation6 + $0x18] sm:$0xff] %v5392
    %5409 = vst [vmem:[#allocation6 + $0x20] sm:$0xff] %v5393
    %5410 = vst [vmem:[#allocation6 + $0x28] sm:$0xff] %v5394
    %5411 = vst [vmem:[#allocation6 + $0x30] sm:$0xff] %v5395
    %5412 = vst [vmem:[#allocation6 + $0x38] sm:$0xff] %v5396
    %5413 = vst [vmem:[#allocation6 + $0x40] sm:$0xff] %v5397
    %5414 = vst [vmem:[#allocation6 + $0x48] sm:$0xff] %v5398
    %5415 = vst [vmem:[#allocation6 + $0x50] sm:$0xff] %v5399
    %5416 = vst [vmem:[#allocation6 + $0x58] sm:$0xff] %v5400
    %5417 = vst [vmem:[#allocation6 + $0x60] sm:$0xff] %v5401
    %5418 = vst [vmem:[#allocation6 + $0x68] sm:$0xff] %v5402
    %5419 = vst [vmem:[#allocation6 + $0x70] sm:$0xff] %v5403
    %5420 = vst [vmem:[#allocation6 + $0x78] sm:$0xff] %v5404
    %v5421 = vld [vmem:[#allocation6] sm:$0xff]
    %v5422 = vld [vmem:[#allocation6 + $0x8] sm:$0xff]
    %v5423 = vld [vmem:[#allocation6 + $0x10] sm:$0xff]
    %v5424 = vld [vmem:[#allocation6 + $0x18] sm:$0xff]
    %v5425 = vld [vmem:[#allocation6 + $0x20] sm:$0xff]
    %v5426 = vld [vmem:[#allocation6 + $0x28] sm:$0xff]
    %v5427 = vld [vmem:[#allocation6 + $0x30] sm:$0xff]
    %v5428 = vld [vmem:[#allocation6 + $0x38] sm:$0xff]
    %v5429 = vld [vmem:[#allocation6 + $0x40] sm:$0xff]
    %v5430 = vld [vmem:[#allocation6 + $0x48] sm:$0xff]
    %v5431 = vld [vmem:[#allocation6 + $0x50] sm:$0xff]
    %v5432 = vld [vmem:[#allocation6 + $0x58] sm:$0xff]
    %v5433 = vld [vmem:[#allocation6 + $0x60] sm:$0xff]
    %v5434 = vld [vmem:[#allocation6 + $0x68] sm:$0xff]
    %v5435 = vld [vmem:[#allocation6 + $0x70] sm:$0xff]
    %v5436 = vld [vmem:[#allocation6 + $0x78] sm:$0xff]
    %v5437 = vld [vmem:[#allocation4 + $0x30] sm:$0xff]
    %v5438 = vld [vmem:[#allocation4 + $0x38] sm:$0xff]
    %v5439 = vld [vmem:[#allocation4 + $0x40] sm:$0xff]
    %v5440 = vld [vmem:[#allocation4 + $0x48] sm:$0xff]
    %v5441 = vld [vmem:[#allocation4 + $0x50] sm:$0xff]
    %v5442 = vld [vmem:[#allocation4 + $0x58] sm:$0xff]
    %v5443 = vld [vmem:[#allocation4 + $0x60] sm:$0xff]
    %v5444 = vld [vmem:[#allocation4 + $0x68] sm:$0xff]
    %v5445 = vld [vmem:[#allocation4 + $0x70] sm:$0xff]
    %v5446 = vld [vmem:[#allocation4 + $0x78] sm:$0xff]
    %v5447 = vld [vmem:[#allocation4 + $0x80] sm:$0xff]
    %v5448 = vld [vmem:[#allocation4 + $0x88] sm:$0xff]
    %v5449 = vld [vmem:[#allocation4 + $0x90] sm:$0xff]
    %v5450 = vld [vmem:[#allocation4 + $0x98] sm:$0xff]
    %v5451 = vld [vmem:[#allocation4 + $0xa0] sm:$0xff]
    %v5452 = vld [vmem:[#allocation4 + $0xa8] sm:$0xff]
    %s5453 = scalar_lea.vmem [#allocation9], 1536
    %v5454 = vld [vmem:[%s5453] sm:$0xff]
    %v5455 = vld [vmem:[%s5453 + $0x8] sm:$0xff]
    %v5456 = vld [vmem:[%s5453 + $0x10] sm:$0xff]
    %v5457 = vld [vmem:[%s5453 + $0x18] sm:$0xff]
    %v5458 = vld [vmem:[%s5453 + $0x20] sm:$0xff]
    %v5459 = vld [vmem:[%s5453 + $0x28] sm:$0xff]
    %v5460 = vld [vmem:[%s5453 + $0x30] sm:$0xff]
    %v5461 = vld [vmem:[%s5453 + $0x38] sm:$0xff]
    %v5462 = vld [vmem:[%s5453 + $0x40] sm:$0xff]
    %v5463 = vld [vmem:[%s5453 + $0x48] sm:$0xff]
    %v5464 = vld [vmem:[%s5453 + $0x50] sm:$0xff]
    %v5465 = vld [vmem:[%s5453 + $0x58] sm:$0xff]
    %v5466 = vld [vmem:[%s5453 + $0x60] sm:$0xff]
    %v5467 = vld [vmem:[%s5453 + $0x68] sm:$0xff]
    %v5468 = vld [vmem:[%s5453 + $0x70] sm:$0xff]
    %v5469 = vld [vmem:[%s5453 + $0x78] sm:$0xff]
    %v5470 = vld [vmem:[%s5453 + $0x80] sm:$0xff]
    %v5471 = vld [vmem:[%s5453 + $0x88] sm:$0xff]
    %v5472 = vld [vmem:[%s5453 + $0x90] sm:$0xff]
    %v5473 = vld [vmem:[%s5453 + $0x98] sm:$0xff]
    %v5474 = vld [vmem:[%s5453 + $0xa0] sm:$0xff]
    %v5475 = vld [vmem:[%s5453 + $0xa8] sm:$0xff]
    %v5476 = vld [vmem:[%s5453 + $0xb0] sm:$0xff]
    %v5477 = vld [vmem:[%s5453 + $0xb8] sm:$0xff]
    %v5478 = vld [vmem:[%s5453 + $0xc0] sm:$0xff]
    %v5479 = vld [vmem:[%s5453 + $0xc8] sm:$0xff]
    %v5480 = vld [vmem:[%s5453 + $0xd0] sm:$0xff]
    %v5481 = vld [vmem:[%s5453 + $0xd8] sm:$0xff]
    %v5482 = vld [vmem:[%s5453 + $0xe0] sm:$0xff]
    %v5483 = vld [vmem:[%s5453 + $0xe8] sm:$0xff]
    %v5484 = vld [vmem:[%s5453 + $0xf0] sm:$0xff]
    %v5485 = vld [vmem:[%s5453 + $0xf8] sm:$0xff]
    %v5486 = vld [vmem:[%s5453 + $0x100] sm:$0xff]
    %v5487 = vld [vmem:[%s5453 + $0x108] sm:$0xff]
    %v5488 = vld [vmem:[%s5453 + $0x110] sm:$0xff]
    %v5489 = vld [vmem:[%s5453 + $0x118] sm:$0xff]
    %v5490 = vld [vmem:[%s5453 + $0x120] sm:$0xff]
    %v5491 = vld [vmem:[%s5453 + $0x128] sm:$0xff]
    %v5492 = vld [vmem:[%s5453 + $0x130] sm:$0xff]
    %v5493 = vld [vmem:[%s5453 + $0x138] sm:$0xff]
    %v5494 = vld [vmem:[%s5453 + $0x140] sm:$0xff]
    %v5495 = vld [vmem:[%s5453 + $0x148] sm:$0xff]
    %v5496 = vld [vmem:[%s5453 + $0x150] sm:$0xff]
    %v5497 = vld [vmem:[%s5453 + $0x158] sm:$0xff]
    %v5498 = vld [vmem:[%s5453 + $0x160] sm:$0xff]
    %v5499 = vld [vmem:[%s5453 + $0x168] sm:$0xff]
    %v5500 = vld [vmem:[%s5453 + $0x170] sm:$0xff]
    %v5501 = vld [vmem:[%s5453 + $0x178] sm:$0xff]
    %v5502 = vld [vmem:[%s5453 + $0x180] sm:$0xff]
    %v5503 = vld [vmem:[%s5453 + $0x188] sm:$0xff]
    %v5504 = vld [vmem:[%s5453 + $0x190] sm:$0xff]
    %v5505 = vld [vmem:[%s5453 + $0x198] sm:$0xff]
    %v5506 = vld [vmem:[%s5453 + $0x1a0] sm:$0xff]
    %v5507 = vld [vmem:[%s5453 + $0x1a8] sm:$0xff]
    %v5508 = vld [vmem:[%s5453 + $0x1b0] sm:$0xff]
    %v5509 = vld [vmem:[%s5453 + $0x1b8] sm:$0xff]
    %v5510 = vld [vmem:[%s5453 + $0x1c0] sm:$0xff]
    %v5511 = vld [vmem:[%s5453 + $0x1c8] sm:$0xff]
    %v5512 = vld [vmem:[%s5453 + $0x1d0] sm:$0xff]
    %v5513 = vld [vmem:[%s5453 + $0x1d8] sm:$0xff]
    %v5514 = vld [vmem:[%s5453 + $0x1e0] sm:$0xff]
    %v5515 = vld [vmem:[%s5453 + $0x1e8] sm:$0xff]
    %v5516 = vld [vmem:[%s5453 + $0x1f0] sm:$0xff]
    %v5517 = vld [vmem:[%s5453 + $0x1f8] sm:$0xff]
    %5518 = vmatpush.msra.mxu0 %v5484
    %5519 = vmatpush.msra.mxu0 %v5482
    %5520 = vmatpush.msra.mxu0 %v5480
    %5521 = vmatpush.msra.mxu0 %v5478
    %5522 = vmatpush.msra.mxu0 %v5476
    %5523 = vmatpush.msra.mxu0 %v5474
    %5524 = vmatpush.msra.mxu0 %v5472
    %5525 = vmatpush.msra.mxu0 %v5470
    %5526 = vmatpush.msra.mxu0 %v5468
    %5527 = vmatpush.msra.mxu0 %v5466
    %5528 = vmatpush.msra.mxu0 %v5464
    %5529 = vmatpush.msra.mxu0 %v5462
    %5530 = vmatpush.msra.mxu0 %v5460
    %5531 = vmatpush.msra.mxu0 %v5458
    %5532 = vmatpush.msra.mxu0 %v5456
    %5533 = vmatpush.msra.mxu0 %v5454
    %5534 = vmatmul.f32.gmra.mxu0 %v5437
    %v5535 = vpop.f32.mrf.mxu0
    %v5536 = vadd.f32 0.0, %v5535
    %5537 = vmatmul.f32.gmra.mxu0 %v5439
    %v5538 = vpop.f32.mrf.mxu0
    %v5539 = vadd.f32 0.0, %v5538
    %5540 = vmatmul.f32.gmra.mxu0 %v5441
    %v5541 = vpop.f32.mrf.mxu0
    %v5542 = vadd.f32 0.0, %v5541
    %5543 = vmatmul.f32.gmra.mxu0 %v5443
    %v5544 = vpop.f32.mrf.mxu0
    %v5545 = vadd.f32 0.0, %v5544
    %5546 = vmatmul.f32.gmra.mxu0 %v5445
    %v5547 = vpop.f32.mrf.mxu0
    %v5548 = vadd.f32 0.0, %v5547
    %5549 = vmatmul.f32.gmra.mxu0 %v5447
    %v5550 = vpop.f32.mrf.mxu0
    %v5551 = vadd.f32 0.0, %v5550
    %5552 = vmatmul.f32.gmra.mxu0 %v5449
    %v5553 = vpop.f32.mrf.mxu0
    %v5554 = vadd.f32 0.0, %v5553
    %5555 = vmatmul.f32.gmra.mxu0 %v5451
    %v5556 = vpop.f32.mrf.mxu0
    %v5557 = vadd.f32 0.0, %v5556
    %5558 = vdwg.mxu0
    %5559 = vmatpush.msra.mxu0 %v5516
    %5560 = vmatpush.msra.mxu0 %v5514
    %5561 = vmatpush.msra.mxu0 %v5512
    %5562 = vmatpush.msra.mxu0 %v5510
    %5563 = vmatpush.msra.mxu0 %v5508
    %5564 = vmatpush.msra.mxu0 %v5506
    %5565 = vmatpush.msra.mxu0 %v5504
    %5566 = vmatpush.msra.mxu0 %v5502
    %5567 = vmatpush.msra.mxu0 %v5500
    %5568 = vmatpush.msra.mxu0 %v5498
    %5569 = vmatpush.msra.mxu0 %v5496
    %5570 = vmatpush.msra.mxu0 %v5494
    %5571 = vmatpush.msra.mxu0 %v5492
    %5572 = vmatpush.msra.mxu0 %v5490
    %5573 = vmatpush.msra.mxu0 %v5488
    %5574 = vmatpush.msra.mxu0 %v5486
    %5575 = vmatmul.f32.gmra.mxu0 %v5438
    %v5576 = vpop.f32.mrf.mxu0
    %v5577 = vadd.f32 %v5536, %v5576
    %5578 = vmatmul.f32.gmra.mxu0 %v5440
    %v5579 = vpop.f32.mrf.mxu0
    %v5580 = vadd.f32 %v5539, %v5579
    %5581 = vmatmul.f32.gmra.mxu0 %v5442
    %v5582 = vpop.f32.mrf.mxu0
    %v5583 = vadd.f32 %v5542, %v5582
    %5584 = vmatmul.f32.gmra.mxu0 %v5444
    %v5585 = vpop.f32.mrf.mxu0
    %v5586 = vadd.f32 %v5545, %v5585
    %5587 = vmatmul.f32.gmra.mxu0 %v5446
    %v5588 = vpop.f32.mrf.mxu0
    %v5589 = vadd.f32 %v5548, %v5588
    %5590 = vmatmul.f32.gmra.mxu0 %v5448
    %v5591 = vpop.f32.mrf.mxu0
    %v5592 = vadd.f32 %v5551, %v5591
    %5593 = vmatmul.f32.gmra.mxu0 %v5450
    %v5594 = vpop.f32.mrf.mxu0
    %v5595 = vadd.f32 %v5554, %v5594
    %5596 = vmatmul.f32.gmra.mxu0 %v5452
    %v5597 = vpop.f32.mrf.mxu0
    %v5598 = vadd.f32 %v5557, %v5597
    %5599 = vdwg.mxu0
    %5600 = vmatpush.msra.mxu0 %v5485
    %5601 = vmatpush.msra.mxu0 %v5483
    %5602 = vmatpush.msra.mxu0 %v5481
    %5603 = vmatpush.msra.mxu0 %v5479
    %5604 = vmatpush.msra.mxu0 %v5477
    %5605 = vmatpush.msra.mxu0 %v5475
    %5606 = vmatpush.msra.mxu0 %v5473
    %5607 = vmatpush.msra.mxu0 %v5471
    %5608 = vmatpush.msra.mxu0 %v5469
    %5609 = vmatpush.msra.mxu0 %v5467
    %5610 = vmatpush.msra.mxu0 %v5465
    %5611 = vmatpush.msra.mxu0 %v5463
    %5612 = vmatpush.msra.mxu0 %v5461
    %5613 = vmatpush.msra.mxu0 %v5459
    %5614 = vmatpush.msra.mxu0 %v5457
    %5615 = vmatpush.msra.mxu0 %v5455
    %5616 = vmatmul.f32.gmra.mxu0 %v5437
    %v5617 = vpop.f32.mrf.mxu0
    %v5618 = vadd.f32 0.0, %v5617
    %5619 = vmatmul.f32.gmra.mxu0 %v5439
    %v5620 = vpop.f32.mrf.mxu0
    %v5621 = vadd.f32 0.0, %v5620
    %5622 = vmatmul.f32.gmra.mxu0 %v5441
    %v5623 = vpop.f32.mrf.mxu0
    %v5624 = vadd.f32 0.0, %v5623
    %5625 = vmatmul.f32.gmra.mxu0 %v5443
    %v5626 = vpop.f32.mrf.mxu0
    %v5627 = vadd.f32 0.0, %v5626
    %5628 = vmatmul.f32.gmra.mxu0 %v5445
    %v5629 = vpop.f32.mrf.mxu0
    %v5630 = vadd.f32 0.0, %v5629
    %5631 = vmatmul.f32.gmra.mxu0 %v5447
    %v5632 = vpop.f32.mrf.mxu0
    %v5633 = vadd.f32 0.0, %v5632
    %5634 = vmatmul.f32.gmra.mxu0 %v5449
    %v5635 = vpop.f32.mrf.mxu0
    %v5636 = vadd.f32 0.0, %v5635
    %5637 = vmatmul.f32.gmra.mxu0 %v5451
    %v5638 = vpop.f32.mrf.mxu0
    %v5639 = vadd.f32 0.0, %v5638
    %5640 = vdwg.mxu0
    %5641 = vmatpush.msra.mxu0 %v5517
    %5642 = vmatpush.msra.mxu0 %v5515
    %5643 = vmatpush.msra.mxu0 %v5513
    %5644 = vmatpush.msra.mxu0 %v5511
    %5645 = vmatpush.msra.mxu0 %v5509
    %5646 = vmatpush.msra.mxu0 %v5507
    %5647 = vmatpush.msra.mxu0 %v5505
    %5648 = vmatpush.msra.mxu0 %v5503
    %5649 = vmatpush.msra.mxu0 %v5501
    %5650 = vmatpush.msra.mxu0 %v5499
    %5651 = vmatpush.msra.mxu0 %v5497
    %5652 = vmatpush.msra.mxu0 %v5495
    %5653 = vmatpush.msra.mxu0 %v5493
    %5654 = vmatpush.msra.mxu0 %v5491
    %5655 = vmatpush.msra.mxu0 %v5489
    %5656 = vmatpush.msra.mxu0 %v5487
    %5657 = vmatmul.f32.gmra.mxu0 %v5438
    %v5658 = vpop.f32.mrf.mxu0
    %v5659 = vadd.f32 %v5618, %v5658
    %5660 = vmatmul.f32.gmra.mxu0 %v5440
    %v5661 = vpop.f32.mrf.mxu0
    %v5662 = vadd.f32 %v5621, %v5661
    %5663 = vmatmul.f32.gmra.mxu0 %v5442
    %v5664 = vpop.f32.mrf.mxu0
    %v5665 = vadd.f32 %v5624, %v5664
    %5666 = vmatmul.f32.gmra.mxu0 %v5444
    %v5667 = vpop.f32.mrf.mxu0
    %v5668 = vadd.f32 %v5627, %v5667
    %5669 = vmatmul.f32.gmra.mxu0 %v5446
    %v5670 = vpop.f32.mrf.mxu0
    %v5671 = vadd.f32 %v5630, %v5670
    %5672 = vmatmul.f32.gmra.mxu0 %v5448
    %v5673 = vpop.f32.mrf.mxu0
    %v5674 = vadd.f32 %v5633, %v5673
    %5675 = vmatmul.f32.gmra.mxu0 %v5450
    %v5676 = vpop.f32.mrf.mxu0
    %v5677 = vadd.f32 %v5636, %v5676
    %5678 = vmatmul.f32.gmra.mxu0 %v5452
    %v5679 = vpop.f32.mrf.mxu0
    %v5680 = vadd.f32 %v5639, %v5679
    %5681 = vdwg.mxu0
    %v5682 = vadd.f32 %v5421, %v5577
    %v5683 = vadd.f32 %v5422, %v5659
    %v5684 = vadd.f32 %v5423, %v5580
    %v5685 = vadd.f32 %v5424, %v5662
    %v5686 = vadd.f32 %v5425, %v5583
    %v5687 = vadd.f32 %v5426, %v5665
    %v5688 = vadd.f32 %v5427, %v5586
    %v5689 = vadd.f32 %v5428, %v5668
    %v5690 = vadd.f32 %v5429, %v5589
    %v5691 = vadd.f32 %v5430, %v5671
    %v5692 = vadd.f32 %v5431, %v5592
    %v5693 = vadd.f32 %v5432, %v5674
    %v5694 = vadd.f32 %v5433, %v5595
    %v5695 = vadd.f32 %v5434, %v5677
    %v5696 = vadd.f32 %v5435, %v5598
    %v5697 = vadd.f32 %v5436, %v5680
    %5698 = vst [vmem:[#allocation6] sm:$0xff] %v5682
    %5699 = vst [vmem:[#allocation6 + $0x8] sm:$0xff] %v5683
    %5700 = vst [vmem:[#allocation6 + $0x10] sm:$0xff] %v5684
    %5701 = vst [vmem:[#allocation6 + $0x18] sm:$0xff] %v5685
    %5702 = vst [vmem:[#allocation6 + $0x20] sm:$0xff] %v5686
    %5703 = vst [vmem:[#allocation6 + $0x28] sm:$0xff] %v5687
    %5704 = vst [vmem:[#allocation6 + $0x30] sm:$0xff] %v5688
    %5705 = vst [vmem:[#allocation6 + $0x38] sm:$0xff] %v5689
    %5706 = vst [vmem:[#allocation6 + $0x40] sm:$0xff] %v5690
    %5707 = vst [vmem:[#allocation6 + $0x48] sm:$0xff] %v5691
    %5708 = vst [vmem:[#allocation6 + $0x50] sm:$0xff] %v5692
    %5709 = vst [vmem:[#allocation6 + $0x58] sm:$0xff] %v5693
    %5710 = vst [vmem:[#allocation6 + $0x60] sm:$0xff] %v5694
    %5711 = vst [vmem:[#allocation6 + $0x68] sm:$0xff] %v5695
    %5712 = vst [vmem:[#allocation6 + $0x70] sm:$0xff] %v5696
    %5713 = vst [vmem:[#allocation6 + $0x78] sm:$0xff] %v5697
    %v5714 = vld [vmem:[#allocation6] sm:$0xff]
    %v5715 = vld [vmem:[#allocation6 + $0x8] sm:$0xff]
    %v5716 = vld [vmem:[#allocation6 + $0x10] sm:$0xff]
    %v5717 = vld [vmem:[#allocation6 + $0x18] sm:$0xff]
    %v5718 = vld [vmem:[#allocation6 + $0x20] sm:$0xff]
    %v5719 = vld [vmem:[#allocation6 + $0x28] sm:$0xff]
    %v5720 = vld [vmem:[#allocation6 + $0x30] sm:$0xff]
    %v5721 = vld [vmem:[#allocation6 + $0x38] sm:$0xff]
    %v5722 = vld [vmem:[#allocation6 + $0x40] sm:$0xff]
    %v5723 = vld [vmem:[#allocation6 + $0x48] sm:$0xff]
    %v5724 = vld [vmem:[#allocation6 + $0x50] sm:$0xff]
    %v5725 = vld [vmem:[#allocation6 + $0x58] sm:$0xff]
    %v5726 = vld [vmem:[#allocation6 + $0x60] sm:$0xff]
    %v5727 = vld [vmem:[#allocation6 + $0x68] sm:$0xff]
    %v5728 = vld [vmem:[#allocation6 + $0x70] sm:$0xff]
    %v5729 = vld [vmem:[#allocation6 + $0x78] sm:$0xff]
    %v5730 = vld [vmem:[#allocation4 + $0x40] sm:$0xff]
    %v5731 = vld [vmem:[#allocation4 + $0x48] sm:$0xff]
    %v5732 = vld [vmem:[#allocation4 + $0x50] sm:$0xff]
    %v5733 = vld [vmem:[#allocation4 + $0x58] sm:$0xff]
    %v5734 = vld [vmem:[#allocation4 + $0x60] sm:$0xff]
    %v5735 = vld [vmem:[#allocation4 + $0x68] sm:$0xff]
    %v5736 = vld [vmem:[#allocation4 + $0x70] sm:$0xff]
    %v5737 = vld [vmem:[#allocation4 + $0x78] sm:$0xff]
    %v5738 = vld [vmem:[#allocation4 + $0x80] sm:$0xff]
    %v5739 = vld [vmem:[#allocation4 + $0x88] sm:$0xff]
    %v5740 = vld [vmem:[#allocation4 + $0x90] sm:$0xff]
    %v5741 = vld [vmem:[#allocation4 + $0x98] sm:$0xff]
    %v5742 = vld [vmem:[#allocation4 + $0xa0] sm:$0xff]
    %v5743 = vld [vmem:[#allocation4 + $0xa8] sm:$0xff]
    %v5744 = vld [vmem:[#allocation4 + $0xb0] sm:$0xff]
    %v5745 = vld [vmem:[#allocation4 + $0xb8] sm:$0xff]
    %s5746 = scalar_lea.vmem [#allocation9], 2048
    %v5747 = vld [vmem:[%s5746] sm:$0xff]
    %v5748 = vld [vmem:[%s5746 + $0x8] sm:$0xff]
    %v5749 = vld [vmem:[%s5746 + $0x10] sm:$0xff]
    %v5750 = vld [vmem:[%s5746 + $0x18] sm:$0xff]
    %v5751 = vld [vmem:[%s5746 + $0x20] sm:$0xff]
    %v5752 = vld [vmem:[%s5746 + $0x28] sm:$0xff]
    %v5753 = vld [vmem:[%s5746 + $0x30] sm:$0xff]
    %v5754 = vld [vmem:[%s5746 + $0x38] sm:$0xff]
    %v5755 = vld [vmem:[%s5746 + $0x40] sm:$0xff]
    %v5756 = vld [vmem:[%s5746 + $0x48] sm:$0xff]
    %v5757 = vld [vmem:[%s5746 + $0x50] sm:$0xff]
    %v5758 = vld [vmem:[%s5746 + $0x58] sm:$0xff]
    %v5759 = vld [vmem:[%s5746 + $0x60] sm:$0xff]
    %v5760 = vld [vmem:[%s5746 + $0x68] sm:$0xff]
    %v5761 = vld [vmem:[%s5746 + $0x70] sm:$0xff]
    %v5762 = vld [vmem:[%s5746 + $0x78] sm:$0xff]
    %v5763 = vld [vmem:[%s5746 + $0x80] sm:$0xff]
    %v5764 = vld [vmem:[%s5746 + $0x88] sm:$0xff]
    %v5765 = vld [vmem:[%s5746 + $0x90] sm:$0xff]
    %v5766 = vld [vmem:[%s5746 + $0x98] sm:$0xff]
    %v5767 = vld [vmem:[%s5746 + $0xa0] sm:$0xff]
    %v5768 = vld [vmem:[%s5746 + $0xa8] sm:$0xff]
    %v5769 = vld [vmem:[%s5746 + $0xb0] sm:$0xff]
    %v5770 = vld [vmem:[%s5746 + $0xb8] sm:$0xff]
    %v5771 = vld [vmem:[%s5746 + $0xc0] sm:$0xff]
    %v5772 = vld [vmem:[%s5746 + $0xc8] sm:$0xff]
    %v5773 = vld [vmem:[%s5746 + $0xd0] sm:$0xff]
    %v5774 = vld [vmem:[%s5746 + $0xd8] sm:$0xff]
    %v5775 = vld [vmem:[%s5746 + $0xe0] sm:$0xff]
    %v5776 = vld [vmem:[%s5746 + $0xe8] sm:$0xff]
    %v5777 = vld [vmem:[%s5746 + $0xf0] sm:$0xff]
    %v5778 = vld [vmem:[%s5746 + $0xf8] sm:$0xff]
    %v5779 = vld [vmem:[%s5746 + $0x100] sm:$0xff]
    %v5780 = vld [vmem:[%s5746 + $0x108] sm:$0xff]
    %v5781 = vld [vmem:[%s5746 + $0x110] sm:$0xff]
    %v5782 = vld [vmem:[%s5746 + $0x118] sm:$0xff]
    %v5783 = vld [vmem:[%s5746 + $0x120] sm:$0xff]
    %v5784 = vld [vmem:[%s5746 + $0x128] sm:$0xff]
    %v5785 = vld [vmem:[%s5746 + $0x130] sm:$0xff]
    %v5786 = vld [vmem:[%s5746 + $0x138] sm:$0xff]
    %v5787 = vld [vmem:[%s5746 + $0x140] sm:$0xff]
    %v5788 = vld [vmem:[%s5746 + $0x148] sm:$0xff]
    %v5789 = vld [vmem:[%s5746 + $0x150] sm:$0xff]
    %v5790 = vld [vmem:[%s5746 + $0x158] sm:$0xff]
    %v5791 = vld [vmem:[%s5746 + $0x160] sm:$0xff]
    %v5792 = vld [vmem:[%s5746 + $0x168] sm:$0xff]
    %v5793 = vld [vmem:[%s5746 + $0x170] sm:$0xff]
    %v5794 = vld [vmem:[%s5746 + $0x178] sm:$0xff]
    %v5795 = vld [vmem:[%s5746 + $0x180] sm:$0xff]
    %v5796 = vld [vmem:[%s5746 + $0x188] sm:$0xff]
    %v5797 = vld [vmem:[%s5746 + $0x190] sm:$0xff]
    %v5798 = vld [vmem:[%s5746 + $0x198] sm:$0xff]
    %v5799 = vld [vmem:[%s5746 + $0x1a0] sm:$0xff]
    %v5800 = vld [vmem:[%s5746 + $0x1a8] sm:$0xff]
    %v5801 = vld [vmem:[%s5746 + $0x1b0] sm:$0xff]
    %v5802 = vld [vmem:[%s5746 + $0x1b8] sm:$0xff]
    %v5803 = vld [vmem:[%s5746 + $0x1c0] sm:$0xff]
    %v5804 = vld [vmem:[%s5746 + $0x1c8] sm:$0xff]
    %v5805 = vld [vmem:[%s5746 + $0x1d0] sm:$0xff]
    %v5806 = vld [vmem:[%s5746 + $0x1d8] sm:$0xff]
    %v5807 = vld [vmem:[%s5746 + $0x1e0] sm:$0xff]
    %v5808 = vld [vmem:[%s5746 + $0x1e8] sm:$0xff]
    %v5809 = vld [vmem:[%s5746 + $0x1f0] sm:$0xff]
    %v5810 = vld [vmem:[%s5746 + $0x1f8] sm:$0xff]
    %5811 = vmatpush.msra.mxu0 %v5777
    %5812 = vmatpush.msra.mxu0 %v5775
    %5813 = vmatpush.msra.mxu0 %v5773
    %5814 = vmatpush.msra.mxu0 %v5771
    %5815 = vmatpush.msra.mxu0 %v5769
    %5816 = vmatpush.msra.mxu0 %v5767
    %5817 = vmatpush.msra.mxu0 %v5765
    %5818 = vmatpush.msra.mxu0 %v5763
    %5819 = vmatpush.msra.mxu0 %v5761
    %5820 = vmatpush.msra.mxu0 %v5759
    %5821 = vmatpush.msra.mxu0 %v5757
    %5822 = vmatpush.msra.mxu0 %v5755
    %5823 = vmatpush.msra.mxu0 %v5753
    %5824 = vmatpush.msra.mxu0 %v5751
    %5825 = vmatpush.msra.mxu0 %v5749
    %5826 = vmatpush.msra.mxu0 %v5747
    %5827 = vmatmul.f32.gmra.mxu0 %v5730
    %v5828 = vpop.f32.mrf.mxu0
    %v5829 = vadd.f32 0.0, %v5828
    %5830 = vmatmul.f32.gmra.mxu0 %v5732
    %v5831 = vpop.f32.mrf.mxu0
    %v5832 = vadd.f32 0.0, %v5831
    %5833 = vmatmul.f32.gmra.mxu0 %v5734
    %v5834 = vpop.f32.mrf.mxu0
    %v5835 = vadd.f32 0.0, %v5834
    %5836 = vmatmul.f32.gmra.mxu0 %v5736
    %v5837 = vpop.f32.mrf.mxu0
    %v5838 = vadd.f32 0.0, %v5837
    %5839 = vmatmul.f32.gmra.mxu0 %v5738
    %v5840 = vpop.f32.mrf.mxu0
    %v5841 = vadd.f32 0.0, %v5840
    %5842 = vmatmul.f32.gmra.mxu0 %v5740
    %v5843 = vpop.f32.mrf.mxu0
    %v5844 = vadd.f32 0.0, %v5843
    %5845 = vmatmul.f32.gmra.mxu0 %v5742
    %v5846 = vpop.f32.mrf.mxu0
    %v5847 = vadd.f32 0.0, %v5846
    %5848 = vmatmul.f32.gmra.mxu0 %v5744
    %v5849 = vpop.f32.mrf.mxu0
    %v5850 = vadd.f32 0.0, %v5849
    %5851 = vdwg.mxu0
    %5852 = vmatpush.msra.mxu0 %v5809
    %5853 = vmatpush.msra.mxu0 %v5807
    %5854 = vmatpush.msra.mxu0 %v5805
    %5855 = vmatpush.msra.mxu0 %v5803
    %5856 = vmatpush.msra.mxu0 %v5801
    %5857 = vmatpush.msra.mxu0 %v5799
    %5858 = vmatpush.msra.mxu0 %v5797
    %5859 = vmatpush.msra.mxu0 %v5795
    %5860 = vmatpush.msra.mxu0 %v5793
    %5861 = vmatpush.msra.mxu0 %v5791
    %5862 = vmatpush.msra.mxu0 %v5789
    %5863 = vmatpush.msra.mxu0 %v5787
    %5864 = vmatpush.msra.mxu0 %v5785
    %5865 = vmatpush.msra.mxu0 %v5783
    %5866 = vmatpush.msra.mxu0 %v5781
    %5867 = vmatpush.msra.mxu0 %v5779
    %5868 = vmatmul.f32.gmra.mxu0 %v5731
    %v5869 = vpop.f32.mrf.mxu0
    %v5870 = vadd.f32 %v5829, %v5869
    %5871 = vmatmul.f32.gmra.mxu0 %v5733
    %v5872 = vpop.f32.mrf.mxu0
    %v5873 = vadd.f32 %v5832, %v5872
    %5874 = vmatmul.f32.gmra.mxu0 %v5735
    %v5875 = vpop.f32.mrf.mxu0
    %v5876 = vadd.f32 %v5835, %v5875
    %5877 = vmatmul.f32.gmra.mxu0 %v5737
    %v5878 = vpop.f32.mrf.mxu0
    %v5879 = vadd.f32 %v5838, %v5878
    %5880 = vmatmul.f32.gmra.mxu0 %v5739
    %v5881 = vpop.f32.mrf.mxu0
    %v5882 = vadd.f32 %v5841, %v5881
    %5883 = vmatmul.f32.gmra.mxu0 %v5741
    %v5884 = vpop.f32.mrf.mxu0
    %v5885 = vadd.f32 %v5844, %v5884
    %5886 = vmatmul.f32.gmra.mxu0 %v5743
    %v5887 = vpop.f32.mrf.mxu0
    %v5888 = vadd.f32 %v5847, %v5887
    %5889 = vmatmul.f32.gmra.mxu0 %v5745
    %v5890 = vpop.f32.mrf.mxu0
    %v5891 = vadd.f32 %v5850, %v5890
    %5892 = vdwg.mxu0
    %5893 = vmatpush.msra.mxu0 %v5778
    %5894 = vmatpush.msra.mxu0 %v5776
    %5895 = vmatpush.msra.mxu0 %v5774
    %5896 = vmatpush.msra.mxu0 %v5772
    %5897 = vmatpush.msra.mxu0 %v5770
    %5898 = vmatpush.msra.mxu0 %v5768
    %5899 = vmatpush.msra.mxu0 %v5766
    %5900 = vmatpush.msra.mxu0 %v5764
    %5901 = vmatpush.msra.mxu0 %v5762
    %5902 = vmatpush.msra.mxu0 %v5760
    %5903 = vmatpush.msra.mxu0 %v5758
    %5904 = vmatpush.msra.mxu0 %v5756
    %5905 = vmatpush.msra.mxu0 %v5754
    %5906 = vmatpush.msra.mxu0 %v5752
    %5907 = vmatpush.msra.mxu0 %v5750
    %5908 = vmatpush.msra.mxu0 %v5748
    %5909 = vmatmul.f32.gmra.mxu0 %v5730
    %v5910 = vpop.f32.mrf.mxu0
    %v5911 = vadd.f32 0.0, %v5910
    %5912 = vmatmul.f32.gmra.mxu0 %v5732
    %v5913 = vpop.f32.mrf.mxu0
    %v5914 = vadd.f32 0.0, %v5913
    %5915 = vmatmul.f32.gmra.mxu0 %v5734
    %v5916 = vpop.f32.mrf.mxu0
    %v5917 = vadd.f32 0.0, %v5916
    %5918 = vmatmul.f32.gmra.mxu0 %v5736
    %v5919 = vpop.f32.mrf.mxu0
    %v5920 = vadd.f32 0.0, %v5919
    %5921 = vmatmul.f32.gmra.mxu0 %v5738
    %v5922 = vpop.f32.mrf.mxu0
    %v5923 = vadd.f32 0.0, %v5922
    %5924 = vmatmul.f32.gmra.mxu0 %v5740
    %v5925 = vpop.f32.mrf.mxu0
    %v5926 = vadd.f32 0.0, %v5925
    %5927 = vmatmul.f32.gmra.mxu0 %v5742
    %v5928 = vpop.f32.mrf.mxu0
    %v5929 = vadd.f32 0.0, %v5928
    %5930 = vmatmul.f32.gmra.mxu0 %v5744
    %v5931 = vpop.f32.mrf.mxu0
    %v5932 = vadd.f32 0.0, %v5931
    %5933 = vdwg.mxu0
    %5934 = vmatpush.msra.mxu0 %v5810
    %5935 = vmatpush.msra.mxu0 %v5808
    %5936 = vmatpush.msra.mxu0 %v5806
    %5937 = vmatpush.msra.mxu0 %v5804
    %5938 = vmatpush.msra.mxu0 %v5802
    %5939 = vmatpush.msra.mxu0 %v5800
    %5940 = vmatpush.msra.mxu0 %v5798
    %5941 = vmatpush.msra.mxu0 %v5796
    %5942 = vmatpush.msra.mxu0 %v5794
    %5943 = vmatpush.msra.mxu0 %v5792
    %5944 = vmatpush.msra.mxu0 %v5790
    %5945 = vmatpush.msra.mxu0 %v5788
    %5946 = vmatpush.msra.mxu0 %v5786
    %5947 = vmatpush.msra.mxu0 %v5784
    %5948 = vmatpush.msra.mxu0 %v5782
    %5949 = vmatpush.msra.mxu0 %v5780
    %5950 = vmatmul.f32.gmra.mxu0 %v5731
    %v5951 = vpop.f32.mrf.mxu0
    %v5952 = vadd.f32 %v5911, %v5951
    %5953 = vmatmul.f32.gmra.mxu0 %v5733
    %v5954 = vpop.f32.mrf.mxu0
    %v5955 = vadd.f32 %v5914, %v5954
    %5956 = vmatmul.f32.gmra.mxu0 %v5735
    %v5957 = vpop.f32.mrf.mxu0
    %v5958 = vadd.f32 %v5917, %v5957
    %5959 = vmatmul.f32.gmra.mxu0 %v5737
    %v5960 = vpop.f32.mrf.mxu0
    %v5961 = vadd.f32 %v5920, %v5960
    %5962 = vmatmul.f32.gmra.mxu0 %v5739
    %v5963 = vpop.f32.mrf.mxu0
    %v5964 = vadd.f32 %v5923, %v5963
    %5965 = vmatmul.f32.gmra.mxu0 %v5741
    %v5966 = vpop.f32.mrf.mxu0
    %v5967 = vadd.f32 %v5926, %v5966
    %5968 = vmatmul.f32.gmra.mxu0 %v5743
    %v5969 = vpop.f32.mrf.mxu0
    %v5970 = vadd.f32 %v5929, %v5969
    %5971 = vmatmul.f32.gmra.mxu0 %v5745
    %v5972 = vpop.f32.mrf.mxu0
    %v5973 = vadd.f32 %v5932, %v5972
    %5974 = vdwg.mxu0
    %v5975 = vadd.f32 %v5714, %v5870
    %v5976 = vadd.f32 %v5715, %v5952
    %v5977 = vadd.f32 %v5716, %v5873
    %v5978 = vadd.f32 %v5717, %v5955
    %v5979 = vadd.f32 %v5718, %v5876
    %v5980 = vadd.f32 %v5719, %v5958
    %v5981 = vadd.f32 %v5720, %v5879
    %v5982 = vadd.f32 %v5721, %v5961
    %v5983 = vadd.f32 %v5722, %v5882
    %v5984 = vadd.f32 %v5723, %v5964
    %v5985 = vadd.f32 %v5724, %v5885
    %v5986 = vadd.f32 %v5725, %v5967
    %v5987 = vadd.f32 %v5726, %v5888
    %v5988 = vadd.f32 %v5727, %v5970
    %v5989 = vadd.f32 %v5728, %v5891
    %v5990 = vadd.f32 %v5729, %v5973
    %5991 = vst [vmem:[#allocation6] sm:$0xff] %v5975
    %5992 = vst [vmem:[#allocation6 + $0x8] sm:$0xff] %v5976
    %5993 = vst [vmem:[#allocation6 + $0x10] sm:$0xff] %v5977
    %5994 = vst [vmem:[#allocation6 + $0x18] sm:$0xff] %v5978
    %5995 = vst [vmem:[#allocation6 + $0x20] sm:$0xff] %v5979
    %5996 = vst [vmem:[#allocation6 + $0x28] sm:$0xff] %v5980
    %5997 = vst [vmem:[#allocation6 + $0x30] sm:$0xff] %v5981
    %5998 = vst [vmem:[#allocation6 + $0x38] sm:$0xff] %v5982
    %5999 = vst [vmem:[#allocation6 + $0x40] sm:$0xff] %v5983
    %6000 = vst [vmem:[#allocation6 + $0x48] sm:$0xff] %v5984
    %6001 = vst [vmem:[#allocation6 + $0x50] sm:$0xff] %v5985
    %6002 = vst [vmem:[#allocation6 + $0x58] sm:$0xff] %v5986
    %6003 = vst [vmem:[#allocation6 + $0x60] sm:$0xff] %v5987
    %6004 = vst [vmem:[#allocation6 + $0x68] sm:$0xff] %v5988
    %6005 = vst [vmem:[#allocation6 + $0x70] sm:$0xff] %v5989
    %6006 = vst [vmem:[#allocation6 + $0x78] sm:$0xff] %v5990
    %v6007 = vld [vmem:[#allocation6] sm:$0xff]
    %v6008 = vld [vmem:[#allocation6 + $0x8] sm:$0xff]
    %v6009 = vld [vmem:[#allocation6 + $0x10] sm:$0xff]
    %v6010 = vld [vmem:[#allocation6 + $0x18] sm:$0xff]
    %v6011 = vld [vmem:[#allocation6 + $0x20] sm:$0xff]
    %v6012 = vld [vmem:[#allocation6 + $0x28] sm:$0xff]
    %v6013 = vld [vmem:[#allocation6 + $0x30] sm:$0xff]
    %v6014 = vld [vmem:[#allocation6 + $0x38] sm:$0xff]
    %v6015 = vld [vmem:[#allocation6 + $0x40] sm:$0xff]
    %v6016 = vld [vmem:[#allocation6 + $0x48] sm:$0xff]
    %v6017 = vld [vmem:[#allocation6 + $0x50] sm:$0xff]
    %v6018 = vld [vmem:[#allocation6 + $0x58] sm:$0xff]
    %v6019 = vld [vmem:[#allocation6 + $0x60] sm:$0xff]
    %v6020 = vld [vmem:[#allocation6 + $0x68] sm:$0xff]
    %v6021 = vld [vmem:[#allocation6 + $0x70] sm:$0xff]
    %v6022 = vld [vmem:[#allocation6 + $0x78] sm:$0xff]
    %v6023 = vmax.f32 %v6007, 0.0
    %v6024 = vmax.f32 %v6008, 0.0
    %v6025 = vmax.f32 %v6009, 0.0
    %v6026 = vmax.f32 %v6010, 0.0
    %v6027 = vmax.f32 %v6011, 0.0
    %v6028 = vmax.f32 %v6012, 0.0
    %v6029 = vmax.f32 %v6013, 0.0
    %v6030 = vmax.f32 %v6014, 0.0
    %v6031 = vmax.f32 %v6015, 0.0
    %v6032 = vmax.f32 %v6016, 0.0
    %v6033 = vmax.f32 %v6017, 0.0
    %v6034 = vmax.f32 %v6018, 0.0
    %v6035 = vmax.f32 %v6019, 0.0
    %v6036 = vmax.f32 %v6020, 0.0
    %v6037 = vmax.f32 %v6021, 0.0
    %v6038 = vmax.f32 %v6022, 0.0
    %v6039 = vld [vmem:[%s4] sm:$0xff]
    %v6040 = vld [vmem:[%s4 + $0x8] sm:$0xff]
    %v6041 = vld [vmem:[%s4 + $0x10] sm:$0xff]
    %v6042 = vld [vmem:[%s4 + $0x18] sm:$0xff]
    %v6043 = vld [vmem:[%s4 + $0x20] sm:$0xff]
    %v6044 = vld [vmem:[%s4 + $0x28] sm:$0xff]
    %v6045 = vld [vmem:[%s4 + $0x30] sm:$0xff]
    %v6046 = vld [vmem:[%s4 + $0x38] sm:$0xff]
    %v6047 = vld [vmem:[%s4 + $0x40] sm:$0xff]
    %v6048 = vld [vmem:[%s4 + $0x48] sm:$0xff]
    %v6049 = vld [vmem:[%s4 + $0x50] sm:$0xff]
    %v6050 = vld [vmem:[%s4 + $0x58] sm:$0xff]
    %v6051 = vld [vmem:[%s4 + $0x60] sm:$0xff]
    %v6052 = vld [vmem:[%s4 + $0x68] sm:$0xff]
    %v6053 = vld [vmem:[%s4 + $0x70] sm:$0xff]
    %v6054 = vld [vmem:[%s4 + $0x78] sm:$0xff]
    %v6055 = vld [vmem:[%s4 + $0x80] sm:$0xff]
    %v6056 = vld [vmem:[%s4 + $0x88] sm:$0xff]
    %v6057 = vld [vmem:[%s4 + $0x90] sm:$0xff]
    %v6058 = vld [vmem:[%s4 + $0x98] sm:$0xff]
    %v6059 = vld [vmem:[%s4 + $0xa0] sm:$0xff]
    %v6060 = vld [vmem:[%s4 + $0xa8] sm:$0xff]
    %v6061 = vld [vmem:[%s4 + $0xb0] sm:$0xff]
    %v6062 = vld [vmem:[%s4 + $0xb8] sm:$0xff]
    %v6063 = vld [vmem:[%s4 + $0xc0] sm:$0xff]
    %v6064 = vld [vmem:[%s4 + $0xc8] sm:$0xff]
    %v6065 = vld [vmem:[%s4 + $0xd0] sm:$0xff]
    %v6066 = vld [vmem:[%s4 + $0xd8] sm:$0xff]
    %v6067 = vld [vmem:[%s4 + $0xe0] sm:$0xff]
    %v6068 = vld [vmem:[%s4 + $0xe8] sm:$0xff]
    %v6069 = vld [vmem:[%s4 + $0xf0] sm:$0xff]
    %v6070 = vld [vmem:[%s4 + $0xf8] sm:$0xff]
    %6071 = vmatpush.msra.mxu0 %v6054
    %6072 = vmatpush.msra.mxu0 %v6053
    %6073 = vmatpush.msra.mxu0 %v6052
    %6074 = vmatpush.msra.mxu0 %v6051
    %6075 = vmatpush.msra.mxu0 %v6050
    %6076 = vmatpush.msra.mxu0 %v6049
    %6077 = vmatpush.msra.mxu0 %v6048
    %6078 = vmatpush.msra.mxu0 %v6047
    %6079 = vmatpush.msra.mxu0 %v6046
    %6080 = vmatpush.msra.mxu0 %v6045
    %6081 = vmatpush.msra.mxu0 %v6044
    %6082 = vmatpush.msra.mxu0 %v6043
    %6083 = vmatpush.msra.mxu0 %v6042
    %6084 = vmatpush.msra.mxu0 %v6041
    %6085 = vmatpush.msra.mxu0 %v6040
    %6086 = vmatpush.msra.mxu0 %v6039
    %6087 = vmatmul.f32.gmra.mxu0 %v6023
    %v6088 = vpop.f32.mrf.mxu0
    %v6089 = vadd.f32 0.0, %v6088
    %6090 = vmatmul.f32.gmra.mxu0 %v6025
    %v6091 = vpop.f32.mrf.mxu0
    %v6092 = vadd.f32 0.0, %v6091
    %6093 = vmatmul.f32.gmra.mxu0 %v6027
    %v6094 = vpop.f32.mrf.mxu0
    %v6095 = vadd.f32 0.0, %v6094
    %6096 = vmatmul.f32.gmra.mxu0 %v6029
    %v6097 = vpop.f32.mrf.mxu0
    %v6098 = vadd.f32 0.0, %v6097
    %6099 = vmatmul.f32.gmra.mxu0 %v6031
    %v6100 = vpop.f32.mrf.mxu0
    %v6101 = vadd.f32 0.0, %v6100
    %6102 = vmatmul.f32.gmra.mxu0 %v6033
    %v6103 = vpop.f32.mrf.mxu0
    %v6104 = vadd.f32 0.0, %v6103
    %6105 = vmatmul.f32.gmra.mxu0 %v6035
    %v6106 = vpop.f32.mrf.mxu0
    %v6107 = vadd.f32 0.0, %v6106
    %6108 = vmatmul.f32.gmra.mxu0 %v6037
    %v6109 = vpop.f32.mrf.mxu0
    %v6110 = vadd.f32 0.0, %v6109
    %6111 = vdwg.mxu0
    %6112 = vmatpush.msra.mxu0 %v6070
    %6113 = vmatpush.msra.mxu0 %v6069
    %6114 = vmatpush.msra.mxu0 %v6068
    %6115 = vmatpush.msra.mxu0 %v6067
    %6116 = vmatpush.msra.mxu0 %v6066
    %6117 = vmatpush.msra.mxu0 %v6065
    %6118 = vmatpush.msra.mxu0 %v6064
    %6119 = vmatpush.msra.mxu0 %v6063
    %6120 = vmatpush.msra.mxu0 %v6062
    %6121 = vmatpush.msra.mxu0 %v6061
    %6122 = vmatpush.msra.mxu0 %v6060
    %6123 = vmatpush.msra.mxu0 %v6059
    %6124 = vmatpush.msra.mxu0 %v6058
    %6125 = vmatpush.msra.mxu0 %v6057
    %6126 = vmatpush.msra.mxu0 %v6056
    %6127 = vmatpush.msra.mxu0 %v6055
    %6128 = vmatmul.f32.gmra.mxu0 %v6024
    %v6129 = vpop.f32.mrf.mxu0
    %v6130 = vadd.f32 %v6089, %v6129
    %6131 = vmatmul.f32.gmra.mxu0 %v6026
    %v6132 = vpop.f32.mrf.mxu0
    %v6133 = vadd.f32 %v6092, %v6132
    %6134 = vmatmul.f32.gmra.mxu0 %v6028
    %v6135 = vpop.f32.mrf.mxu0
    %v6136 = vadd.f32 %v6095, %v6135
    %6137 = vmatmul.f32.gmra.mxu0 %v6030
    %v6138 = vpop.f32.mrf.mxu0
    %v6139 = vadd.f32 %v6098, %v6138
    %6140 = vmatmul.f32.gmra.mxu0 %v6032
    %v6141 = vpop.f32.mrf.mxu0
    %v6142 = vadd.f32 %v6101, %v6141
    %6143 = vmatmul.f32.gmra.mxu0 %v6034
    %v6144 = vpop.f32.mrf.mxu0
    %v6145 = vadd.f32 %v6104, %v6144
    %6146 = vmatmul.f32.gmra.mxu0 %v6036
    %v6147 = vpop.f32.mrf.mxu0
    %v6148 = vadd.f32 %v6107, %v6147
    %6149 = vmatmul.f32.gmra.mxu0 %v6038
    %v6150 = vpop.f32.mrf.mxu0
    %v6151 = vadd.f32 %v6110, %v6150
    %6152 = vdwg.mxu0
    %v6153 = vadd.f32 %v6130, %v6133
    %v6154 = vadd.f32 %v6153, %v6136
    %v6155 = vadd.f32 %v6154, %v6139
    %v6156 = vadd.f32 %v6155, %v6142
    %v6157 = vadd.f32 %v6156, %v6145
    %v6158 = vadd.f32 %v6157, %v6148
    %v6159 = vadd.f32 %v6158, %v6151
    %v6160 = vmax.f32 %v6159, 0.0
    %v6161 = vld [vmem:[%s5] sm:$0xff]
    %v6162 = vld [vmem:[%s5 + $0x8] sm:$0xff]
    %v6163 = vld [vmem:[%s5 + $0x10] sm:$0xff]
    %v6164 = vld [vmem:[%s5 + $0x18] sm:$0xff]
    %v6165 = vld [vmem:[%s6] sm:$0x1]
    %v6167 = vperm.slane %v6165, 0
    %vm6169 = vcmask 261120
    %v6171 = vsel %vm6169, %v6160, 0
    %6173 = vmatpush.msra.mxu0 0.0
    %6174 = vmatpush.msra.mxu0 0.0
    %6175 = vmatpush.msra.mxu0 0.0
    %6176 = vmatpush.msra.mxu0 0.0
    %6177 = vmatpush.msra.mxu0 0.0
    %6178 = vmatpush.msra.mxu0 0.0
    %6179 = vmatpush.msra.mxu0 0.0
    %6180 = vmatpush.msra.mxu0 0.0
    %6181 = vmatpush.msra.mxu0 0.0
    %6182 = vmatpush.msra.mxu0 0.0
    %6183 = vmatpush.msra.mxu0 0.0
    %6184 = vmatpush.msra.mxu0 0.0
    %6185 = vmatpush.msra.mxu0 %v6164
    %6186 = vmatpush.msra.mxu0 %v6163
    %6187 = vmatpush.msra.mxu0 %v6162
    %6188 = vmatpush.msra.mxu0 %v6161
    %6189 = vmatmul.f32.gmra.mxu0 %v6171
    %v6190 = vpop.f32.mrf.mxu0
    %v6191 = vadd.f32 %v6167, %v6190
    %6192 = vdwg.mxu0
    %6193 = vst [vmem:[%s7] sm:$0xff] %v6191
    // Predicated region
    $region38: #{basic_cnn1_forward.1} parent=1 // pred_check
      _
    $region39: #{basic_cnn1_forward.1} parent=1 // pred_check_branch
      %6195 = sbr.rel (0) target = $region41
    $region40: #{basic_cnn1_forward.1} parent=1 // pred_region
      _
    $region41: #{basic_cnn1_forward.1} parent=1 // pred_fallthru
      _
    // Predicated region
    $region42: #{basic_cnn1_forward.1} parent=1 // pred_check
      _
    $region43: #{basic_cnn1_forward.1} parent=1 // pred_check_branch
      %6197 = sbr.rel (0) target = $region45
    $region44: #{basic_cnn1_forward.1} parent=1 // pred_region
      _
    $region45: #{basic_cnn1_forward.1} parent=1 // pred_fallthru
      _
    %6198 = vsyncpa [#allocation8], 1
    %6199 = vsyncpa [#allocation10], 1

</llo_original>
